<compile_context>
chip_gen: v6e
topology: v6e:2x2x1
jax: 0.10.0
libtpu: 0.0.40
codegen_flags: <defaults>
</compile_context>

<pallas_src>
import jax
import jax.numpy as jnp
from jax import lax
from jax.experimental import pallas as pl
from jax.experimental.pallas import tpu as pltpu

EMBED_DIM = 64
HIDDEN_DIM = 256
NUM_LAYERS = 1          # kernel assumes 1 layer, as in the module
VOCAB = 700             # input_dim
SUBLANE = 8             # TPU sublane granularity (batch padding target)


# ---------------------------------------------------------------------------
# Fused encoder kernel: input projection for all timesteps + LSTM recurrence.
# emb_ref: (S*B, E)  wih_ref: (E, 4H)  whh_ref: (H, 4H)  b_ref: (1, 4H)
# h_ref/c_ref: (B, H) outputs   xp_ref: (S*B, 4H) VMEM scratch
# ---------------------------------------------------------------------------
def encoder_lstm_kernel(emb_ref, wih_ref, whh_ref, b_ref, h_ref, c_ref, xp_ref):
    H = whh_ref.shape[0]
    B = h_ref.shape[0]
    S = emb_ref.shape[0] // B

    # One big input-projection matmul for every timestep at once; the bias
    # broadcast is also done exactly once (hoisted out of the recurrence).
    xp_ref[...] = (
        jnp.dot(emb_ref[...], wih_ref[...], preferred_element_type=jnp.float32)
        + b_ref[...]
    )

    h_ref[...] = jnp.zeros_like(h_ref)
    c_ref[...] = jnp.zeros_like(c_ref)

    def step(t, carry):
        base = pl.multiple_of(t * B, SUBLANE)
        gates = xp_ref[pl.ds(base, B), :] + jnp.dot(
            h_ref[...], whh_ref[...], preferred_element_type=jnp.float32)
        i = jax.nn.sigmoid(gates[:, 0:H])
        f = jax.nn.sigmoid(gates[:, H:2 * H])
        g = jnp.tanh(gates[:, 2 * H:3 * H])
        o = jax.nn.sigmoid(gates[:, 3 * H:4 * H])
        c_new = f * c_ref[...] + i * g
        c_ref[...] = c_new
        h_ref[...] = o * jnp.tanh(c_new)
        return carry

    # Short, fixed trip count -> full unroll for LLO scheduling visibility.
    lax.fori_loop(0, S, step, 0, unroll=True)


def _pad_batch(x, to):
    pad = (-x.shape[0]) % to
    if pad:
        x = jnp.pad(x, ((0, pad),) + ((0, 0),) * (x.ndim - 1))
    return x


@jax.jit
def encoder_forward(params, src):
    """PyTorch-equivalent Encoder.forward: returns (hidden, cell),
    each shaped (num_layers=1, batch, hidden)."""
    B = src.shape[0]
    E, H = EMBED_DIM, HIDDEN_DIM

    # Kernel weight layout: (in, out) so the kernel computes x @ W on the MXU.
    wih_t = params["wih"].T                                   # (E, 4H)
    whh_t = params["whh"].T                                   # (H, 4H)
    b = (params["b_ih"] + params["b_hh"]).reshape(1, 4 * H)   # folded bias

    # Embedding gather (single XLA op), pad batch to full sublanes, and lay the
    # sequence out time-major flattened to (S*B, E) for the fused projection.
    src_p = _pad_batch(src, SUBLANE)                          # (Bp, S)
    emb = jnp.take(params["emb"], src_p, axis=0)              # (Bp, S, E)
    emb = jnp.transpose(emb, (1, 0, 2)).astype(jnp.float32)   # (S, Bp, E)
    S, Bp, _ = emb.shape
    emb = emb.reshape(S * Bp, E)

    vmem = lambda: pl.BlockSpec(memory_space=pltpu.MemorySpace.VMEM)
    h, c = pl.pallas_call(
        encoder_lstm_kernel,
        out_shape=(jax.ShapeDtypeStruct((Bp, H), jnp.float32),
                   jax.ShapeDtypeStruct((Bp, H), jnp.float32)),
        in_specs=[vmem() for _ in range(4)],
        out_specs=(vmem(), vmem()),
        scratch_shapes=[pltpu.VMEM((S * Bp, 4 * H), jnp.float32)],
        compiler_params=pltpu.CompilerParams(
            vmem_limit_bytes=32 * 1024 * 1024),
    )(emb, wih_t, whh_t, b)

    # Drop batch padding, add the num_layers axis (matches PyTorch layout).
    return h[:B][None], c[:B][None]


# ---------------------------------------------------------------------------
# Pure-JAX reference (mirrors nn.LSTM semantics) for a correctness check.
# ---------------------------------------------------------------------------
def encoder_reference(params, src):
    emb = jnp.take(params["emb"], src, axis=0)                # (B, S, E)
    wih, whh = params["wih"], params["whh"]
    b = params["b_ih"] + params["b_hh"]
    B = src.shape[0]
    H = whh.shape[1]

    def cell(carry, x_t):
        h, c = carry
        gates = x_t @ wih.T + h @ whh.T + b
        i, f, g, o = jnp.split(gates, 4, axis=-1)
        c = jax.nn.sigmoid(f) * c + jax.nn.sigmoid(i) * jnp.tanh(g)
        h = jax.nn.sigmoid(o) * jnp.tanh(c)
        return (h, c), None

    init = (jnp.zeros((B, H), jnp.float32), jnp.zeros((B, H), jnp.float32))
    (h, c), _ = lax.scan(cell, init, jnp.transpose(emb, (1, 0, 2)))
    return h[None], c[None]


# ---------------------------------------------------------------------------
# Deterministic parameter init (PyTorch-shaped tensors, as in nn.LSTM)
# ---------------------------------------------------------------------------
def init_params(key):
    ks = jax.random.split(key, 5)
    E, H, V = EMBED_DIM, HIDDEN_DIM, VOCAB
    scale = 0.08
    rnd = lambda k, s: (scale * jax.random.normal(k, s)).astype(jnp.float32)
    return dict(
        emb=rnd(ks[0], (V, E)),       # nn.Embedding.weight
        wih=rnd(ks[1], (4 * H, E)),   # lstm.weight_ih_l0
        whh=rnd(ks[2], (4 * H, H)),   # lstm.weight_hh_l0
        b_ih=rnd(ks[3], (4 * H,)),
        b_hh=rnd(ks[4], (4 * H,)),
    )


if __name__ == "__main__":
    key = jax.random.PRNGKey(0)
    k_params, k_src = jax.random.split(key)
    params = init_params(k_params)

    B, SRC_LEN = 2, 8
    src = jax.random.randint(k_src, (B, SRC_LEN), 0, VOCAB, dtype=jnp.int32)

    hidden, cell = encoder_forward(params, src)
    hidden, cell = jax.block_until_ready((hidden, cell))

    assert hidden.shape == (NUM_LAYERS, B, HIDDEN_DIM)
    assert cell.shape == (NUM_LAYERS, B, HIDDEN_DIM)
    assert bool(jnp.all(jnp.isfinite(hidden))) and bool(jnp.all(jnp.isfinite(cell)))

    h_ref, c_ref = encoder_reference(params, src)
    assert bool(jnp.allclose(hidden, h_ref, atol=1e-4, rtol=1e-4))
    assert bool(jnp.allclose(cell, c_ref, atol=1e-4, rtol=1e-4))

    print("KERNEL_OK")
</pallas_src>

<mosaic_0001>
module attributes {stable_mosaic.version = 11 : i64} {
  func.func @encoder_lstm_kernel(%arg0: memref<64x64xf32, #tpu.memory_space<vmem>>, %arg1: memref<64x1024xf32, #tpu.memory_space<vmem>>, %arg2: memref<256x1024xf32, #tpu.memory_space<vmem>>, %arg3: memref<1x1024xf32, #tpu.memory_space<vmem>>, %arg4: memref<8x256xf32, #tpu.memory_space<vmem>>, %arg5: memref<8x256xf32, #tpu.memory_space<vmem>>, %arg6: memref<64x1024xf32, #tpu.memory_space<vmem>>) attributes {dimension_semantics = [], scalar_prefetch = 0 : i64, scratch_operands = 1 : i64, tpu.core_type = #tpu.core_type<tc>} {
    %c0 = arith.constant 0 : index
    %c0_0 = arith.constant 0 : index
    %0 = vector.load %arg0[%c0, %c0_0] : memref<64x64xf32, #tpu.memory_space<vmem>>, vector<64x64xf32>
    %c0_1 = arith.constant 0 : index
    %c0_2 = arith.constant 0 : index
    %1 = vector.load %arg1[%c0_1, %c0_2] : memref<64x1024xf32, #tpu.memory_space<vmem>>, vector<64x1024xf32>
    %cst = arith.constant dense<0.000000e+00> : vector<64x1024xf32>
    %2 = tpu.matmul %0, %1, %cst {dimension_numbers = #tpu.dot_dimension_numbers<[1], [0], [0], [1], [0, 0, 1, 1], [], []>} : vector<64x64xf32>, vector<64x1024xf32>, vector<64x1024xf32> -> vector<64x1024xf32>
    %c0_3 = arith.constant 0 : index
    %c0_4 = arith.constant 0 : index
    %3 = vector.load %arg3[%c0_3, %c0_4] : memref<1x1024xf32, #tpu.memory_space<vmem>>, vector<1x1024xf32>
    %4 = vector.broadcast %3 : vector<1x1024xf32> to vector<64x1024xf32>
    %5 = arith.addf %2, %4 : vector<64x1024xf32>
    %c0_5 = arith.constant 0 : index
    %c0_6 = arith.constant 0 : index
    %6 = vector.load %arg6[%c0_5, %c0_6] : memref<64x1024xf32, #tpu.memory_space<vmem>>, vector<64x1024xf32>
    tpu.vector_store %arg6[%c0_5, %c0_6], %5 {strides = array<i32>} : memref<64x1024xf32, #tpu.memory_space<vmem>>, vector<64x1024xf32>,
    %cst_7 = arith.constant 0.000000e+00 : f32
    %7 = vector.broadcast %cst_7 : f32 to vector<8x256xf32>
    %c0_8 = arith.constant 0 : index
    %c0_9 = arith.constant 0 : index
    %8 = vector.load %arg4[%c0_8, %c0_9] : memref<8x256xf32, #tpu.memory_space<vmem>>, vector<8x256xf32>
    tpu.vector_store %arg4[%c0_8, %c0_9], %7 {strides = array<i32>} : memref<8x256xf32, #tpu.memory_space<vmem>>, vector<8x256xf32>,
    %cst_10 = arith.constant 0.000000e+00 : f32
    %9 = vector.broadcast %cst_10 : f32 to vector<8x256xf32>
    %c0_11 = arith.constant 0 : index
    %c0_12 = arith.constant 0 : index
    %10 = vector.load %arg5[%c0_11, %c0_12] : memref<8x256xf32, #tpu.memory_space<vmem>>, vector<8x256xf32>
    tpu.vector_store %arg5[%c0_11, %c0_12], %9 {strides = array<i32>} : memref<8x256xf32, #tpu.memory_space<vmem>>, vector<8x256xf32>,
    %c0_i32 = arith.constant 0 : i32
    %c8_i32 = arith.constant 8 : i32
    %11 = arith.muli %c0_i32, %c8_i32 : i32
    %12 = tpu.assume_multiple %11, 8 : i32
    %13 = arith.index_cast %12 : i32 to index
    %c0_13 = arith.constant 0 : index
    %14 = vector.load %arg6[%13, %c0_13] : memref<64x1024xf32, #tpu.memory_space<vmem>>, vector<8x1024xf32>
    %c0_14 = arith.constant 0 : index
    %c0_15 = arith.constant 0 : index
    %15 = vector.load %arg4[%c0_14, %c0_15] : memref<8x256xf32, #tpu.memory_space<vmem>>, vector<8x256xf32>
    %c0_16 = arith.constant 0 : index
    %c0_17 = arith.constant 0 : index
    %16 = vector.load %arg2[%c0_16, %c0_17] : memref<256x1024xf32, #tpu.memory_space<vmem>>, vector<256x1024xf32>
    %cst_18 = arith.constant dense<0.000000e+00> : vector<8x1024xf32>
    %17 = tpu.matmul %15, %16, %cst_18 {dimension_numbers = #tpu.dot_dimension_numbers<[1], [0], [0], [1], [0, 0, 1, 1], [], []>} : vector<8x256xf32>, vector<256x1024xf32>, vector<8x1024xf32> -> vector<8x1024xf32>
    %18 = arith.addf %14, %17 : vector<8x1024xf32>
    %19 = vector.extract_strided_slice %18 {offsets = [0, 0], sizes = [8, 256], strides = [1, 1]} : vector<8x1024xf32> to vector<8x256xf32>
    %20 = arith.negf %19 : vector<8x256xf32>
    %21 = math.exp %20 : vector<8x256xf32>
    %cst_19 = arith.constant 1.000000e+00 : f32
    %22 = vector.broadcast %cst_19 : f32 to vector<8x256xf32>
    %23 = arith.addf %22, %21 : vector<8x256xf32>
    %24 = arith.divf %22, %23 : vector<8x256xf32>
    %25 = vector.extract_strided_slice %18 {offsets = [0, 256], sizes = [8, 256], strides = [1, 1]} : vector<8x1024xf32> to vector<8x256xf32>
    %26 = arith.negf %25 : vector<8x256xf32>
    %27 = math.exp %26 : vector<8x256xf32>
    %cst_20 = arith.constant 1.000000e+00 : f32
    %28 = vector.broadcast %cst_20 : f32 to vector<8x256xf32>
    %29 = arith.addf %28, %27 : vector<8x256xf32>
    %30 = arith.divf %28, %29 : vector<8x256xf32>
    %31 = vector.extract_strided_slice %18 {offsets = [0, 512], sizes = [8, 256], strides = [1, 1]} : vector<8x1024xf32> to vector<8x256xf32>
    %32 = math.tanh %31 : vector<8x256xf32>
    %33 = vector.extract_strided_slice %18 {offsets = [0, 768], sizes = [8, 256], strides = [1, 1]} : vector<8x1024xf32> to vector<8x256xf32>
    %34 = arith.negf %33 : vector<8x256xf32>
    %35 = math.exp %34 : vector<8x256xf32>
    %cst_21 = arith.constant 1.000000e+00 : f32
    %36 = vector.broadcast %cst_21 : f32 to vector<8x256xf32>
    %37 = arith.addf %36, %35 : vector<8x256xf32>
    %38 = arith.divf %36, %37 : vector<8x256xf32>
    %c0_22 = arith.constant 0 : index
    %c0_23 = arith.constant 0 : index
    %39 = vector.load %arg5[%c0_22, %c0_23] : memref<8x256xf32, #tpu.memory_space<vmem>>, vector<8x256xf32>
    %40 = arith.mulf %30, %39 : vector<8x256xf32>
    %41 = arith.mulf %24, %32 : vector<8x256xf32>
    %42 = arith.addf %40, %41 : vector<8x256xf32>
    %c0_24 = arith.constant 0 : index
    %c0_25 = arith.constant 0 : index
    %43 = vector.load %arg5[%c0_24, %c0_25] : memref<8x256xf32, #tpu.memory_space<vmem>>, vector<8x256xf32>
    tpu.vector_store %arg5[%c0_24, %c0_25], %42 {strides = array<i32>} : memref<8x256xf32, #tpu.memory_space<vmem>>, vector<8x256xf32>,
    %44 = math.tanh %42 : vector<8x256xf32>
    %45 = arith.mulf %38, %44 : vector<8x256xf32>
    %c0_26 = arith.constant 0 : index
    %c0_27 = arith.constant 0 : index
    %46 = vector.load %arg4[%c0_26, %c0_27] : memref<8x256xf32, #tpu.memory_space<vmem>>, vector<8x256xf32>
    tpu.vector_store %arg4[%c0_26, %c0_27], %45 {strides = array<i32>} : memref<8x256xf32, #tpu.memory_space<vmem>>, vector<8x256xf32>,
    %c1_i32 = arith.constant 1 : i32
    %c8_i32_28 = arith.constant 8 : i32
    %47 = arith.muli %c1_i32, %c8_i32_28 : i32
    %48 = tpu.assume_multiple %47, 8 : i32
    %49 = arith.index_cast %48 : i32 to index
    %c0_29 = arith.constant 0 : index
    %50 = vector.load %arg6[%49, %c0_29] : memref<64x1024xf32, #tpu.memory_space<vmem>>, vector<8x1024xf32>
    %c0_30 = arith.constant 0 : index
    %c0_31 = arith.constant 0 : index
    %51 = vector.load %arg4[%c0_30, %c0_31] : memref<8x256xf32, #tpu.memory_space<vmem>>, vector<8x256xf32>
    %c0_32 = arith.constant 0 : index
    %c0_33 = arith.constant 0 : index
    %52 = vector.load %arg2[%c0_32, %c0_33] : memref<256x1024xf32, #tpu.memory_space<vmem>>, vector<256x1024xf32>
    %cst_34 = arith.constant dense<0.000000e+00> : vector<8x1024xf32>
    %53 = tpu.matmul %51, %52, %cst_34 {dimension_numbers = #tpu.dot_dimension_numbers<[1], [0], [0], [1], [0, 0, 1, 1], [], []>} : vector<8x256xf32>, vector<256x1024xf32>, vector<8x1024xf32> -> vector<8x1024xf32>
    %54 = arith.addf %50, %53 : vector<8x1024xf32>
    %55 = vector.extract_strided_slice %54 {offsets = [0, 0], sizes = [8, 256], strides = [1, 1]} : vector<8x1024xf32> to vector<8x256xf32>
    %56 = arith.negf %55 : vector<8x256xf32>
    %57 = math.exp %56 : vector<8x256xf32>
    %cst_35 = arith.constant 1.000000e+00 : f32
    %58 = vector.broadcast %cst_35 : f32 to vector<8x256xf32>
    %59 = arith.addf %58, %57 : vector<8x256xf32>
    %60 = arith.divf %58, %59 : vector<8x256xf32>
    %61 = vector.extract_strided_slice %54 {offsets = [0, 256], sizes = [8, 256], strides = [1, 1]} : vector<8x1024xf32> to vector<8x256xf32>
    %62 = arith.negf %61 : vector<8x256xf32>
    %63 = math.exp %62 : vector<8x256xf32>
    %cst_36 = arith.constant 1.000000e+00 : f32
    %64 = vector.broadcast %cst_36 : f32 to vector<8x256xf32>
    %65 = arith.addf %64, %63 : vector<8x256xf32>
    %66 = arith.divf %64, %65 : vector<8x256xf32>
    %67 = vector.extract_strided_slice %54 {offsets = [0, 512], sizes = [8, 256], strides = [1, 1]} : vector<8x1024xf32> to vector<8x256xf32>
    %68 = math.tanh %67 : vector<8x256xf32>
    %69 = vector.extract_strided_slice %54 {offsets = [0, 768], sizes = [8, 256], strides = [1, 1]} : vector<8x1024xf32> to vector<8x256xf32>
    %70 = arith.negf %69 : vector<8x256xf32>
    %71 = math.exp %70 : vector<8x256xf32>
    %cst_37 = arith.constant 1.000000e+00 : f32
    %72 = vector.broadcast %cst_37 : f32 to vector<8x256xf32>
    %73 = arith.addf %72, %71 : vector<8x256xf32>
    %74 = arith.divf %72, %73 : vector<8x256xf32>
    %c0_38 = arith.constant 0 : index
    %c0_39 = arith.constant 0 : index
    %75 = vector.load %arg5[%c0_38, %c0_39] : memref<8x256xf32, #tpu.memory_space<vmem>>, vector<8x256xf32>
    %76 = arith.mulf %66, %75 : vector<8x256xf32>
    %77 = arith.mulf %60, %68 : vector<8x256xf32>
    %78 = arith.addf %76, %77 : vector<8x256xf32>
    %c0_40 = arith.constant 0 : index
    %c0_41 = arith.constant 0 : index
    %79 = vector.load %arg5[%c0_40, %c0_41] : memref<8x256xf32, #tpu.memory_space<vmem>>, vector<8x256xf32>
    tpu.vector_store %arg5[%c0_40, %c0_41], %78 {strides = array<i32>} : memref<8x256xf32, #tpu.memory_space<vmem>>, vector<8x256xf32>,
    %80 = math.tanh %78 : vector<8x256xf32>
    %81 = arith.mulf %74, %80 : vector<8x256xf32>
    %c0_42 = arith.constant 0 : index
    %c0_43 = arith.constant 0 : index
    %82 = vector.load %arg4[%c0_42, %c0_43] : memref<8x256xf32, #tpu.memory_space<vmem>>, vector<8x256xf32>
    tpu.vector_store %arg4[%c0_42, %c0_43], %81 {strides = array<i32>} : memref<8x256xf32, #tpu.memory_space<vmem>>, vector<8x256xf32>,
    %c2_i32 = arith.constant 2 : i32
    %c8_i32_44 = arith.constant 8 : i32
    %83 = arith.muli %c2_i32, %c8_i32_44 : i32
    %84 = tpu.assume_multiple %83, 8 : i32
    %85 = arith.index_cast %84 : i32 to index
    %c0_45 = arith.constant 0 : index
    %86 = vector.load %arg6[%85, %c0_45] : memref<64x1024xf32, #tpu.memory_space<vmem>>, vector<8x1024xf32>
    %c0_46 = arith.constant 0 : index
    %c0_47 = arith.constant 0 : index
    %87 = vector.load %arg4[%c0_46, %c0_47] : memref<8x256xf32, #tpu.memory_space<vmem>>, vector<8x256xf32>
    %c0_48 = arith.constant 0 : index
    %c0_49 = arith.constant 0 : index
    %88 = vector.load %arg2[%c0_48, %c0_49] : memref<256x1024xf32, #tpu.memory_space<vmem>>, vector<256x1024xf32>
    %cst_50 = arith.constant dense<0.000000e+00> : vector<8x1024xf32>
    %89 = tpu.matmul %87, %88, %cst_50 {dimension_numbers = #tpu.dot_dimension_numbers<[1], [0], [0], [1], [0, 0, 1, 1], [], []>} : vector<8x256xf32>, vector<256x1024xf32>, vector<8x1024xf32> -> vector<8x1024xf32>
    %90 = arith.addf %86, %89 : vector<8x1024xf32>
    %91 = vector.extract_strided_slice %90 {offsets = [0, 0], sizes = [8, 256], strides = [1, 1]} : vector<8x1024xf32> to vector<8x256xf32>
    %92 = arith.negf %91 : vector<8x256xf32>
    %93 = math.exp %92 : vector<8x256xf32>
    %cst_51 = arith.constant 1.000000e+00 : f32
    %94 = vector.broadcast %cst_51 : f32 to vector<8x256xf32>
    %95 = arith.addf %94, %93 : vector<8x256xf32>
    %96 = arith.divf %94, %95 : vector<8x256xf32>
    %97 = vector.extract_strided_slice %90 {offsets = [0, 256], sizes = [8, 256], strides = [1, 1]} : vector<8x1024xf32> to vector<8x256xf32>
    %98 = arith.negf %97 : vector<8x256xf32>
    %99 = math.exp %98 : vector<8x256xf32>
    %cst_52 = arith.constant 1.000000e+00 : f32
    %100 = vector.broadcast %cst_52 : f32 to vector<8x256xf32>
    %101 = arith.addf %100, %99 : vector<8x256xf32>
    %102 = arith.divf %100, %101 : vector<8x256xf32>
    %103 = vector.extract_strided_slice %90 {offsets = [0, 512], sizes = [8, 256], strides = [1, 1]} : vector<8x1024xf32> to vector<8x256xf32>
    %104 = math.tanh %103 : vector<8x256xf32>
    %105 = vector.extract_strided_slice %90 {offsets = [0, 768], sizes = [8, 256], strides = [1, 1]} : vector<8x1024xf32> to vector<8x256xf32>
    %106 = arith.negf %105 : vector<8x256xf32>
    %107 = math.exp %106 : vector<8x256xf32>
    %cst_53 = arith.constant 1.000000e+00 : f32
    %108 = vector.broadcast %cst_53 : f32 to vector<8x256xf32>
    %109 = arith.addf %108, %107 : vector<8x256xf32>
    %110 = arith.divf %108, %109 : vector<8x256xf32>
    %c0_54 = arith.constant 0 : index
    %c0_55 = arith.constant 0 : index
    %111 = vector.load %arg5[%c0_54, %c0_55] : memref<8x256xf32, #tpu.memory_space<vmem>>, vector<8x256xf32>
    %112 = arith.mulf %102, %111 : vector<8x256xf32>
    %113 = arith.mulf %96, %104 : vector<8x256xf32>
    %114 = arith.addf %112, %113 : vector<8x256xf32>
    %c0_56 = arith.constant 0 : index
    %c0_57 = arith.constant 0 : index
    %115 = vector.load %arg5[%c0_56, %c0_57] : memref<8x256xf32, #tpu.memory_space<vmem>>, vector<8x256xf32>
    tpu.vector_store %arg5[%c0_56, %c0_57], %114 {strides = array<i32>} : memref<8x256xf32, #tpu.memory_space<vmem>>, vector<8x256xf32>,
    %116 = math.tanh %114 : vector<8x256xf32>
    %117 = arith.mulf %110, %116 : vector<8x256xf32>
    %c0_58 = arith.constant 0 : index
    %c0_59 = arith.constant 0 : index
    %118 = vector.load %arg4[%c0_58, %c0_59] : memref<8x256xf32, #tpu.memory_space<vmem>>, vector<8x256xf32>
    tpu.vector_store %arg4[%c0_58, %c0_59], %117 {strides = array<i32>} : memref<8x256xf32, #tpu.memory_space<vmem>>, vector<8x256xf32>,
    %c3_i32 = arith.constant 3 : i32
    %c8_i32_60 = arith.constant 8 : i32
    %119 = arith.muli %c3_i32, %c8_i32_60 : i32
    %120 = tpu.assume_multiple %119, 8 : i32
    %121 = arith.index_cast %120 : i32 to index
    %c0_61 = arith.constant 0 : index
    %122 = vector.load %arg6[%121, %c0_61] : memref<64x1024xf32, #tpu.memory_space<vmem>>, vector<8x1024xf32>
    %c0_62 = arith.constant 0 : index
    %c0_63 = arith.constant 0 : index
    %123 = vector.load %arg4[%c0_62, %c0_63] : memref<8x256xf32, #tpu.memory_space<vmem>>, vector<8x256xf32>
    %c0_64 = arith.constant 0 : index
    %c0_65 = arith.constant 0 : index
    %124 = vector.load %arg2[%c0_64, %c0_65] : memref<256x1024xf32, #tpu.memory_space<vmem>>, vector<256x1024xf32>
    %cst_66 = arith.constant dense<0.000000e+00> : vector<8x1024xf32>
    %125 = tpu.matmul %123, %124, %cst_66 {dimension_numbers = #tpu.dot_dimension_numbers<[1], [0], [0], [1], [0, 0, 1, 1], [], []>} : vector<8x256xf32>, vector<256x1024xf32>, vector<8x1024xf32> -> vector<8x1024xf32>
    %126 = arith.addf %122, %125 : vector<8x1024xf32>
    %127 = vector.extract_strided_slice %126 {offsets = [0, 0], sizes = [8, 256], strides = [1, 1]} : vector<8x1024xf32> to vector<8x256xf32>
    %128 = arith.negf %127 : vector<8x256xf32>
    %129 = math.exp %128 : vector<8x256xf32>
    %cst_67 = arith.constant 1.000000e+00 : f32
    %130 = vector.broadcast %cst_67 : f32 to vector<8x256xf32>
    %131 = arith.addf %130, %129 : vector<8x256xf32>
    %132 = arith.divf %130, %131 : vector<8x256xf32>
    %133 = vector.extract_strided_slice %126 {offsets = [0, 256], sizes = [8, 256], strides = [1, 1]} : vector<8x1024xf32> to vector<8x256xf32>
    %134 = arith.negf %133 : vector<8x256xf32>
    %135 = math.exp %134 : vector<8x256xf32>
    %cst_68 = arith.constant 1.000000e+00 : f32
    %136 = vector.broadcast %cst_68 : f32 to vector<8x256xf32>
    %137 = arith.addf %136, %135 : vector<8x256xf32>
    %138 = arith.divf %136, %137 : vector<8x256xf32>
    %139 = vector.extract_strided_slice %126 {offsets = [0, 512], sizes = [8, 256], strides = [1, 1]} : vector<8x1024xf32> to vector<8x256xf32>
    %140 = math.tanh %139 : vector<8x256xf32>
    %141 = vector.extract_strided_slice %126 {offsets = [0, 768], sizes = [8, 256], strides = [1, 1]} : vector<8x1024xf32> to vector<8x256xf32>
    %142 = arith.negf %141 : vector<8x256xf32>
    %143 = math.exp %142 : vector<8x256xf32>
    %cst_69 = arith.constant 1.000000e+00 : f32
    %144 = vector.broadcast %cst_69 : f32 to vector<8x256xf32>
    %145 = arith.addf %144, %143 : vector<8x256xf32>
    %146 = arith.divf %144, %145 : vector<8x256xf32>
    %c0_70 = arith.constant 0 : index
    %c0_71 = arith.constant 0 : index
    %147 = vector.load %arg5[%c0_70, %c0_71] : memref<8x256xf32, #tpu.memory_space<vmem>>, vector<8x256xf32>
    %148 = arith.mulf %138, %147 : vector<8x256xf32>
    %149 = arith.mulf %132, %140 : vector<8x256xf32>
    %150 = arith.addf %148, %149 : vector<8x256xf32>
    %c0_72 = arith.constant 0 : index
    %c0_73 = arith.constant 0 : index
    %151 = vector.load %arg5[%c0_72, %c0_73] : memref<8x256xf32, #tpu.memory_space<vmem>>, vector<8x256xf32>
    tpu.vector_store %arg5[%c0_72, %c0_73], %150 {strides = array<i32>} : memref<8x256xf32, #tpu.memory_space<vmem>>, vector<8x256xf32>,
    %152 = math.tanh %150 : vector<8x256xf32>
    %153 = arith.mulf %146, %152 : vector<8x256xf32>
    %c0_74 = arith.constant 0 : index
    %c0_75 = arith.constant 0 : index
    %154 = vector.load %arg4[%c0_74, %c0_75] : memref<8x256xf32, #tpu.memory_space<vmem>>, vector<8x256xf32>
    tpu.vector_store %arg4[%c0_74, %c0_75], %153 {strides = array<i32>} : memref<8x256xf32, #tpu.memory_space<vmem>>, vector<8x256xf32>,
    %c4_i32 = arith.constant 4 : i32
    %c8_i32_76 = arith.constant 8 : i32
    %155 = arith.muli %c4_i32, %c8_i32_76 : i32
    %156 = tpu.assume_multiple %155, 8 : i32
    %157 = arith.index_cast %156 : i32 to index
    %c0_77 = arith.constant 0 : index
    %158 = vector.load %arg6[%157, %c0_77] : memref<64x1024xf32, #tpu.memory_space<vmem>>, vector<8x1024xf32>
    %c0_78 = arith.constant 0 : index
    %c0_79 = arith.constant 0 : index
    %159 = vector.load %arg4[%c0_78, %c0_79] : memref<8x256xf32, #tpu.memory_space<vmem>>, vector<8x256xf32>
    %c0_80 = arith.constant 0 : index
    %c0_81 = arith.constant 0 : index
    %160 = vector.load %arg2[%c0_80, %c0_81] : memref<256x1024xf32, #tpu.memory_space<vmem>>, vector<256x1024xf32>
    %cst_82 = arith.constant dense<0.000000e+00> : vector<8x1024xf32>
    %161 = tpu.matmul %159, %160, %cst_82 {dimension_numbers = #tpu.dot_dimension_numbers<[1], [0], [0], [1], [0, 0, 1, 1], [], []>} : vector<8x256xf32>, vector<256x1024xf32>, vector<8x1024xf32> -> vector<8x1024xf32>
    %162 = arith.addf %158, %161 : vector<8x1024xf32>
    %163 = vector.extract_strided_slice %162 {offsets = [0, 0], sizes = [8, 256], strides = [1, 1]} : vector<8x1024xf32> to vector<8x256xf32>
    %164 = arith.negf %163 : vector<8x256xf32>
    %165 = math.exp %164 : vector<8x256xf32>
    %cst_83 = arith.constant 1.000000e+00 : f32
    %166 = vector.broadcast %cst_83 : f32 to vector<8x256xf32>
    %167 = arith.addf %166, %165 : vector<8x256xf32>
    %168 = arith.divf %166, %167 : vector<8x256xf32>
    %169 = vector.extract_strided_slice %162 {offsets = [0, 256], sizes = [8, 256], strides = [1, 1]} : vector<8x1024xf32> to vector<8x256xf32>
    %170 = arith.negf %169 : vector<8x256xf32>
    %171 = math.exp %170 : vector<8x256xf32>
    %cst_84 = arith.constant 1.000000e+00 : f32
    %172 = vector.broadcast %cst_84 : f32 to vector<8x256xf32>
    %173 = arith.addf %172, %171 : vector<8x256xf32>
    %174 = arith.divf %172, %173 : vector<8x256xf32>
    %175 = vector.extract_strided_slice %162 {offsets = [0, 512], sizes = [8, 256], strides = [1, 1]} : vector<8x1024xf32> to vector<8x256xf32>
    %176 = math.tanh %175 : vector<8x256xf32>
    %177 = vector.extract_strided_slice %162 {offsets = [0, 768], sizes = [8, 256], strides = [1, 1]} : vector<8x1024xf32> to vector<8x256xf32>
    %178 = arith.negf %177 : vector<8x256xf32>
    %179 = math.exp %178 : vector<8x256xf32>
    %cst_85 = arith.constant 1.000000e+00 : f32
    %180 = vector.broadcast %cst_85 : f32 to vector<8x256xf32>
    %181 = arith.addf %180, %179 : vector<8x256xf32>
    %182 = arith.divf %180, %181 : vector<8x256xf32>
    %c0_86 = arith.constant 0 : index
    %c0_87 = arith.constant 0 : index
    %183 = vector.load %arg5[%c0_86, %c0_87] : memref<8x256xf32, #tpu.memory_space<vmem>>, vector<8x256xf32>
    %184 = arith.mulf %174, %183 : vector<8x256xf32>
    %185 = arith.mulf %168, %176 : vector<8x256xf32>
    %186 = arith.addf %184, %185 : vector<8x256xf32>
    %c0_88 = arith.constant 0 : index
    %c0_89 = arith.constant 0 : index
    %187 = vector.load %arg5[%c0_88, %c0_89] : memref<8x256xf32, #tpu.memory_space<vmem>>, vector<8x256xf32>
    tpu.vector_store %arg5[%c0_88, %c0_89], %186 {strides = array<i32>} : memref<8x256xf32, #tpu.memory_space<vmem>>, vector<8x256xf32>,
    %188 = math.tanh %186 : vector<8x256xf32>
    %189 = arith.mulf %182, %188 : vector<8x256xf32>
    %c0_90 = arith.constant 0 : index
    %c0_91 = arith.constant 0 : index
    %190 = vector.load %arg4[%c0_90, %c0_91] : memref<8x256xf32, #tpu.memory_space<vmem>>, vector<8x256xf32>
    tpu.vector_store %arg4[%c0_90, %c0_91], %189 {strides = array<i32>} : memref<8x256xf32, #tpu.memory_space<vmem>>, vector<8x256xf32>,
    %c5_i32 = arith.constant 5 : i32
    %c8_i32_92 = arith.constant 8 : i32
    %191 = arith.muli %c5_i32, %c8_i32_92 : i32
    %192 = tpu.assume_multiple %191, 8 : i32
    %193 = arith.index_cast %192 : i32 to index
    %c0_93 = arith.constant 0 : index
    %194 = vector.load %arg6[%193, %c0_93] : memref<64x1024xf32, #tpu.memory_space<vmem>>, vector<8x1024xf32>
    %c0_94 = arith.constant 0 : index
    %c0_95 = arith.constant 0 : index
    %195 = vector.load %arg4[%c0_94, %c0_95] : memref<8x256xf32, #tpu.memory_space<vmem>>, vector<8x256xf32>
    %c0_96 = arith.constant 0 : index
    %c0_97 = arith.constant 0 : index
    %196 = vector.load %arg2[%c0_96, %c0_97] : memref<256x1024xf32, #tpu.memory_space<vmem>>, vector<256x1024xf32>
    %cst_98 = arith.constant dense<0.000000e+00> : vector<8x1024xf32>
    %197 = tpu.matmul %195, %196, %cst_98 {dimension_numbers = #tpu.dot_dimension_numbers<[1], [0], [0], [1], [0, 0, 1, 1], [], []>} : vector<8x256xf32>, vector<256x1024xf32>, vector<8x1024xf32> -> vector<8x1024xf32>
    %198 = arith.addf %194, %197 : vector<8x1024xf32>
    %199 = vector.extract_strided_slice %198 {offsets = [0, 0], sizes = [8, 256], strides = [1, 1]} : vector<8x1024xf32> to vector<8x256xf32>
    %200 = arith.negf %199 : vector<8x256xf32>
    %201 = math.exp %200 : vector<8x256xf32>
    %cst_99 = arith.constant 1.000000e+00 : f32
    %202 = vector.broadcast %cst_99 : f32 to vector<8x256xf32>
    %203 = arith.addf %202, %201 : vector<8x256xf32>
    %204 = arith.divf %202, %203 : vector<8x256xf32>
    %205 = vector.extract_strided_slice %198 {offsets = [0, 256], sizes = [8, 256], strides = [1, 1]} : vector<8x1024xf32> to vector<8x256xf32>
    %206 = arith.negf %205 : vector<8x256xf32>
    %207 = math.exp %206 : vector<8x256xf32>
    %cst_100 = arith.constant 1.000000e+00 : f32
    %208 = vector.broadcast %cst_100 : f32 to vector<8x256xf32>
    %209 = arith.addf %208, %207 : vector<8x256xf32>
    %210 = arith.divf %208, %209 : vector<8x256xf32>
    %211 = vector.extract_strided_slice %198 {offsets = [0, 512], sizes = [8, 256], strides = [1, 1]} : vector<8x1024xf32> to vector<8x256xf32>
    %212 = math.tanh %211 : vector<8x256xf32>
    %213 = vector.extract_strided_slice %198 {offsets = [0, 768], sizes = [8, 256], strides = [1, 1]} : vector<8x1024xf32> to vector<8x256xf32>
    %214 = arith.negf %213 : vector<8x256xf32>
    %215 = math.exp %214 : vector<8x256xf32>
    %cst_101 = arith.constant 1.000000e+00 : f32
    %216 = vector.broadcast %cst_101 : f32 to vector<8x256xf32>
    %217 = arith.addf %216, %215 : vector<8x256xf32>
    %218 = arith.divf %216, %217 : vector<8x256xf32>
    %c0_102 = arith.constant 0 : index
    %c0_103 = arith.constant 0 : index
    %219 = vector.load %arg5[%c0_102, %c0_103] : memref<8x256xf32, #tpu.memory_space<vmem>>, vector<8x256xf32>
    %220 = arith.mulf %210, %219 : vector<8x256xf32>
    %221 = arith.mulf %204, %212 : vector<8x256xf32>
    %222 = arith.addf %220, %221 : vector<8x256xf32>
    %c0_104 = arith.constant 0 : index
    %c0_105 = arith.constant 0 : index
    %223 = vector.load %arg5[%c0_104, %c0_105] : memref<8x256xf32, #tpu.memory_space<vmem>>, vector<8x256xf32>
    tpu.vector_store %arg5[%c0_104, %c0_105], %222 {strides = array<i32>} : memref<8x256xf32, #tpu.memory_space<vmem>>, vector<8x256xf32>,
    %224 = math.tanh %222 : vector<8x256xf32>
    %225 = arith.mulf %218, %224 : vector<8x256xf32>
    %c0_106 = arith.constant 0 : index
    %c0_107 = arith.constant 0 : index
    %226 = vector.load %arg4[%c0_106, %c0_107] : memref<8x256xf32, #tpu.memory_space<vmem>>, vector<8x256xf32>
    tpu.vector_store %arg4[%c0_106, %c0_107], %225 {strides = array<i32>} : memref<8x256xf32, #tpu.memory_space<vmem>>, vector<8x256xf32>,
    %c6_i32 = arith.constant 6 : i32
    %c8_i32_108 = arith.constant 8 : i32
    %227 = arith.muli %c6_i32, %c8_i32_108 : i32
    %228 = tpu.assume_multiple %227, 8 : i32
    %229 = arith.index_cast %228 : i32 to index
    %c0_109 = arith.constant 0 : index
    %230 = vector.load %arg6[%229, %c0_109] : memref<64x1024xf32, #tpu.memory_space<vmem>>, vector<8x1024xf32>
    %c0_110 = arith.constant 0 : index
    %c0_111 = arith.constant 0 : index
    %231 = vector.load %arg4[%c0_110, %c0_111] : memref<8x256xf32, #tpu.memory_space<vmem>>, vector<8x256xf32>
    %c0_112 = arith.constant 0 : index
    %c0_113 = arith.constant 0 : index
    %232 = vector.load %arg2[%c0_112, %c0_113] : memref<256x1024xf32, #tpu.memory_space<vmem>>, vector<256x1024xf32>
    %cst_114 = arith.constant dense<0.000000e+00> : vector<8x1024xf32>
    %233 = tpu.matmul %231, %232, %cst_114 {dimension_numbers = #tpu.dot_dimension_numbers<[1], [0], [0], [1], [0, 0, 1, 1], [], []>} : vector<8x256xf32>, vector<256x1024xf32>, vector<8x1024xf32> -> vector<8x1024xf32>
    %234 = arith.addf %230, %233 : vector<8x1024xf32>
    %235 = vector.extract_strided_slice %234 {offsets = [0, 0], sizes = [8, 256], strides = [1, 1]} : vector<8x1024xf32> to vector<8x256xf32>
    %236 = arith.negf %235 : vector<8x256xf32>
    %237 = math.exp %236 : vector<8x256xf32>
    %cst_115 = arith.constant 1.000000e+00 : f32
    %238 = vector.broadcast %cst_115 : f32 to vector<8x256xf32>
    %239 = arith.addf %238, %237 : vector<8x256xf32>
    %240 = arith.divf %238, %239 : vector<8x256xf32>
    %241 = vector.extract_strided_slice %234 {offsets = [0, 256], sizes = [8, 256], strides = [1, 1]} : vector<8x1024xf32> to vector<8x256xf32>
    %242 = arith.negf %241 : vector<8x256xf32>
    %243 = math.exp %242 : vector<8x256xf32>
    %cst_116 = arith.constant 1.000000e+00 : f32
    %244 = vector.broadcast %cst_116 : f32 to vector<8x256xf32>
    %245 = arith.addf %244, %243 : vector<8x256xf32>
    %246 = arith.divf %244, %245 : vector<8x256xf32>
    %247 = vector.extract_strided_slice %234 {offsets = [0, 512], sizes = [8, 256], strides = [1, 1]} : vector<8x1024xf32> to vector<8x256xf32>
    %248 = math.tanh %247 : vector<8x256xf32>
    %249 = vector.extract_strided_slice %234 {offsets = [0, 768], sizes = [8, 256], strides = [1, 1]} : vector<8x1024xf32> to vector<8x256xf32>
    %250 = arith.negf %249 : vector<8x256xf32>
    %251 = math.exp %250 : vector<8x256xf32>
    %cst_117 = arith.constant 1.000000e+00 : f32
    %252 = vector.broadcast %cst_117 : f32 to vector<8x256xf32>
    %253 = arith.addf %252, %251 : vector<8x256xf32>
    %254 = arith.divf %252, %253 : vector<8x256xf32>
    %c0_118 = arith.constant 0 : index
    %c0_119 = arith.constant 0 : index
    %255 = vector.load %arg5[%c0_118, %c0_119] : memref<8x256xf32, #tpu.memory_space<vmem>>, vector<8x256xf32>
    %256 = arith.mulf %246, %255 : vector<8x256xf32>
    %257 = arith.mulf %240, %248 : vector<8x256xf32>
    %258 = arith.addf %256, %257 : vector<8x256xf32>
    %c0_120 = arith.constant 0 : index
    %c0_121 = arith.constant 0 : index
    %259 = vector.load %arg5[%c0_120, %c0_121] : memref<8x256xf32, #tpu.memory_space<vmem>>, vector<8x256xf32>
    tpu.vector_store %arg5[%c0_120, %c0_121], %258 {strides = array<i32>} : memref<8x256xf32, #tpu.memory_space<vmem>>, vector<8x256xf32>,
    %260 = math.tanh %258 : vector<8x256xf32>
    %261 = arith.mulf %254, %260 : vector<8x256xf32>
    %c0_122 = arith.constant 0 : index
    %c0_123 = arith.constant 0 : index
    %262 = vector.load %arg4[%c0_122, %c0_123] : memref<8x256xf32, #tpu.memory_space<vmem>>, vector<8x256xf32>
    tpu.vector_store %arg4[%c0_122, %c0_123], %261 {strides = array<i32>} : memref<8x256xf32, #tpu.memory_space<vmem>>, vector<8x256xf32>,
    %c7_i32 = arith.constant 7 : i32
    %c8_i32_124 = arith.constant 8 : i32
    %263 = arith.muli %c7_i32, %c8_i32_124 : i32
    %264 = tpu.assume_multiple %263, 8 : i32
    %265 = arith.index_cast %264 : i32 to index
    %c0_125 = arith.constant 0 : index
    %266 = vector.load %arg6[%265, %c0_125] : memref<64x1024xf32, #tpu.memory_space<vmem>>, vector<8x1024xf32>
    %c0_126 = arith.constant 0 : index
    %c0_127 = arith.constant 0 : index
    %267 = vector.load %arg4[%c0_126, %c0_127] : memref<8x256xf32, #tpu.memory_space<vmem>>, vector<8x256xf32>
    %c0_128 = arith.constant 0 : index
    %c0_129 = arith.constant 0 : index
    %268 = vector.load %arg2[%c0_128, %c0_129] : memref<256x1024xf32, #tpu.memory_space<vmem>>, vector<256x1024xf32>
    %cst_130 = arith.constant dense<0.000000e+00> : vector<8x1024xf32>
    %269 = tpu.matmul %267, %268, %cst_130 {dimension_numbers = #tpu.dot_dimension_numbers<[1], [0], [0], [1], [0, 0, 1, 1], [], []>} : vector<8x256xf32>, vector<256x1024xf32>, vector<8x1024xf32> -> vector<8x1024xf32>
    %270 = arith.addf %266, %269 : vector<8x1024xf32>
    %271 = vector.extract_strided_slice %270 {offsets = [0, 0], sizes = [8, 256], strides = [1, 1]} : vector<8x1024xf32> to vector<8x256xf32>
    %272 = arith.negf %271 : vector<8x256xf32>
    %273 = math.exp %272 : vector<8x256xf32>
    %cst_131 = arith.constant 1.000000e+00 : f32
    %274 = vector.broadcast %cst_131 : f32 to vector<8x256xf32>
    %275 = arith.addf %274, %273 : vector<8x256xf32>
    %276 = arith.divf %274, %275 : vector<8x256xf32>
    %277 = vector.extract_strided_slice %270 {offsets = [0, 256], sizes = [8, 256], strides = [1, 1]} : vector<8x1024xf32> to vector<8x256xf32>
    %278 = arith.negf %277 : vector<8x256xf32>
    %279 = math.exp %278 : vector<8x256xf32>
    %cst_132 = arith.constant 1.000000e+00 : f32
    %280 = vector.broadcast %cst_132 : f32 to vector<8x256xf32>
    %281 = arith.addf %280, %279 : vector<8x256xf32>
    %282 = arith.divf %280, %281 : vector<8x256xf32>
    %283 = vector.extract_strided_slice %270 {offsets = [0, 512], sizes = [8, 256], strides = [1, 1]} : vector<8x1024xf32> to vector<8x256xf32>
    %284 = math.tanh %283 : vector<8x256xf32>
    %285 = vector.extract_strided_slice %270 {offsets = [0, 768], sizes = [8, 256], strides = [1, 1]} : vector<8x1024xf32> to vector<8x256xf32>
    %286 = arith.negf %285 : vector<8x256xf32>
    %287 = math.exp %286 : vector<8x256xf32>
    %cst_133 = arith.constant 1.000000e+00 : f32
    %288 = vector.broadcast %cst_133 : f32 to vector<8x256xf32>
    %289 = arith.addf %288, %287 : vector<8x256xf32>
    %290 = arith.divf %288, %289 : vector<8x256xf32>
    %c0_134 = arith.constant 0 : index
    %c0_135 = arith.constant 0 : index
    %291 = vector.load %arg5[%c0_134, %c0_135] : memref<8x256xf32, #tpu.memory_space<vmem>>, vector<8x256xf32>
    %292 = arith.mulf %282, %291 : vector<8x256xf32>
    %293 = arith.mulf %276, %284 : vector<8x256xf32>
    %294 = arith.addf %292, %293 : vector<8x256xf32>
    %c0_136 = arith.constant 0 : index
    %c0_137 = arith.constant 0 : index
    %295 = vector.load %arg5[%c0_136, %c0_137] : memref<8x256xf32, #tpu.memory_space<vmem>>, vector<8x256xf32>
    tpu.vector_store %arg5[%c0_136, %c0_137], %294 {strides = array<i32>} : memref<8x256xf32, #tpu.memory_space<vmem>>, vector<8x256xf32>,
    %296 = math.tanh %294 : vector<8x256xf32>
    %297 = arith.mulf %290, %296 : vector<8x256xf32>
    %c0_138 = arith.constant 0 : index
    %c0_139 = arith.constant 0 : index
    %298 = vector.load %arg4[%c0_138, %c0_139] : memref<8x256xf32, #tpu.memory_space<vmem>>, vector<8x256xf32>
    tpu.vector_store %arg4[%c0_138, %c0_139], %297 {strides = array<i32>} : memref<8x256xf32, #tpu.memory_space<vmem>>, vector<8x256xf32>,
    %c8_i32_140 = arith.constant 8 : i32
    return
  }
}

</mosaic_0001>

<llo_original>
// kernel: encoder_forward.1
$region0: #{encoder_forward.1}
  #allocation0 [shape = 'u32[]', space=smem, size = 0x4, offset = 0x4, fixed_abs, tag = 'smem constant byte address 0x4 - core index']
  #allocation1 [shape = 'u32[144,128]{1,0:T(1,128)}', space=vmem, size = 0x12000, scoped, tag = 'internal scratch']
  #allocation2 [shape = 'f32[64,1024]{1,0:T(8,128)}', space=vmem, size = 0x40000, scoped, tag = 'scratch operand']
  %s0 = inlined_call_operand.vmem [shape: f32[64,64], index: 0, kind: input, shape index: {}]
  %s1 = inlined_call_operand.vmem [shape: f32[64,1024], index: 1, kind: input, shape index: {}]
  %s2 = inlined_call_operand.vmem [shape: f32[256,1024], index: 2, kind: input, shape index: {}]
  %s3 = inlined_call_operand.vmem [shape: f32[1,1024], index: 3, kind: input, shape index: {}]
  %s4 = inlined_call_operand.vmem [shape: f32[8,256], index: 4, kind: output, shape index: {0}]
  %s5 = inlined_call_operand.vmem [shape: f32[8,256], index: 5, kind: output, shape index: {1}]
  %6 = xla_tuple %s4, %s5
  %s7 = sld [smem:[#allocation0]]
  $region34: #{encoder_forward.1} parent=0
    _
  %s9 = ssub.s32 1, %s7
  %s10 = scalar_select 0, %s9, %s7
  // Predicated region
  $region2: #{encoder_forward.1} parent=0 // pred_check
    _
  $region3: #{encoder_forward.1} parent=0 // pred_check_branch
    %12 = sbr.rel (0) target = $region5
  $region4: #{encoder_forward.1} parent=0 // pred_region
    _
  $region5: #{encoder_forward.1} parent=0 // pred_fallthru
    _
  // Predicated region
  $region6: #{encoder_forward.1} parent=0 // pred_check
    _
  $region7: #{encoder_forward.1} parent=0 // pred_check_branch
    %14 = sbr.rel (0) target = $region9
  $region8: #{encoder_forward.1} parent=0 // pred_region
    _
  $region9: #{encoder_forward.1} parent=0 // pred_fallthru
    _
  // Predicated region
  $region10: #{encoder_forward.1} parent=0 // pred_check
    _
  $region11: #{encoder_forward.1} parent=0 // pred_check_branch
    %16 = sbr.rel (0) target = $region13
  $region12: #{encoder_forward.1} parent=0 // pred_region
    _
  $region13: #{encoder_forward.1} parent=0 // pred_fallthru
    _
  // Predicated region
  $region14: #{encoder_forward.1} parent=0 // pred_check
    _
  $region15: #{encoder_forward.1} parent=0 // pred_check_branch
    %18 = sbr.rel (0) target = $region17
  $region16: #{encoder_forward.1} parent=0 // pred_region
    _
  $region17: #{encoder_forward.1} parent=0 // pred_fallthru
    _
  %v19 = vld [vmem:[%s0] sm:$0xff]
  %v20 = vld [vmem:[%s0 + $0x8] sm:$0xff]
  %v21 = vld [vmem:[%s0 + $0x10] sm:$0xff]
  %v22 = vld [vmem:[%s0 + $0x18] sm:$0xff]
  %v23 = vld [vmem:[%s0 + $0x20] sm:$0xff]
  %v24 = vld [vmem:[%s0 + $0x28] sm:$0xff]
  %v25 = vld [vmem:[%s0 + $0x30] sm:$0xff]
  %v26 = vld [vmem:[%s0 + $0x38] sm:$0xff]
  %v27 = vld [vmem:[%s1] sm:$0xff]
  %v28 = vld [vmem:[%s1 + $0x8] sm:$0xff]
  %v29 = vld [vmem:[%s1 + $0x10] sm:$0xff]
  %v30 = vld [vmem:[%s1 + $0x18] sm:$0xff]
  %v31 = vld [vmem:[%s1 + $0x20] sm:$0xff]
  %v32 = vld [vmem:[%s1 + $0x28] sm:$0xff]
  %v33 = vld [vmem:[%s1 + $0x30] sm:$0xff]
  %v34 = vld [vmem:[%s1 + $0x38] sm:$0xff]
  %v35 = vld [vmem:[%s1 + $0x40] sm:$0xff]
  %v36 = vld [vmem:[%s1 + $0x48] sm:$0xff]
  %v37 = vld [vmem:[%s1 + $0x50] sm:$0xff]
  %v38 = vld [vmem:[%s1 + $0x58] sm:$0xff]
  %v39 = vld [vmem:[%s1 + $0x60] sm:$0xff]
  %v40 = vld [vmem:[%s1 + $0x68] sm:$0xff]
  %v41 = vld [vmem:[%s1 + $0x70] sm:$0xff]
  %v42 = vld [vmem:[%s1 + $0x78] sm:$0xff]
  %v43 = vld [vmem:[%s1 + $0x80] sm:$0xff]
  %v44 = vld [vmem:[%s1 + $0x88] sm:$0xff]
  %v45 = vld [vmem:[%s1 + $0x90] sm:$0xff]
  %v46 = vld [vmem:[%s1 + $0x98] sm:$0xff]
  %v47 = vld [vmem:[%s1 + $0xa0] sm:$0xff]
  %v48 = vld [vmem:[%s1 + $0xa8] sm:$0xff]
  %v49 = vld [vmem:[%s1 + $0xb0] sm:$0xff]
  %v50 = vld [vmem:[%s1 + $0xb8] sm:$0xff]
  %v51 = vld [vmem:[%s1 + $0xc0] sm:$0xff]
  %v52 = vld [vmem:[%s1 + $0xc8] sm:$0xff]
  %v53 = vld [vmem:[%s1 + $0xd0] sm:$0xff]
  %v54 = vld [vmem:[%s1 + $0xd8] sm:$0xff]
  %v55 = vld [vmem:[%s1 + $0xe0] sm:$0xff]
  %v56 = vld [vmem:[%s1 + $0xe8] sm:$0xff]
  %v57 = vld [vmem:[%s1 + $0xf0] sm:$0xff]
  %v58 = vld [vmem:[%s1 + $0xf8] sm:$0xff]
  %v59 = vld [vmem:[%s1 + $0x100] sm:$0xff]
  %v60 = vld [vmem:[%s1 + $0x108] sm:$0xff]
  %v61 = vld [vmem:[%s1 + $0x110] sm:$0xff]
  %v62 = vld [vmem:[%s1 + $0x118] sm:$0xff]
  %v63 = vld [vmem:[%s1 + $0x120] sm:$0xff]
  %v64 = vld [vmem:[%s1 + $0x128] sm:$0xff]
  %v65 = vld [vmem:[%s1 + $0x130] sm:$0xff]
  %v66 = vld [vmem:[%s1 + $0x138] sm:$0xff]
  %v67 = vld [vmem:[%s1 + $0x140] sm:$0xff]
  %v68 = vld [vmem:[%s1 + $0x148] sm:$0xff]
  %v69 = vld [vmem:[%s1 + $0x150] sm:$0xff]
  %v70 = vld [vmem:[%s1 + $0x158] sm:$0xff]
  %v71 = vld [vmem:[%s1 + $0x160] sm:$0xff]
  %v72 = vld [vmem:[%s1 + $0x168] sm:$0xff]
  %v73 = vld [vmem:[%s1 + $0x170] sm:$0xff]
  %v74 = vld [vmem:[%s1 + $0x178] sm:$0xff]
  %v75 = vld [vmem:[%s1 + $0x180] sm:$0xff]
  %v76 = vld [vmem:[%s1 + $0x188] sm:$0xff]
  %v77 = vld [vmem:[%s1 + $0x190] sm:$0xff]
  %v78 = vld [vmem:[%s1 + $0x198] sm:$0xff]
  %v79 = vld [vmem:[%s1 + $0x1a0] sm:$0xff]
  %v80 = vld [vmem:[%s1 + $0x1a8] sm:$0xff]
  %v81 = vld [vmem:[%s1 + $0x1b0] sm:$0xff]
  %v82 = vld [vmem:[%s1 + $0x1b8] sm:$0xff]
  %v83 = vld [vmem:[%s1 + $0x1c0] sm:$0xff]
  %v84 = vld [vmem:[%s1 + $0x1c8] sm:$0xff]
  %v85 = vld [vmem:[%s1 + $0x1d0] sm:$0xff]
  %v86 = vld [vmem:[%s1 + $0x1d8] sm:$0xff]
  %v87 = vld [vmem:[%s1 + $0x1e0] sm:$0xff]
  %v88 = vld [vmem:[%s1 + $0x1e8] sm:$0xff]
  %v89 = vld [vmem:[%s1 + $0x1f0] sm:$0xff]
  %v90 = vld [vmem:[%s1 + $0x1f8] sm:$0xff]
  %v91 = vld [vmem:[%s3] sm:$0xff]
  %v93 = vlaneseq
  %v94 = vshrl.u32 %v93, 7
  %v95 = vsub.s32 0, %v94
  %v96 = vrot.slane %v91, %v95
  %v97 = vlaneseq
  %v98 = vshrl.u32 %v97, 7
  %v99 = vsub.s32 1, %v98
  %v100 = vrot.slane %v91, %v99
  %v101 = vlaneseq
  %v102 = vshrl.u32 %v101, 7
  %v103 = vsub.s32 2, %v102
  %v104 = vrot.slane %v91, %v103
  %v105 = vlaneseq
  %v106 = vshrl.u32 %v105, 7
  %v107 = vsub.s32 3, %v106
  %v108 = vrot.slane %v91, %v107
  %v109 = vlaneseq
  %v110 = vshrl.u32 %v109, 7
  %v111 = vsub.s32 4, %v110
  %v112 = vrot.slane %v91, %v111
  %v113 = vlaneseq
  %v114 = vshrl.u32 %v113, 7
  %v115 = vsub.s32 5, %v114
  %v116 = vrot.slane %v91, %v115
  %v117 = vlaneseq
  %v118 = vshrl.u32 %v117, 7
  %v119 = vsub.s32 6, %v118
  %v120 = vrot.slane %v91, %v119
  %v121 = vlaneseq
  %v122 = vshrl.u32 %v121, 7
  %v123 = vsub.s32 7, %v122
  %v124 = vrot.slane %v91, %v123
  %vm133 = vcmask 523264
  %v135 = vsel %vm133, %v19, 0
  %v138 = vsel %vm133, %v20, 0
  %v141 = vsel %vm133, %v21, 0
  %v144 = vsel %vm133, %v22, 0
  %v147 = vsel %vm133, %v23, 0
  %v150 = vsel %vm133, %v24, 0
  %v153 = vsel %vm133, %v25, 0
  %v156 = vsel %vm133, %v26, 0
  %158 = vmatprep.subr.mxu0 0.0
  %159 = vmatpush1.msra.mxu0 0.0
  %160 = vmatprep.subr.mxu0 0.0
  %161 = vmatpush1.msra.mxu0 0.0
  %162 = vmatprep.subr.mxu0 0.0
  %163 = vmatpush1.msra.mxu0 0.0
  %164 = vmatprep.subr.mxu0 0.0
  %165 = vmatpush1.msra.mxu0 0.0
  %166 = vmatprep.subr.mxu0 0.0
  %167 = vmatpush1.msra.mxu0 0.0
  %168 = vmatprep.subr.mxu0 0.0
  %169 = vmatpush1.msra.mxu0 0.0
  %170 = vmatprep.subr.mxu0 0.0
  %171 = vmatpush1.msra.mxu0 0.0
  %172 = vmatprep.subr.mxu0 0.0
  %173 = vmatpush1.msra.mxu0 0.0
  %174 = vmatprep.subr.mxu0 %v84
  %175 = vmatpush1.msra.mxu0 %v83
  %176 = vmatprep.subr.mxu0 %v76
  %177 = vmatpush1.msra.mxu0 %v75
  %178 = vmatprep.subr.mxu0 %v68
  %179 = vmatpush1.msra.mxu0 %v67
  %180 = vmatprep.subr.mxu0 %v60
  %181 = vmatpush1.msra.mxu0 %v59
  %182 = vmatprep.subr.mxu0 %v52
  %183 = vmatpush1.msra.mxu0 %v51
  %184 = vmatprep.subr.mxu0 %v44
  %185 = vmatpush1.msra.mxu0 %v43
  %186 = vmatprep.subr.mxu0 %v36
  %187 = vmatpush1.msra.mxu0 %v35
  %188 = vmatprep.subr.mxu0 %v28
  %189 = vmatpush1.msra.mxu0 %v27
  %190 = vmatprep.subr.mxu0 0.0
  %191 = vmatpush2.msra.mxu0 0.0
  %192 = vmatprep.subr.mxu0 0.0
  %193 = vmatpush2.msra.mxu0 0.0
  %194 = vmatprep.subr.mxu0 0.0
  %195 = vmatpush2.msra.mxu0 0.0
  %196 = vmatprep.subr.mxu0 0.0
  %197 = vmatpush2.msra.mxu0 0.0
  %198 = vmatprep.subr.mxu0 0.0
  %199 = vmatpush2.msra.mxu0 0.0
  %200 = vmatprep.subr.mxu0 0.0
  %201 = vmatpush2.msra.mxu0 0.0
  %202 = vmatprep.subr.mxu0 0.0
  %203 = vmatpush2.msra.mxu0 0.0
  %204 = vmatprep.subr.mxu0 0.0
  %205 = vmatpush2.msra.mxu0 0.0
  %206 = vmatprep.subr.mxu0 0.0
  %207 = vmatpush2.msra.mxu0 0.0
  %208 = vmatprep.subr.mxu0 0.0
  %209 = vmatpush2.msra.mxu0 0.0
  %210 = vmatprep.subr.mxu0 0.0
  %211 = vmatpush2.msra.mxu0 0.0
  %212 = vmatprep.subr.mxu0 0.0
  %213 = vmatpush2.msra.mxu0 0.0
  %214 = vmatprep.subr.mxu0 0.0
  %215 = vmatpush2.msra.mxu0 0.0
  %216 = vmatprep.subr.mxu0 0.0
  %217 = vmatpush2.msra.mxu0 0.0
  %218 = vmatprep.subr.mxu0 0.0
  %219 = vmatpush2.msra.mxu0 0.0
  %220 = vmatprep.subr.mxu0 0.0
  %221 = vmatpush2.msra.mxu0 0.0
  %222 = vmatprep.mubr.f32.mxu0 0.0
  %223 = vmatmul.mubr.f32.gmra.mxu0 %v135
  %v224 = vpop.f32.mrf.mxu0
  %v225 = vadd.f32 %v96, %v224
  %v226 = vpop.f32.mrf.mxu0
  %v227 = vadd.f32 %v100, %v226
  %228 = vmatprep.mubr.f32.mxu0 0.0
  %229 = vmatmul.mubr.f32.gmra.mxu0 %v138
  %v230 = vpop.f32.mrf.mxu0
  %v231 = vadd.f32 %v96, %v230
  %v232 = vpop.f32.mrf.mxu0
  %v233 = vadd.f32 %v100, %v232
  %234 = vmatprep.mubr.f32.mxu0 0.0
  %235 = vmatmul.mubr.f32.gmra.mxu0 %v141
  %v236 = vpop.f32.mrf.mxu0
  %v237 = vadd.f32 %v96, %v236
  %v238 = vpop.f32.mrf.mxu0
  %v239 = vadd.f32 %v100, %v238
  %240 = vmatprep.mubr.f32.mxu0 0.0
  %241 = vmatmul.mubr.f32.gmra.mxu0 %v144
  %v242 = vpop.f32.mrf.mxu0
  %v243 = vadd.f32 %v96, %v242
  %v244 = vpop.f32.mrf.mxu0
  %v245 = vadd.f32 %v100, %v244
  %246 = vmatprep.mubr.f32.mxu0 0.0
  %247 = vmatmul.mubr.f32.gmra.mxu0 %v147
  %v248 = vpop.f32.mrf.mxu0
  %v249 = vadd.f32 %v96, %v248
  %v250 = vpop.f32.mrf.mxu0
  %v251 = vadd.f32 %v100, %v250
  %252 = vmatprep.mubr.f32.mxu0 0.0
  %253 = vmatmul.mubr.f32.gmra.mxu0 %v150
  %v254 = vpop.f32.mrf.mxu0
  %v255 = vadd.f32 %v96, %v254
  %v256 = vpop.f32.mrf.mxu0
  %v257 = vadd.f32 %v100, %v256
  %258 = vmatprep.mubr.f32.mxu0 0.0
  %259 = vmatmul.mubr.f32.gmra.mxu0 %v153
  %v260 = vpop.f32.mrf.mxu0
  %v261 = vadd.f32 %v96, %v260
  %v262 = vpop.f32.mrf.mxu0
  %v263 = vadd.f32 %v100, %v262
  %264 = vmatprep.mubr.f32.mxu0 0.0
  %265 = vmatmul.mubr.f32.gmra.mxu0 %v156
  %v266 = vpop.f32.mrf.mxu0
  %v267 = vadd.f32 %v96, %v266
  %v268 = vpop.f32.mrf.mxu0
  %v269 = vadd.f32 %v100, %v268
  %270 = vdwg.mxu0
  %271 = vmatprep.subr.mxu0 0.0
  %272 = vmatpush1.msra.mxu0 0.0
  %273 = vmatprep.subr.mxu0 0.0
  %274 = vmatpush1.msra.mxu0 0.0
  %275 = vmatprep.subr.mxu0 0.0
  %276 = vmatpush1.msra.mxu0 0.0
  %277 = vmatprep.subr.mxu0 0.0
  %278 = vmatpush1.msra.mxu0 0.0
  %279 = vmatprep.subr.mxu0 0.0
  %280 = vmatpush1.msra.mxu0 0.0
  %281 = vmatprep.subr.mxu0 0.0
  %282 = vmatpush1.msra.mxu0 0.0
  %283 = vmatprep.subr.mxu0 0.0
  %284 = vmatpush1.msra.mxu0 0.0
  %285 = vmatprep.subr.mxu0 0.0
  %286 = vmatpush1.msra.mxu0 0.0
  %287 = vmatprep.subr.mxu0 %v86
  %288 = vmatpush1.msra.mxu0 %v85
  %289 = vmatprep.subr.mxu0 %v78
  %290 = vmatpush1.msra.mxu0 %v77
  %291 = vmatprep.subr.mxu0 %v70
  %292 = vmatpush1.msra.mxu0 %v69
  %293 = vmatprep.subr.mxu0 %v62
  %294 = vmatpush1.msra.mxu0 %v61
  %295 = vmatprep.subr.mxu0 %v54
  %296 = vmatpush1.msra.mxu0 %v53
  %297 = vmatprep.subr.mxu0 %v46
  %298 = vmatpush1.msra.mxu0 %v45
  %299 = vmatprep.subr.mxu0 %v38
  %300 = vmatpush1.msra.mxu0 %v37
  %301 = vmatprep.subr.mxu0 %v30
  %302 = vmatpush1.msra.mxu0 %v29
  %303 = vmatprep.subr.mxu0 0.0
  %304 = vmatpush2.msra.mxu0 0.0
  %305 = vmatprep.subr.mxu0 0.0
  %306 = vmatpush2.msra.mxu0 0.0
  %307 = vmatprep.subr.mxu0 0.0
  %308 = vmatpush2.msra.mxu0 0.0
  %309 = vmatprep.subr.mxu0 0.0
  %310 = vmatpush2.msra.mxu0 0.0
  %311 = vmatprep.subr.mxu0 0.0
  %312 = vmatpush2.msra.mxu0 0.0
  %313 = vmatprep.subr.mxu0 0.0
  %314 = vmatpush2.msra.mxu0 0.0
  %315 = vmatprep.subr.mxu0 0.0
  %316 = vmatpush2.msra.mxu0 0.0
  %317 = vmatprep.subr.mxu0 0.0
  %318 = vmatpush2.msra.mxu0 0.0
  %319 = vmatprep.subr.mxu0 0.0
  %320 = vmatpush2.msra.mxu0 0.0
  %321 = vmatprep.subr.mxu0 0.0
  %322 = vmatpush2.msra.mxu0 0.0
  %323 = vmatprep.subr.mxu0 0.0
  %324 = vmatpush2.msra.mxu0 0.0
  %325 = vmatprep.subr.mxu0 0.0
  %326 = vmatpush2.msra.mxu0 0.0
  %327 = vmatprep.subr.mxu0 0.0
  %328 = vmatpush2.msra.mxu0 0.0
  %329 = vmatprep.subr.mxu0 0.0
  %330 = vmatpush2.msra.mxu0 0.0
  %331 = vmatprep.subr.mxu0 0.0
  %332 = vmatpush2.msra.mxu0 0.0
  %333 = vmatprep.subr.mxu0 0.0
  %334 = vmatpush2.msra.mxu0 0.0
  %335 = vmatprep.mubr.f32.mxu0 0.0
  %336 = vmatmul.mubr.f32.gmra.mxu0 %v135
  %v337 = vpop.f32.mrf.mxu0
  %v338 = vadd.f32 %v104, %v337
  %v339 = vpop.f32.mrf.mxu0
  %v340 = vadd.f32 %v108, %v339
  %341 = vmatprep.mubr.f32.mxu0 0.0
  %342 = vmatmul.mubr.f32.gmra.mxu0 %v138
  %v343 = vpop.f32.mrf.mxu0
  %v344 = vadd.f32 %v104, %v343
  %v345 = vpop.f32.mrf.mxu0
  %v346 = vadd.f32 %v108, %v345
  %347 = vmatprep.mubr.f32.mxu0 0.0
  %348 = vmatmul.mubr.f32.gmra.mxu0 %v141
  %v349 = vpop.f32.mrf.mxu0
  %v350 = vadd.f32 %v104, %v349
  %v351 = vpop.f32.mrf.mxu0
  %v352 = vadd.f32 %v108, %v351
  %353 = vmatprep.mubr.f32.mxu0 0.0
  %354 = vmatmul.mubr.f32.gmra.mxu0 %v144
  %v355 = vpop.f32.mrf.mxu0
  %v356 = vadd.f32 %v104, %v355
  %v357 = vpop.f32.mrf.mxu0
  %v358 = vadd.f32 %v108, %v357
  %359 = vmatprep.mubr.f32.mxu0 0.0
  %360 = vmatmul.mubr.f32.gmra.mxu0 %v147
  %v361 = vpop.f32.mrf.mxu0
  %v362 = vadd.f32 %v104, %v361
  %v363 = vpop.f32.mrf.mxu0
  %v364 = vadd.f32 %v108, %v363
  %365 = vmatprep.mubr.f32.mxu0 0.0
  %366 = vmatmul.mubr.f32.gmra.mxu0 %v150
  %v367 = vpop.f32.mrf.mxu0
  %v368 = vadd.f32 %v104, %v367
  %v369 = vpop.f32.mrf.mxu0
  %v370 = vadd.f32 %v108, %v369
  %371 = vmatprep.mubr.f32.mxu0 0.0
  %372 = vmatmul.mubr.f32.gmra.mxu0 %v153
  %v373 = vpop.f32.mrf.mxu0
  %v374 = vadd.f32 %v104, %v373
  %v375 = vpop.f32.mrf.mxu0
  %v376 = vadd.f32 %v108, %v375
  %377 = vmatprep.mubr.f32.mxu0 0.0
  %378 = vmatmul.mubr.f32.gmra.mxu0 %v156
  %v379 = vpop.f32.mrf.mxu0
  %v380 = vadd.f32 %v104, %v379
  %v381 = vpop.f32.mrf.mxu0
  %v382 = vadd.f32 %v108, %v381
  %383 = vdwg.mxu0
  %384 = vmatprep.subr.mxu0 0.0
  %385 = vmatpush1.msra.mxu0 0.0
  %386 = vmatprep.subr.mxu0 0.0
  %387 = vmatpush1.msra.mxu0 0.0
  %388 = vmatprep.subr.mxu0 0.0
  %389 = vmatpush1.msra.mxu0 0.0
  %390 = vmatprep.subr.mxu0 0.0
  %391 = vmatpush1.msra.mxu0 0.0
  %392 = vmatprep.subr.mxu0 0.0
  %393 = vmatpush1.msra.mxu0 0.0
  %394 = vmatprep.subr.mxu0 0.0
  %395 = vmatpush1.msra.mxu0 0.0
  %396 = vmatprep.subr.mxu0 0.0
  %397 = vmatpush1.msra.mxu0 0.0
  %398 = vmatprep.subr.mxu0 0.0
  %399 = vmatpush1.msra.mxu0 0.0
  %400 = vmatprep.subr.mxu0 %v88
  %401 = vmatpush1.msra.mxu0 %v87
  %402 = vmatprep.subr.mxu0 %v80
  %403 = vmatpush1.msra.mxu0 %v79
  %404 = vmatprep.subr.mxu0 %v72
  %405 = vmatpush1.msra.mxu0 %v71
  %406 = vmatprep.subr.mxu0 %v64
  %407 = vmatpush1.msra.mxu0 %v63
  %408 = vmatprep.subr.mxu0 %v56
  %409 = vmatpush1.msra.mxu0 %v55
  %410 = vmatprep.subr.mxu0 %v48
  %411 = vmatpush1.msra.mxu0 %v47
  %412 = vmatprep.subr.mxu0 %v40
  %413 = vmatpush1.msra.mxu0 %v39
  %414 = vmatprep.subr.mxu0 %v32
  %415 = vmatpush1.msra.mxu0 %v31
  %416 = vmatprep.subr.mxu0 0.0
  %417 = vmatpush2.msra.mxu0 0.0
  %418 = vmatprep.subr.mxu0 0.0
  %419 = vmatpush2.msra.mxu0 0.0
  %420 = vmatprep.subr.mxu0 0.0
  %421 = vmatpush2.msra.mxu0 0.0
  %422 = vmatprep.subr.mxu0 0.0
  %423 = vmatpush2.msra.mxu0 0.0
  %424 = vmatprep.subr.mxu0 0.0
  %425 = vmatpush2.msra.mxu0 0.0
  %426 = vmatprep.subr.mxu0 0.0
  %427 = vmatpush2.msra.mxu0 0.0
  %428 = vmatprep.subr.mxu0 0.0
  %429 = vmatpush2.msra.mxu0 0.0
  %430 = vmatprep.subr.mxu0 0.0
  %431 = vmatpush2.msra.mxu0 0.0
  %432 = vmatprep.subr.mxu0 0.0
  %433 = vmatpush2.msra.mxu0 0.0
  %434 = vmatprep.subr.mxu0 0.0
  %435 = vmatpush2.msra.mxu0 0.0
  %436 = vmatprep.subr.mxu0 0.0
  %437 = vmatpush2.msra.mxu0 0.0
  %438 = vmatprep.subr.mxu0 0.0
  %439 = vmatpush2.msra.mxu0 0.0
  %440 = vmatprep.subr.mxu0 0.0
  %441 = vmatpush2.msra.mxu0 0.0
  %442 = vmatprep.subr.mxu0 0.0
  %443 = vmatpush2.msra.mxu0 0.0
  %444 = vmatprep.subr.mxu0 0.0
  %445 = vmatpush2.msra.mxu0 0.0
  %446 = vmatprep.subr.mxu0 0.0
  %447 = vmatpush2.msra.mxu0 0.0
  %448 = vmatprep.mubr.f32.mxu0 0.0
  %449 = vmatmul.mubr.f32.gmra.mxu0 %v135
  %v450 = vpop.f32.mrf.mxu0
  %v451 = vadd.f32 %v112, %v450
  %v452 = vpop.f32.mrf.mxu0
  %v453 = vadd.f32 %v116, %v452
  %454 = vmatprep.mubr.f32.mxu0 0.0
  %455 = vmatmul.mubr.f32.gmra.mxu0 %v138
  %v456 = vpop.f32.mrf.mxu0
  %v457 = vadd.f32 %v112, %v456
  %v458 = vpop.f32.mrf.mxu0
  %v459 = vadd.f32 %v116, %v458
  %460 = vmatprep.mubr.f32.mxu0 0.0
  %461 = vmatmul.mubr.f32.gmra.mxu0 %v141
  %v462 = vpop.f32.mrf.mxu0
  %v463 = vadd.f32 %v112, %v462
  %v464 = vpop.f32.mrf.mxu0
  %v465 = vadd.f32 %v116, %v464
  %466 = vmatprep.mubr.f32.mxu0 0.0
  %467 = vmatmul.mubr.f32.gmra.mxu0 %v144
  %v468 = vpop.f32.mrf.mxu0
  %v469 = vadd.f32 %v112, %v468
  %v470 = vpop.f32.mrf.mxu0
  %v471 = vadd.f32 %v116, %v470
  %472 = vmatprep.mubr.f32.mxu0 0.0
  %473 = vmatmul.mubr.f32.gmra.mxu0 %v147
  %v474 = vpop.f32.mrf.mxu0
  %v475 = vadd.f32 %v112, %v474
  %v476 = vpop.f32.mrf.mxu0
  %v477 = vadd.f32 %v116, %v476
  %478 = vmatprep.mubr.f32.mxu0 0.0
  %479 = vmatmul.mubr.f32.gmra.mxu0 %v150
  %v480 = vpop.f32.mrf.mxu0
  %v481 = vadd.f32 %v112, %v480
  %v482 = vpop.f32.mrf.mxu0
  %v483 = vadd.f32 %v116, %v482
  %484 = vmatprep.mubr.f32.mxu0 0.0
  %485 = vmatmul.mubr.f32.gmra.mxu0 %v153
  %v486 = vpop.f32.mrf.mxu0
  %v487 = vadd.f32 %v112, %v486
  %v488 = vpop.f32.mrf.mxu0
  %v489 = vadd.f32 %v116, %v488
  %490 = vmatprep.mubr.f32.mxu0 0.0
  %491 = vmatmul.mubr.f32.gmra.mxu0 %v156
  %v492 = vpop.f32.mrf.mxu0
  %v493 = vadd.f32 %v112, %v492
  %v494 = vpop.f32.mrf.mxu0
  %v495 = vadd.f32 %v116, %v494
  %496 = vdwg.mxu0
  %497 = vmatprep.subr.mxu0 0.0
  %498 = vmatpush1.msra.mxu0 0.0
  %499 = vmatprep.subr.mxu0 0.0
  %500 = vmatpush1.msra.mxu0 0.0
  %501 = vmatprep.subr.mxu0 0.0
  %502 = vmatpush1.msra.mxu0 0.0
  %503 = vmatprep.subr.mxu0 0.0
  %504 = vmatpush1.msra.mxu0 0.0
  %505 = vmatprep.subr.mxu0 0.0
  %506 = vmatpush1.msra.mxu0 0.0
  %507 = vmatprep.subr.mxu0 0.0
  %508 = vmatpush1.msra.mxu0 0.0
  %509 = vmatprep.subr.mxu0 0.0
  %510 = vmatpush1.msra.mxu0 0.0
  %511 = vmatprep.subr.mxu0 0.0
  %512 = vmatpush1.msra.mxu0 0.0
  %513 = vmatprep.subr.mxu0 %v90
  %514 = vmatpush1.msra.mxu0 %v89
  %515 = vmatprep.subr.mxu0 %v82
  %516 = vmatpush1.msra.mxu0 %v81
  %517 = vmatprep.subr.mxu0 %v74
  %518 = vmatpush1.msra.mxu0 %v73
  %519 = vmatprep.subr.mxu0 %v66
  %520 = vmatpush1.msra.mxu0 %v65
  %521 = vmatprep.subr.mxu0 %v58
  %522 = vmatpush1.msra.mxu0 %v57
  %523 = vmatprep.subr.mxu0 %v50
  %524 = vmatpush1.msra.mxu0 %v49
  %525 = vmatprep.subr.mxu0 %v42
  %526 = vmatpush1.msra.mxu0 %v41
  %527 = vmatprep.subr.mxu0 %v34
  %528 = vmatpush1.msra.mxu0 %v33
  %529 = vmatprep.subr.mxu0 0.0
  %530 = vmatpush2.msra.mxu0 0.0
  %531 = vmatprep.subr.mxu0 0.0
  %532 = vmatpush2.msra.mxu0 0.0
  %533 = vmatprep.subr.mxu0 0.0
  %534 = vmatpush2.msra.mxu0 0.0
  %535 = vmatprep.subr.mxu0 0.0
  %536 = vmatpush2.msra.mxu0 0.0
  %537 = vmatprep.subr.mxu0 0.0
  %538 = vmatpush2.msra.mxu0 0.0
  %539 = vmatprep.subr.mxu0 0.0
  %540 = vmatpush2.msra.mxu0 0.0
  %541 = vmatprep.subr.mxu0 0.0
  %542 = vmatpush2.msra.mxu0 0.0
  %543 = vmatprep.subr.mxu0 0.0
  %544 = vmatpush2.msra.mxu0 0.0
  %545 = vmatprep.subr.mxu0 0.0
  %546 = vmatpush2.msra.mxu0 0.0
  %547 = vmatprep.subr.mxu0 0.0
  %548 = vmatpush2.msra.mxu0 0.0
  %549 = vmatprep.subr.mxu0 0.0
  %550 = vmatpush2.msra.mxu0 0.0
  %551 = vmatprep.subr.mxu0 0.0
  %552 = vmatpush2.msra.mxu0 0.0
  %553 = vmatprep.subr.mxu0 0.0
  %554 = vmatpush2.msra.mxu0 0.0
  %555 = vmatprep.subr.mxu0 0.0
  %556 = vmatpush2.msra.mxu0 0.0
  %557 = vmatprep.subr.mxu0 0.0
  %558 = vmatpush2.msra.mxu0 0.0
  %559 = vmatprep.subr.mxu0 0.0
  %560 = vmatpush2.msra.mxu0 0.0
  %561 = vmatprep.mubr.f32.mxu0 0.0
  %562 = vmatmul.mubr.f32.gmra.mxu0 %v135
  %v563 = vpop.f32.mrf.mxu0
  %v564 = vadd.f32 %v120, %v563
  %v565 = vpop.f32.mrf.mxu0
  %v566 = vadd.f32 %v124, %v565
  %567 = vmatprep.mubr.f32.mxu0 0.0
  %568 = vmatmul.mubr.f32.gmra.mxu0 %v138
  %v569 = vpop.f32.mrf.mxu0
  %v570 = vadd.f32 %v120, %v569
  %v571 = vpop.f32.mrf.mxu0
  %v572 = vadd.f32 %v124, %v571
  %573 = vmatprep.mubr.f32.mxu0 0.0
  %574 = vmatmul.mubr.f32.gmra.mxu0 %v141
  %v575 = vpop.f32.mrf.mxu0
  %v576 = vadd.f32 %v120, %v575
  %v577 = vpop.f32.mrf.mxu0
  %v578 = vadd.f32 %v124, %v577
  %579 = vmatprep.mubr.f32.mxu0 0.0
  %580 = vmatmul.mubr.f32.gmra.mxu0 %v144
  %v581 = vpop.f32.mrf.mxu0
  %v582 = vadd.f32 %v120, %v581
  %v583 = vpop.f32.mrf.mxu0
  %v584 = vadd.f32 %v124, %v583
  %585 = vmatprep.mubr.f32.mxu0 0.0
  %586 = vmatmul.mubr.f32.gmra.mxu0 %v147
  %v587 = vpop.f32.mrf.mxu0
  %v588 = vadd.f32 %v120, %v587
  %v589 = vpop.f32.mrf.mxu0
  %v590 = vadd.f32 %v124, %v589
  %591 = vmatprep.mubr.f32.mxu0 0.0
  %592 = vmatmul.mubr.f32.gmra.mxu0 %v150
  %v593 = vpop.f32.mrf.mxu0
  %v594 = vadd.f32 %v120, %v593
  %v595 = vpop.f32.mrf.mxu0
  %v596 = vadd.f32 %v124, %v595
  %597 = vmatprep.mubr.f32.mxu0 0.0
  %598 = vmatmul.mubr.f32.gmra.mxu0 %v153
  %v599 = vpop.f32.mrf.mxu0
  %v600 = vadd.f32 %v120, %v599
  %v601 = vpop.f32.mrf.mxu0
  %v602 = vadd.f32 %v124, %v601
  %603 = vmatprep.mubr.f32.mxu0 0.0
  %604 = vmatmul.mubr.f32.gmra.mxu0 %v156
  %v605 = vpop.f32.mrf.mxu0
  %v606 = vadd.f32 %v120, %v605
  %v607 = vpop.f32.mrf.mxu0
  %v608 = vadd.f32 %v124, %v607
  %609 = vdwg.mxu0
  %610 = vst [vmem:[#allocation2] sm:$0xff] %v225
  %611 = vst [vmem:[#allocation2 + $0x8] sm:$0xff] %v227
  %612 = vst [vmem:[#allocation2 + $0x10] sm:$0xff] %v338
  %613 = vst [vmem:[#allocation2 + $0x18] sm:$0xff] %v340
  %614 = vst [vmem:[#allocation2 + $0x20] sm:$0xff] %v451
  %615 = vst [vmem:[#allocation2 + $0x28] sm:$0xff] %v453
  %616 = vst [vmem:[#allocation2 + $0x30] sm:$0xff] %v564
  %617 = vst [vmem:[#allocation2 + $0x38] sm:$0xff] %v566
  %618 = vst [vmem:[#allocation2 + $0x40] sm:$0xff] %v231
  %619 = vst [vmem:[#allocation2 + $0x48] sm:$0xff] %v233
  %620 = vst [vmem:[#allocation2 + $0x50] sm:$0xff] %v344
  %621 = vst [vmem:[#allocation2 + $0x58] sm:$0xff] %v346
  %622 = vst [vmem:[#allocation2 + $0x60] sm:$0xff] %v457
  %623 = vst [vmem:[#allocation2 + $0x68] sm:$0xff] %v459
  %624 = vst [vmem:[#allocation2 + $0x70] sm:$0xff] %v570
  %625 = vst [vmem:[#allocation2 + $0x78] sm:$0xff] %v572
  %626 = vst [vmem:[#allocation2 + $0x80] sm:$0xff] %v237
  %627 = vst [vmem:[#allocation2 + $0x88] sm:$0xff] %v239
  %628 = vst [vmem:[#allocation2 + $0x90] sm:$0xff] %v350
  %629 = vst [vmem:[#allocation2 + $0x98] sm:$0xff] %v352
  %630 = vst [vmem:[#allocation2 + $0xa0] sm:$0xff] %v463
  %631 = vst [vmem:[#allocation2 + $0xa8] sm:$0xff] %v465
  %632 = vst [vmem:[#allocation2 + $0xb0] sm:$0xff] %v576
  %633 = vst [vmem:[#allocation2 + $0xb8] sm:$0xff] %v578
  %634 = vst [vmem:[#allocation2 + $0xc0] sm:$0xff] %v243
  %635 = vst [vmem:[#allocation2 + $0xc8] sm:$0xff] %v245
  %636 = vst [vmem:[#allocation2 + $0xd0] sm:$0xff] %v356
  %637 = vst [vmem:[#allocation2 + $0xd8] sm:$0xff] %v358
  %638 = vst [vmem:[#allocation2 + $0xe0] sm:$0xff] %v469
  %639 = vst [vmem:[#allocation2 + $0xe8] sm:$0xff] %v471
  %640 = vst [vmem:[#allocation2 + $0xf0] sm:$0xff] %v582
  %641 = vst [vmem:[#allocation2 + $0xf8] sm:$0xff] %v584
  %642 = vst [vmem:[#allocation2 + $0x100] sm:$0xff] %v249
  %643 = vst [vmem:[#allocation2 + $0x108] sm:$0xff] %v251
  %644 = vst [vmem:[#allocation2 + $0x110] sm:$0xff] %v362
  %645 = vst [vmem:[#allocation2 + $0x118] sm:$0xff] %v364
  %646 = vst [vmem:[#allocation2 + $0x120] sm:$0xff] %v475
  %647 = vst [vmem:[#allocation2 + $0x128] sm:$0xff] %v477
  %648 = vst [vmem:[#allocation2 + $0x130] sm:$0xff] %v588
  %649 = vst [vmem:[#allocation2 + $0x138] sm:$0xff] %v590
  %650 = vst [vmem:[#allocation2 + $0x140] sm:$0xff] %v255
  %651 = vst [vmem:[#allocation2 + $0x148] sm:$0xff] %v257
  %652 = vst [vmem:[#allocation2 + $0x150] sm:$0xff] %v368
  %653 = vst [vmem:[#allocation2 + $0x158] sm:$0xff] %v370
  %654 = vst [vmem:[#allocation2 + $0x160] sm:$0xff] %v481
  %655 = vst [vmem:[#allocation2 + $0x168] sm:$0xff] %v483
  %656 = vst [vmem:[#allocation2 + $0x170] sm:$0xff] %v594
  %657 = vst [vmem:[#allocation2 + $0x178] sm:$0xff] %v596
  %658 = vst [vmem:[#allocation2 + $0x180] sm:$0xff] %v261
  %659 = vst [vmem:[#allocation2 + $0x188] sm:$0xff] %v263
  %660 = vst [vmem:[#allocation2 + $0x190] sm:$0xff] %v374
  %661 = vst [vmem:[#allocation2 + $0x198] sm:$0xff] %v376
  %662 = vst [vmem:[#allocation2 + $0x1a0] sm:$0xff] %v487
  %663 = vst [vmem:[#allocation2 + $0x1a8] sm:$0xff] %v489
  %664 = vst [vmem:[#allocation2 + $0x1b0] sm:$0xff] %v600
  %665 = vst [vmem:[#allocation2 + $0x1b8] sm:$0xff] %v602
  %666 = vst [vmem:[#allocation2 + $0x1c0] sm:$0xff] %v267
  %667 = vst [vmem:[#allocation2 + $0x1c8] sm:$0xff] %v269
  %668 = vst [vmem:[#allocation2 + $0x1d0] sm:$0xff] %v380
  %669 = vst [vmem:[#allocation2 + $0x1d8] sm:$0xff] %v382
  %670 = vst [vmem:[#allocation2 + $0x1e0] sm:$0xff] %v493
  %671 = vst [vmem:[#allocation2 + $0x1e8] sm:$0xff] %v495
  %672 = vst [vmem:[#allocation2 + $0x1f0] sm:$0xff] %v606
  %673 = vst [vmem:[#allocation2 + $0x1f8] sm:$0xff] %v608
  %674 = vst [vmem:[%s4] sm:$0xff] 0.0
  %675 = vst [vmem:[%s4 + $0x8] sm:$0xff] 0.0
  %676 = vst [vmem:[%s5] sm:$0xff] 0.0
  %677 = vst [vmem:[%s5 + $0x8] sm:$0xff] 0.0
  %s678 = smul.u32 0, 8
  %s679 = smul.addr %s678, 8
  %s680 = scalar_lea.vmem [#allocation2], %s679
  %v681 = vld [vmem:[%s680] sm:$0xff]
  %v682 = vld [vmem:[%s680 + $0x8] sm:$0xff]
  %v683 = vld [vmem:[%s680 + $0x10] sm:$0xff]
  %v684 = vld [vmem:[%s680 + $0x18] sm:$0xff]
  %v685 = vld [vmem:[%s680 + $0x20] sm:$0xff]
  %v686 = vld [vmem:[%s680 + $0x28] sm:$0xff]
  %v687 = vld [vmem:[%s680 + $0x30] sm:$0xff]
  %v688 = vld [vmem:[%s680 + $0x38] sm:$0xff]
  %v689 = vld [vmem:[%s4] sm:$0xff]
  %v690 = vld [vmem:[%s4 + $0x8] sm:$0xff]
  %v691 = vld [vmem:[%s2] sm:$0xff]
  %v692 = vld [vmem:[%s2 + $0x8] sm:$0xff]
  %v693 = vld [vmem:[%s2 + $0x10] sm:$0xff]
  %v694 = vld [vmem:[%s2 + $0x18] sm:$0xff]
  %v695 = vld [vmem:[%s2 + $0x20] sm:$0xff]
  %v696 = vld [vmem:[%s2 + $0x28] sm:$0xff]
  %v697 = vld [vmem:[%s2 + $0x30] sm:$0xff]
  %v698 = vld [vmem:[%s2 + $0x38] sm:$0xff]
  %v699 = vld [vmem:[%s2 + $0x40] sm:$0xff]
  %v700 = vld [vmem:[%s2 + $0x48] sm:$0xff]
  %v701 = vld [vmem:[%s2 + $0x50] sm:$0xff]
  %v702 = vld [vmem:[%s2 + $0x58] sm:$0xff]
  %v703 = vld [vmem:[%s2 + $0x60] sm:$0xff]
  %v704 = vld [vmem:[%s2 + $0x68] sm:$0xff]
  %v705 = vld [vmem:[%s2 + $0x70] sm:$0xff]
  %v706 = vld [vmem:[%s2 + $0x78] sm:$0xff]
  %v707 = vld [vmem:[%s2 + $0x80] sm:$0xff]
  %v708 = vld [vmem:[%s2 + $0x88] sm:$0xff]
  %v709 = vld [vmem:[%s2 + $0x90] sm:$0xff]
  %v710 = vld [vmem:[%s2 + $0x98] sm:$0xff]
  %v711 = vld [vmem:[%s2 + $0xa0] sm:$0xff]
  %v712 = vld [vmem:[%s2 + $0xa8] sm:$0xff]
  %v713 = vld [vmem:[%s2 + $0xb0] sm:$0xff]
  %v714 = vld [vmem:[%s2 + $0xb8] sm:$0xff]
  %v715 = vld [vmem:[%s2 + $0xc0] sm:$0xff]
  %v716 = vld [vmem:[%s2 + $0xc8] sm:$0xff]
  %v717 = vld [vmem:[%s2 + $0xd0] sm:$0xff]
  %v718 = vld [vmem:[%s2 + $0xd8] sm:$0xff]
  %v719 = vld [vmem:[%s2 + $0xe0] sm:$0xff]
  %v720 = vld [vmem:[%s2 + $0xe8] sm:$0xff]
  %v721 = vld [vmem:[%s2 + $0xf0] sm:$0xff]
  %v722 = vld [vmem:[%s2 + $0xf8] sm:$0xff]
  %v723 = vld [vmem:[%s2 + $0x100] sm:$0xff]
  %v724 = vld [vmem:[%s2 + $0x108] sm:$0xff]
  %v725 = vld [vmem:[%s2 + $0x110] sm:$0xff]
  %v726 = vld [vmem:[%s2 + $0x118] sm:$0xff]
  %v727 = vld [vmem:[%s2 + $0x120] sm:$0xff]
  %v728 = vld [vmem:[%s2 + $0x128] sm:$0xff]
  %v729 = vld [vmem:[%s2 + $0x130] sm:$0xff]
  %v730 = vld [vmem:[%s2 + $0x138] sm:$0xff]
  %v731 = vld [vmem:[%s2 + $0x140] sm:$0xff]
  %v732 = vld [vmem:[%s2 + $0x148] sm:$0xff]
  %v733 = vld [vmem:[%s2 + $0x150] sm:$0xff]
  %v734 = vld [vmem:[%s2 + $0x158] sm:$0xff]
  %v735 = vld [vmem:[%s2 + $0x160] sm:$0xff]
  %v736 = vld [vmem:[%s2 + $0x168] sm:$0xff]
  %v737 = vld [vmem:[%s2 + $0x170] sm:$0xff]
  %v738 = vld [vmem:[%s2 + $0x178] sm:$0xff]
  %v739 = vld [vmem:[%s2 + $0x180] sm:$0xff]
  %v740 = vld [vmem:[%s2 + $0x188] sm:$0xff]
  %v741 = vld [vmem:[%s2 + $0x190] sm:$0xff]
  %v742 = vld [vmem:[%s2 + $0x198] sm:$0xff]
  %v743 = vld [vmem:[%s2 + $0x1a0] sm:$0xff]
  %v744 = vld [vmem:[%s2 + $0x1a8] sm:$0xff]
  %v745 = vld [vmem:[%s2 + $0x1b0] sm:$0xff]
  %v746 = vld [vmem:[%s2 + $0x1b8] sm:$0xff]
  %v747 = vld [vmem:[%s2 + $0x1c0] sm:$0xff]
  %v748 = vld [vmem:[%s2 + $0x1c8] sm:$0xff]
  %v749 = vld [vmem:[%s2 + $0x1d0] sm:$0xff]
  %v750 = vld [vmem:[%s2 + $0x1d8] sm:$0xff]
  %v751 = vld [vmem:[%s2 + $0x1e0] sm:$0xff]
  %v752 = vld [vmem:[%s2 + $0x1e8] sm:$0xff]
  %v753 = vld [vmem:[%s2 + $0x1f0] sm:$0xff]
  %v754 = vld [vmem:[%s2 + $0x1f8] sm:$0xff]
  %v755 = vld [vmem:[%s2 + $0x200] sm:$0xff]
  %v756 = vld [vmem:[%s2 + $0x208] sm:$0xff]
  %v757 = vld [vmem:[%s2 + $0x210] sm:$0xff]
  %v758 = vld [vmem:[%s2 + $0x218] sm:$0xff]
  %v759 = vld [vmem:[%s2 + $0x220] sm:$0xff]
  %v760 = vld [vmem:[%s2 + $0x228] sm:$0xff]
  %v761 = vld [vmem:[%s2 + $0x230] sm:$0xff]
  %v762 = vld [vmem:[%s2 + $0x238] sm:$0xff]
  %v763 = vld [vmem:[%s2 + $0x240] sm:$0xff]
  %v764 = vld [vmem:[%s2 + $0x248] sm:$0xff]
  %v765 = vld [vmem:[%s2 + $0x250] sm:$0xff]
  %v766 = vld [vmem:[%s2 + $0x258] sm:$0xff]
  %v767 = vld [vmem:[%s2 + $0x260] sm:$0xff]
  %v768 = vld [vmem:[%s2 + $0x268] sm:$0xff]
  %v769 = vld [vmem:[%s2 + $0x270] sm:$0xff]
  %v770 = vld [vmem:[%s2 + $0x278] sm:$0xff]
  %v771 = vld [vmem:[%s2 + $0x280] sm:$0xff]
  %v772 = vld [vmem:[%s2 + $0x288] sm:$0xff]
  %v773 = vld [vmem:[%s2 + $0x290] sm:$0xff]
  %v774 = vld [vmem:[%s2 + $0x298] sm:$0xff]
  %v775 = vld [vmem:[%s2 + $0x2a0] sm:$0xff]
  %v776 = vld [vmem:[%s2 + $0x2a8] sm:$0xff]
  %v777 = vld [vmem:[%s2 + $0x2b0] sm:$0xff]
  %v778 = vld [vmem:[%s2 + $0x2b8] sm:$0xff]
  %v779 = vld [vmem:[%s2 + $0x2c0] sm:$0xff]
  %v780 = vld [vmem:[%s2 + $0x2c8] sm:$0xff]
  %v781 = vld [vmem:[%s2 + $0x2d0] sm:$0xff]
  %v782 = vld [vmem:[%s2 + $0x2d8] sm:$0xff]
  %v783 = vld [vmem:[%s2 + $0x2e0] sm:$0xff]
  %v784 = vld [vmem:[%s2 + $0x2e8] sm:$0xff]
  %v785 = vld [vmem:[%s2 + $0x2f0] sm:$0xff]
  %v786 = vld [vmem:[%s2 + $0x2f8] sm:$0xff]
  %v787 = vld [vmem:[%s2 + $0x300] sm:$0xff]
  %v788 = vld [vmem:[%s2 + $0x308] sm:$0xff]
  %v789 = vld [vmem:[%s2 + $0x310] sm:$0xff]
  %v790 = vld [vmem:[%s2 + $0x318] sm:$0xff]
  %v791 = vld [vmem:[%s2 + $0x320] sm:$0xff]
  %v792 = vld [vmem:[%s2 + $0x328] sm:$0xff]
  %v793 = vld [vmem:[%s2 + $0x330] sm:$0xff]
  %v794 = vld [vmem:[%s2 + $0x338] sm:$0xff]
  %v795 = vld [vmem:[%s2 + $0x340] sm:$0xff]
  %v796 = vld [vmem:[%s2 + $0x348] sm:$0xff]
  %v797 = vld [vmem:[%s2 + $0x350] sm:$0xff]
  %v798 = vld [vmem:[%s2 + $0x358] sm:$0xff]
  %v799 = vld [vmem:[%s2 + $0x360] sm:$0xff]
  %v800 = vld [vmem:[%s2 + $0x368] sm:$0xff]
  %v801 = vld [vmem:[%s2 + $0x370] sm:$0xff]
  %v802 = vld [vmem:[%s2 + $0x378] sm:$0xff]
  %v803 = vld [vmem:[%s2 + $0x380] sm:$0xff]
  %v804 = vld [vmem:[%s2 + $0x388] sm:$0xff]
  %v805 = vld [vmem:[%s2 + $0x390] sm:$0xff]
  %v806 = vld [vmem:[%s2 + $0x398] sm:$0xff]
  %v807 = vld [vmem:[%s2 + $0x3a0] sm:$0xff]
  %v808 = vld [vmem:[%s2 + $0x3a8] sm:$0xff]
  %v809 = vld [vmem:[%s2 + $0x3b0] sm:$0xff]
  %v810 = vld [vmem:[%s2 + $0x3b8] sm:$0xff]
  %v811 = vld [vmem:[%s2 + $0x3c0] sm:$0xff]
  %v812 = vld [vmem:[%s2 + $0x3c8] sm:$0xff]
  %v813 = vld [vmem:[%s2 + $0x3d0] sm:$0xff]
  %v814 = vld [vmem:[%s2 + $0x3d8] sm:$0xff]
  %v815 = vld [vmem:[%s2 + $0x3e0] sm:$0xff]
  %v816 = vld [vmem:[%s2 + $0x3e8] sm:$0xff]
  %v817 = vld [vmem:[%s2 + $0x3f0] sm:$0xff]
  %v818 = vld [vmem:[%s2 + $0x3f8] sm:$0xff]
  %v819 = vld [vmem:[%s2 + $0x400] sm:$0xff]
  %v820 = vld [vmem:[%s2 + $0x408] sm:$0xff]
  %v821 = vld [vmem:[%s2 + $0x410] sm:$0xff]
  %v822 = vld [vmem:[%s2 + $0x418] sm:$0xff]
  %v823 = vld [vmem:[%s2 + $0x420] sm:$0xff]
  %v824 = vld [vmem:[%s2 + $0x428] sm:$0xff]
  %v825 = vld [vmem:[%s2 + $0x430] sm:$0xff]
  %v826 = vld [vmem:[%s2 + $0x438] sm:$0xff]
  %v827 = vld [vmem:[%s2 + $0x440] sm:$0xff]
  %v828 = vld [vmem:[%s2 + $0x448] sm:$0xff]
  %v829 = vld [vmem:[%s2 + $0x450] sm:$0xff]
  %v830 = vld [vmem:[%s2 + $0x458] sm:$0xff]
  %v831 = vld [vmem:[%s2 + $0x460] sm:$0xff]
  %v832 = vld [vmem:[%s2 + $0x468] sm:$0xff]
  %v833 = vld [vmem:[%s2 + $0x470] sm:$0xff]
  %v834 = vld [vmem:[%s2 + $0x478] sm:$0xff]
  %v835 = vld [vmem:[%s2 + $0x480] sm:$0xff]
  %v836 = vld [vmem:[%s2 + $0x488] sm:$0xff]
  %v837 = vld [vmem:[%s2 + $0x490] sm:$0xff]
  %v838 = vld [vmem:[%s2 + $0x498] sm:$0xff]
  %v839 = vld [vmem:[%s2 + $0x4a0] sm:$0xff]
  %v840 = vld [vmem:[%s2 + $0x4a8] sm:$0xff]
  %v841 = vld [vmem:[%s2 + $0x4b0] sm:$0xff]
  %v842 = vld [vmem:[%s2 + $0x4b8] sm:$0xff]
  %v843 = vld [vmem:[%s2 + $0x4c0] sm:$0xff]
  %v844 = vld [vmem:[%s2 + $0x4c8] sm:$0xff]
  %v845 = vld [vmem:[%s2 + $0x4d0] sm:$0xff]
  %v846 = vld [vmem:[%s2 + $0x4d8] sm:$0xff]
  %v847 = vld [vmem:[%s2 + $0x4e0] sm:$0xff]
  %v848 = vld [vmem:[%s2 + $0x4e8] sm:$0xff]
  %v849 = vld [vmem:[%s2 + $0x4f0] sm:$0xff]
  %v850 = vld [vmem:[%s2 + $0x4f8] sm:$0xff]
  %v851 = vld [vmem:[%s2 + $0x500] sm:$0xff]
  %v852 = vld [vmem:[%s2 + $0x508] sm:$0xff]
  %v853 = vld [vmem:[%s2 + $0x510] sm:$0xff]
  %v854 = vld [vmem:[%s2 + $0x518] sm:$0xff]
  %v855 = vld [vmem:[%s2 + $0x520] sm:$0xff]
  %v856 = vld [vmem:[%s2 + $0x528] sm:$0xff]
  %v857 = vld [vmem:[%s2 + $0x530] sm:$0xff]
  %v858 = vld [vmem:[%s2 + $0x538] sm:$0xff]
  %v859 = vld [vmem:[%s2 + $0x540] sm:$0xff]
  %v860 = vld [vmem:[%s2 + $0x548] sm:$0xff]
  %v861 = vld [vmem:[%s2 + $0x550] sm:$0xff]
  %v862 = vld [vmem:[%s2 + $0x558] sm:$0xff]
  %v863 = vld [vmem:[%s2 + $0x560] sm:$0xff]
  %v864 = vld [vmem:[%s2 + $0x568] sm:$0xff]
  %v865 = vld [vmem:[%s2 + $0x570] sm:$0xff]
  %v866 = vld [vmem:[%s2 + $0x578] sm:$0xff]
  %v867 = vld [vmem:[%s2 + $0x580] sm:$0xff]
  %v868 = vld [vmem:[%s2 + $0x588] sm:$0xff]
  %v869 = vld [vmem:[%s2 + $0x590] sm:$0xff]
  %v870 = vld [vmem:[%s2 + $0x598] sm:$0xff]
  %v871 = vld [vmem:[%s2 + $0x5a0] sm:$0xff]
  %v872 = vld [vmem:[%s2 + $0x5a8] sm:$0xff]
  %v873 = vld [vmem:[%s2 + $0x5b0] sm:$0xff]
  %v874 = vld [vmem:[%s2 + $0x5b8] sm:$0xff]
  %v875 = vld [vmem:[%s2 + $0x5c0] sm:$0xff]
  %v876 = vld [vmem:[%s2 + $0x5c8] sm:$0xff]
  %v877 = vld [vmem:[%s2 + $0x5d0] sm:$0xff]
  %v878 = vld [vmem:[%s2 + $0x5d8] sm:$0xff]
  %v879 = vld [vmem:[%s2 + $0x5e0] sm:$0xff]
  %v880 = vld [vmem:[%s2 + $0x5e8] sm:$0xff]
  %v881 = vld [vmem:[%s2 + $0x5f0] sm:$0xff]
  %v882 = vld [vmem:[%s2 + $0x5f8] sm:$0xff]
  %v883 = vld [vmem:[%s2 + $0x600] sm:$0xff]
  %v884 = vld [vmem:[%s2 + $0x608] sm:$0xff]
  %v885 = vld [vmem:[%s2 + $0x610] sm:$0xff]
  %v886 = vld [vmem:[%s2 + $0x618] sm:$0xff]
  %v887 = vld [vmem:[%s2 + $0x620] sm:$0xff]
  %v888 = vld [vmem:[%s2 + $0x628] sm:$0xff]
  %v889 = vld [vmem:[%s2 + $0x630] sm:$0xff]
  %v890 = vld [vmem:[%s2 + $0x638] sm:$0xff]
  %v891 = vld [vmem:[%s2 + $0x640] sm:$0xff]
  %v892 = vld [vmem:[%s2 + $0x648] sm:$0xff]
  %v893 = vld [vmem:[%s2 + $0x650] sm:$0xff]
  %v894 = vld [vmem:[%s2 + $0x658] sm:$0xff]
  %v895 = vld [vmem:[%s2 + $0x660] sm:$0xff]
  %v896 = vld [vmem:[%s2 + $0x668] sm:$0xff]
  %v897 = vld [vmem:[%s2 + $0x670] sm:$0xff]
  %v898 = vld [vmem:[%s2 + $0x678] sm:$0xff]
  %v899 = vld [vmem:[%s2 + $0x680] sm:$0xff]
  %v900 = vld [vmem:[%s2 + $0x688] sm:$0xff]
  %v901 = vld [vmem:[%s2 + $0x690] sm:$0xff]
  %v902 = vld [vmem:[%s2 + $0x698] sm:$0xff]
  %v903 = vld [vmem:[%s2 + $0x6a0] sm:$0xff]
  %v904 = vld [vmem:[%s2 + $0x6a8] sm:$0xff]
  %v905 = vld [vmem:[%s2 + $0x6b0] sm:$0xff]
  %v906 = vld [vmem:[%s2 + $0x6b8] sm:$0xff]
  %v907 = vld [vmem:[%s2 + $0x6c0] sm:$0xff]
  %v908 = vld [vmem:[%s2 + $0x6c8] sm:$0xff]
  %v909 = vld [vmem:[%s2 + $0x6d0] sm:$0xff]
  %v910 = vld [vmem:[%s2 + $0x6d8] sm:$0xff]
  %v911 = vld [vmem:[%s2 + $0x6e0] sm:$0xff]
  %v912 = vld [vmem:[%s2 + $0x6e8] sm:$0xff]
  %v913 = vld [vmem:[%s2 + $0x6f0] sm:$0xff]
  %v914 = vld [vmem:[%s2 + $0x6f8] sm:$0xff]
  %v915 = vld [vmem:[%s2 + $0x700] sm:$0xff]
  %v916 = vld [vmem:[%s2 + $0x708] sm:$0xff]
  %v917 = vld [vmem:[%s2 + $0x710] sm:$0xff]
  %v918 = vld [vmem:[%s2 + $0x718] sm:$0xff]
  %v919 = vld [vmem:[%s2 + $0x720] sm:$0xff]
  %v920 = vld [vmem:[%s2 + $0x728] sm:$0xff]
  %v921 = vld [vmem:[%s2 + $0x730] sm:$0xff]
  %v922 = vld [vmem:[%s2 + $0x738] sm:$0xff]
  %v923 = vld [vmem:[%s2 + $0x740] sm:$0xff]
  %v924 = vld [vmem:[%s2 + $0x748] sm:$0xff]
  %v925 = vld [vmem:[%s2 + $0x750] sm:$0xff]
  %v926 = vld [vmem:[%s2 + $0x758] sm:$0xff]
  %v927 = vld [vmem:[%s2 + $0x760] sm:$0xff]
  %v928 = vld [vmem:[%s2 + $0x768] sm:$0xff]
  %v929 = vld [vmem:[%s2 + $0x770] sm:$0xff]
  %v930 = vld [vmem:[%s2 + $0x778] sm:$0xff]
  %v931 = vld [vmem:[%s2 + $0x780] sm:$0xff]
  %v932 = vld [vmem:[%s2 + $0x788] sm:$0xff]
  %v933 = vld [vmem:[%s2 + $0x790] sm:$0xff]
  %v934 = vld [vmem:[%s2 + $0x798] sm:$0xff]
  %v935 = vld [vmem:[%s2 + $0x7a0] sm:$0xff]
  %v936 = vld [vmem:[%s2 + $0x7a8] sm:$0xff]
  %v937 = vld [vmem:[%s2 + $0x7b0] sm:$0xff]
  %v938 = vld [vmem:[%s2 + $0x7b8] sm:$0xff]
  %v939 = vld [vmem:[%s2 + $0x7c0] sm:$0xff]
  %v940 = vld [vmem:[%s2 + $0x7c8] sm:$0xff]
  %v941 = vld [vmem:[%s2 + $0x7d0] sm:$0xff]
  %v942 = vld [vmem:[%s2 + $0x7d8] sm:$0xff]
  %v943 = vld [vmem:[%s2 + $0x7e0] sm:$0xff]
  %v944 = vld [vmem:[%s2 + $0x7e8] sm:$0xff]
  %v945 = vld [vmem:[%s2 + $0x7f0] sm:$0xff]
  %v946 = vld [vmem:[%s2 + $0x7f8] sm:$0xff]
  %947 = vmatprep.subr.mxu0 %v812
  %948 = vmatpush1.msra.mxu0 %v811
  %949 = vmatprep.subr.mxu0 %v804
  %950 = vmatpush1.msra.mxu0 %v803
  %951 = vmatprep.subr.mxu0 %v796
  %952 = vmatpush1.msra.mxu0 %v795
  %953 = vmatprep.subr.mxu0 %v788
  %954 = vmatpush1.msra.mxu0 %v787
  %955 = vmatprep.subr.mxu0 %v780
  %956 = vmatpush1.msra.mxu0 %v779
  %957 = vmatprep.subr.mxu0 %v772
  %958 = vmatpush1.msra.mxu0 %v771
  %959 = vmatprep.subr.mxu0 %v764
  %960 = vmatpush1.msra.mxu0 %v763
  %961 = vmatprep.subr.mxu0 %v756
  %962 = vmatpush1.msra.mxu0 %v755
  %963 = vmatprep.subr.mxu0 %v748
  %964 = vmatpush1.msra.mxu0 %v747
  %965 = vmatprep.subr.mxu0 %v740
  %966 = vmatpush1.msra.mxu0 %v739
  %967 = vmatprep.subr.mxu0 %v732
  %968 = vmatpush1.msra.mxu0 %v731
  %969 = vmatprep.subr.mxu0 %v724
  %970 = vmatpush1.msra.mxu0 %v723
  %971 = vmatprep.subr.mxu0 %v716
  %972 = vmatpush1.msra.mxu0 %v715
  %973 = vmatprep.subr.mxu0 %v708
  %974 = vmatpush1.msra.mxu0 %v707
  %975 = vmatprep.subr.mxu0 %v700
  %976 = vmatpush1.msra.mxu0 %v699
  %977 = vmatprep.subr.mxu0 %v692
  %978 = vmatpush1.msra.mxu0 %v691
  %979 = vmatprep.subr.mxu0 %v940
  %980 = vmatpush2.msra.mxu0 %v939
  %981 = vmatprep.subr.mxu0 %v932
  %982 = vmatpush2.msra.mxu0 %v931
  %983 = vmatprep.subr.mxu0 %v924
  %984 = vmatpush2.msra.mxu0 %v923
  %985 = vmatprep.subr.mxu0 %v916
  %986 = vmatpush2.msra.mxu0 %v915
  %987 = vmatprep.subr.mxu0 %v908
  %988 = vmatpush2.msra.mxu0 %v907
  %989 = vmatprep.subr.mxu0 %v900
  %990 = vmatpush2.msra.mxu0 %v899
  %991 = vmatprep.subr.mxu0 %v892
  %992 = vmatpush2.msra.mxu0 %v891
  %993 = vmatprep.subr.mxu0 %v884
  %994 = vmatpush2.msra.mxu0 %v883
  %995 = vmatprep.subr.mxu0 %v876
  %996 = vmatpush2.msra.mxu0 %v875
  %997 = vmatprep.subr.mxu0 %v868
  %998 = vmatpush2.msra.mxu0 %v867
  %999 = vmatprep.subr.mxu0 %v860
  %1000 = vmatpush2.msra.mxu0 %v859
  %1001 = vmatprep.subr.mxu0 %v852
  %1002 = vmatpush2.msra.mxu0 %v851
  %1003 = vmatprep.subr.mxu0 %v844
  %1004 = vmatpush2.msra.mxu0 %v843
  %1005 = vmatprep.subr.mxu0 %v836
  %1006 = vmatpush2.msra.mxu0 %v835
  %1007 = vmatprep.subr.mxu0 %v828
  %1008 = vmatpush2.msra.mxu0 %v827
  %1009 = vmatprep.subr.mxu0 %v820
  %1010 = vmatpush2.msra.mxu0 %v819
  %1011 = vmatprep.mubr.f32.mxu0 %v690
  %1012 = vmatmul.mubr.f32.gmra.mxu0 %v689
  %v1013 = vpop.f32.mrf.mxu0
  %v1014 = vadd.f32 0.0, %v1013
  %v1015 = vpop.f32.mrf.mxu0
  %v1016 = vadd.f32 0.0, %v1015
  %1017 = vdwg.mxu0
  %1018 = vmatprep.subr.mxu0 %v814
  %1019 = vmatpush1.msra.mxu0 %v813
  %1020 = vmatprep.subr.mxu0 %v806
  %1021 = vmatpush1.msra.mxu0 %v805
  %1022 = vmatprep.subr.mxu0 %v798
  %1023 = vmatpush1.msra.mxu0 %v797
  %1024 = vmatprep.subr.mxu0 %v790
  %1025 = vmatpush1.msra.mxu0 %v789
  %1026 = vmatprep.subr.mxu0 %v782
  %1027 = vmatpush1.msra.mxu0 %v781
  %1028 = vmatprep.subr.mxu0 %v774
  %1029 = vmatpush1.msra.mxu0 %v773
  %1030 = vmatprep.subr.mxu0 %v766
  %1031 = vmatpush1.msra.mxu0 %v765
  %1032 = vmatprep.subr.mxu0 %v758
  %1033 = vmatpush1.msra.mxu0 %v757
  %1034 = vmatprep.subr.mxu0 %v750
  %1035 = vmatpush1.msra.mxu0 %v749
  %1036 = vmatprep.subr.mxu0 %v742
  %1037 = vmatpush1.msra.mxu0 %v741
  %1038 = vmatprep.subr.mxu0 %v734
  %1039 = vmatpush1.msra.mxu0 %v733
  %1040 = vmatprep.subr.mxu0 %v726
  %1041 = vmatpush1.msra.mxu0 %v725
  %1042 = vmatprep.subr.mxu0 %v718
  %1043 = vmatpush1.msra.mxu0 %v717
  %1044 = vmatprep.subr.mxu0 %v710
  %1045 = vmatpush1.msra.mxu0 %v709
  %1046 = vmatprep.subr.mxu0 %v702
  %1047 = vmatpush1.msra.mxu0 %v701
  %1048 = vmatprep.subr.mxu0 %v694
  %1049 = vmatpush1.msra.mxu0 %v693
  %1050 = vmatprep.subr.mxu0 %v942
  %1051 = vmatpush2.msra.mxu0 %v941
  %1052 = vmatprep.subr.mxu0 %v934
  %1053 = vmatpush2.msra.mxu0 %v933
  %1054 = vmatprep.subr.mxu0 %v926
  %1055 = vmatpush2.msra.mxu0 %v925
  %1056 = vmatprep.subr.mxu0 %v918
  %1057 = vmatpush2.msra.mxu0 %v917
  %1058 = vmatprep.subr.mxu0 %v910
  %1059 = vmatpush2.msra.mxu0 %v909
  %1060 = vmatprep.subr.mxu0 %v902
  %1061 = vmatpush2.msra.mxu0 %v901
  %1062 = vmatprep.subr.mxu0 %v894
  %1063 = vmatpush2.msra.mxu0 %v893
  %1064 = vmatprep.subr.mxu0 %v886
  %1065 = vmatpush2.msra.mxu0 %v885
  %1066 = vmatprep.subr.mxu0 %v878
  %1067 = vmatpush2.msra.mxu0 %v877
  %1068 = vmatprep.subr.mxu0 %v870
  %1069 = vmatpush2.msra.mxu0 %v869
  %1070 = vmatprep.subr.mxu0 %v862
  %1071 = vmatpush2.msra.mxu0 %v861
  %1072 = vmatprep.subr.mxu0 %v854
  %1073 = vmatpush2.msra.mxu0 %v853
  %1074 = vmatprep.subr.mxu0 %v846
  %1075 = vmatpush2.msra.mxu0 %v845
  %1076 = vmatprep.subr.mxu0 %v838
  %1077 = vmatpush2.msra.mxu0 %v837
  %1078 = vmatprep.subr.mxu0 %v830
  %1079 = vmatpush2.msra.mxu0 %v829
  %1080 = vmatprep.subr.mxu0 %v822
  %1081 = vmatpush2.msra.mxu0 %v821
  %1082 = vmatprep.mubr.f32.mxu0 %v690
  %1083 = vmatmul.mubr.f32.gmra.mxu0 %v689
  %v1084 = vpop.f32.mrf.mxu0
  %v1085 = vadd.f32 0.0, %v1084
  %v1086 = vpop.f32.mrf.mxu0
  %v1087 = vadd.f32 0.0, %v1086
  %1088 = vdwg.mxu0
  %1089 = vmatprep.subr.mxu0 %v816
  %1090 = vmatpush1.msra.mxu0 %v815
  %1091 = vmatprep.subr.mxu0 %v808
  %1092 = vmatpush1.msra.mxu0 %v807
  %1093 = vmatprep.subr.mxu0 %v800
  %1094 = vmatpush1.msra.mxu0 %v799
  %1095 = vmatprep.subr.mxu0 %v792
  %1096 = vmatpush1.msra.mxu0 %v791
  %1097 = vmatprep.subr.mxu0 %v784
  %1098 = vmatpush1.msra.mxu0 %v783
  %1099 = vmatprep.subr.mxu0 %v776
  %1100 = vmatpush1.msra.mxu0 %v775
  %1101 = vmatprep.subr.mxu0 %v768
  %1102 = vmatpush1.msra.mxu0 %v767
  %1103 = vmatprep.subr.mxu0 %v760
  %1104 = vmatpush1.msra.mxu0 %v759
  %1105 = vmatprep.subr.mxu0 %v752
  %1106 = vmatpush1.msra.mxu0 %v751
  %1107 = vmatprep.subr.mxu0 %v744
  %1108 = vmatpush1.msra.mxu0 %v743
  %1109 = vmatprep.subr.mxu0 %v736
  %1110 = vmatpush1.msra.mxu0 %v735
  %1111 = vmatprep.subr.mxu0 %v728
  %1112 = vmatpush1.msra.mxu0 %v727
  %1113 = vmatprep.subr.mxu0 %v720
  %1114 = vmatpush1.msra.mxu0 %v719
  %1115 = vmatprep.subr.mxu0 %v712
  %1116 = vmatpush1.msra.mxu0 %v711
  %1117 = vmatprep.subr.mxu0 %v704
  %1118 = vmatpush1.msra.mxu0 %v703
  %1119 = vmatprep.subr.mxu0 %v696
  %1120 = vmatpush1.msra.mxu0 %v695
  %1121 = vmatprep.subr.mxu0 %v944
  %1122 = vmatpush2.msra.mxu0 %v943
  %1123 = vmatprep.subr.mxu0 %v936
  %1124 = vmatpush2.msra.mxu0 %v935
  %1125 = vmatprep.subr.mxu0 %v928
  %1126 = vmatpush2.msra.mxu0 %v927
  %1127 = vmatprep.subr.mxu0 %v920
  %1128 = vmatpush2.msra.mxu0 %v919
  %1129 = vmatprep.subr.mxu0 %v912
  %1130 = vmatpush2.msra.mxu0 %v911
  %1131 = vmatprep.subr.mxu0 %v904
  %1132 = vmatpush2.msra.mxu0 %v903
  %1133 = vmatprep.subr.mxu0 %v896
  %1134 = vmatpush2.msra.mxu0 %v895
  %1135 = vmatprep.subr.mxu0 %v888
  %1136 = vmatpush2.msra.mxu0 %v887
  %1137 = vmatprep.subr.mxu0 %v880
  %1138 = vmatpush2.msra.mxu0 %v879
  %1139 = vmatprep.subr.mxu0 %v872
  %1140 = vmatpush2.msra.mxu0 %v871
  %1141 = vmatprep.subr.mxu0 %v864
  %1142 = vmatpush2.msra.mxu0 %v863
  %1143 = vmatprep.subr.mxu0 %v856
  %1144 = vmatpush2.msra.mxu0 %v855
  %1145 = vmatprep.subr.mxu0 %v848
  %1146 = vmatpush2.msra.mxu0 %v847
  %1147 = vmatprep.subr.mxu0 %v840
  %1148 = vmatpush2.msra.mxu0 %v839
  %1149 = vmatprep.subr.mxu0 %v832
  %1150 = vmatpush2.msra.mxu0 %v831
  %1151 = vmatprep.subr.mxu0 %v824
  %1152 = vmatpush2.msra.mxu0 %v823
  %1153 = vmatprep.mubr.f32.mxu0 %v690
  %1154 = vmatmul.mubr.f32.gmra.mxu0 %v689
  %v1155 = vpop.f32.mrf.mxu0
  %v1156 = vadd.f32 0.0, %v1155
  %v1157 = vpop.f32.mrf.mxu0
  %v1158 = vadd.f32 0.0, %v1157
  %1159 = vdwg.mxu0
  %1160 = vmatprep.subr.mxu0 %v818
  %1161 = vmatpush1.msra.mxu0 %v817
  %1162 = vmatprep.subr.mxu0 %v810
  %1163 = vmatpush1.msra.mxu0 %v809
  %1164 = vmatprep.subr.mxu0 %v802
  %1165 = vmatpush1.msra.mxu0 %v801
  %1166 = vmatprep.subr.mxu0 %v794
  %1167 = vmatpush1.msra.mxu0 %v793
  %1168 = vmatprep.subr.mxu0 %v786
  %1169 = vmatpush1.msra.mxu0 %v785
  %1170 = vmatprep.subr.mxu0 %v778
  %1171 = vmatpush1.msra.mxu0 %v777
  %1172 = vmatprep.subr.mxu0 %v770
  %1173 = vmatpush1.msra.mxu0 %v769
  %1174 = vmatprep.subr.mxu0 %v762
  %1175 = vmatpush1.msra.mxu0 %v761
  %1176 = vmatprep.subr.mxu0 %v754
  %1177 = vmatpush1.msra.mxu0 %v753
  %1178 = vmatprep.subr.mxu0 %v746
  %1179 = vmatpush1.msra.mxu0 %v745
  %1180 = vmatprep.subr.mxu0 %v738
  %1181 = vmatpush1.msra.mxu0 %v737
  %1182 = vmatprep.subr.mxu0 %v730
  %1183 = vmatpush1.msra.mxu0 %v729
  %1184 = vmatprep.subr.mxu0 %v722
  %1185 = vmatpush1.msra.mxu0 %v721
  %1186 = vmatprep.subr.mxu0 %v714
  %1187 = vmatpush1.msra.mxu0 %v713
  %1188 = vmatprep.subr.mxu0 %v706
  %1189 = vmatpush1.msra.mxu0 %v705
  %1190 = vmatprep.subr.mxu0 %v698
  %1191 = vmatpush1.msra.mxu0 %v697
  %1192 = vmatprep.subr.mxu0 %v946
  %1193 = vmatpush2.msra.mxu0 %v945
  %1194 = vmatprep.subr.mxu0 %v938
  %1195 = vmatpush2.msra.mxu0 %v937
  %1196 = vmatprep.subr.mxu0 %v930
  %1197 = vmatpush2.msra.mxu0 %v929
  %1198 = vmatprep.subr.mxu0 %v922
  %1199 = vmatpush2.msra.mxu0 %v921
  %1200 = vmatprep.subr.mxu0 %v914
  %1201 = vmatpush2.msra.mxu0 %v913
  %1202 = vmatprep.subr.mxu0 %v906
  %1203 = vmatpush2.msra.mxu0 %v905
  %1204 = vmatprep.subr.mxu0 %v898
  %1205 = vmatpush2.msra.mxu0 %v897
  %1206 = vmatprep.subr.mxu0 %v890
  %1207 = vmatpush2.msra.mxu0 %v889
  %1208 = vmatprep.subr.mxu0 %v882
  %1209 = vmatpush2.msra.mxu0 %v881
  %1210 = vmatprep.subr.mxu0 %v874
  %1211 = vmatpush2.msra.mxu0 %v873
  %1212 = vmatprep.subr.mxu0 %v866
  %1213 = vmatpush2.msra.mxu0 %v865
  %1214 = vmatprep.subr.mxu0 %v858
  %1215 = vmatpush2.msra.mxu0 %v857
  %1216 = vmatprep.subr.mxu0 %v850
  %1217 = vmatpush2.msra.mxu0 %v849
  %1218 = vmatprep.subr.mxu0 %v842
  %1219 = vmatpush2.msra.mxu0 %v841
  %1220 = vmatprep.subr.mxu0 %v834
  %1221 = vmatpush2.msra.mxu0 %v833
  %1222 = vmatprep.subr.mxu0 %v826
  %1223 = vmatpush2.msra.mxu0 %v825
  %1224 = vmatprep.mubr.f32.mxu0 %v690
  %1225 = vmatmul.mubr.f32.gmra.mxu0 %v689
  %v1226 = vpop.f32.mrf.mxu0
  %v1227 = vadd.f32 0.0, %v1226
  %v1228 = vpop.f32.mrf.mxu0
  %v1229 = vadd.f32 0.0, %v1228
  %1230 = vdwg.mxu0
  %v1231 = vadd.f32 %v681, %v1014
  %v1232 = vadd.f32 %v682, %v1016
  %v1233 = vadd.f32 %v683, %v1085
  %v1234 = vadd.f32 %v684, %v1087
  %v1235 = vadd.f32 %v685, %v1156
  %v1236 = vadd.f32 %v686, %v1158
  %v1237 = vadd.f32 %v687, %v1227
  %v1238 = vadd.f32 %v688, %v1229
  %v1239 = vxor.u32 %v1231, 2147483648
  %v1240 = vxor.u32 %v1232, 2147483648
  %v1241 = vmul.f32 %v1239, 1.442695
  %v1242 = vpow.pop %v1241
  %v1243 = vmul.f32 %v1240, 1.442695
  %v1244 = vpow.pop %v1243
  %v1245 = vadd.f32 %v1242, 1.0
  %v1246 = vadd.f32 %v1244, 1.0
  %v1247 = vrcp.pop %v1245
  %v1248 = vmul.f32 1.0, %v1247
  %v1249 = vrcp.pop %v1246
  %v1250 = vmul.f32 1.0, %v1249
  %v1251 = vxor.u32 %v1233, 2147483648
  %v1252 = vxor.u32 %v1234, 2147483648
  %v1253 = vmul.f32 %v1251, 1.442695
  %v1254 = vpow.pop %v1253
  %v1255 = vmul.f32 %v1252, 1.442695
  %v1256 = vpow.pop %v1255
  %v1257 = vadd.f32 %v1254, 1.0
  %v1258 = vadd.f32 %v1256, 1.0
  %v1259 = vrcp.pop %v1257
  %v1260 = vmul.f32 1.0, %v1259
  %v1261 = vrcp.pop %v1258
  %v1262 = vmul.f32 1.0, %v1261
  %v1263 = vtanh.pop %v1235
  %v1264 = vtanh.pop %v1236
  %v1265 = vxor.u32 %v1237, 2147483648
  %v1266 = vxor.u32 %v1238, 2147483648
  %v1267 = vmul.f32 %v1265, 1.442695
  %v1268 = vpow.pop %v1267
  %v1269 = vmul.f32 %v1266, 1.442695
  %v1270 = vpow.pop %v1269
  %v1271 = vadd.f32 %v1268, 1.0
  %v1272 = vadd.f32 %v1270, 1.0
  %v1273 = vrcp.pop %v1271
  %v1274 = vmul.f32 1.0, %v1273
  %v1275 = vrcp.pop %v1272
  %v1276 = vmul.f32 1.0, %v1275
  %v1277 = vld [vmem:[%s5] sm:$0xff]
  %v1278 = vld [vmem:[%s5 + $0x8] sm:$0xff]
  %v1279 = vmul.f32 %v1260, %v1277
  %v1280 = vmul.f32 %v1262, %v1278
  %v1281 = vmul.f32 %v1248, %v1263
  %v1282 = vmul.f32 %v1250, %v1264
  %v1283 = vadd.f32 %v1279, %v1281
  %v1284 = vadd.f32 %v1280, %v1282
  %1285 = vst [vmem:[%s5] sm:$0xff] %v1283
  %1286 = vst [vmem:[%s5 + $0x8] sm:$0xff] %v1284
  %v1287 = vtanh.pop %v1283
  %v1288 = vtanh.pop %v1284
  %v1289 = vmul.f32 %v1274, %v1287
  %v1290 = vmul.f32 %v1276, %v1288
  %1291 = vst [vmem:[%s4] sm:$0xff] %v1289
  %1292 = vst [vmem:[%s4 + $0x8] sm:$0xff] %v1290
  %s1293 = smul.u32 1, 8
  %s1294 = smul.addr %s1293, 8
  %s1295 = scalar_lea.vmem [#allocation2], %s1294
  %v1296 = vld [vmem:[%s1295] sm:$0xff]
  %v1297 = vld [vmem:[%s1295 + $0x8] sm:$0xff]
  %v1298 = vld [vmem:[%s1295 + $0x10] sm:$0xff]
  %v1299 = vld [vmem:[%s1295 + $0x18] sm:$0xff]
  %v1300 = vld [vmem:[%s1295 + $0x20] sm:$0xff]
  %v1301 = vld [vmem:[%s1295 + $0x28] sm:$0xff]
  %v1302 = vld [vmem:[%s1295 + $0x30] sm:$0xff]
  %v1303 = vld [vmem:[%s1295 + $0x38] sm:$0xff]
  %v1304 = vld [vmem:[%s4] sm:$0xff]
  %v1305 = vld [vmem:[%s4 + $0x8] sm:$0xff]
  %v1306 = vld [vmem:[%s2] sm:$0xff]
  %v1307 = vld [vmem:[%s2 + $0x8] sm:$0xff]
  %v1308 = vld [vmem:[%s2 + $0x10] sm:$0xff]
  %v1309 = vld [vmem:[%s2 + $0x18] sm:$0xff]
  %v1310 = vld [vmem:[%s2 + $0x20] sm:$0xff]
  %v1311 = vld [vmem:[%s2 + $0x28] sm:$0xff]
  %v1312 = vld [vmem:[%s2 + $0x30] sm:$0xff]
  %v1313 = vld [vmem:[%s2 + $0x38] sm:$0xff]
  %v1314 = vld [vmem:[%s2 + $0x40] sm:$0xff]
  %v1315 = vld [vmem:[%s2 + $0x48] sm:$0xff]
  %v1316 = vld [vmem:[%s2 + $0x50] sm:$0xff]
  %v1317 = vld [vmem:[%s2 + $0x58] sm:$0xff]
  %v1318 = vld [vmem:[%s2 + $0x60] sm:$0xff]
  %v1319 = vld [vmem:[%s2 + $0x68] sm:$0xff]
  %v1320 = vld [vmem:[%s2 + $0x70] sm:$0xff]
  %v1321 = vld [vmem:[%s2 + $0x78] sm:$0xff]
  %v1322 = vld [vmem:[%s2 + $0x80] sm:$0xff]
  %v1323 = vld [vmem:[%s2 + $0x88] sm:$0xff]
  %v1324 = vld [vmem:[%s2 + $0x90] sm:$0xff]
  %v1325 = vld [vmem:[%s2 + $0x98] sm:$0xff]
  %v1326 = vld [vmem:[%s2 + $0xa0] sm:$0xff]
  %v1327 = vld [vmem:[%s2 + $0xa8] sm:$0xff]
  %v1328 = vld [vmem:[%s2 + $0xb0] sm:$0xff]
  %v1329 = vld [vmem:[%s2 + $0xb8] sm:$0xff]
  %v1330 = vld [vmem:[%s2 + $0xc0] sm:$0xff]
  %v1331 = vld [vmem:[%s2 + $0xc8] sm:$0xff]
  %v1332 = vld [vmem:[%s2 + $0xd0] sm:$0xff]
  %v1333 = vld [vmem:[%s2 + $0xd8] sm:$0xff]
  %v1334 = vld [vmem:[%s2 + $0xe0] sm:$0xff]
  %v1335 = vld [vmem:[%s2 + $0xe8] sm:$0xff]
  %v1336 = vld [vmem:[%s2 + $0xf0] sm:$0xff]
  %v1337 = vld [vmem:[%s2 + $0xf8] sm:$0xff]
  %v1338 = vld [vmem:[%s2 + $0x100] sm:$0xff]
  %v1339 = vld [vmem:[%s2 + $0x108] sm:$0xff]
  %v1340 = vld [vmem:[%s2 + $0x110] sm:$0xff]
  %v1341 = vld [vmem:[%s2 + $0x118] sm:$0xff]
  %v1342 = vld [vmem:[%s2 + $0x120] sm:$0xff]
  %v1343 = vld [vmem:[%s2 + $0x128] sm:$0xff]
  %v1344 = vld [vmem:[%s2 + $0x130] sm:$0xff]
  %v1345 = vld [vmem:[%s2 + $0x138] sm:$0xff]
  %v1346 = vld [vmem:[%s2 + $0x140] sm:$0xff]
  %v1347 = vld [vmem:[%s2 + $0x148] sm:$0xff]
  %v1348 = vld [vmem:[%s2 + $0x150] sm:$0xff]
  %v1349 = vld [vmem:[%s2 + $0x158] sm:$0xff]
  %v1350 = vld [vmem:[%s2 + $0x160] sm:$0xff]
  %v1351 = vld [vmem:[%s2 + $0x168] sm:$0xff]
  %v1352 = vld [vmem:[%s2 + $0x170] sm:$0xff]
  %v1353 = vld [vmem:[%s2 + $0x178] sm:$0xff]
  %v1354 = vld [vmem:[%s2 + $0x180] sm:$0xff]
  %v1355 = vld [vmem:[%s2 + $0x188] sm:$0xff]
  %v1356 = vld [vmem:[%s2 + $0x190] sm:$0xff]
  %v1357 = vld [vmem:[%s2 + $0x198] sm:$0xff]
  %v1358 = vld [vmem:[%s2 + $0x1a0] sm:$0xff]
  %v1359 = vld [vmem:[%s2 + $0x1a8] sm:$0xff]
  %v1360 = vld [vmem:[%s2 + $0x1b0] sm:$0xff]
  %v1361 = vld [vmem:[%s2 + $0x1b8] sm:$0xff]
  %v1362 = vld [vmem:[%s2 + $0x1c0] sm:$0xff]
  %v1363 = vld [vmem:[%s2 + $0x1c8] sm:$0xff]
  %v1364 = vld [vmem:[%s2 + $0x1d0] sm:$0xff]
  %v1365 = vld [vmem:[%s2 + $0x1d8] sm:$0xff]
  %v1366 = vld [vmem:[%s2 + $0x1e0] sm:$0xff]
  %v1367 = vld [vmem:[%s2 + $0x1e8] sm:$0xff]
  %v1368 = vld [vmem:[%s2 + $0x1f0] sm:$0xff]
  %v1369 = vld [vmem:[%s2 + $0x1f8] sm:$0xff]
  %v1370 = vld [vmem:[%s2 + $0x200] sm:$0xff]
  %v1371 = vld [vmem:[%s2 + $0x208] sm:$0xff]
  %v1372 = vld [vmem:[%s2 + $0x210] sm:$0xff]
  %v1373 = vld [vmem:[%s2 + $0x218] sm:$0xff]
  %v1374 = vld [vmem:[%s2 + $0x220] sm:$0xff]
  %v1375 = vld [vmem:[%s2 + $0x228] sm:$0xff]
  %v1376 = vld [vmem:[%s2 + $0x230] sm:$0xff]
  %v1377 = vld [vmem:[%s2 + $0x238] sm:$0xff]
  %v1378 = vld [vmem:[%s2 + $0x240] sm:$0xff]
  %v1379 = vld [vmem:[%s2 + $0x248] sm:$0xff]
  %v1380 = vld [vmem:[%s2 + $0x250] sm:$0xff]
  %v1381 = vld [vmem:[%s2 + $0x258] sm:$0xff]
  %v1382 = vld [vmem:[%s2 + $0x260] sm:$0xff]
  %v1383 = vld [vmem:[%s2 + $0x268] sm:$0xff]
  %v1384 = vld [vmem:[%s2 + $0x270] sm:$0xff]
  %v1385 = vld [vmem:[%s2 + $0x278] sm:$0xff]
  %v1386 = vld [vmem:[%s2 + $0x280] sm:$0xff]
  %v1387 = vld [vmem:[%s2 + $0x288] sm:$0xff]
  %v1388 = vld [vmem:[%s2 + $0x290] sm:$0xff]
  %v1389 = vld [vmem:[%s2 + $0x298] sm:$0xff]
  %v1390 = vld [vmem:[%s2 + $0x2a0] sm:$0xff]
  %v1391 = vld [vmem:[%s2 + $0x2a8] sm:$0xff]
  %v1392 = vld [vmem:[%s2 + $0x2b0] sm:$0xff]
  %v1393 = vld [vmem:[%s2 + $0x2b8] sm:$0xff]
  %v1394 = vld [vmem:[%s2 + $0x2c0] sm:$0xff]
  %v1395 = vld [vmem:[%s2 + $0x2c8] sm:$0xff]
  %v1396 = vld [vmem:[%s2 + $0x2d0] sm:$0xff]
  %v1397 = vld [vmem:[%s2 + $0x2d8] sm:$0xff]
  %v1398 = vld [vmem:[%s2 + $0x2e0] sm:$0xff]
  %v1399 = vld [vmem:[%s2 + $0x2e8] sm:$0xff]
  %v1400 = vld [vmem:[%s2 + $0x2f0] sm:$0xff]
  %v1401 = vld [vmem:[%s2 + $0x2f8] sm:$0xff]
  %v1402 = vld [vmem:[%s2 + $0x300] sm:$0xff]
  %v1403 = vld [vmem:[%s2 + $0x308] sm:$0xff]
  %v1404 = vld [vmem:[%s2 + $0x310] sm:$0xff]
  %v1405 = vld [vmem:[%s2 + $0x318] sm:$0xff]
  %v1406 = vld [vmem:[%s2 + $0x320] sm:$0xff]
  %v1407 = vld [vmem:[%s2 + $0x328] sm:$0xff]
  %v1408 = vld [vmem:[%s2 + $0x330] sm:$0xff]
  %v1409 = vld [vmem:[%s2 + $0x338] sm:$0xff]
  %v1410 = vld [vmem:[%s2 + $0x340] sm:$0xff]
  %v1411 = vld [vmem:[%s2 + $0x348] sm:$0xff]
  %v1412 = vld [vmem:[%s2 + $0x350] sm:$0xff]
  %v1413 = vld [vmem:[%s2 + $0x358] sm:$0xff]
  %v1414 = vld [vmem:[%s2 + $0x360] sm:$0xff]
  %v1415 = vld [vmem:[%s2 + $0x368] sm:$0xff]
  %v1416 = vld [vmem:[%s2 + $0x370] sm:$0xff]
  %v1417 = vld [vmem:[%s2 + $0x378] sm:$0xff]
  %v1418 = vld [vmem:[%s2 + $0x380] sm:$0xff]
  %v1419 = vld [vmem:[%s2 + $0x388] sm:$0xff]
  %v1420 = vld [vmem:[%s2 + $0x390] sm:$0xff]
  %v1421 = vld [vmem:[%s2 + $0x398] sm:$0xff]
  %v1422 = vld [vmem:[%s2 + $0x3a0] sm:$0xff]
  %v1423 = vld [vmem:[%s2 + $0x3a8] sm:$0xff]
  %v1424 = vld [vmem:[%s2 + $0x3b0] sm:$0xff]
  %v1425 = vld [vmem:[%s2 + $0x3b8] sm:$0xff]
  %v1426 = vld [vmem:[%s2 + $0x3c0] sm:$0xff]
  %v1427 = vld [vmem:[%s2 + $0x3c8] sm:$0xff]
  %v1428 = vld [vmem:[%s2 + $0x3d0] sm:$0xff]
  %v1429 = vld [vmem:[%s2 + $0x3d8] sm:$0xff]
  %v1430 = vld [vmem:[%s2 + $0x3e0] sm:$0xff]
  %v1431 = vld [vmem:[%s2 + $0x3e8] sm:$0xff]
  %v1432 = vld [vmem:[%s2 + $0x3f0] sm:$0xff]
  %v1433 = vld [vmem:[%s2 + $0x3f8] sm:$0xff]
  %v1434 = vld [vmem:[%s2 + $0x400] sm:$0xff]
  %v1435 = vld [vmem:[%s2 + $0x408] sm:$0xff]
  %v1436 = vld [vmem:[%s2 + $0x410] sm:$0xff]
  %v1437 = vld [vmem:[%s2 + $0x418] sm:$0xff]
  %v1438 = vld [vmem:[%s2 + $0x420] sm:$0xff]
  %v1439 = vld [vmem:[%s2 + $0x428] sm:$0xff]
  %v1440 = vld [vmem:[%s2 + $0x430] sm:$0xff]
  %v1441 = vld [vmem:[%s2 + $0x438] sm:$0xff]
  %v1442 = vld [vmem:[%s2 + $0x440] sm:$0xff]
  %v1443 = vld [vmem:[%s2 + $0x448] sm:$0xff]
  %v1444 = vld [vmem:[%s2 + $0x450] sm:$0xff]
  %v1445 = vld [vmem:[%s2 + $0x458] sm:$0xff]
  %v1446 = vld [vmem:[%s2 + $0x460] sm:$0xff]
  %v1447 = vld [vmem:[%s2 + $0x468] sm:$0xff]
  %v1448 = vld [vmem:[%s2 + $0x470] sm:$0xff]
  %v1449 = vld [vmem:[%s2 + $0x478] sm:$0xff]
  %v1450 = vld [vmem:[%s2 + $0x480] sm:$0xff]
  %v1451 = vld [vmem:[%s2 + $0x488] sm:$0xff]
  %v1452 = vld [vmem:[%s2 + $0x490] sm:$0xff]
  %v1453 = vld [vmem:[%s2 + $0x498] sm:$0xff]
  %v1454 = vld [vmem:[%s2 + $0x4a0] sm:$0xff]
  %v1455 = vld [vmem:[%s2 + $0x4a8] sm:$0xff]
  %v1456 = vld [vmem:[%s2 + $0x4b0] sm:$0xff]
  %v1457 = vld [vmem:[%s2 + $0x4b8] sm:$0xff]
  %v1458 = vld [vmem:[%s2 + $0x4c0] sm:$0xff]
  %v1459 = vld [vmem:[%s2 + $0x4c8] sm:$0xff]
  %v1460 = vld [vmem:[%s2 + $0x4d0] sm:$0xff]
  %v1461 = vld [vmem:[%s2 + $0x4d8] sm:$0xff]
  %v1462 = vld [vmem:[%s2 + $0x4e0] sm:$0xff]
  %v1463 = vld [vmem:[%s2 + $0x4e8] sm:$0xff]
  %v1464 = vld [vmem:[%s2 + $0x4f0] sm:$0xff]
  %v1465 = vld [vmem:[%s2 + $0x4f8] sm:$0xff]
  %v1466 = vld [vmem:[%s2 + $0x500] sm:$0xff]
  %v1467 = vld [vmem:[%s2 + $0x508] sm:$0xff]
  %v1468 = vld [vmem:[%s2 + $0x510] sm:$0xff]
  %v1469 = vld [vmem:[%s2 + $0x518] sm:$0xff]
  %v1470 = vld [vmem:[%s2 + $0x520] sm:$0xff]
  %v1471 = vld [vmem:[%s2 + $0x528] sm:$0xff]
  %v1472 = vld [vmem:[%s2 + $0x530] sm:$0xff]
  %v1473 = vld [vmem:[%s2 + $0x538] sm:$0xff]
  %v1474 = vld [vmem:[%s2 + $0x540] sm:$0xff]
  %v1475 = vld [vmem:[%s2 + $0x548] sm:$0xff]
  %v1476 = vld [vmem:[%s2 + $0x550] sm:$0xff]
  %v1477 = vld [vmem:[%s2 + $0x558] sm:$0xff]
  %v1478 = vld [vmem:[%s2 + $0x560] sm:$0xff]
  %v1479 = vld [vmem:[%s2 + $0x568] sm:$0xff]
  %v1480 = vld [vmem:[%s2 + $0x570] sm:$0xff]
  %v1481 = vld [vmem:[%s2 + $0x578] sm:$0xff]
  %v1482 = vld [vmem:[%s2 + $0x580] sm:$0xff]
  %v1483 = vld [vmem:[%s2 + $0x588] sm:$0xff]
  %v1484 = vld [vmem:[%s2 + $0x590] sm:$0xff]
  %v1485 = vld [vmem:[%s2 + $0x598] sm:$0xff]
  %v1486 = vld [vmem:[%s2 + $0x5a0] sm:$0xff]
  %v1487 = vld [vmem:[%s2 + $0x5a8] sm:$0xff]
  %v1488 = vld [vmem:[%s2 + $0x5b0] sm:$0xff]
  %v1489 = vld [vmem:[%s2 + $0x5b8] sm:$0xff]
  %v1490 = vld [vmem:[%s2 + $0x5c0] sm:$0xff]
  %v1491 = vld [vmem:[%s2 + $0x5c8] sm:$0xff]
  %v1492 = vld [vmem:[%s2 + $0x5d0] sm:$0xff]
  %v1493 = vld [vmem:[%s2 + $0x5d8] sm:$0xff]
  %v1494 = vld [vmem:[%s2 + $0x5e0] sm:$0xff]
  %v1495 = vld [vmem:[%s2 + $0x5e8] sm:$0xff]
  %v1496 = vld [vmem:[%s2 + $0x5f0] sm:$0xff]
  %v1497 = vld [vmem:[%s2 + $0x5f8] sm:$0xff]
  %v1498 = vld [vmem:[%s2 + $0x600] sm:$0xff]
  %v1499 = vld [vmem:[%s2 + $0x608] sm:$0xff]
  %v1500 = vld [vmem:[%s2 + $0x610] sm:$0xff]
  %v1501 = vld [vmem:[%s2 + $0x618] sm:$0xff]
  %v1502 = vld [vmem:[%s2 + $0x620] sm:$0xff]
  %v1503 = vld [vmem:[%s2 + $0x628] sm:$0xff]
  %v1504 = vld [vmem:[%s2 + $0x630] sm:$0xff]
  %v1505 = vld [vmem:[%s2 + $0x638] sm:$0xff]
  %v1506 = vld [vmem:[%s2 + $0x640] sm:$0xff]
  %v1507 = vld [vmem:[%s2 + $0x648] sm:$0xff]
  %v1508 = vld [vmem:[%s2 + $0x650] sm:$0xff]
  %v1509 = vld [vmem:[%s2 + $0x658] sm:$0xff]
  %v1510 = vld [vmem:[%s2 + $0x660] sm:$0xff]
  %v1511 = vld [vmem:[%s2 + $0x668] sm:$0xff]
  %v1512 = vld [vmem:[%s2 + $0x670] sm:$0xff]
  %v1513 = vld [vmem:[%s2 + $0x678] sm:$0xff]
  %v1514 = vld [vmem:[%s2 + $0x680] sm:$0xff]
  %v1515 = vld [vmem:[%s2 + $0x688] sm:$0xff]
  %v1516 = vld [vmem:[%s2 + $0x690] sm:$0xff]
  %v1517 = vld [vmem:[%s2 + $0x698] sm:$0xff]
  %v1518 = vld [vmem:[%s2 + $0x6a0] sm:$0xff]
  %v1519 = vld [vmem:[%s2 + $0x6a8] sm:$0xff]
  %v1520 = vld [vmem:[%s2 + $0x6b0] sm:$0xff]
  %v1521 = vld [vmem:[%s2 + $0x6b8] sm:$0xff]
  %v1522 = vld [vmem:[%s2 + $0x6c0] sm:$0xff]
  %v1523 = vld [vmem:[%s2 + $0x6c8] sm:$0xff]
  %v1524 = vld [vmem:[%s2 + $0x6d0] sm:$0xff]
  %v1525 = vld [vmem:[%s2 + $0x6d8] sm:$0xff]
  %v1526 = vld [vmem:[%s2 + $0x6e0] sm:$0xff]
  %v1527 = vld [vmem:[%s2 + $0x6e8] sm:$0xff]
  %v1528 = vld [vmem:[%s2 + $0x6f0] sm:$0xff]
  %v1529 = vld [vmem:[%s2 + $0x6f8] sm:$0xff]
  %v1530 = vld [vmem:[%s2 + $0x700] sm:$0xff]
  %v1531 = vld [vmem:[%s2 + $0x708] sm:$0xff]
  %v1532 = vld [vmem:[%s2 + $0x710] sm:$0xff]
  %v1533 = vld [vmem:[%s2 + $0x718] sm:$0xff]
  %v1534 = vld [vmem:[%s2 + $0x720] sm:$0xff]
  %v1535 = vld [vmem:[%s2 + $0x728] sm:$0xff]
  %v1536 = vld [vmem:[%s2 + $0x730] sm:$0xff]
  %v1537 = vld [vmem:[%s2 + $0x738] sm:$0xff]
  %v1538 = vld [vmem:[%s2 + $0x740] sm:$0xff]
  %v1539 = vld [vmem:[%s2 + $0x748] sm:$0xff]
  %v1540 = vld [vmem:[%s2 + $0x750] sm:$0xff]
  %v1541 = vld [vmem:[%s2 + $0x758] sm:$0xff]
  %v1542 = vld [vmem:[%s2 + $0x760] sm:$0xff]
  %v1543 = vld [vmem:[%s2 + $0x768] sm:$0xff]
  %v1544 = vld [vmem:[%s2 + $0x770] sm:$0xff]
  %v1545 = vld [vmem:[%s2 + $0x778] sm:$0xff]
  %v1546 = vld [vmem:[%s2 + $0x780] sm:$0xff]
  %v1547 = vld [vmem:[%s2 + $0x788] sm:$0xff]
  %v1548 = vld [vmem:[%s2 + $0x790] sm:$0xff]
  %v1549 = vld [vmem:[%s2 + $0x798] sm:$0xff]
  %v1550 = vld [vmem:[%s2 + $0x7a0] sm:$0xff]
  %v1551 = vld [vmem:[%s2 + $0x7a8] sm:$0xff]
  %v1552 = vld [vmem:[%s2 + $0x7b0] sm:$0xff]
  %v1553 = vld [vmem:[%s2 + $0x7b8] sm:$0xff]
  %v1554 = vld [vmem:[%s2 + $0x7c0] sm:$0xff]
  %v1555 = vld [vmem:[%s2 + $0x7c8] sm:$0xff]
  %v1556 = vld [vmem:[%s2 + $0x7d0] sm:$0xff]
  %v1557 = vld [vmem:[%s2 + $0x7d8] sm:$0xff]
  %v1558 = vld [vmem:[%s2 + $0x7e0] sm:$0xff]
  %v1559 = vld [vmem:[%s2 + $0x7e8] sm:$0xff]
  %v1560 = vld [vmem:[%s2 + $0x7f0] sm:$0xff]
  %v1561 = vld [vmem:[%s2 + $0x7f8] sm:$0xff]
  %1562 = vmatprep.subr.mxu0 %v1427
  %1563 = vmatpush1.msra.mxu0 %v1426
  %1564 = vmatprep.subr.mxu0 %v1419
  %1565 = vmatpush1.msra.mxu0 %v1418
  %1566 = vmatprep.subr.mxu0 %v1411
  %1567 = vmatpush1.msra.mxu0 %v1410
  %1568 = vmatprep.subr.mxu0 %v1403
  %1569 = vmatpush1.msra.mxu0 %v1402
  %1570 = vmatprep.subr.mxu0 %v1395
  %1571 = vmatpush1.msra.mxu0 %v1394
  %1572 = vmatprep.subr.mxu0 %v1387
  %1573 = vmatpush1.msra.mxu0 %v1386
  %1574 = vmatprep.subr.mxu0 %v1379
  %1575 = vmatpush1.msra.mxu0 %v1378
  %1576 = vmatprep.subr.mxu0 %v1371
  %1577 = vmatpush1.msra.mxu0 %v1370
  %1578 = vmatprep.subr.mxu0 %v1363
  %1579 = vmatpush1.msra.mxu0 %v1362
  %1580 = vmatprep.subr.mxu0 %v1355
  %1581 = vmatpush1.msra.mxu0 %v1354
  %1582 = vmatprep.subr.mxu0 %v1347
  %1583 = vmatpush1.msra.mxu0 %v1346
  %1584 = vmatprep.subr.mxu0 %v1339
  %1585 = vmatpush1.msra.mxu0 %v1338
  %1586 = vmatprep.subr.mxu0 %v1331
  %1587 = vmatpush1.msra.mxu0 %v1330
  %1588 = vmatprep.subr.mxu0 %v1323
  %1589 = vmatpush1.msra.mxu0 %v1322
  %1590 = vmatprep.subr.mxu0 %v1315
  %1591 = vmatpush1.msra.mxu0 %v1314
  %1592 = vmatprep.subr.mxu0 %v1307
  %1593 = vmatpush1.msra.mxu0 %v1306
  %1594 = vmatprep.subr.mxu0 %v1555
  %1595 = vmatpush2.msra.mxu0 %v1554
  %1596 = vmatprep.subr.mxu0 %v1547
  %1597 = vmatpush2.msra.mxu0 %v1546
  %1598 = vmatprep.subr.mxu0 %v1539
  %1599 = vmatpush2.msra.mxu0 %v1538
  %1600 = vmatprep.subr.mxu0 %v1531
  %1601 = vmatpush2.msra.mxu0 %v1530
  %1602 = vmatprep.subr.mxu0 %v1523
  %1603 = vmatpush2.msra.mxu0 %v1522
  %1604 = vmatprep.subr.mxu0 %v1515
  %1605 = vmatpush2.msra.mxu0 %v1514
  %1606 = vmatprep.subr.mxu0 %v1507
  %1607 = vmatpush2.msra.mxu0 %v1506
  %1608 = vmatprep.subr.mxu0 %v1499
  %1609 = vmatpush2.msra.mxu0 %v1498
  %1610 = vmatprep.subr.mxu0 %v1491
  %1611 = vmatpush2.msra.mxu0 %v1490
  %1612 = vmatprep.subr.mxu0 %v1483
  %1613 = vmatpush2.msra.mxu0 %v1482
  %1614 = vmatprep.subr.mxu0 %v1475
  %1615 = vmatpush2.msra.mxu0 %v1474
  %1616 = vmatprep.subr.mxu0 %v1467
  %1617 = vmatpush2.msra.mxu0 %v1466
  %1618 = vmatprep.subr.mxu0 %v1459
  %1619 = vmatpush2.msra.mxu0 %v1458
  %1620 = vmatprep.subr.mxu0 %v1451
  %1621 = vmatpush2.msra.mxu0 %v1450
  %1622 = vmatprep.subr.mxu0 %v1443
  %1623 = vmatpush2.msra.mxu0 %v1442
  %1624 = vmatprep.subr.mxu0 %v1435
  %1625 = vmatpush2.msra.mxu0 %v1434
  %1626 = vmatprep.mubr.f32.mxu0 %v1305
  %1627 = vmatmul.mubr.f32.gmra.mxu0 %v1304
  %v1628 = vpop.f32.mrf.mxu0
  %v1629 = vadd.f32 0.0, %v1628
  %v1630 = vpop.f32.mrf.mxu0
  %v1631 = vadd.f32 0.0, %v1630
  %1632 = vdwg.mxu0
  %1633 = vmatprep.subr.mxu0 %v1429
  %1634 = vmatpush1.msra.mxu0 %v1428
  %1635 = vmatprep.subr.mxu0 %v1421
  %1636 = vmatpush1.msra.mxu0 %v1420
  %1637 = vmatprep.subr.mxu0 %v1413
  %1638 = vmatpush1.msra.mxu0 %v1412
  %1639 = vmatprep.subr.mxu0 %v1405
  %1640 = vmatpush1.msra.mxu0 %v1404
  %1641 = vmatprep.subr.mxu0 %v1397
  %1642 = vmatpush1.msra.mxu0 %v1396
  %1643 = vmatprep.subr.mxu0 %v1389
  %1644 = vmatpush1.msra.mxu0 %v1388
  %1645 = vmatprep.subr.mxu0 %v1381
  %1646 = vmatpush1.msra.mxu0 %v1380
  %1647 = vmatprep.subr.mxu0 %v1373
  %1648 = vmatpush1.msra.mxu0 %v1372
  %1649 = vmatprep.subr.mxu0 %v1365
  %1650 = vmatpush1.msra.mxu0 %v1364
  %1651 = vmatprep.subr.mxu0 %v1357
  %1652 = vmatpush1.msra.mxu0 %v1356
  %1653 = vmatprep.subr.mxu0 %v1349
  %1654 = vmatpush1.msra.mxu0 %v1348
  %1655 = vmatprep.subr.mxu0 %v1341
  %1656 = vmatpush1.msra.mxu0 %v1340
  %1657 = vmatprep.subr.mxu0 %v1333
  %1658 = vmatpush1.msra.mxu0 %v1332
  %1659 = vmatprep.subr.mxu0 %v1325
  %1660 = vmatpush1.msra.mxu0 %v1324
  %1661 = vmatprep.subr.mxu0 %v1317
  %1662 = vmatpush1.msra.mxu0 %v1316
  %1663 = vmatprep.subr.mxu0 %v1309
  %1664 = vmatpush1.msra.mxu0 %v1308
  %1665 = vmatprep.subr.mxu0 %v1557
  %1666 = vmatpush2.msra.mxu0 %v1556
  %1667 = vmatprep.subr.mxu0 %v1549
  %1668 = vmatpush2.msra.mxu0 %v1548
  %1669 = vmatprep.subr.mxu0 %v1541
  %1670 = vmatpush2.msra.mxu0 %v1540
  %1671 = vmatprep.subr.mxu0 %v1533
  %1672 = vmatpush2.msra.mxu0 %v1532
  %1673 = vmatprep.subr.mxu0 %v1525
  %1674 = vmatpush2.msra.mxu0 %v1524
  %1675 = vmatprep.subr.mxu0 %v1517
  %1676 = vmatpush2.msra.mxu0 %v1516
  %1677 = vmatprep.subr.mxu0 %v1509
  %1678 = vmatpush2.msra.mxu0 %v1508
  %1679 = vmatprep.subr.mxu0 %v1501
  %1680 = vmatpush2.msra.mxu0 %v1500
  %1681 = vmatprep.subr.mxu0 %v1493
  %1682 = vmatpush2.msra.mxu0 %v1492
  %1683 = vmatprep.subr.mxu0 %v1485
  %1684 = vmatpush2.msra.mxu0 %v1484
  %1685 = vmatprep.subr.mxu0 %v1477
  %1686 = vmatpush2.msra.mxu0 %v1476
  %1687 = vmatprep.subr.mxu0 %v1469
  %1688 = vmatpush2.msra.mxu0 %v1468
  %1689 = vmatprep.subr.mxu0 %v1461
  %1690 = vmatpush2.msra.mxu0 %v1460
  %1691 = vmatprep.subr.mxu0 %v1453
  %1692 = vmatpush2.msra.mxu0 %v1452
  %1693 = vmatprep.subr.mxu0 %v1445
  %1694 = vmatpush2.msra.mxu0 %v1444
  %1695 = vmatprep.subr.mxu0 %v1437
  %1696 = vmatpush2.msra.mxu0 %v1436
  %1697 = vmatprep.mubr.f32.mxu0 %v1305
  %1698 = vmatmul.mubr.f32.gmra.mxu0 %v1304
  %v1699 = vpop.f32.mrf.mxu0
  %v1700 = vadd.f32 0.0, %v1699
  %v1701 = vpop.f32.mrf.mxu0
  %v1702 = vadd.f32 0.0, %v1701
  %1703 = vdwg.mxu0
  %1704 = vmatprep.subr.mxu0 %v1431
  %1705 = vmatpush1.msra.mxu0 %v1430
  %1706 = vmatprep.subr.mxu0 %v1423
  %1707 = vmatpush1.msra.mxu0 %v1422
  %1708 = vmatprep.subr.mxu0 %v1415
  %1709 = vmatpush1.msra.mxu0 %v1414
  %1710 = vmatprep.subr.mxu0 %v1407
  %1711 = vmatpush1.msra.mxu0 %v1406
  %1712 = vmatprep.subr.mxu0 %v1399
  %1713 = vmatpush1.msra.mxu0 %v1398
  %1714 = vmatprep.subr.mxu0 %v1391
  %1715 = vmatpush1.msra.mxu0 %v1390
  %1716 = vmatprep.subr.mxu0 %v1383
  %1717 = vmatpush1.msra.mxu0 %v1382
  %1718 = vmatprep.subr.mxu0 %v1375
  %1719 = vmatpush1.msra.mxu0 %v1374
  %1720 = vmatprep.subr.mxu0 %v1367
  %1721 = vmatpush1.msra.mxu0 %v1366
  %1722 = vmatprep.subr.mxu0 %v1359
  %1723 = vmatpush1.msra.mxu0 %v1358
  %1724 = vmatprep.subr.mxu0 %v1351
  %1725 = vmatpush1.msra.mxu0 %v1350
  %1726 = vmatprep.subr.mxu0 %v1343
  %1727 = vmatpush1.msra.mxu0 %v1342
  %1728 = vmatprep.subr.mxu0 %v1335
  %1729 = vmatpush1.msra.mxu0 %v1334
  %1730 = vmatprep.subr.mxu0 %v1327
  %1731 = vmatpush1.msra.mxu0 %v1326
  %1732 = vmatprep.subr.mxu0 %v1319
  %1733 = vmatpush1.msra.mxu0 %v1318
  %1734 = vmatprep.subr.mxu0 %v1311
  %1735 = vmatpush1.msra.mxu0 %v1310
  %1736 = vmatprep.subr.mxu0 %v1559
  %1737 = vmatpush2.msra.mxu0 %v1558
  %1738 = vmatprep.subr.mxu0 %v1551
  %1739 = vmatpush2.msra.mxu0 %v1550
  %1740 = vmatprep.subr.mxu0 %v1543
  %1741 = vmatpush2.msra.mxu0 %v1542
  %1742 = vmatprep.subr.mxu0 %v1535
  %1743 = vmatpush2.msra.mxu0 %v1534
  %1744 = vmatprep.subr.mxu0 %v1527
  %1745 = vmatpush2.msra.mxu0 %v1526
  %1746 = vmatprep.subr.mxu0 %v1519
  %1747 = vmatpush2.msra.mxu0 %v1518
  %1748 = vmatprep.subr.mxu0 %v1511
  %1749 = vmatpush2.msra.mxu0 %v1510
  %1750 = vmatprep.subr.mxu0 %v1503
  %1751 = vmatpush2.msra.mxu0 %v1502
  %1752 = vmatprep.subr.mxu0 %v1495
  %1753 = vmatpush2.msra.mxu0 %v1494
  %1754 = vmatprep.subr.mxu0 %v1487
  %1755 = vmatpush2.msra.mxu0 %v1486
  %1756 = vmatprep.subr.mxu0 %v1479
  %1757 = vmatpush2.msra.mxu0 %v1478
  %1758 = vmatprep.subr.mxu0 %v1471
  %1759 = vmatpush2.msra.mxu0 %v1470
  %1760 = vmatprep.subr.mxu0 %v1463
  %1761 = vmatpush2.msra.mxu0 %v1462
  %1762 = vmatprep.subr.mxu0 %v1455
  %1763 = vmatpush2.msra.mxu0 %v1454
  %1764 = vmatprep.subr.mxu0 %v1447
  %1765 = vmatpush2.msra.mxu0 %v1446
  %1766 = vmatprep.subr.mxu0 %v1439
  %1767 = vmatpush2.msra.mxu0 %v1438
  %1768 = vmatprep.mubr.f32.mxu0 %v1305
  %1769 = vmatmul.mubr.f32.gmra.mxu0 %v1304
  %v1770 = vpop.f32.mrf.mxu0
  %v1771 = vadd.f32 0.0, %v1770
  %v1772 = vpop.f32.mrf.mxu0
  %v1773 = vadd.f32 0.0, %v1772
  %1774 = vdwg.mxu0
  %1775 = vmatprep.subr.mxu0 %v1433
  %1776 = vmatpush1.msra.mxu0 %v1432
  %1777 = vmatprep.subr.mxu0 %v1425
  %1778 = vmatpush1.msra.mxu0 %v1424
  %1779 = vmatprep.subr.mxu0 %v1417
  %1780 = vmatpush1.msra.mxu0 %v1416
  %1781 = vmatprep.subr.mxu0 %v1409
  %1782 = vmatpush1.msra.mxu0 %v1408
  %1783 = vmatprep.subr.mxu0 %v1401
  %1784 = vmatpush1.msra.mxu0 %v1400
  %1785 = vmatprep.subr.mxu0 %v1393
  %1786 = vmatpush1.msra.mxu0 %v1392
  %1787 = vmatprep.subr.mxu0 %v1385
  %1788 = vmatpush1.msra.mxu0 %v1384
  %1789 = vmatprep.subr.mxu0 %v1377
  %1790 = vmatpush1.msra.mxu0 %v1376
  %1791 = vmatprep.subr.mxu0 %v1369
  %1792 = vmatpush1.msra.mxu0 %v1368
  %1793 = vmatprep.subr.mxu0 %v1361
  %1794 = vmatpush1.msra.mxu0 %v1360
  %1795 = vmatprep.subr.mxu0 %v1353
  %1796 = vmatpush1.msra.mxu0 %v1352
  %1797 = vmatprep.subr.mxu0 %v1345
  %1798 = vmatpush1.msra.mxu0 %v1344
  %1799 = vmatprep.subr.mxu0 %v1337
  %1800 = vmatpush1.msra.mxu0 %v1336
  %1801 = vmatprep.subr.mxu0 %v1329
  %1802 = vmatpush1.msra.mxu0 %v1328
  %1803 = vmatprep.subr.mxu0 %v1321
  %1804 = vmatpush1.msra.mxu0 %v1320
  %1805 = vmatprep.subr.mxu0 %v1313
  %1806 = vmatpush1.msra.mxu0 %v1312
  %1807 = vmatprep.subr.mxu0 %v1561
  %1808 = vmatpush2.msra.mxu0 %v1560
  %1809 = vmatprep.subr.mxu0 %v1553
  %1810 = vmatpush2.msra.mxu0 %v1552
  %1811 = vmatprep.subr.mxu0 %v1545
  %1812 = vmatpush2.msra.mxu0 %v1544
  %1813 = vmatprep.subr.mxu0 %v1537
  %1814 = vmatpush2.msra.mxu0 %v1536
  %1815 = vmatprep.subr.mxu0 %v1529
  %1816 = vmatpush2.msra.mxu0 %v1528
  %1817 = vmatprep.subr.mxu0 %v1521
  %1818 = vmatpush2.msra.mxu0 %v1520
  %1819 = vmatprep.subr.mxu0 %v1513
  %1820 = vmatpush2.msra.mxu0 %v1512
  %1821 = vmatprep.subr.mxu0 %v1505
  %1822 = vmatpush2.msra.mxu0 %v1504
  %1823 = vmatprep.subr.mxu0 %v1497
  %1824 = vmatpush2.msra.mxu0 %v1496
  %1825 = vmatprep.subr.mxu0 %v1489
  %1826 = vmatpush2.msra.mxu0 %v1488
  %1827 = vmatprep.subr.mxu0 %v1481
  %1828 = vmatpush2.msra.mxu0 %v1480
  %1829 = vmatprep.subr.mxu0 %v1473
  %1830 = vmatpush2.msra.mxu0 %v1472
  %1831 = vmatprep.subr.mxu0 %v1465
  %1832 = vmatpush2.msra.mxu0 %v1464
  %1833 = vmatprep.subr.mxu0 %v1457
  %1834 = vmatpush2.msra.mxu0 %v1456
  %1835 = vmatprep.subr.mxu0 %v1449
  %1836 = vmatpush2.msra.mxu0 %v1448
  %1837 = vmatprep.subr.mxu0 %v1441
  %1838 = vmatpush2.msra.mxu0 %v1440
  %1839 = vmatprep.mubr.f32.mxu0 %v1305
  %1840 = vmatmul.mubr.f32.gmra.mxu0 %v1304
  %v1841 = vpop.f32.mrf.mxu0
  %v1842 = vadd.f32 0.0, %v1841
  %v1843 = vpop.f32.mrf.mxu0
  %v1844 = vadd.f32 0.0, %v1843
  %1845 = vdwg.mxu0
  %v1846 = vadd.f32 %v1296, %v1629
  %v1847 = vadd.f32 %v1297, %v1631
  %v1848 = vadd.f32 %v1298, %v1700
  %v1849 = vadd.f32 %v1299, %v1702
  %v1850 = vadd.f32 %v1300, %v1771
  %v1851 = vadd.f32 %v1301, %v1773
  %v1852 = vadd.f32 %v1302, %v1842
  %v1853 = vadd.f32 %v1303, %v1844
  %v1854 = vxor.u32 %v1846, 2147483648
  %v1855 = vxor.u32 %v1847, 2147483648
  %v1856 = vmul.f32 %v1854, 1.442695
  %v1857 = vpow.pop %v1856
  %v1858 = vmul.f32 %v1855, 1.442695
  %v1859 = vpow.pop %v1858
  %v1860 = vadd.f32 %v1857, 1.0
  %v1861 = vadd.f32 %v1859, 1.0
  %v1862 = vrcp.pop %v1860
  %v1863 = vmul.f32 1.0, %v1862
  %v1864 = vrcp.pop %v1861
  %v1865 = vmul.f32 1.0, %v1864
  %v1866 = vxor.u32 %v1848, 2147483648
  %v1867 = vxor.u32 %v1849, 2147483648
  %v1868 = vmul.f32 %v1866, 1.442695
  %v1869 = vpow.pop %v1868
  %v1870 = vmul.f32 %v1867, 1.442695
  %v1871 = vpow.pop %v1870
  %v1872 = vadd.f32 %v1869, 1.0
  %v1873 = vadd.f32 %v1871, 1.0
  %v1874 = vrcp.pop %v1872
  %v1875 = vmul.f32 1.0, %v1874
  %v1876 = vrcp.pop %v1873
  %v1877 = vmul.f32 1.0, %v1876
  %v1878 = vtanh.pop %v1850
  %v1879 = vtanh.pop %v1851
  %v1880 = vxor.u32 %v1852, 2147483648
  %v1881 = vxor.u32 %v1853, 2147483648
  %v1882 = vmul.f32 %v1880, 1.442695
  %v1883 = vpow.pop %v1882
  %v1884 = vmul.f32 %v1881, 1.442695
  %v1885 = vpow.pop %v1884
  %v1886 = vadd.f32 %v1883, 1.0
  %v1887 = vadd.f32 %v1885, 1.0
  %v1888 = vrcp.pop %v1886
  %v1889 = vmul.f32 1.0, %v1888
  %v1890 = vrcp.pop %v1887
  %v1891 = vmul.f32 1.0, %v1890
  %v1892 = vld [vmem:[%s5] sm:$0xff]
  %v1893 = vld [vmem:[%s5 + $0x8] sm:$0xff]
  %v1894 = vmul.f32 %v1875, %v1892
  %v1895 = vmul.f32 %v1877, %v1893
  %v1896 = vmul.f32 %v1863, %v1878
  %v1897 = vmul.f32 %v1865, %v1879
  %v1898 = vadd.f32 %v1894, %v1896
  %v1899 = vadd.f32 %v1895, %v1897
  %1900 = vst [vmem:[%s5] sm:$0xff] %v1898
  %1901 = vst [vmem:[%s5 + $0x8] sm:$0xff] %v1899
  %v1902 = vtanh.pop %v1898
  %v1903 = vtanh.pop %v1899
  %v1904 = vmul.f32 %v1889, %v1902
  %v1905 = vmul.f32 %v1891, %v1903
  %1906 = vst [vmem:[%s4] sm:$0xff] %v1904
  %1907 = vst [vmem:[%s4 + $0x8] sm:$0xff] %v1905
  %s1908 = smul.u32 2, 8
  %s1909 = smul.addr %s1908, 8
  %s1910 = scalar_lea.vmem [#allocation2], %s1909
  %v1911 = vld [vmem:[%s1910] sm:$0xff]
  %v1912 = vld [vmem:[%s1910 + $0x8] sm:$0xff]
  %v1913 = vld [vmem:[%s1910 + $0x10] sm:$0xff]
  %v1914 = vld [vmem:[%s1910 + $0x18] sm:$0xff]
  %v1915 = vld [vmem:[%s1910 + $0x20] sm:$0xff]
  %v1916 = vld [vmem:[%s1910 + $0x28] sm:$0xff]
  %v1917 = vld [vmem:[%s1910 + $0x30] sm:$0xff]
  %v1918 = vld [vmem:[%s1910 + $0x38] sm:$0xff]
  %v1919 = vld [vmem:[%s4] sm:$0xff]
  %v1920 = vld [vmem:[%s4 + $0x8] sm:$0xff]
  %v1921 = vld [vmem:[%s2] sm:$0xff]
  %v1922 = vld [vmem:[%s2 + $0x8] sm:$0xff]
  %v1923 = vld [vmem:[%s2 + $0x10] sm:$0xff]
  %v1924 = vld [vmem:[%s2 + $0x18] sm:$0xff]
  %v1925 = vld [vmem:[%s2 + $0x20] sm:$0xff]
  %v1926 = vld [vmem:[%s2 + $0x28] sm:$0xff]
  %v1927 = vld [vmem:[%s2 + $0x30] sm:$0xff]
  %v1928 = vld [vmem:[%s2 + $0x38] sm:$0xff]
  %v1929 = vld [vmem:[%s2 + $0x40] sm:$0xff]
  %v1930 = vld [vmem:[%s2 + $0x48] sm:$0xff]
  %v1931 = vld [vmem:[%s2 + $0x50] sm:$0xff]
  %v1932 = vld [vmem:[%s2 + $0x58] sm:$0xff]
  %v1933 = vld [vmem:[%s2 + $0x60] sm:$0xff]
  %v1934 = vld [vmem:[%s2 + $0x68] sm:$0xff]
  %v1935 = vld [vmem:[%s2 + $0x70] sm:$0xff]
  %v1936 = vld [vmem:[%s2 + $0x78] sm:$0xff]
  %v1937 = vld [vmem:[%s2 + $0x80] sm:$0xff]
  %v1938 = vld [vmem:[%s2 + $0x88] sm:$0xff]
  %v1939 = vld [vmem:[%s2 + $0x90] sm:$0xff]
  %v1940 = vld [vmem:[%s2 + $0x98] sm:$0xff]
  %v1941 = vld [vmem:[%s2 + $0xa0] sm:$0xff]
  %v1942 = vld [vmem:[%s2 + $0xa8] sm:$0xff]
  %v1943 = vld [vmem:[%s2 + $0xb0] sm:$0xff]
  %v1944 = vld [vmem:[%s2 + $0xb8] sm:$0xff]
  %v1945 = vld [vmem:[%s2 + $0xc0] sm:$0xff]
  %v1946 = vld [vmem:[%s2 + $0xc8] sm:$0xff]
  %v1947 = vld [vmem:[%s2 + $0xd0] sm:$0xff]
  %v1948 = vld [vmem:[%s2 + $0xd8] sm:$0xff]
  %v1949 = vld [vmem:[%s2 + $0xe0] sm:$0xff]
  %v1950 = vld [vmem:[%s2 + $0xe8] sm:$0xff]
  %v1951 = vld [vmem:[%s2 + $0xf0] sm:$0xff]
  %v1952 = vld [vmem:[%s2 + $0xf8] sm:$0xff]
  %v1953 = vld [vmem:[%s2 + $0x100] sm:$0xff]
  %v1954 = vld [vmem:[%s2 + $0x108] sm:$0xff]
  %v1955 = vld [vmem:[%s2 + $0x110] sm:$0xff]
  %v1956 = vld [vmem:[%s2 + $0x118] sm:$0xff]
  %v1957 = vld [vmem:[%s2 + $0x120] sm:$0xff]
  %v1958 = vld [vmem:[%s2 + $0x128] sm:$0xff]
  %v1959 = vld [vmem:[%s2 + $0x130] sm:$0xff]
  %v1960 = vld [vmem:[%s2 + $0x138] sm:$0xff]
  %v1961 = vld [vmem:[%s2 + $0x140] sm:$0xff]
  %v1962 = vld [vmem:[%s2 + $0x148] sm:$0xff]
  %v1963 = vld [vmem:[%s2 + $0x150] sm:$0xff]
  %v1964 = vld [vmem:[%s2 + $0x158] sm:$0xff]
  %v1965 = vld [vmem:[%s2 + $0x160] sm:$0xff]
  %v1966 = vld [vmem:[%s2 + $0x168] sm:$0xff]
  %v1967 = vld [vmem:[%s2 + $0x170] sm:$0xff]
  %v1968 = vld [vmem:[%s2 + $0x178] sm:$0xff]
  %v1969 = vld [vmem:[%s2 + $0x180] sm:$0xff]
  %v1970 = vld [vmem:[%s2 + $0x188] sm:$0xff]
  %v1971 = vld [vmem:[%s2 + $0x190] sm:$0xff]
  %v1972 = vld [vmem:[%s2 + $0x198] sm:$0xff]
  %v1973 = vld [vmem:[%s2 + $0x1a0] sm:$0xff]
  %v1974 = vld [vmem:[%s2 + $0x1a8] sm:$0xff]
  %v1975 = vld [vmem:[%s2 + $0x1b0] sm:$0xff]
  %v1976 = vld [vmem:[%s2 + $0x1b8] sm:$0xff]
  %v1977 = vld [vmem:[%s2 + $0x1c0] sm:$0xff]
  %v1978 = vld [vmem:[%s2 + $0x1c8] sm:$0xff]
  %v1979 = vld [vmem:[%s2 + $0x1d0] sm:$0xff]
  %v1980 = vld [vmem:[%s2 + $0x1d8] sm:$0xff]
  %v1981 = vld [vmem:[%s2 + $0x1e0] sm:$0xff]
  %v1982 = vld [vmem:[%s2 + $0x1e8] sm:$0xff]
  %v1983 = vld [vmem:[%s2 + $0x1f0] sm:$0xff]
  %v1984 = vld [vmem:[%s2 + $0x1f8] sm:$0xff]
  %v1985 = vld [vmem:[%s2 + $0x200] sm:$0xff]
  %v1986 = vld [vmem:[%s2 + $0x208] sm:$0xff]
  %v1987 = vld [vmem:[%s2 + $0x210] sm:$0xff]
  %v1988 = vld [vmem:[%s2 + $0x218] sm:$0xff]
  %v1989 = vld [vmem:[%s2 + $0x220] sm:$0xff]
  %v1990 = vld [vmem:[%s2 + $0x228] sm:$0xff]
  %v1991 = vld [vmem:[%s2 + $0x230] sm:$0xff]
  %v1992 = vld [vmem:[%s2 + $0x238] sm:$0xff]
  %v1993 = vld [vmem:[%s2 + $0x240] sm:$0xff]
  %v1994 = vld [vmem:[%s2 + $0x248] sm:$0xff]
  %v1995 = vld [vmem:[%s2 + $0x250] sm:$0xff]
  %v1996 = vld [vmem:[%s2 + $0x258] sm:$0xff]
  %v1997 = vld [vmem:[%s2 + $0x260] sm:$0xff]
  %v1998 = vld [vmem:[%s2 + $0x268] sm:$0xff]
  %v1999 = vld [vmem:[%s2 + $0x270] sm:$0xff]
  %v2000 = vld [vmem:[%s2 + $0x278] sm:$0xff]
  %v2001 = vld [vmem:[%s2 + $0x280] sm:$0xff]
  %v2002 = vld [vmem:[%s2 + $0x288] sm:$0xff]
  %v2003 = vld [vmem:[%s2 + $0x290] sm:$0xff]
  %v2004 = vld [vmem:[%s2 + $0x298] sm:$0xff]
  %v2005 = vld [vmem:[%s2 + $0x2a0] sm:$0xff]
  %v2006 = vld [vmem:[%s2 + $0x2a8] sm:$0xff]
  %v2007 = vld [vmem:[%s2 + $0x2b0] sm:$0xff]
  %v2008 = vld [vmem:[%s2 + $0x2b8] sm:$0xff]
  %v2009 = vld [vmem:[%s2 + $0x2c0] sm:$0xff]
  %v2010 = vld [vmem:[%s2 + $0x2c8] sm:$0xff]
  %v2011 = vld [vmem:[%s2 + $0x2d0] sm:$0xff]
  %v2012 = vld [vmem:[%s2 + $0x2d8] sm:$0xff]
  %v2013 = vld [vmem:[%s2 + $0x2e0] sm:$0xff]
  %v2014 = vld [vmem:[%s2 + $0x2e8] sm:$0xff]
  %v2015 = vld [vmem:[%s2 + $0x2f0] sm:$0xff]
  %v2016 = vld [vmem:[%s2 + $0x2f8] sm:$0xff]
  %v2017 = vld [vmem:[%s2 + $0x300] sm:$0xff]
  %v2018 = vld [vmem:[%s2 + $0x308] sm:$0xff]
  %v2019 = vld [vmem:[%s2 + $0x310] sm:$0xff]
  %v2020 = vld [vmem:[%s2 + $0x318] sm:$0xff]
  %v2021 = vld [vmem:[%s2 + $0x320] sm:$0xff]
  %v2022 = vld [vmem:[%s2 + $0x328] sm:$0xff]
  %v2023 = vld [vmem:[%s2 + $0x330] sm:$0xff]
  %v2024 = vld [vmem:[%s2 + $0x338] sm:$0xff]
  %v2025 = vld [vmem:[%s2 + $0x340] sm:$0xff]
  %v2026 = vld [vmem:[%s2 + $0x348] sm:$0xff]
  %v2027 = vld [vmem:[%s2 + $0x350] sm:$0xff]
  %v2028 = vld [vmem:[%s2 + $0x358] sm:$0xff]
  %v2029 = vld [vmem:[%s2 + $0x360] sm:$0xff]
  %v2030 = vld [vmem:[%s2 + $0x368] sm:$0xff]
  %v2031 = vld [vmem:[%s2 + $0x370] sm:$0xff]
  %v2032 = vld [vmem:[%s2 + $0x378] sm:$0xff]
  %v2033 = vld [vmem:[%s2 + $0x380] sm:$0xff]
  %v2034 = vld [vmem:[%s2 + $0x388] sm:$0xff]
  %v2035 = vld [vmem:[%s2 + $0x390] sm:$0xff]
  %v2036 = vld [vmem:[%s2 + $0x398] sm:$0xff]
  %v2037 = vld [vmem:[%s2 + $0x3a0] sm:$0xff]
  %v2038 = vld [vmem:[%s2 + $0x3a8] sm:$0xff]
  %v2039 = vld [vmem:[%s2 + $0x3b0] sm:$0xff]
  %v2040 = vld [vmem:[%s2 + $0x3b8] sm:$0xff]
  %v2041 = vld [vmem:[%s2 + $0x3c0] sm:$0xff]
  %v2042 = vld [vmem:[%s2 + $0x3c8] sm:$0xff]
  %v2043 = vld [vmem:[%s2 + $0x3d0] sm:$0xff]
  %v2044 = vld [vmem:[%s2 + $0x3d8] sm:$0xff]
  %v2045 = vld [vmem:[%s2 + $0x3e0] sm:$0xff]
  %v2046 = vld [vmem:[%s2 + $0x3e8] sm:$0xff]
  %v2047 = vld [vmem:[%s2 + $0x3f0] sm:$0xff]
  %v2048 = vld [vmem:[%s2 + $0x3f8] sm:$0xff]
  %v2049 = vld [vmem:[%s2 + $0x400] sm:$0xff]
  %v2050 = vld [vmem:[%s2 + $0x408] sm:$0xff]
  %v2051 = vld [vmem:[%s2 + $0x410] sm:$0xff]
  %v2052 = vld [vmem:[%s2 + $0x418] sm:$0xff]
  %v2053 = vld [vmem:[%s2 + $0x420] sm:$0xff]
  %v2054 = vld [vmem:[%s2 + $0x428] sm:$0xff]
  %v2055 = vld [vmem:[%s2 + $0x430] sm:$0xff]
  %v2056 = vld [vmem:[%s2 + $0x438] sm:$0xff]
  %v2057 = vld [vmem:[%s2 + $0x440] sm:$0xff]
  %v2058 = vld [vmem:[%s2 + $0x448] sm:$0xff]
  %v2059 = vld [vmem:[%s2 + $0x450] sm:$0xff]
  %v2060 = vld [vmem:[%s2 + $0x458] sm:$0xff]
  %v2061 = vld [vmem:[%s2 + $0x460] sm:$0xff]
  %v2062 = vld [vmem:[%s2 + $0x468] sm:$0xff]
  %v2063 = vld [vmem:[%s2 + $0x470] sm:$0xff]
  %v2064 = vld [vmem:[%s2 + $0x478] sm:$0xff]
  %v2065 = vld [vmem:[%s2 + $0x480] sm:$0xff]
  %v2066 = vld [vmem:[%s2 + $0x488] sm:$0xff]
  %v2067 = vld [vmem:[%s2 + $0x490] sm:$0xff]
  %v2068 = vld [vmem:[%s2 + $0x498] sm:$0xff]
  %v2069 = vld [vmem:[%s2 + $0x4a0] sm:$0xff]
  %v2070 = vld [vmem:[%s2 + $0x4a8] sm:$0xff]
  %v2071 = vld [vmem:[%s2 + $0x4b0] sm:$0xff]
  %v2072 = vld [vmem:[%s2 + $0x4b8] sm:$0xff]
  %v2073 = vld [vmem:[%s2 + $0x4c0] sm:$0xff]
  %v2074 = vld [vmem:[%s2 + $0x4c8] sm:$0xff]
  %v2075 = vld [vmem:[%s2 + $0x4d0] sm:$0xff]
  %v2076 = vld [vmem:[%s2 + $0x4d8] sm:$0xff]
  %v2077 = vld [vmem:[%s2 + $0x4e0] sm:$0xff]
  %v2078 = vld [vmem:[%s2 + $0x4e8] sm:$0xff]
  %v2079 = vld [vmem:[%s2 + $0x4f0] sm:$0xff]
  %v2080 = vld [vmem:[%s2 + $0x4f8] sm:$0xff]
  %v2081 = vld [vmem:[%s2 + $0x500] sm:$0xff]
  %v2082 = vld [vmem:[%s2 + $0x508] sm:$0xff]
  %v2083 = vld [vmem:[%s2 + $0x510] sm:$0xff]
  %v2084 = vld [vmem:[%s2 + $0x518] sm:$0xff]
  %v2085 = vld [vmem:[%s2 + $0x520] sm:$0xff]
  %v2086 = vld [vmem:[%s2 + $0x528] sm:$0xff]
  %v2087 = vld [vmem:[%s2 + $0x530] sm:$0xff]
  %v2088 = vld [vmem:[%s2 + $0x538] sm:$0xff]
  %v2089 = vld [vmem:[%s2 + $0x540] sm:$0xff]
  %v2090 = vld [vmem:[%s2 + $0x548] sm:$0xff]
  %v2091 = vld [vmem:[%s2 + $0x550] sm:$0xff]
  %v2092 = vld [vmem:[%s2 + $0x558] sm:$0xff]
  %v2093 = vld [vmem:[%s2 + $0x560] sm:$0xff]
  %v2094 = vld [vmem:[%s2 + $0x568] sm:$0xff]
  %v2095 = vld [vmem:[%s2 + $0x570] sm:$0xff]
  %v2096 = vld [vmem:[%s2 + $0x578] sm:$0xff]
  %v2097 = vld [vmem:[%s2 + $0x580] sm:$0xff]
  %v2098 = vld [vmem:[%s2 + $0x588] sm:$0xff]
  %v2099 = vld [vmem:[%s2 + $0x590] sm:$0xff]
  %v2100 = vld [vmem:[%s2 + $0x598] sm:$0xff]
  %v2101 = vld [vmem:[%s2 + $0x5a0] sm:$0xff]
  %v2102 = vld [vmem:[%s2 + $0x5a8] sm:$0xff]
  %v2103 = vld [vmem:[%s2 + $0x5b0] sm:$0xff]
  %v2104 = vld [vmem:[%s2 + $0x5b8] sm:$0xff]
  %v2105 = vld [vmem:[%s2 + $0x5c0] sm:$0xff]
  %v2106 = vld [vmem:[%s2 + $0x5c8] sm:$0xff]
  %v2107 = vld [vmem:[%s2 + $0x5d0] sm:$0xff]
  %v2108 = vld [vmem:[%s2 + $0x5d8] sm:$0xff]
  %v2109 = vld [vmem:[%s2 + $0x5e0] sm:$0xff]
  %v2110 = vld [vmem:[%s2 + $0x5e8] sm:$0xff]
  %v2111 = vld [vmem:[%s2 + $0x5f0] sm:$0xff]
  %v2112 = vld [vmem:[%s2 + $0x5f8] sm:$0xff]
  %v2113 = vld [vmem:[%s2 + $0x600] sm:$0xff]
  %v2114 = vld [vmem:[%s2 + $0x608] sm:$0xff]
  %v2115 = vld [vmem:[%s2 + $0x610] sm:$0xff]
  %v2116 = vld [vmem:[%s2 + $0x618] sm:$0xff]
  %v2117 = vld [vmem:[%s2 + $0x620] sm:$0xff]
  %v2118 = vld [vmem:[%s2 + $0x628] sm:$0xff]
  %v2119 = vld [vmem:[%s2 + $0x630] sm:$0xff]
  %v2120 = vld [vmem:[%s2 + $0x638] sm:$0xff]
  %v2121 = vld [vmem:[%s2 + $0x640] sm:$0xff]
  %v2122 = vld [vmem:[%s2 + $0x648] sm:$0xff]
  %v2123 = vld [vmem:[%s2 + $0x650] sm:$0xff]
  %v2124 = vld [vmem:[%s2 + $0x658] sm:$0xff]
  %v2125 = vld [vmem:[%s2 + $0x660] sm:$0xff]
  %v2126 = vld [vmem:[%s2 + $0x668] sm:$0xff]
  %v2127 = vld [vmem:[%s2 + $0x670] sm:$0xff]
  %v2128 = vld [vmem:[%s2 + $0x678] sm:$0xff]
  %v2129 = vld [vmem:[%s2 + $0x680] sm:$0xff]
  %v2130 = vld [vmem:[%s2 + $0x688] sm:$0xff]
  %v2131 = vld [vmem:[%s2 + $0x690] sm:$0xff]
  %v2132 = vld [vmem:[%s2 + $0x698] sm:$0xff]
  %v2133 = vld [vmem:[%s2 + $0x6a0] sm:$0xff]
  %v2134 = vld [vmem:[%s2 + $0x6a8] sm:$0xff]
  %v2135 = vld [vmem:[%s2 + $0x6b0] sm:$0xff]
  %v2136 = vld [vmem:[%s2 + $0x6b8] sm:$0xff]
  %v2137 = vld [vmem:[%s2 + $0x6c0] sm:$0xff]
  %v2138 = vld [vmem:[%s2 + $0x6c8] sm:$0xff]
  %v2139 = vld [vmem:[%s2 + $0x6d0] sm:$0xff]
  %v2140 = vld [vmem:[%s2 + $0x6d8] sm:$0xff]
  %v2141 = vld [vmem:[%s2 + $0x6e0] sm:$0xff]
  %v2142 = vld [vmem:[%s2 + $0x6e8] sm:$0xff]
  %v2143 = vld [vmem:[%s2 + $0x6f0] sm:$0xff]
  %v2144 = vld [vmem:[%s2 + $0x6f8] sm:$0xff]
  %v2145 = vld [vmem:[%s2 + $0x700] sm:$0xff]
  %v2146 = vld [vmem:[%s2 + $0x708] sm:$0xff]
  %v2147 = vld [vmem:[%s2 + $0x710] sm:$0xff]
  %v2148 = vld [vmem:[%s2 + $0x718] sm:$0xff]
  %v2149 = vld [vmem:[%s2 + $0x720] sm:$0xff]
  %v2150 = vld [vmem:[%s2 + $0x728] sm:$0xff]
  %v2151 = vld [vmem:[%s2 + $0x730] sm:$0xff]
  %v2152 = vld [vmem:[%s2 + $0x738] sm:$0xff]
  %v2153 = vld [vmem:[%s2 + $0x740] sm:$0xff]
  %v2154 = vld [vmem:[%s2 + $0x748] sm:$0xff]
  %v2155 = vld [vmem:[%s2 + $0x750] sm:$0xff]
  %v2156 = vld [vmem:[%s2 + $0x758] sm:$0xff]
  %v2157 = vld [vmem:[%s2 + $0x760] sm:$0xff]
  %v2158 = vld [vmem:[%s2 + $0x768] sm:$0xff]
  %v2159 = vld [vmem:[%s2 + $0x770] sm:$0xff]
  %v2160 = vld [vmem:[%s2 + $0x778] sm:$0xff]
  %v2161 = vld [vmem:[%s2 + $0x780] sm:$0xff]
  %v2162 = vld [vmem:[%s2 + $0x788] sm:$0xff]
  %v2163 = vld [vmem:[%s2 + $0x790] sm:$0xff]
  %v2164 = vld [vmem:[%s2 + $0x798] sm:$0xff]
  %v2165 = vld [vmem:[%s2 + $0x7a0] sm:$0xff]
  %v2166 = vld [vmem:[%s2 + $0x7a8] sm:$0xff]
  %v2167 = vld [vmem:[%s2 + $0x7b0] sm:$0xff]
  %v2168 = vld [vmem:[%s2 + $0x7b8] sm:$0xff]
  %v2169 = vld [vmem:[%s2 + $0x7c0] sm:$0xff]
  %v2170 = vld [vmem:[%s2 + $0x7c8] sm:$0xff]
  %v2171 = vld [vmem:[%s2 + $0x7d0] sm:$0xff]
  %v2172 = vld [vmem:[%s2 + $0x7d8] sm:$0xff]
  %v2173 = vld [vmem:[%s2 + $0x7e0] sm:$0xff]
  %v2174 = vld [vmem:[%s2 + $0x7e8] sm:$0xff]
  %v2175 = vld [vmem:[%s2 + $0x7f0] sm:$0xff]
  %v2176 = vld [vmem:[%s2 + $0x7f8] sm:$0xff]
  %2177 = vmatprep.subr.mxu0 %v2042
  %2178 = vmatpush1.msra.mxu0 %v2041
  %2179 = vmatprep.subr.mxu0 %v2034
  %2180 = vmatpush1.msra.mxu0 %v2033
  %2181 = vmatprep.subr.mxu0 %v2026
  %2182 = vmatpush1.msra.mxu0 %v2025
  %2183 = vmatprep.subr.mxu0 %v2018
  %2184 = vmatpush1.msra.mxu0 %v2017
  %2185 = vmatprep.subr.mxu0 %v2010
  %2186 = vmatpush1.msra.mxu0 %v2009
  %2187 = vmatprep.subr.mxu0 %v2002
  %2188 = vmatpush1.msra.mxu0 %v2001
  %2189 = vmatprep.subr.mxu0 %v1994
  %2190 = vmatpush1.msra.mxu0 %v1993
  %2191 = vmatprep.subr.mxu0 %v1986
  %2192 = vmatpush1.msra.mxu0 %v1985
  %2193 = vmatprep.subr.mxu0 %v1978
  %2194 = vmatpush1.msra.mxu0 %v1977
  %2195 = vmatprep.subr.mxu0 %v1970
  %2196 = vmatpush1.msra.mxu0 %v1969
  %2197 = vmatprep.subr.mxu0 %v1962
  %2198 = vmatpush1.msra.mxu0 %v1961
  %2199 = vmatprep.subr.mxu0 %v1954
  %2200 = vmatpush1.msra.mxu0 %v1953
  %2201 = vmatprep.subr.mxu0 %v1946
  %2202 = vmatpush1.msra.mxu0 %v1945
  %2203 = vmatprep.subr.mxu0 %v1938
  %2204 = vmatpush1.msra.mxu0 %v1937
  %2205 = vmatprep.subr.mxu0 %v1930
  %2206 = vmatpush1.msra.mxu0 %v1929
  %2207 = vmatprep.subr.mxu0 %v1922
  %2208 = vmatpush1.msra.mxu0 %v1921
  %2209 = vmatprep.subr.mxu0 %v2170
  %2210 = vmatpush2.msra.mxu0 %v2169
  %2211 = vmatprep.subr.mxu0 %v2162
  %2212 = vmatpush2.msra.mxu0 %v2161
  %2213 = vmatprep.subr.mxu0 %v2154
  %2214 = vmatpush2.msra.mxu0 %v2153
  %2215 = vmatprep.subr.mxu0 %v2146
  %2216 = vmatpush2.msra.mxu0 %v2145
  %2217 = vmatprep.subr.mxu0 %v2138
  %2218 = vmatpush2.msra.mxu0 %v2137
  %2219 = vmatprep.subr.mxu0 %v2130
  %2220 = vmatpush2.msra.mxu0 %v2129
  %2221 = vmatprep.subr.mxu0 %v2122
  %2222 = vmatpush2.msra.mxu0 %v2121
  %2223 = vmatprep.subr.mxu0 %v2114
  %2224 = vmatpush2.msra.mxu0 %v2113
  %2225 = vmatprep.subr.mxu0 %v2106
  %2226 = vmatpush2.msra.mxu0 %v2105
  %2227 = vmatprep.subr.mxu0 %v2098
  %2228 = vmatpush2.msra.mxu0 %v2097
  %2229 = vmatprep.subr.mxu0 %v2090
  %2230 = vmatpush2.msra.mxu0 %v2089
  %2231 = vmatprep.subr.mxu0 %v2082
  %2232 = vmatpush2.msra.mxu0 %v2081
  %2233 = vmatprep.subr.mxu0 %v2074
  %2234 = vmatpush2.msra.mxu0 %v2073
  %2235 = vmatprep.subr.mxu0 %v2066
  %2236 = vmatpush2.msra.mxu0 %v2065
  %2237 = vmatprep.subr.mxu0 %v2058
  %2238 = vmatpush2.msra.mxu0 %v2057
  %2239 = vmatprep.subr.mxu0 %v2050
  %2240 = vmatpush2.msra.mxu0 %v2049
  %2241 = vmatprep.mubr.f32.mxu0 %v1920
  %2242 = vmatmul.mubr.f32.gmra.mxu0 %v1919
  %v2243 = vpop.f32.mrf.mxu0
  %v2244 = vadd.f32 0.0, %v2243
  %v2245 = vpop.f32.mrf.mxu0
  %v2246 = vadd.f32 0.0, %v2245
  %2247 = vdwg.mxu0
  %2248 = vmatprep.subr.mxu0 %v2044
  %2249 = vmatpush1.msra.mxu0 %v2043
  %2250 = vmatprep.subr.mxu0 %v2036
  %2251 = vmatpush1.msra.mxu0 %v2035
  %2252 = vmatprep.subr.mxu0 %v2028
  %2253 = vmatpush1.msra.mxu0 %v2027
  %2254 = vmatprep.subr.mxu0 %v2020
  %2255 = vmatpush1.msra.mxu0 %v2019
  %2256 = vmatprep.subr.mxu0 %v2012
  %2257 = vmatpush1.msra.mxu0 %v2011
  %2258 = vmatprep.subr.mxu0 %v2004
  %2259 = vmatpush1.msra.mxu0 %v2003
  %2260 = vmatprep.subr.mxu0 %v1996
  %2261 = vmatpush1.msra.mxu0 %v1995
  %2262 = vmatprep.subr.mxu0 %v1988
  %2263 = vmatpush1.msra.mxu0 %v1987
  %2264 = vmatprep.subr.mxu0 %v1980
  %2265 = vmatpush1.msra.mxu0 %v1979
  %2266 = vmatprep.subr.mxu0 %v1972
  %2267 = vmatpush1.msra.mxu0 %v1971
  %2268 = vmatprep.subr.mxu0 %v1964
  %2269 = vmatpush1.msra.mxu0 %v1963
  %2270 = vmatprep.subr.mxu0 %v1956
  %2271 = vmatpush1.msra.mxu0 %v1955
  %2272 = vmatprep.subr.mxu0 %v1948
  %2273 = vmatpush1.msra.mxu0 %v1947
  %2274 = vmatprep.subr.mxu0 %v1940
  %2275 = vmatpush1.msra.mxu0 %v1939
  %2276 = vmatprep.subr.mxu0 %v1932
  %2277 = vmatpush1.msra.mxu0 %v1931
  %2278 = vmatprep.subr.mxu0 %v1924
  %2279 = vmatpush1.msra.mxu0 %v1923
  %2280 = vmatprep.subr.mxu0 %v2172
  %2281 = vmatpush2.msra.mxu0 %v2171
  %2282 = vmatprep.subr.mxu0 %v2164
  %2283 = vmatpush2.msra.mxu0 %v2163
  %2284 = vmatprep.subr.mxu0 %v2156
  %2285 = vmatpush2.msra.mxu0 %v2155
  %2286 = vmatprep.subr.mxu0 %v2148
  %2287 = vmatpush2.msra.mxu0 %v2147
  %2288 = vmatprep.subr.mxu0 %v2140
  %2289 = vmatpush2.msra.mxu0 %v2139
  %2290 = vmatprep.subr.mxu0 %v2132
  %2291 = vmatpush2.msra.mxu0 %v2131
  %2292 = vmatprep.subr.mxu0 %v2124
  %2293 = vmatpush2.msra.mxu0 %v2123
  %2294 = vmatprep.subr.mxu0 %v2116
  %2295 = vmatpush2.msra.mxu0 %v2115
  %2296 = vmatprep.subr.mxu0 %v2108
  %2297 = vmatpush2.msra.mxu0 %v2107
  %2298 = vmatprep.subr.mxu0 %v2100
  %2299 = vmatpush2.msra.mxu0 %v2099
  %2300 = vmatprep.subr.mxu0 %v2092
  %2301 = vmatpush2.msra.mxu0 %v2091
  %2302 = vmatprep.subr.mxu0 %v2084
  %2303 = vmatpush2.msra.mxu0 %v2083
  %2304 = vmatprep.subr.mxu0 %v2076
  %2305 = vmatpush2.msra.mxu0 %v2075
  %2306 = vmatprep.subr.mxu0 %v2068
  %2307 = vmatpush2.msra.mxu0 %v2067
  %2308 = vmatprep.subr.mxu0 %v2060
  %2309 = vmatpush2.msra.mxu0 %v2059
  %2310 = vmatprep.subr.mxu0 %v2052
  %2311 = vmatpush2.msra.mxu0 %v2051
  %2312 = vmatprep.mubr.f32.mxu0 %v1920
  %2313 = vmatmul.mubr.f32.gmra.mxu0 %v1919
  %v2314 = vpop.f32.mrf.mxu0
  %v2315 = vadd.f32 0.0, %v2314
  %v2316 = vpop.f32.mrf.mxu0
  %v2317 = vadd.f32 0.0, %v2316
  %2318 = vdwg.mxu0
  %2319 = vmatprep.subr.mxu0 %v2046
  %2320 = vmatpush1.msra.mxu0 %v2045
  %2321 = vmatprep.subr.mxu0 %v2038
  %2322 = vmatpush1.msra.mxu0 %v2037
  %2323 = vmatprep.subr.mxu0 %v2030
  %2324 = vmatpush1.msra.mxu0 %v2029
  %2325 = vmatprep.subr.mxu0 %v2022
  %2326 = vmatpush1.msra.mxu0 %v2021
  %2327 = vmatprep.subr.mxu0 %v2014
  %2328 = vmatpush1.msra.mxu0 %v2013
  %2329 = vmatprep.subr.mxu0 %v2006
  %2330 = vmatpush1.msra.mxu0 %v2005
  %2331 = vmatprep.subr.mxu0 %v1998
  %2332 = vmatpush1.msra.mxu0 %v1997
  %2333 = vmatprep.subr.mxu0 %v1990
  %2334 = vmatpush1.msra.mxu0 %v1989
  %2335 = vmatprep.subr.mxu0 %v1982
  %2336 = vmatpush1.msra.mxu0 %v1981
  %2337 = vmatprep.subr.mxu0 %v1974
  %2338 = vmatpush1.msra.mxu0 %v1973
  %2339 = vmatprep.subr.mxu0 %v1966
  %2340 = vmatpush1.msra.mxu0 %v1965
  %2341 = vmatprep.subr.mxu0 %v1958
  %2342 = vmatpush1.msra.mxu0 %v1957
  %2343 = vmatprep.subr.mxu0 %v1950
  %2344 = vmatpush1.msra.mxu0 %v1949
  %2345 = vmatprep.subr.mxu0 %v1942
  %2346 = vmatpush1.msra.mxu0 %v1941
  %2347 = vmatprep.subr.mxu0 %v1934
  %2348 = vmatpush1.msra.mxu0 %v1933
  %2349 = vmatprep.subr.mxu0 %v1926
  %2350 = vmatpush1.msra.mxu0 %v1925
  %2351 = vmatprep.subr.mxu0 %v2174
  %2352 = vmatpush2.msra.mxu0 %v2173
  %2353 = vmatprep.subr.mxu0 %v2166
  %2354 = vmatpush2.msra.mxu0 %v2165
  %2355 = vmatprep.subr.mxu0 %v2158
  %2356 = vmatpush2.msra.mxu0 %v2157
  %2357 = vmatprep.subr.mxu0 %v2150
  %2358 = vmatpush2.msra.mxu0 %v2149
  %2359 = vmatprep.subr.mxu0 %v2142
  %2360 = vmatpush2.msra.mxu0 %v2141
  %2361 = vmatprep.subr.mxu0 %v2134
  %2362 = vmatpush2.msra.mxu0 %v2133
  %2363 = vmatprep.subr.mxu0 %v2126
  %2364 = vmatpush2.msra.mxu0 %v2125
  %2365 = vmatprep.subr.mxu0 %v2118
  %2366 = vmatpush2.msra.mxu0 %v2117
  %2367 = vmatprep.subr.mxu0 %v2110
  %2368 = vmatpush2.msra.mxu0 %v2109
  %2369 = vmatprep.subr.mxu0 %v2102
  %2370 = vmatpush2.msra.mxu0 %v2101
  %2371 = vmatprep.subr.mxu0 %v2094
  %2372 = vmatpush2.msra.mxu0 %v2093
  %2373 = vmatprep.subr.mxu0 %v2086
  %2374 = vmatpush2.msra.mxu0 %v2085
  %2375 = vmatprep.subr.mxu0 %v2078
  %2376 = vmatpush2.msra.mxu0 %v2077
  %2377 = vmatprep.subr.mxu0 %v2070
  %2378 = vmatpush2.msra.mxu0 %v2069
  %2379 = vmatprep.subr.mxu0 %v2062
  %2380 = vmatpush2.msra.mxu0 %v2061
  %2381 = vmatprep.subr.mxu0 %v2054
  %2382 = vmatpush2.msra.mxu0 %v2053
  %2383 = vmatprep.mubr.f32.mxu0 %v1920
  %2384 = vmatmul.mubr.f32.gmra.mxu0 %v1919
  %v2385 = vpop.f32.mrf.mxu0
  %v2386 = vadd.f32 0.0, %v2385
  %v2387 = vpop.f32.mrf.mxu0
  %v2388 = vadd.f32 0.0, %v2387
  %2389 = vdwg.mxu0
  %2390 = vmatprep.subr.mxu0 %v2048
  %2391 = vmatpush1.msra.mxu0 %v2047
  %2392 = vmatprep.subr.mxu0 %v2040
  %2393 = vmatpush1.msra.mxu0 %v2039
  %2394 = vmatprep.subr.mxu0 %v2032
  %2395 = vmatpush1.msra.mxu0 %v2031
  %2396 = vmatprep.subr.mxu0 %v2024
  %2397 = vmatpush1.msra.mxu0 %v2023
  %2398 = vmatprep.subr.mxu0 %v2016
  %2399 = vmatpush1.msra.mxu0 %v2015
  %2400 = vmatprep.subr.mxu0 %v2008
  %2401 = vmatpush1.msra.mxu0 %v2007
  %2402 = vmatprep.subr.mxu0 %v2000
  %2403 = vmatpush1.msra.mxu0 %v1999
  %2404 = vmatprep.subr.mxu0 %v1992
  %2405 = vmatpush1.msra.mxu0 %v1991
  %2406 = vmatprep.subr.mxu0 %v1984
  %2407 = vmatpush1.msra.mxu0 %v1983
  %2408 = vmatprep.subr.mxu0 %v1976
  %2409 = vmatpush1.msra.mxu0 %v1975
  %2410 = vmatprep.subr.mxu0 %v1968
  %2411 = vmatpush1.msra.mxu0 %v1967
  %2412 = vmatprep.subr.mxu0 %v1960
  %2413 = vmatpush1.msra.mxu0 %v1959
  %2414 = vmatprep.subr.mxu0 %v1952
  %2415 = vmatpush1.msra.mxu0 %v1951
  %2416 = vmatprep.subr.mxu0 %v1944
  %2417 = vmatpush1.msra.mxu0 %v1943
  %2418 = vmatprep.subr.mxu0 %v1936
  %2419 = vmatpush1.msra.mxu0 %v1935
  %2420 = vmatprep.subr.mxu0 %v1928
  %2421 = vmatpush1.msra.mxu0 %v1927
  %2422 = vmatprep.subr.mxu0 %v2176
  %2423 = vmatpush2.msra.mxu0 %v2175
  %2424 = vmatprep.subr.mxu0 %v2168
  %2425 = vmatpush2.msra.mxu0 %v2167
  %2426 = vmatprep.subr.mxu0 %v2160
  %2427 = vmatpush2.msra.mxu0 %v2159
  %2428 = vmatprep.subr.mxu0 %v2152
  %2429 = vmatpush2.msra.mxu0 %v2151
  %2430 = vmatprep.subr.mxu0 %v2144
  %2431 = vmatpush2.msra.mxu0 %v2143
  %2432 = vmatprep.subr.mxu0 %v2136
  %2433 = vmatpush2.msra.mxu0 %v2135
  %2434 = vmatprep.subr.mxu0 %v2128
  %2435 = vmatpush2.msra.mxu0 %v2127
  %2436 = vmatprep.subr.mxu0 %v2120
  %2437 = vmatpush2.msra.mxu0 %v2119
  %2438 = vmatprep.subr.mxu0 %v2112
  %2439 = vmatpush2.msra.mxu0 %v2111
  %2440 = vmatprep.subr.mxu0 %v2104
  %2441 = vmatpush2.msra.mxu0 %v2103
  %2442 = vmatprep.subr.mxu0 %v2096
  %2443 = vmatpush2.msra.mxu0 %v2095
  %2444 = vmatprep.subr.mxu0 %v2088
  %2445 = vmatpush2.msra.mxu0 %v2087
  %2446 = vmatprep.subr.mxu0 %v2080
  %2447 = vmatpush2.msra.mxu0 %v2079
  %2448 = vmatprep.subr.mxu0 %v2072
  %2449 = vmatpush2.msra.mxu0 %v2071
  %2450 = vmatprep.subr.mxu0 %v2064
  %2451 = vmatpush2.msra.mxu0 %v2063
  %2452 = vmatprep.subr.mxu0 %v2056
  %2453 = vmatpush2.msra.mxu0 %v2055
  %2454 = vmatprep.mubr.f32.mxu0 %v1920
  %2455 = vmatmul.mubr.f32.gmra.mxu0 %v1919
  %v2456 = vpop.f32.mrf.mxu0
  %v2457 = vadd.f32 0.0, %v2456
  %v2458 = vpop.f32.mrf.mxu0
  %v2459 = vadd.f32 0.0, %v2458
  %2460 = vdwg.mxu0
  %v2461 = vadd.f32 %v1911, %v2244
  %v2462 = vadd.f32 %v1912, %v2246
  %v2463 = vadd.f32 %v1913, %v2315
  %v2464 = vadd.f32 %v1914, %v2317
  %v2465 = vadd.f32 %v1915, %v2386
  %v2466 = vadd.f32 %v1916, %v2388
  %v2467 = vadd.f32 %v1917, %v2457
  %v2468 = vadd.f32 %v1918, %v2459
  %v2469 = vxor.u32 %v2461, 2147483648
  %v2470 = vxor.u32 %v2462, 2147483648
  %v2471 = vmul.f32 %v2469, 1.442695
  %v2472 = vpow.pop %v2471
  %v2473 = vmul.f32 %v2470, 1.442695
  %v2474 = vpow.pop %v2473
  %v2475 = vadd.f32 %v2472, 1.0
  %v2476 = vadd.f32 %v2474, 1.0
  %v2477 = vrcp.pop %v2475
  %v2478 = vmul.f32 1.0, %v2477
  %v2479 = vrcp.pop %v2476
  %v2480 = vmul.f32 1.0, %v2479
  %v2481 = vxor.u32 %v2463, 2147483648
  %v2482 = vxor.u32 %v2464, 2147483648
  %v2483 = vmul.f32 %v2481, 1.442695
  %v2484 = vpow.pop %v2483
  %v2485 = vmul.f32 %v2482, 1.442695
  %v2486 = vpow.pop %v2485
  %v2487 = vadd.f32 %v2484, 1.0
  %v2488 = vadd.f32 %v2486, 1.0
  %v2489 = vrcp.pop %v2487
  %v2490 = vmul.f32 1.0, %v2489
  %v2491 = vrcp.pop %v2488
  %v2492 = vmul.f32 1.0, %v2491
  %v2493 = vtanh.pop %v2465
  %v2494 = vtanh.pop %v2466
  %v2495 = vxor.u32 %v2467, 2147483648
  %v2496 = vxor.u32 %v2468, 2147483648
  %v2497 = vmul.f32 %v2495, 1.442695
  %v2498 = vpow.pop %v2497
  %v2499 = vmul.f32 %v2496, 1.442695
  %v2500 = vpow.pop %v2499
  %v2501 = vadd.f32 %v2498, 1.0
  %v2502 = vadd.f32 %v2500, 1.0
  %v2503 = vrcp.pop %v2501
  %v2504 = vmul.f32 1.0, %v2503
  %v2505 = vrcp.pop %v2502
  %v2506 = vmul.f32 1.0, %v2505
  %v2507 = vld [vmem:[%s5] sm:$0xff]
  %v2508 = vld [vmem:[%s5 + $0x8] sm:$0xff]
  %v2509 = vmul.f32 %v2490, %v2507
  %v2510 = vmul.f32 %v2492, %v2508
  %v2511 = vmul.f32 %v2478, %v2493
  %v2512 = vmul.f32 %v2480, %v2494
  %v2513 = vadd.f32 %v2509, %v2511
  %v2514 = vadd.f32 %v2510, %v2512
  %2515 = vst [vmem:[%s5] sm:$0xff] %v2513
  %2516 = vst [vmem:[%s5 + $0x8] sm:$0xff] %v2514
  %v2517 = vtanh.pop %v2513
  %v2518 = vtanh.pop %v2514
  %v2519 = vmul.f32 %v2504, %v2517
  %v2520 = vmul.f32 %v2506, %v2518
  %2521 = vst [vmem:[%s4] sm:$0xff] %v2519
  %2522 = vst [vmem:[%s4 + $0x8] sm:$0xff] %v2520
  %s2523 = smul.u32 3, 8
  %s2524 = smul.addr %s2523, 8
  %s2525 = scalar_lea.vmem [#allocation2], %s2524
  %v2526 = vld [vmem:[%s2525] sm:$0xff]
  %v2527 = vld [vmem:[%s2525 + $0x8] sm:$0xff]
  %v2528 = vld [vmem:[%s2525 + $0x10] sm:$0xff]
  %v2529 = vld [vmem:[%s2525 + $0x18] sm:$0xff]
  %v2530 = vld [vmem:[%s2525 + $0x20] sm:$0xff]
  %v2531 = vld [vmem:[%s2525 + $0x28] sm:$0xff]
  %v2532 = vld [vmem:[%s2525 + $0x30] sm:$0xff]
  %v2533 = vld [vmem:[%s2525 + $0x38] sm:$0xff]
  %v2534 = vld [vmem:[%s4] sm:$0xff]
  %v2535 = vld [vmem:[%s4 + $0x8] sm:$0xff]
  %v2536 = vld [vmem:[%s2] sm:$0xff]
  %v2537 = vld [vmem:[%s2 + $0x8] sm:$0xff]
  %v2538 = vld [vmem:[%s2 + $0x10] sm:$0xff]
  %v2539 = vld [vmem:[%s2 + $0x18] sm:$0xff]
  %v2540 = vld [vmem:[%s2 + $0x20] sm:$0xff]
  %v2541 = vld [vmem:[%s2 + $0x28] sm:$0xff]
  %v2542 = vld [vmem:[%s2 + $0x30] sm:$0xff]
  %v2543 = vld [vmem:[%s2 + $0x38] sm:$0xff]
  %v2544 = vld [vmem:[%s2 + $0x40] sm:$0xff]
  %v2545 = vld [vmem:[%s2 + $0x48] sm:$0xff]
  %v2546 = vld [vmem:[%s2 + $0x50] sm:$0xff]
  %v2547 = vld [vmem:[%s2 + $0x58] sm:$0xff]
  %v2548 = vld [vmem:[%s2 + $0x60] sm:$0xff]
  %v2549 = vld [vmem:[%s2 + $0x68] sm:$0xff]
  %v2550 = vld [vmem:[%s2 + $0x70] sm:$0xff]
  %v2551 = vld [vmem:[%s2 + $0x78] sm:$0xff]
  %v2552 = vld [vmem:[%s2 + $0x80] sm:$0xff]
  %v2553 = vld [vmem:[%s2 + $0x88] sm:$0xff]
  %v2554 = vld [vmem:[%s2 + $0x90] sm:$0xff]
  %v2555 = vld [vmem:[%s2 + $0x98] sm:$0xff]
  %v2556 = vld [vmem:[%s2 + $0xa0] sm:$0xff]
  %v2557 = vld [vmem:[%s2 + $0xa8] sm:$0xff]
  %v2558 = vld [vmem:[%s2 + $0xb0] sm:$0xff]
  %v2559 = vld [vmem:[%s2 + $0xb8] sm:$0xff]
  %v2560 = vld [vmem:[%s2 + $0xc0] sm:$0xff]
  %v2561 = vld [vmem:[%s2 + $0xc8] sm:$0xff]
  %v2562 = vld [vmem:[%s2 + $0xd0] sm:$0xff]
  %v2563 = vld [vmem:[%s2 + $0xd8] sm:$0xff]
  %v2564 = vld [vmem:[%s2 + $0xe0] sm:$0xff]
  %v2565 = vld [vmem:[%s2 + $0xe8] sm:$0xff]
  %v2566 = vld [vmem:[%s2 + $0xf0] sm:$0xff]
  %v2567 = vld [vmem:[%s2 + $0xf8] sm:$0xff]
  %v2568 = vld [vmem:[%s2 + $0x100] sm:$0xff]
  %v2569 = vld [vmem:[%s2 + $0x108] sm:$0xff]
  %v2570 = vld [vmem:[%s2 + $0x110] sm:$0xff]
  %v2571 = vld [vmem:[%s2 + $0x118] sm:$0xff]
  %v2572 = vld [vmem:[%s2 + $0x120] sm:$0xff]
  %v2573 = vld [vmem:[%s2 + $0x128] sm:$0xff]
  %v2574 = vld [vmem:[%s2 + $0x130] sm:$0xff]
  %v2575 = vld [vmem:[%s2 + $0x138] sm:$0xff]
  %v2576 = vld [vmem:[%s2 + $0x140] sm:$0xff]
  %v2577 = vld [vmem:[%s2 + $0x148] sm:$0xff]
  %v2578 = vld [vmem:[%s2 + $0x150] sm:$0xff]
  %v2579 = vld [vmem:[%s2 + $0x158] sm:$0xff]
  %v2580 = vld [vmem:[%s2 + $0x160] sm:$0xff]
  %v2581 = vld [vmem:[%s2 + $0x168] sm:$0xff]
  %v2582 = vld [vmem:[%s2 + $0x170] sm:$0xff]
  %v2583 = vld [vmem:[%s2 + $0x178] sm:$0xff]
  %v2584 = vld [vmem:[%s2 + $0x180] sm:$0xff]
  %v2585 = vld [vmem:[%s2 + $0x188] sm:$0xff]
  %v2586 = vld [vmem:[%s2 + $0x190] sm:$0xff]
  %v2587 = vld [vmem:[%s2 + $0x198] sm:$0xff]
  %v2588 = vld [vmem:[%s2 + $0x1a0] sm:$0xff]
  %v2589 = vld [vmem:[%s2 + $0x1a8] sm:$0xff]
  %v2590 = vld [vmem:[%s2 + $0x1b0] sm:$0xff]
  %v2591 = vld [vmem:[%s2 + $0x1b8] sm:$0xff]
  %v2592 = vld [vmem:[%s2 + $0x1c0] sm:$0xff]
  %v2593 = vld [vmem:[%s2 + $0x1c8] sm:$0xff]
  %v2594 = vld [vmem:[%s2 + $0x1d0] sm:$0xff]
  %v2595 = vld [vmem:[%s2 + $0x1d8] sm:$0xff]
  %v2596 = vld [vmem:[%s2 + $0x1e0] sm:$0xff]
  %v2597 = vld [vmem:[%s2 + $0x1e8] sm:$0xff]
  %v2598 = vld [vmem:[%s2 + $0x1f0] sm:$0xff]
  %v2599 = vld [vmem:[%s2 + $0x1f8] sm:$0xff]
  %v2600 = vld [vmem:[%s2 + $0x200] sm:$0xff]
  %v2601 = vld [vmem:[%s2 + $0x208] sm:$0xff]
  %v2602 = vld [vmem:[%s2 + $0x210] sm:$0xff]
  %v2603 = vld [vmem:[%s2 + $0x218] sm:$0xff]
  %v2604 = vld [vmem:[%s2 + $0x220] sm:$0xff]
  %v2605 = vld [vmem:[%s2 + $0x228] sm:$0xff]
  %v2606 = vld [vmem:[%s2 + $0x230] sm:$0xff]
  %v2607 = vld [vmem:[%s2 + $0x238] sm:$0xff]
  %v2608 = vld [vmem:[%s2 + $0x240] sm:$0xff]
  %v2609 = vld [vmem:[%s2 + $0x248] sm:$0xff]
  %v2610 = vld [vmem:[%s2 + $0x250] sm:$0xff]
  %v2611 = vld [vmem:[%s2 + $0x258] sm:$0xff]
  %v2612 = vld [vmem:[%s2 + $0x260] sm:$0xff]
  %v2613 = vld [vmem:[%s2 + $0x268] sm:$0xff]
  %v2614 = vld [vmem:[%s2 + $0x270] sm:$0xff]
  %v2615 = vld [vmem:[%s2 + $0x278] sm:$0xff]
  %v2616 = vld [vmem:[%s2 + $0x280] sm:$0xff]
  %v2617 = vld [vmem:[%s2 + $0x288] sm:$0xff]
  %v2618 = vld [vmem:[%s2 + $0x290] sm:$0xff]
  %v2619 = vld [vmem:[%s2 + $0x298] sm:$0xff]
  %v2620 = vld [vmem:[%s2 + $0x2a0] sm:$0xff]
  %v2621 = vld [vmem:[%s2 + $0x2a8] sm:$0xff]
  %v2622 = vld [vmem:[%s2 + $0x2b0] sm:$0xff]
  %v2623 = vld [vmem:[%s2 + $0x2b8] sm:$0xff]
  %v2624 = vld [vmem:[%s2 + $0x2c0] sm:$0xff]
  %v2625 = vld [vmem:[%s2 + $0x2c8] sm:$0xff]
  %v2626 = vld [vmem:[%s2 + $0x2d0] sm:$0xff]
  %v2627 = vld [vmem:[%s2 + $0x2d8] sm:$0xff]
  %v2628 = vld [vmem:[%s2 + $0x2e0] sm:$0xff]
  %v2629 = vld [vmem:[%s2 + $0x2e8] sm:$0xff]
  %v2630 = vld [vmem:[%s2 + $0x2f0] sm:$0xff]
  %v2631 = vld [vmem:[%s2 + $0x2f8] sm:$0xff]
  %v2632 = vld [vmem:[%s2 + $0x300] sm:$0xff]
  %v2633 = vld [vmem:[%s2 + $0x308] sm:$0xff]
  %v2634 = vld [vmem:[%s2 + $0x310] sm:$0xff]
  %v2635 = vld [vmem:[%s2 + $0x318] sm:$0xff]
  %v2636 = vld [vmem:[%s2 + $0x320] sm:$0xff]
  %v2637 = vld [vmem:[%s2 + $0x328] sm:$0xff]
  %v2638 = vld [vmem:[%s2 + $0x330] sm:$0xff]
  %v2639 = vld [vmem:[%s2 + $0x338] sm:$0xff]
  %v2640 = vld [vmem:[%s2 + $0x340] sm:$0xff]
  %v2641 = vld [vmem:[%s2 + $0x348] sm:$0xff]
  %v2642 = vld [vmem:[%s2 + $0x350] sm:$0xff]
  %v2643 = vld [vmem:[%s2 + $0x358] sm:$0xff]
  %v2644 = vld [vmem:[%s2 + $0x360] sm:$0xff]
  %v2645 = vld [vmem:[%s2 + $0x368] sm:$0xff]
  %v2646 = vld [vmem:[%s2 + $0x370] sm:$0xff]
  %v2647 = vld [vmem:[%s2 + $0x378] sm:$0xff]
  %v2648 = vld [vmem:[%s2 + $0x380] sm:$0xff]
  %v2649 = vld [vmem:[%s2 + $0x388] sm:$0xff]
  %v2650 = vld [vmem:[%s2 + $0x390] sm:$0xff]
  %v2651 = vld [vmem:[%s2 + $0x398] sm:$0xff]
  %v2652 = vld [vmem:[%s2 + $0x3a0] sm:$0xff]
  %v2653 = vld [vmem:[%s2 + $0x3a8] sm:$0xff]
  %v2654 = vld [vmem:[%s2 + $0x3b0] sm:$0xff]
  %v2655 = vld [vmem:[%s2 + $0x3b8] sm:$0xff]
  %v2656 = vld [vmem:[%s2 + $0x3c0] sm:$0xff]
  %v2657 = vld [vmem:[%s2 + $0x3c8] sm:$0xff]
  %v2658 = vld [vmem:[%s2 + $0x3d0] sm:$0xff]
  %v2659 = vld [vmem:[%s2 + $0x3d8] sm:$0xff]
  %v2660 = vld [vmem:[%s2 + $0x3e0] sm:$0xff]
  %v2661 = vld [vmem:[%s2 + $0x3e8] sm:$0xff]
  %v2662 = vld [vmem:[%s2 + $0x3f0] sm:$0xff]
  %v2663 = vld [vmem:[%s2 + $0x3f8] sm:$0xff]
  %v2664 = vld [vmem:[%s2 + $0x400] sm:$0xff]
  %v2665 = vld [vmem:[%s2 + $0x408] sm:$0xff]
  %v2666 = vld [vmem:[%s2 + $0x410] sm:$0xff]
  %v2667 = vld [vmem:[%s2 + $0x418] sm:$0xff]
  %v2668 = vld [vmem:[%s2 + $0x420] sm:$0xff]
  %v2669 = vld [vmem:[%s2 + $0x428] sm:$0xff]
  %v2670 = vld [vmem:[%s2 + $0x430] sm:$0xff]
  %v2671 = vld [vmem:[%s2 + $0x438] sm:$0xff]
  %v2672 = vld [vmem:[%s2 + $0x440] sm:$0xff]
  %v2673 = vld [vmem:[%s2 + $0x448] sm:$0xff]
  %v2674 = vld [vmem:[%s2 + $0x450] sm:$0xff]
  %v2675 = vld [vmem:[%s2 + $0x458] sm:$0xff]
  %v2676 = vld [vmem:[%s2 + $0x460] sm:$0xff]
  %v2677 = vld [vmem:[%s2 + $0x468] sm:$0xff]
  %v2678 = vld [vmem:[%s2 + $0x470] sm:$0xff]
  %v2679 = vld [vmem:[%s2 + $0x478] sm:$0xff]
  %v2680 = vld [vmem:[%s2 + $0x480] sm:$0xff]
  %v2681 = vld [vmem:[%s2 + $0x488] sm:$0xff]
  %v2682 = vld [vmem:[%s2 + $0x490] sm:$0xff]
  %v2683 = vld [vmem:[%s2 + $0x498] sm:$0xff]
  %v2684 = vld [vmem:[%s2 + $0x4a0] sm:$0xff]
  %v2685 = vld [vmem:[%s2 + $0x4a8] sm:$0xff]
  %v2686 = vld [vmem:[%s2 + $0x4b0] sm:$0xff]
  %v2687 = vld [vmem:[%s2 + $0x4b8] sm:$0xff]
  %v2688 = vld [vmem:[%s2 + $0x4c0] sm:$0xff]
  %v2689 = vld [vmem:[%s2 + $0x4c8] sm:$0xff]
  %v2690 = vld [vmem:[%s2 + $0x4d0] sm:$0xff]
  %v2691 = vld [vmem:[%s2 + $0x4d8] sm:$0xff]
  %v2692 = vld [vmem:[%s2 + $0x4e0] sm:$0xff]
  %v2693 = vld [vmem:[%s2 + $0x4e8] sm:$0xff]
  %v2694 = vld [vmem:[%s2 + $0x4f0] sm:$0xff]
  %v2695 = vld [vmem:[%s2 + $0x4f8] sm:$0xff]
  %v2696 = vld [vmem:[%s2 + $0x500] sm:$0xff]
  %v2697 = vld [vmem:[%s2 + $0x508] sm:$0xff]
  %v2698 = vld [vmem:[%s2 + $0x510] sm:$0xff]
  %v2699 = vld [vmem:[%s2 + $0x518] sm:$0xff]
  %v2700 = vld [vmem:[%s2 + $0x520] sm:$0xff]
  %v2701 = vld [vmem:[%s2 + $0x528] sm:$0xff]
  %v2702 = vld [vmem:[%s2 + $0x530] sm:$0xff]
  %v2703 = vld [vmem:[%s2 + $0x538] sm:$0xff]
  %v2704 = vld [vmem:[%s2 + $0x540] sm:$0xff]
  %v2705 = vld [vmem:[%s2 + $0x548] sm:$0xff]
  %v2706 = vld [vmem:[%s2 + $0x550] sm:$0xff]
  %v2707 = vld [vmem:[%s2 + $0x558] sm:$0xff]
  %v2708 = vld [vmem:[%s2 + $0x560] sm:$0xff]
  %v2709 = vld [vmem:[%s2 + $0x568] sm:$0xff]
  %v2710 = vld [vmem:[%s2 + $0x570] sm:$0xff]
  %v2711 = vld [vmem:[%s2 + $0x578] sm:$0xff]
  %v2712 = vld [vmem:[%s2 + $0x580] sm:$0xff]
  %v2713 = vld [vmem:[%s2 + $0x588] sm:$0xff]
  %v2714 = vld [vmem:[%s2 + $0x590] sm:$0xff]
  %v2715 = vld [vmem:[%s2 + $0x598] sm:$0xff]
  %v2716 = vld [vmem:[%s2 + $0x5a0] sm:$0xff]
  %v2717 = vld [vmem:[%s2 + $0x5a8] sm:$0xff]
  %v2718 = vld [vmem:[%s2 + $0x5b0] sm:$0xff]
  %v2719 = vld [vmem:[%s2 + $0x5b8] sm:$0xff]
  %v2720 = vld [vmem:[%s2 + $0x5c0] sm:$0xff]
  %v2721 = vld [vmem:[%s2 + $0x5c8] sm:$0xff]
  %v2722 = vld [vmem:[%s2 + $0x5d0] sm:$0xff]
  %v2723 = vld [vmem:[%s2 + $0x5d8] sm:$0xff]
  %v2724 = vld [vmem:[%s2 + $0x5e0] sm:$0xff]
  %v2725 = vld [vmem:[%s2 + $0x5e8] sm:$0xff]
  %v2726 = vld [vmem:[%s2 + $0x5f0] sm:$0xff]
  %v2727 = vld [vmem:[%s2 + $0x5f8] sm:$0xff]
  %v2728 = vld [vmem:[%s2 + $0x600] sm:$0xff]
  %v2729 = vld [vmem:[%s2 + $0x608] sm:$0xff]
  %v2730 = vld [vmem:[%s2 + $0x610] sm:$0xff]
  %v2731 = vld [vmem:[%s2 + $0x618] sm:$0xff]
  %v2732 = vld [vmem:[%s2 + $0x620] sm:$0xff]
  %v2733 = vld [vmem:[%s2 + $0x628] sm:$0xff]
  %v2734 = vld [vmem:[%s2 + $0x630] sm:$0xff]
  %v2735 = vld [vmem:[%s2 + $0x638] sm:$0xff]
  %v2736 = vld [vmem:[%s2 + $0x640] sm:$0xff]
  %v2737 = vld [vmem:[%s2 + $0x648] sm:$0xff]
  %v2738 = vld [vmem:[%s2 + $0x650] sm:$0xff]
  %v2739 = vld [vmem:[%s2 + $0x658] sm:$0xff]
  %v2740 = vld [vmem:[%s2 + $0x660] sm:$0xff]
  %v2741 = vld [vmem:[%s2 + $0x668] sm:$0xff]
  %v2742 = vld [vmem:[%s2 + $0x670] sm:$0xff]
  %v2743 = vld [vmem:[%s2 + $0x678] sm:$0xff]
  %v2744 = vld [vmem:[%s2 + $0x680] sm:$0xff]
  %v2745 = vld [vmem:[%s2 + $0x688] sm:$0xff]
  %v2746 = vld [vmem:[%s2 + $0x690] sm:$0xff]
  %v2747 = vld [vmem:[%s2 + $0x698] sm:$0xff]
  %v2748 = vld [vmem:[%s2 + $0x6a0] sm:$0xff]
  %v2749 = vld [vmem:[%s2 + $0x6a8] sm:$0xff]
  %v2750 = vld [vmem:[%s2 + $0x6b0] sm:$0xff]
  %v2751 = vld [vmem:[%s2 + $0x6b8] sm:$0xff]
  %v2752 = vld [vmem:[%s2 + $0x6c0] sm:$0xff]
  %v2753 = vld [vmem:[%s2 + $0x6c8] sm:$0xff]
  %v2754 = vld [vmem:[%s2 + $0x6d0] sm:$0xff]
  %v2755 = vld [vmem:[%s2 + $0x6d8] sm:$0xff]
  %v2756 = vld [vmem:[%s2 + $0x6e0] sm:$0xff]
  %v2757 = vld [vmem:[%s2 + $0x6e8] sm:$0xff]
  %v2758 = vld [vmem:[%s2 + $0x6f0] sm:$0xff]
  %v2759 = vld [vmem:[%s2 + $0x6f8] sm:$0xff]
  %v2760 = vld [vmem:[%s2 + $0x700] sm:$0xff]
  %v2761 = vld [vmem:[%s2 + $0x708] sm:$0xff]
  %v2762 = vld [vmem:[%s2 + $0x710] sm:$0xff]
  %v2763 = vld [vmem:[%s2 + $0x718] sm:$0xff]
  %v2764 = vld [vmem:[%s2 + $0x720] sm:$0xff]
  %v2765 = vld [vmem:[%s2 + $0x728] sm:$0xff]
  %v2766 = vld [vmem:[%s2 + $0x730] sm:$0xff]
  %v2767 = vld [vmem:[%s2 + $0x738] sm:$0xff]
  %v2768 = vld [vmem:[%s2 + $0x740] sm:$0xff]
  %v2769 = vld [vmem:[%s2 + $0x748] sm:$0xff]
  %v2770 = vld [vmem:[%s2 + $0x750] sm:$0xff]
  %v2771 = vld [vmem:[%s2 + $0x758] sm:$0xff]
  %v2772 = vld [vmem:[%s2 + $0x760] sm:$0xff]
  %v2773 = vld [vmem:[%s2 + $0x768] sm:$0xff]
  %v2774 = vld [vmem:[%s2 + $0x770] sm:$0xff]
  %v2775 = vld [vmem:[%s2 + $0x778] sm:$0xff]
  %v2776 = vld [vmem:[%s2 + $0x780] sm:$0xff]
  %v2777 = vld [vmem:[%s2 + $0x788] sm:$0xff]
  %v2778 = vld [vmem:[%s2 + $0x790] sm:$0xff]
  %v2779 = vld [vmem:[%s2 + $0x798] sm:$0xff]
  %v2780 = vld [vmem:[%s2 + $0x7a0] sm:$0xff]
  %v2781 = vld [vmem:[%s2 + $0x7a8] sm:$0xff]
  %v2782 = vld [vmem:[%s2 + $0x7b0] sm:$0xff]
  %v2783 = vld [vmem:[%s2 + $0x7b8] sm:$0xff]
  %v2784 = vld [vmem:[%s2 + $0x7c0] sm:$0xff]
  %v2785 = vld [vmem:[%s2 + $0x7c8] sm:$0xff]
  %v2786 = vld [vmem:[%s2 + $0x7d0] sm:$0xff]
  %v2787 = vld [vmem:[%s2 + $0x7d8] sm:$0xff]
  %v2788 = vld [vmem:[%s2 + $0x7e0] sm:$0xff]
  %v2789 = vld [vmem:[%s2 + $0x7e8] sm:$0xff]
  %v2790 = vld [vmem:[%s2 + $0x7f0] sm:$0xff]
  %v2791 = vld [vmem:[%s2 + $0x7f8] sm:$0xff]
  %2792 = vmatprep.subr.mxu0 %v2657
  %2793 = vmatpush1.msra.mxu0 %v2656
  %2794 = vmatprep.subr.mxu0 %v2649
  %2795 = vmatpush1.msra.mxu0 %v2648
  %2796 = vmatprep.subr.mxu0 %v2641
  %2797 = vmatpush1.msra.mxu0 %v2640
  %2798 = vmatprep.subr.mxu0 %v2633
  %2799 = vmatpush1.msra.mxu0 %v2632
  %2800 = vmatprep.subr.mxu0 %v2625
  %2801 = vmatpush1.msra.mxu0 %v2624
  %2802 = vmatprep.subr.mxu0 %v2617
  %2803 = vmatpush1.msra.mxu0 %v2616
  %2804 = vmatprep.subr.mxu0 %v2609
  %2805 = vmatpush1.msra.mxu0 %v2608
  %2806 = vmatprep.subr.mxu0 %v2601
  %2807 = vmatpush1.msra.mxu0 %v2600
  %2808 = vmatprep.subr.mxu0 %v2593
  %2809 = vmatpush1.msra.mxu0 %v2592
  %2810 = vmatprep.subr.mxu0 %v2585
  %2811 = vmatpush1.msra.mxu0 %v2584
  %2812 = vmatprep.subr.mxu0 %v2577
  %2813 = vmatpush1.msra.mxu0 %v2576
  %2814 = vmatprep.subr.mxu0 %v2569
  %2815 = vmatpush1.msra.mxu0 %v2568
  %2816 = vmatprep.subr.mxu0 %v2561
  %2817 = vmatpush1.msra.mxu0 %v2560
  %2818 = vmatprep.subr.mxu0 %v2553
  %2819 = vmatpush1.msra.mxu0 %v2552
  %2820 = vmatprep.subr.mxu0 %v2545
  %2821 = vmatpush1.msra.mxu0 %v2544
  %2822 = vmatprep.subr.mxu0 %v2537
  %2823 = vmatpush1.msra.mxu0 %v2536
  %2824 = vmatprep.subr.mxu0 %v2785
  %2825 = vmatpush2.msra.mxu0 %v2784
  %2826 = vmatprep.subr.mxu0 %v2777
  %2827 = vmatpush2.msra.mxu0 %v2776
  %2828 = vmatprep.subr.mxu0 %v2769
  %2829 = vmatpush2.msra.mxu0 %v2768
  %2830 = vmatprep.subr.mxu0 %v2761
  %2831 = vmatpush2.msra.mxu0 %v2760
  %2832 = vmatprep.subr.mxu0 %v2753
  %2833 = vmatpush2.msra.mxu0 %v2752
  %2834 = vmatprep.subr.mxu0 %v2745
  %2835 = vmatpush2.msra.mxu0 %v2744
  %2836 = vmatprep.subr.mxu0 %v2737
  %2837 = vmatpush2.msra.mxu0 %v2736
  %2838 = vmatprep.subr.mxu0 %v2729
  %2839 = vmatpush2.msra.mxu0 %v2728
  %2840 = vmatprep.subr.mxu0 %v2721
  %2841 = vmatpush2.msra.mxu0 %v2720
  %2842 = vmatprep.subr.mxu0 %v2713
  %2843 = vmatpush2.msra.mxu0 %v2712
  %2844 = vmatprep.subr.mxu0 %v2705
  %2845 = vmatpush2.msra.mxu0 %v2704
  %2846 = vmatprep.subr.mxu0 %v2697
  %2847 = vmatpush2.msra.mxu0 %v2696
  %2848 = vmatprep.subr.mxu0 %v2689
  %2849 = vmatpush2.msra.mxu0 %v2688
  %2850 = vmatprep.subr.mxu0 %v2681
  %2851 = vmatpush2.msra.mxu0 %v2680
  %2852 = vmatprep.subr.mxu0 %v2673
  %2853 = vmatpush2.msra.mxu0 %v2672
  %2854 = vmatprep.subr.mxu0 %v2665
  %2855 = vmatpush2.msra.mxu0 %v2664
  %2856 = vmatprep.mubr.f32.mxu0 %v2535
  %2857 = vmatmul.mubr.f32.gmra.mxu0 %v2534
  %v2858 = vpop.f32.mrf.mxu0
  %v2859 = vadd.f32 0.0, %v2858
  %v2860 = vpop.f32.mrf.mxu0
  %v2861 = vadd.f32 0.0, %v2860
  %2862 = vdwg.mxu0
  %2863 = vmatprep.subr.mxu0 %v2659
  %2864 = vmatpush1.msra.mxu0 %v2658
  %2865 = vmatprep.subr.mxu0 %v2651
  %2866 = vmatpush1.msra.mxu0 %v2650
  %2867 = vmatprep.subr.mxu0 %v2643
  %2868 = vmatpush1.msra.mxu0 %v2642
  %2869 = vmatprep.subr.mxu0 %v2635
  %2870 = vmatpush1.msra.mxu0 %v2634
  %2871 = vmatprep.subr.mxu0 %v2627
  %2872 = vmatpush1.msra.mxu0 %v2626
  %2873 = vmatprep.subr.mxu0 %v2619
  %2874 = vmatpush1.msra.mxu0 %v2618
  %2875 = vmatprep.subr.mxu0 %v2611
  %2876 = vmatpush1.msra.mxu0 %v2610
  %2877 = vmatprep.subr.mxu0 %v2603
  %2878 = vmatpush1.msra.mxu0 %v2602
  %2879 = vmatprep.subr.mxu0 %v2595
  %2880 = vmatpush1.msra.mxu0 %v2594
  %2881 = vmatprep.subr.mxu0 %v2587
  %2882 = vmatpush1.msra.mxu0 %v2586
  %2883 = vmatprep.subr.mxu0 %v2579
  %2884 = vmatpush1.msra.mxu0 %v2578
  %2885 = vmatprep.subr.mxu0 %v2571
  %2886 = vmatpush1.msra.mxu0 %v2570
  %2887 = vmatprep.subr.mxu0 %v2563
  %2888 = vmatpush1.msra.mxu0 %v2562
  %2889 = vmatprep.subr.mxu0 %v2555
  %2890 = vmatpush1.msra.mxu0 %v2554
  %2891 = vmatprep.subr.mxu0 %v2547
  %2892 = vmatpush1.msra.mxu0 %v2546
  %2893 = vmatprep.subr.mxu0 %v2539
  %2894 = vmatpush1.msra.mxu0 %v2538
  %2895 = vmatprep.subr.mxu0 %v2787
  %2896 = vmatpush2.msra.mxu0 %v2786
  %2897 = vmatprep.subr.mxu0 %v2779
  %2898 = vmatpush2.msra.mxu0 %v2778
  %2899 = vmatprep.subr.mxu0 %v2771
  %2900 = vmatpush2.msra.mxu0 %v2770
  %2901 = vmatprep.subr.mxu0 %v2763
  %2902 = vmatpush2.msra.mxu0 %v2762
  %2903 = vmatprep.subr.mxu0 %v2755
  %2904 = vmatpush2.msra.mxu0 %v2754
  %2905 = vmatprep.subr.mxu0 %v2747
  %2906 = vmatpush2.msra.mxu0 %v2746
  %2907 = vmatprep.subr.mxu0 %v2739
  %2908 = vmatpush2.msra.mxu0 %v2738
  %2909 = vmatprep.subr.mxu0 %v2731
  %2910 = vmatpush2.msra.mxu0 %v2730
  %2911 = vmatprep.subr.mxu0 %v2723
  %2912 = vmatpush2.msra.mxu0 %v2722
  %2913 = vmatprep.subr.mxu0 %v2715
  %2914 = vmatpush2.msra.mxu0 %v2714
  %2915 = vmatprep.subr.mxu0 %v2707
  %2916 = vmatpush2.msra.mxu0 %v2706
  %2917 = vmatprep.subr.mxu0 %v2699
  %2918 = vmatpush2.msra.mxu0 %v2698
  %2919 = vmatprep.subr.mxu0 %v2691
  %2920 = vmatpush2.msra.mxu0 %v2690
  %2921 = vmatprep.subr.mxu0 %v2683
  %2922 = vmatpush2.msra.mxu0 %v2682
  %2923 = vmatprep.subr.mxu0 %v2675
  %2924 = vmatpush2.msra.mxu0 %v2674
  %2925 = vmatprep.subr.mxu0 %v2667
  %2926 = vmatpush2.msra.mxu0 %v2666
  %2927 = vmatprep.mubr.f32.mxu0 %v2535
  %2928 = vmatmul.mubr.f32.gmra.mxu0 %v2534
  %v2929 = vpop.f32.mrf.mxu0
  %v2930 = vadd.f32 0.0, %v2929
  %v2931 = vpop.f32.mrf.mxu0
  %v2932 = vadd.f32 0.0, %v2931
  %2933 = vdwg.mxu0
  %2934 = vmatprep.subr.mxu0 %v2661
  %2935 = vmatpush1.msra.mxu0 %v2660
  %2936 = vmatprep.subr.mxu0 %v2653
  %2937 = vmatpush1.msra.mxu0 %v2652
  %2938 = vmatprep.subr.mxu0 %v2645
  %2939 = vmatpush1.msra.mxu0 %v2644
  %2940 = vmatprep.subr.mxu0 %v2637
  %2941 = vmatpush1.msra.mxu0 %v2636
  %2942 = vmatprep.subr.mxu0 %v2629
  %2943 = vmatpush1.msra.mxu0 %v2628
  %2944 = vmatprep.subr.mxu0 %v2621
  %2945 = vmatpush1.msra.mxu0 %v2620
  %2946 = vmatprep.subr.mxu0 %v2613
  %2947 = vmatpush1.msra.mxu0 %v2612
  %2948 = vmatprep.subr.mxu0 %v2605
  %2949 = vmatpush1.msra.mxu0 %v2604
  %2950 = vmatprep.subr.mxu0 %v2597
  %2951 = vmatpush1.msra.mxu0 %v2596
  %2952 = vmatprep.subr.mxu0 %v2589
  %2953 = vmatpush1.msra.mxu0 %v2588
  %2954 = vmatprep.subr.mxu0 %v2581
  %2955 = vmatpush1.msra.mxu0 %v2580
  %2956 = vmatprep.subr.mxu0 %v2573
  %2957 = vmatpush1.msra.mxu0 %v2572
  %2958 = vmatprep.subr.mxu0 %v2565
  %2959 = vmatpush1.msra.mxu0 %v2564
  %2960 = vmatprep.subr.mxu0 %v2557
  %2961 = vmatpush1.msra.mxu0 %v2556
  %2962 = vmatprep.subr.mxu0 %v2549
  %2963 = vmatpush1.msra.mxu0 %v2548
  %2964 = vmatprep.subr.mxu0 %v2541
  %2965 = vmatpush1.msra.mxu0 %v2540
  %2966 = vmatprep.subr.mxu0 %v2789
  %2967 = vmatpush2.msra.mxu0 %v2788
  %2968 = vmatprep.subr.mxu0 %v2781
  %2969 = vmatpush2.msra.mxu0 %v2780
  %2970 = vmatprep.subr.mxu0 %v2773
  %2971 = vmatpush2.msra.mxu0 %v2772
  %2972 = vmatprep.subr.mxu0 %v2765
  %2973 = vmatpush2.msra.mxu0 %v2764
  %2974 = vmatprep.subr.mxu0 %v2757
  %2975 = vmatpush2.msra.mxu0 %v2756
  %2976 = vmatprep.subr.mxu0 %v2749
  %2977 = vmatpush2.msra.mxu0 %v2748
  %2978 = vmatprep.subr.mxu0 %v2741
  %2979 = vmatpush2.msra.mxu0 %v2740
  %2980 = vmatprep.subr.mxu0 %v2733
  %2981 = vmatpush2.msra.mxu0 %v2732
  %2982 = vmatprep.subr.mxu0 %v2725
  %2983 = vmatpush2.msra.mxu0 %v2724
  %2984 = vmatprep.subr.mxu0 %v2717
  %2985 = vmatpush2.msra.mxu0 %v2716
  %2986 = vmatprep.subr.mxu0 %v2709
  %2987 = vmatpush2.msra.mxu0 %v2708
  %2988 = vmatprep.subr.mxu0 %v2701
  %2989 = vmatpush2.msra.mxu0 %v2700
  %2990 = vmatprep.subr.mxu0 %v2693
  %2991 = vmatpush2.msra.mxu0 %v2692
  %2992 = vmatprep.subr.mxu0 %v2685
  %2993 = vmatpush2.msra.mxu0 %v2684
  %2994 = vmatprep.subr.mxu0 %v2677
  %2995 = vmatpush2.msra.mxu0 %v2676
  %2996 = vmatprep.subr.mxu0 %v2669
  %2997 = vmatpush2.msra.mxu0 %v2668
  %2998 = vmatprep.mubr.f32.mxu0 %v2535
  %2999 = vmatmul.mubr.f32.gmra.mxu0 %v2534
  %v3000 = vpop.f32.mrf.mxu0
  %v3001 = vadd.f32 0.0, %v3000
  %v3002 = vpop.f32.mrf.mxu0
  %v3003 = vadd.f32 0.0, %v3002
  %3004 = vdwg.mxu0
  %3005 = vmatprep.subr.mxu0 %v2663
  %3006 = vmatpush1.msra.mxu0 %v2662
  %3007 = vmatprep.subr.mxu0 %v2655
  %3008 = vmatpush1.msra.mxu0 %v2654
  %3009 = vmatprep.subr.mxu0 %v2647
  %3010 = vmatpush1.msra.mxu0 %v2646
  %3011 = vmatprep.subr.mxu0 %v2639
  %3012 = vmatpush1.msra.mxu0 %v2638
  %3013 = vmatprep.subr.mxu0 %v2631
  %3014 = vmatpush1.msra.mxu0 %v2630
  %3015 = vmatprep.subr.mxu0 %v2623
  %3016 = vmatpush1.msra.mxu0 %v2622
  %3017 = vmatprep.subr.mxu0 %v2615
  %3018 = vmatpush1.msra.mxu0 %v2614
  %3019 = vmatprep.subr.mxu0 %v2607
  %3020 = vmatpush1.msra.mxu0 %v2606
  %3021 = vmatprep.subr.mxu0 %v2599
  %3022 = vmatpush1.msra.mxu0 %v2598
  %3023 = vmatprep.subr.mxu0 %v2591
  %3024 = vmatpush1.msra.mxu0 %v2590
  %3025 = vmatprep.subr.mxu0 %v2583
  %3026 = vmatpush1.msra.mxu0 %v2582
  %3027 = vmatprep.subr.mxu0 %v2575
  %3028 = vmatpush1.msra.mxu0 %v2574
  %3029 = vmatprep.subr.mxu0 %v2567
  %3030 = vmatpush1.msra.mxu0 %v2566
  %3031 = vmatprep.subr.mxu0 %v2559
  %3032 = vmatpush1.msra.mxu0 %v2558
  %3033 = vmatprep.subr.mxu0 %v2551
  %3034 = vmatpush1.msra.mxu0 %v2550
  %3035 = vmatprep.subr.mxu0 %v2543
  %3036 = vmatpush1.msra.mxu0 %v2542
  %3037 = vmatprep.subr.mxu0 %v2791
  %3038 = vmatpush2.msra.mxu0 %v2790
  %3039 = vmatprep.subr.mxu0 %v2783
  %3040 = vmatpush2.msra.mxu0 %v2782
  %3041 = vmatprep.subr.mxu0 %v2775
  %3042 = vmatpush2.msra.mxu0 %v2774
  %3043 = vmatprep.subr.mxu0 %v2767
  %3044 = vmatpush2.msra.mxu0 %v2766
  %3045 = vmatprep.subr.mxu0 %v2759
  %3046 = vmatpush2.msra.mxu0 %v2758
  %3047 = vmatprep.subr.mxu0 %v2751
  %3048 = vmatpush2.msra.mxu0 %v2750
  %3049 = vmatprep.subr.mxu0 %v2743
  %3050 = vmatpush2.msra.mxu0 %v2742
  %3051 = vmatprep.subr.mxu0 %v2735
  %3052 = vmatpush2.msra.mxu0 %v2734
  %3053 = vmatprep.subr.mxu0 %v2727
  %3054 = vmatpush2.msra.mxu0 %v2726
  %3055 = vmatprep.subr.mxu0 %v2719
  %3056 = vmatpush2.msra.mxu0 %v2718
  %3057 = vmatprep.subr.mxu0 %v2711
  %3058 = vmatpush2.msra.mxu0 %v2710
  %3059 = vmatprep.subr.mxu0 %v2703
  %3060 = vmatpush2.msra.mxu0 %v2702
  %3061 = vmatprep.subr.mxu0 %v2695
  %3062 = vmatpush2.msra.mxu0 %v2694
  %3063 = vmatprep.subr.mxu0 %v2687
  %3064 = vmatpush2.msra.mxu0 %v2686
  %3065 = vmatprep.subr.mxu0 %v2679
  %3066 = vmatpush2.msra.mxu0 %v2678
  %3067 = vmatprep.subr.mxu0 %v2671
  %3068 = vmatpush2.msra.mxu0 %v2670
  %3069 = vmatprep.mubr.f32.mxu0 %v2535
  %3070 = vmatmul.mubr.f32.gmra.mxu0 %v2534
  %v3071 = vpop.f32.mrf.mxu0
  %v3072 = vadd.f32 0.0, %v3071
  %v3073 = vpop.f32.mrf.mxu0
  %v3074 = vadd.f32 0.0, %v3073
  %3075 = vdwg.mxu0
  %v3076 = vadd.f32 %v2526, %v2859
  %v3077 = vadd.f32 %v2527, %v2861
  %v3078 = vadd.f32 %v2528, %v2930
  %v3079 = vadd.f32 %v2529, %v2932
  %v3080 = vadd.f32 %v2530, %v3001
  %v3081 = vadd.f32 %v2531, %v3003
  %v3082 = vadd.f32 %v2532, %v3072
  %v3083 = vadd.f32 %v2533, %v3074
  %v3084 = vxor.u32 %v3076, 2147483648
  %v3085 = vxor.u32 %v3077, 2147483648
  %v3086 = vmul.f32 %v3084, 1.442695
  %v3087 = vpow.pop %v3086
  %v3088 = vmul.f32 %v3085, 1.442695
  %v3089 = vpow.pop %v3088
  %v3090 = vadd.f32 %v3087, 1.0
  %v3091 = vadd.f32 %v3089, 1.0
  %v3092 = vrcp.pop %v3090
  %v3093 = vmul.f32 1.0, %v3092
  %v3094 = vrcp.pop %v3091
  %v3095 = vmul.f32 1.0, %v3094
  %v3096 = vxor.u32 %v3078, 2147483648
  %v3097 = vxor.u32 %v3079, 2147483648
  %v3098 = vmul.f32 %v3096, 1.442695
  %v3099 = vpow.pop %v3098
  %v3100 = vmul.f32 %v3097, 1.442695
  %v3101 = vpow.pop %v3100
  %v3102 = vadd.f32 %v3099, 1.0
  %v3103 = vadd.f32 %v3101, 1.0
  %v3104 = vrcp.pop %v3102
  %v3105 = vmul.f32 1.0, %v3104
  %v3106 = vrcp.pop %v3103
  %v3107 = vmul.f32 1.0, %v3106
  %v3108 = vtanh.pop %v3080
  %v3109 = vtanh.pop %v3081
  %v3110 = vxor.u32 %v3082, 2147483648
  %v3111 = vxor.u32 %v3083, 2147483648
  %v3112 = vmul.f32 %v3110, 1.442695
  %v3113 = vpow.pop %v3112
  %v3114 = vmul.f32 %v3111, 1.442695
  %v3115 = vpow.pop %v3114
  %v3116 = vadd.f32 %v3113, 1.0
  %v3117 = vadd.f32 %v3115, 1.0
  %v3118 = vrcp.pop %v3116
  %v3119 = vmul.f32 1.0, %v3118
  %v3120 = vrcp.pop %v3117
  %v3121 = vmul.f32 1.0, %v3120
  %v3122 = vld [vmem:[%s5] sm:$0xff]
  %v3123 = vld [vmem:[%s5 + $0x8] sm:$0xff]
  %v3124 = vmul.f32 %v3105, %v3122
  %v3125 = vmul.f32 %v3107, %v3123
  %v3126 = vmul.f32 %v3093, %v3108
  %v3127 = vmul.f32 %v3095, %v3109
  %v3128 = vadd.f32 %v3124, %v3126
  %v3129 = vadd.f32 %v3125, %v3127
  %3130 = vst [vmem:[%s5] sm:$0xff] %v3128
  %3131 = vst [vmem:[%s5 + $0x8] sm:$0xff] %v3129
  %v3132 = vtanh.pop %v3128
  %v3133 = vtanh.pop %v3129
  %v3134 = vmul.f32 %v3119, %v3132
  %v3135 = vmul.f32 %v3121, %v3133
  %3136 = vst [vmem:[%s4] sm:$0xff] %v3134
  %3137 = vst [vmem:[%s4 + $0x8] sm:$0xff] %v3135
  %s3138 = smul.u32 4, 8
  %s3139 = smul.addr %s3138, 8
  %s3140 = scalar_lea.vmem [#allocation2], %s3139
  %v3141 = vld [vmem:[%s3140] sm:$0xff]
  %v3142 = vld [vmem:[%s3140 + $0x8] sm:$0xff]
  %v3143 = vld [vmem:[%s3140 + $0x10] sm:$0xff]
  %v3144 = vld [vmem:[%s3140 + $0x18] sm:$0xff]
  %v3145 = vld [vmem:[%s3140 + $0x20] sm:$0xff]
  %v3146 = vld [vmem:[%s3140 + $0x28] sm:$0xff]
  %v3147 = vld [vmem:[%s3140 + $0x30] sm:$0xff]
  %v3148 = vld [vmem:[%s3140 + $0x38] sm:$0xff]
  %v3149 = vld [vmem:[%s4] sm:$0xff]
  %v3150 = vld [vmem:[%s4 + $0x8] sm:$0xff]
  %v3151 = vld [vmem:[%s2] sm:$0xff]
  %v3152 = vld [vmem:[%s2 + $0x8] sm:$0xff]
  %v3153 = vld [vmem:[%s2 + $0x10] sm:$0xff]
  %v3154 = vld [vmem:[%s2 + $0x18] sm:$0xff]
  %v3155 = vld [vmem:[%s2 + $0x20] sm:$0xff]
  %v3156 = vld [vmem:[%s2 + $0x28] sm:$0xff]
  %v3157 = vld [vmem:[%s2 + $0x30] sm:$0xff]
  %v3158 = vld [vmem:[%s2 + $0x38] sm:$0xff]
  %v3159 = vld [vmem:[%s2 + $0x40] sm:$0xff]
  %v3160 = vld [vmem:[%s2 + $0x48] sm:$0xff]
  %v3161 = vld [vmem:[%s2 + $0x50] sm:$0xff]
  %v3162 = vld [vmem:[%s2 + $0x58] sm:$0xff]
  %v3163 = vld [vmem:[%s2 + $0x60] sm:$0xff]
  %v3164 = vld [vmem:[%s2 + $0x68] sm:$0xff]
  %v3165 = vld [vmem:[%s2 + $0x70] sm:$0xff]
  %v3166 = vld [vmem:[%s2 + $0x78] sm:$0xff]
  %v3167 = vld [vmem:[%s2 + $0x80] sm:$0xff]
  %v3168 = vld [vmem:[%s2 + $0x88] sm:$0xff]
  %v3169 = vld [vmem:[%s2 + $0x90] sm:$0xff]
  %v3170 = vld [vmem:[%s2 + $0x98] sm:$0xff]
  %v3171 = vld [vmem:[%s2 + $0xa0] sm:$0xff]
  %v3172 = vld [vmem:[%s2 + $0xa8] sm:$0xff]
  %v3173 = vld [vmem:[%s2 + $0xb0] sm:$0xff]
  %v3174 = vld [vmem:[%s2 + $0xb8] sm:$0xff]
  %v3175 = vld [vmem:[%s2 + $0xc0] sm:$0xff]
  %v3176 = vld [vmem:[%s2 + $0xc8] sm:$0xff]
  %v3177 = vld [vmem:[%s2 + $0xd0] sm:$0xff]
  %v3178 = vld [vmem:[%s2 + $0xd8] sm:$0xff]
  %v3179 = vld [vmem:[%s2 + $0xe0] sm:$0xff]
  %v3180 = vld [vmem:[%s2 + $0xe8] sm:$0xff]
  %v3181 = vld [vmem:[%s2 + $0xf0] sm:$0xff]
  %v3182 = vld [vmem:[%s2 + $0xf8] sm:$0xff]
  %v3183 = vld [vmem:[%s2 + $0x100] sm:$0xff]
  %v3184 = vld [vmem:[%s2 + $0x108] sm:$0xff]
  %v3185 = vld [vmem:[%s2 + $0x110] sm:$0xff]
  %v3186 = vld [vmem:[%s2 + $0x118] sm:$0xff]
  %v3187 = vld [vmem:[%s2 + $0x120] sm:$0xff]
  %v3188 = vld [vmem:[%s2 + $0x128] sm:$0xff]
  %v3189 = vld [vmem:[%s2 + $0x130] sm:$0xff]
  %v3190 = vld [vmem:[%s2 + $0x138] sm:$0xff]
  %v3191 = vld [vmem:[%s2 + $0x140] sm:$0xff]
  %v3192 = vld [vmem:[%s2 + $0x148] sm:$0xff]
  %v3193 = vld [vmem:[%s2 + $0x150] sm:$0xff]
  %v3194 = vld [vmem:[%s2 + $0x158] sm:$0xff]
  %v3195 = vld [vmem:[%s2 + $0x160] sm:$0xff]
  %v3196 = vld [vmem:[%s2 + $0x168] sm:$0xff]
  %v3197 = vld [vmem:[%s2 + $0x170] sm:$0xff]
  %v3198 = vld [vmem:[%s2 + $0x178] sm:$0xff]
  %v3199 = vld [vmem:[%s2 + $0x180] sm:$0xff]
  %v3200 = vld [vmem:[%s2 + $0x188] sm:$0xff]
  %v3201 = vld [vmem:[%s2 + $0x190] sm:$0xff]
  %v3202 = vld [vmem:[%s2 + $0x198] sm:$0xff]
  %v3203 = vld [vmem:[%s2 + $0x1a0] sm:$0xff]
  %v3204 = vld [vmem:[%s2 + $0x1a8] sm:$0xff]
  %v3205 = vld [vmem:[%s2 + $0x1b0] sm:$0xff]
  %v3206 = vld [vmem:[%s2 + $0x1b8] sm:$0xff]
  %v3207 = vld [vmem:[%s2 + $0x1c0] sm:$0xff]
  %v3208 = vld [vmem:[%s2 + $0x1c8] sm:$0xff]
  %v3209 = vld [vmem:[%s2 + $0x1d0] sm:$0xff]
  %v3210 = vld [vmem:[%s2 + $0x1d8] sm:$0xff]
  %v3211 = vld [vmem:[%s2 + $0x1e0] sm:$0xff]
  %v3212 = vld [vmem:[%s2 + $0x1e8] sm:$0xff]
  %v3213 = vld [vmem:[%s2 + $0x1f0] sm:$0xff]
  %v3214 = vld [vmem:[%s2 + $0x1f8] sm:$0xff]
  %v3215 = vld [vmem:[%s2 + $0x200] sm:$0xff]
  %v3216 = vld [vmem:[%s2 + $0x208] sm:$0xff]
  %v3217 = vld [vmem:[%s2 + $0x210] sm:$0xff]
  %v3218 = vld [vmem:[%s2 + $0x218] sm:$0xff]
  %v3219 = vld [vmem:[%s2 + $0x220] sm:$0xff]
  %v3220 = vld [vmem:[%s2 + $0x228] sm:$0xff]
  %v3221 = vld [vmem:[%s2 + $0x230] sm:$0xff]
  %v3222 = vld [vmem:[%s2 + $0x238] sm:$0xff]
  %v3223 = vld [vmem:[%s2 + $0x240] sm:$0xff]
  %v3224 = vld [vmem:[%s2 + $0x248] sm:$0xff]
  %v3225 = vld [vmem:[%s2 + $0x250] sm:$0xff]
  %v3226 = vld [vmem:[%s2 + $0x258] sm:$0xff]
  %v3227 = vld [vmem:[%s2 + $0x260] sm:$0xff]
  %v3228 = vld [vmem:[%s2 + $0x268] sm:$0xff]
  %v3229 = vld [vmem:[%s2 + $0x270] sm:$0xff]
  %v3230 = vld [vmem:[%s2 + $0x278] sm:$0xff]
  %v3231 = vld [vmem:[%s2 + $0x280] sm:$0xff]
  %v3232 = vld [vmem:[%s2 + $0x288] sm:$0xff]
  %v3233 = vld [vmem:[%s2 + $0x290] sm:$0xff]
  %v3234 = vld [vmem:[%s2 + $0x298] sm:$0xff]
  %v3235 = vld [vmem:[%s2 + $0x2a0] sm:$0xff]
  %v3236 = vld [vmem:[%s2 + $0x2a8] sm:$0xff]
  %v3237 = vld [vmem:[%s2 + $0x2b0] sm:$0xff]
  %v3238 = vld [vmem:[%s2 + $0x2b8] sm:$0xff]
  %v3239 = vld [vmem:[%s2 + $0x2c0] sm:$0xff]
  %v3240 = vld [vmem:[%s2 + $0x2c8] sm:$0xff]
  %v3241 = vld [vmem:[%s2 + $0x2d0] sm:$0xff]
  %v3242 = vld [vmem:[%s2 + $0x2d8] sm:$0xff]
  %v3243 = vld [vmem:[%s2 + $0x2e0] sm:$0xff]
  %v3244 = vld [vmem:[%s2 + $0x2e8] sm:$0xff]
  %v3245 = vld [vmem:[%s2 + $0x2f0] sm:$0xff]
  %v3246 = vld [vmem:[%s2 + $0x2f8] sm:$0xff]
  %v3247 = vld [vmem:[%s2 + $0x300] sm:$0xff]
  %v3248 = vld [vmem:[%s2 + $0x308] sm:$0xff]
  %v3249 = vld [vmem:[%s2 + $0x310] sm:$0xff]
  %v3250 = vld [vmem:[%s2 + $0x318] sm:$0xff]
  %v3251 = vld [vmem:[%s2 + $0x320] sm:$0xff]
  %v3252 = vld [vmem:[%s2 + $0x328] sm:$0xff]
  %v3253 = vld [vmem:[%s2 + $0x330] sm:$0xff]
  %v3254 = vld [vmem:[%s2 + $0x338] sm:$0xff]
  %v3255 = vld [vmem:[%s2 + $0x340] sm:$0xff]
  %v3256 = vld [vmem:[%s2 + $0x348] sm:$0xff]
  %v3257 = vld [vmem:[%s2 + $0x350] sm:$0xff]
  %v3258 = vld [vmem:[%s2 + $0x358] sm:$0xff]
  %v3259 = vld [vmem:[%s2 + $0x360] sm:$0xff]
  %v3260 = vld [vmem:[%s2 + $0x368] sm:$0xff]
  %v3261 = vld [vmem:[%s2 + $0x370] sm:$0xff]
  %v3262 = vld [vmem:[%s2 + $0x378] sm:$0xff]
  %v3263 = vld [vmem:[%s2 + $0x380] sm:$0xff]
  %v3264 = vld [vmem:[%s2 + $0x388] sm:$0xff]
  %v3265 = vld [vmem:[%s2 + $0x390] sm:$0xff]
  %v3266 = vld [vmem:[%s2 + $0x398] sm:$0xff]
  %v3267 = vld [vmem:[%s2 + $0x3a0] sm:$0xff]
  %v3268 = vld [vmem:[%s2 + $0x3a8] sm:$0xff]
  %v3269 = vld [vmem:[%s2 + $0x3b0] sm:$0xff]
  %v3270 = vld [vmem:[%s2 + $0x3b8] sm:$0xff]
  %v3271 = vld [vmem:[%s2 + $0x3c0] sm:$0xff]
  %v3272 = vld [vmem:[%s2 + $0x3c8] sm:$0xff]
  %v3273 = vld [vmem:[%s2 + $0x3d0] sm:$0xff]
  %v3274 = vld [vmem:[%s2 + $0x3d8] sm:$0xff]
  %v3275 = vld [vmem:[%s2 + $0x3e0] sm:$0xff]
  %v3276 = vld [vmem:[%s2 + $0x3e8] sm:$0xff]
  %v3277 = vld [vmem:[%s2 + $0x3f0] sm:$0xff]
  %v3278 = vld [vmem:[%s2 + $0x3f8] sm:$0xff]
  %v3279 = vld [vmem:[%s2 + $0x400] sm:$0xff]
  %v3280 = vld [vmem:[%s2 + $0x408] sm:$0xff]
  %v3281 = vld [vmem:[%s2 + $0x410] sm:$0xff]
  %v3282 = vld [vmem:[%s2 + $0x418] sm:$0xff]
  %v3283 = vld [vmem:[%s2 + $0x420] sm:$0xff]
  %v3284 = vld [vmem:[%s2 + $0x428] sm:$0xff]
  %v3285 = vld [vmem:[%s2 + $0x430] sm:$0xff]
  %v3286 = vld [vmem:[%s2 + $0x438] sm:$0xff]
  %v3287 = vld [vmem:[%s2 + $0x440] sm:$0xff]
  %v3288 = vld [vmem:[%s2 + $0x448] sm:$0xff]
  %v3289 = vld [vmem:[%s2 + $0x450] sm:$0xff]
  %v3290 = vld [vmem:[%s2 + $0x458] sm:$0xff]
  %v3291 = vld [vmem:[%s2 + $0x460] sm:$0xff]
  %v3292 = vld [vmem:[%s2 + $0x468] sm:$0xff]
  %v3293 = vld [vmem:[%s2 + $0x470] sm:$0xff]
  %v3294 = vld [vmem:[%s2 + $0x478] sm:$0xff]
  %v3295 = vld [vmem:[%s2 + $0x480] sm:$0xff]
  %v3296 = vld [vmem:[%s2 + $0x488] sm:$0xff]
  %v3297 = vld [vmem:[%s2 + $0x490] sm:$0xff]
  %v3298 = vld [vmem:[%s2 + $0x498] sm:$0xff]
  %v3299 = vld [vmem:[%s2 + $0x4a0] sm:$0xff]
  %v3300 = vld [vmem:[%s2 + $0x4a8] sm:$0xff]
  %v3301 = vld [vmem:[%s2 + $0x4b0] sm:$0xff]
  %v3302 = vld [vmem:[%s2 + $0x4b8] sm:$0xff]
  %v3303 = vld [vmem:[%s2 + $0x4c0] sm:$0xff]
  %v3304 = vld [vmem:[%s2 + $0x4c8] sm:$0xff]
  %v3305 = vld [vmem:[%s2 + $0x4d0] sm:$0xff]
  %v3306 = vld [vmem:[%s2 + $0x4d8] sm:$0xff]
  %v3307 = vld [vmem:[%s2 + $0x4e0] sm:$0xff]
  %v3308 = vld [vmem:[%s2 + $0x4e8] sm:$0xff]
  %v3309 = vld [vmem:[%s2 + $0x4f0] sm:$0xff]
  %v3310 = vld [vmem:[%s2 + $0x4f8] sm:$0xff]
  %v3311 = vld [vmem:[%s2 + $0x500] sm:$0xff]
  %v3312 = vld [vmem:[%s2 + $0x508] sm:$0xff]
  %v3313 = vld [vmem:[%s2 + $0x510] sm:$0xff]
  %v3314 = vld [vmem:[%s2 + $0x518] sm:$0xff]
  %v3315 = vld [vmem:[%s2 + $0x520] sm:$0xff]
  %v3316 = vld [vmem:[%s2 + $0x528] sm:$0xff]
  %v3317 = vld [vmem:[%s2 + $0x530] sm:$0xff]
  %v3318 = vld [vmem:[%s2 + $0x538] sm:$0xff]
  %v3319 = vld [vmem:[%s2 + $0x540] sm:$0xff]
  %v3320 = vld [vmem:[%s2 + $0x548] sm:$0xff]
  %v3321 = vld [vmem:[%s2 + $0x550] sm:$0xff]
  %v3322 = vld [vmem:[%s2 + $0x558] sm:$0xff]
  %v3323 = vld [vmem:[%s2 + $0x560] sm:$0xff]
  %v3324 = vld [vmem:[%s2 + $0x568] sm:$0xff]
  %v3325 = vld [vmem:[%s2 + $0x570] sm:$0xff]
  %v3326 = vld [vmem:[%s2 + $0x578] sm:$0xff]
  %v3327 = vld [vmem:[%s2 + $0x580] sm:$0xff]
  %v3328 = vld [vmem:[%s2 + $0x588] sm:$0xff]
  %v3329 = vld [vmem:[%s2 + $0x590] sm:$0xff]
  %v3330 = vld [vmem:[%s2 + $0x598] sm:$0xff]
  %v3331 = vld [vmem:[%s2 + $0x5a0] sm:$0xff]
  %v3332 = vld [vmem:[%s2 + $0x5a8] sm:$0xff]
  %v3333 = vld [vmem:[%s2 + $0x5b0] sm:$0xff]
  %v3334 = vld [vmem:[%s2 + $0x5b8] sm:$0xff]
  %v3335 = vld [vmem:[%s2 + $0x5c0] sm:$0xff]
  %v3336 = vld [vmem:[%s2 + $0x5c8] sm:$0xff]
  %v3337 = vld [vmem:[%s2 + $0x5d0] sm:$0xff]
  %v3338 = vld [vmem:[%s2 + $0x5d8] sm:$0xff]
  %v3339 = vld [vmem:[%s2 + $0x5e0] sm:$0xff]
  %v3340 = vld [vmem:[%s2 + $0x5e8] sm:$0xff]
  %v3341 = vld [vmem:[%s2 + $0x5f0] sm:$0xff]
  %v3342 = vld [vmem:[%s2 + $0x5f8] sm:$0xff]
  %v3343 = vld [vmem:[%s2 + $0x600] sm:$0xff]
  %v3344 = vld [vmem:[%s2 + $0x608] sm:$0xff]
  %v3345 = vld [vmem:[%s2 + $0x610] sm:$0xff]
  %v3346 = vld [vmem:[%s2 + $0x618] sm:$0xff]
  %v3347 = vld [vmem:[%s2 + $0x620] sm:$0xff]
  %v3348 = vld [vmem:[%s2 + $0x628] sm:$0xff]
  %v3349 = vld [vmem:[%s2 + $0x630] sm:$0xff]
  %v3350 = vld [vmem:[%s2 + $0x638] sm:$0xff]
  %v3351 = vld [vmem:[%s2 + $0x640] sm:$0xff]
  %v3352 = vld [vmem:[%s2 + $0x648] sm:$0xff]
  %v3353 = vld [vmem:[%s2 + $0x650] sm:$0xff]
  %v3354 = vld [vmem:[%s2 + $0x658] sm:$0xff]
  %v3355 = vld [vmem:[%s2 + $0x660] sm:$0xff]
  %v3356 = vld [vmem:[%s2 + $0x668] sm:$0xff]
  %v3357 = vld [vmem:[%s2 + $0x670] sm:$0xff]
  %v3358 = vld [vmem:[%s2 + $0x678] sm:$0xff]
  %v3359 = vld [vmem:[%s2 + $0x680] sm:$0xff]
  %v3360 = vld [vmem:[%s2 + $0x688] sm:$0xff]
  %v3361 = vld [vmem:[%s2 + $0x690] sm:$0xff]
  %v3362 = vld [vmem:[%s2 + $0x698] sm:$0xff]
  %v3363 = vld [vmem:[%s2 + $0x6a0] sm:$0xff]
  %v3364 = vld [vmem:[%s2 + $0x6a8] sm:$0xff]
  %v3365 = vld [vmem:[%s2 + $0x6b0] sm:$0xff]
  %v3366 = vld [vmem:[%s2 + $0x6b8] sm:$0xff]
  %v3367 = vld [vmem:[%s2 + $0x6c0] sm:$0xff]
  %v3368 = vld [vmem:[%s2 + $0x6c8] sm:$0xff]
  %v3369 = vld [vmem:[%s2 + $0x6d0] sm:$0xff]
  %v3370 = vld [vmem:[%s2 + $0x6d8] sm:$0xff]
  %v3371 = vld [vmem:[%s2 + $0x6e0] sm:$0xff]
  %v3372 = vld [vmem:[%s2 + $0x6e8] sm:$0xff]
  %v3373 = vld [vmem:[%s2 + $0x6f0] sm:$0xff]
  %v3374 = vld [vmem:[%s2 + $0x6f8] sm:$0xff]
  %v3375 = vld [vmem:[%s2 + $0x700] sm:$0xff]
  %v3376 = vld [vmem:[%s2 + $0x708] sm:$0xff]
  %v3377 = vld [vmem:[%s2 + $0x710] sm:$0xff]
  %v3378 = vld [vmem:[%s2 + $0x718] sm:$0xff]
  %v3379 = vld [vmem:[%s2 + $0x720] sm:$0xff]
  %v3380 = vld [vmem:[%s2 + $0x728] sm:$0xff]
  %v3381 = vld [vmem:[%s2 + $0x730] sm:$0xff]
  %v3382 = vld [vmem:[%s2 + $0x738] sm:$0xff]
  %v3383 = vld [vmem:[%s2 + $0x740] sm:$0xff]
  %v3384 = vld [vmem:[%s2 + $0x748] sm:$0xff]
  %v3385 = vld [vmem:[%s2 + $0x750] sm:$0xff]
  %v3386 = vld [vmem:[%s2 + $0x758] sm:$0xff]
  %v3387 = vld [vmem:[%s2 + $0x760] sm:$0xff]
  %v3388 = vld [vmem:[%s2 + $0x768] sm:$0xff]
  %v3389 = vld [vmem:[%s2 + $0x770] sm:$0xff]
  %v3390 = vld [vmem:[%s2 + $0x778] sm:$0xff]
  %v3391 = vld [vmem:[%s2 + $0x780] sm:$0xff]
  %v3392 = vld [vmem:[%s2 + $0x788] sm:$0xff]
  %v3393 = vld [vmem:[%s2 + $0x790] sm:$0xff]
  %v3394 = vld [vmem:[%s2 + $0x798] sm:$0xff]
  %v3395 = vld [vmem:[%s2 + $0x7a0] sm:$0xff]
  %v3396 = vld [vmem:[%s2 + $0x7a8] sm:$0xff]
  %v3397 = vld [vmem:[%s2 + $0x7b0] sm:$0xff]
  %v3398 = vld [vmem:[%s2 + $0x7b8] sm:$0xff]
  %v3399 = vld [vmem:[%s2 + $0x7c0] sm:$0xff]
  %v3400 = vld [vmem:[%s2 + $0x7c8] sm:$0xff]
  %v3401 = vld [vmem:[%s2 + $0x7d0] sm:$0xff]
  %v3402 = vld [vmem:[%s2 + $0x7d8] sm:$0xff]
  %v3403 = vld [vmem:[%s2 + $0x7e0] sm:$0xff]
  %v3404 = vld [vmem:[%s2 + $0x7e8] sm:$0xff]
  %v3405 = vld [vmem:[%s2 + $0x7f0] sm:$0xff]
  %v3406 = vld [vmem:[%s2 + $0x7f8] sm:$0xff]
  %3407 = vmatprep.subr.mxu0 %v3272
  %3408 = vmatpush1.msra.mxu0 %v3271
  %3409 = vmatprep.subr.mxu0 %v3264
  %3410 = vmatpush1.msra.mxu0 %v3263
  %3411 = vmatprep.subr.mxu0 %v3256
  %3412 = vmatpush1.msra.mxu0 %v3255
  %3413 = vmatprep.subr.mxu0 %v3248
  %3414 = vmatpush1.msra.mxu0 %v3247
  %3415 = vmatprep.subr.mxu0 %v3240
  %3416 = vmatpush1.msra.mxu0 %v3239
  %3417 = vmatprep.subr.mxu0 %v3232
  %3418 = vmatpush1.msra.mxu0 %v3231
  %3419 = vmatprep.subr.mxu0 %v3224
  %3420 = vmatpush1.msra.mxu0 %v3223
  %3421 = vmatprep.subr.mxu0 %v3216
  %3422 = vmatpush1.msra.mxu0 %v3215
  %3423 = vmatprep.subr.mxu0 %v3208
  %3424 = vmatpush1.msra.mxu0 %v3207
  %3425 = vmatprep.subr.mxu0 %v3200
  %3426 = vmatpush1.msra.mxu0 %v3199
  %3427 = vmatprep.subr.mxu0 %v3192
  %3428 = vmatpush1.msra.mxu0 %v3191
  %3429 = vmatprep.subr.mxu0 %v3184
  %3430 = vmatpush1.msra.mxu0 %v3183
  %3431 = vmatprep.subr.mxu0 %v3176
  %3432 = vmatpush1.msra.mxu0 %v3175
  %3433 = vmatprep.subr.mxu0 %v3168
  %3434 = vmatpush1.msra.mxu0 %v3167
  %3435 = vmatprep.subr.mxu0 %v3160
  %3436 = vmatpush1.msra.mxu0 %v3159
  %3437 = vmatprep.subr.mxu0 %v3152
  %3438 = vmatpush1.msra.mxu0 %v3151
  %3439 = vmatprep.subr.mxu0 %v3400
  %3440 = vmatpush2.msra.mxu0 %v3399
  %3441 = vmatprep.subr.mxu0 %v3392
  %3442 = vmatpush2.msra.mxu0 %v3391
  %3443 = vmatprep.subr.mxu0 %v3384
  %3444 = vmatpush2.msra.mxu0 %v3383
  %3445 = vmatprep.subr.mxu0 %v3376
  %3446 = vmatpush2.msra.mxu0 %v3375
  %3447 = vmatprep.subr.mxu0 %v3368
  %3448 = vmatpush2.msra.mxu0 %v3367
  %3449 = vmatprep.subr.mxu0 %v3360
  %3450 = vmatpush2.msra.mxu0 %v3359
  %3451 = vmatprep.subr.mxu0 %v3352
  %3452 = vmatpush2.msra.mxu0 %v3351
  %3453 = vmatprep.subr.mxu0 %v3344
  %3454 = vmatpush2.msra.mxu0 %v3343
  %3455 = vmatprep.subr.mxu0 %v3336
  %3456 = vmatpush2.msra.mxu0 %v3335
  %3457 = vmatprep.subr.mxu0 %v3328
  %3458 = vmatpush2.msra.mxu0 %v3327
  %3459 = vmatprep.subr.mxu0 %v3320
  %3460 = vmatpush2.msra.mxu0 %v3319
  %3461 = vmatprep.subr.mxu0 %v3312
  %3462 = vmatpush2.msra.mxu0 %v3311
  %3463 = vmatprep.subr.mxu0 %v3304
  %3464 = vmatpush2.msra.mxu0 %v3303
  %3465 = vmatprep.subr.mxu0 %v3296
  %3466 = vmatpush2.msra.mxu0 %v3295
  %3467 = vmatprep.subr.mxu0 %v3288
  %3468 = vmatpush2.msra.mxu0 %v3287
  %3469 = vmatprep.subr.mxu0 %v3280
  %3470 = vmatpush2.msra.mxu0 %v3279
  %3471 = vmatprep.mubr.f32.mxu0 %v3150
  %3472 = vmatmul.mubr.f32.gmra.mxu0 %v3149
  %v3473 = vpop.f32.mrf.mxu0
  %v3474 = vadd.f32 0.0, %v3473
  %v3475 = vpop.f32.mrf.mxu0
  %v3476 = vadd.f32 0.0, %v3475
  %3477 = vdwg.mxu0
  %3478 = vmatprep.subr.mxu0 %v3274
  %3479 = vmatpush1.msra.mxu0 %v3273
  %3480 = vmatprep.subr.mxu0 %v3266
  %3481 = vmatpush1.msra.mxu0 %v3265
  %3482 = vmatprep.subr.mxu0 %v3258
  %3483 = vmatpush1.msra.mxu0 %v3257
  %3484 = vmatprep.subr.mxu0 %v3250
  %3485 = vmatpush1.msra.mxu0 %v3249
  %3486 = vmatprep.subr.mxu0 %v3242
  %3487 = vmatpush1.msra.mxu0 %v3241
  %3488 = vmatprep.subr.mxu0 %v3234
  %3489 = vmatpush1.msra.mxu0 %v3233
  %3490 = vmatprep.subr.mxu0 %v3226
  %3491 = vmatpush1.msra.mxu0 %v3225
  %3492 = vmatprep.subr.mxu0 %v3218
  %3493 = vmatpush1.msra.mxu0 %v3217
  %3494 = vmatprep.subr.mxu0 %v3210
  %3495 = vmatpush1.msra.mxu0 %v3209
  %3496 = vmatprep.subr.mxu0 %v3202
  %3497 = vmatpush1.msra.mxu0 %v3201
  %3498 = vmatprep.subr.mxu0 %v3194
  %3499 = vmatpush1.msra.mxu0 %v3193
  %3500 = vmatprep.subr.mxu0 %v3186
  %3501 = vmatpush1.msra.mxu0 %v3185
  %3502 = vmatprep.subr.mxu0 %v3178
  %3503 = vmatpush1.msra.mxu0 %v3177
  %3504 = vmatprep.subr.mxu0 %v3170
  %3505 = vmatpush1.msra.mxu0 %v3169
  %3506 = vmatprep.subr.mxu0 %v3162
  %3507 = vmatpush1.msra.mxu0 %v3161
  %3508 = vmatprep.subr.mxu0 %v3154
  %3509 = vmatpush1.msra.mxu0 %v3153
  %3510 = vmatprep.subr.mxu0 %v3402
  %3511 = vmatpush2.msra.mxu0 %v3401
  %3512 = vmatprep.subr.mxu0 %v3394
  %3513 = vmatpush2.msra.mxu0 %v3393
  %3514 = vmatprep.subr.mxu0 %v3386
  %3515 = vmatpush2.msra.mxu0 %v3385
  %3516 = vmatprep.subr.mxu0 %v3378
  %3517 = vmatpush2.msra.mxu0 %v3377
  %3518 = vmatprep.subr.mxu0 %v3370
  %3519 = vmatpush2.msra.mxu0 %v3369
  %3520 = vmatprep.subr.mxu0 %v3362
  %3521 = vmatpush2.msra.mxu0 %v3361
  %3522 = vmatprep.subr.mxu0 %v3354
  %3523 = vmatpush2.msra.mxu0 %v3353
  %3524 = vmatprep.subr.mxu0 %v3346
  %3525 = vmatpush2.msra.mxu0 %v3345
  %3526 = vmatprep.subr.mxu0 %v3338
  %3527 = vmatpush2.msra.mxu0 %v3337
  %3528 = vmatprep.subr.mxu0 %v3330
  %3529 = vmatpush2.msra.mxu0 %v3329
  %3530 = vmatprep.subr.mxu0 %v3322
  %3531 = vmatpush2.msra.mxu0 %v3321
  %3532 = vmatprep.subr.mxu0 %v3314
  %3533 = vmatpush2.msra.mxu0 %v3313
  %3534 = vmatprep.subr.mxu0 %v3306
  %3535 = vmatpush2.msra.mxu0 %v3305
  %3536 = vmatprep.subr.mxu0 %v3298
  %3537 = vmatpush2.msra.mxu0 %v3297
  %3538 = vmatprep.subr.mxu0 %v3290
  %3539 = vmatpush2.msra.mxu0 %v3289
  %3540 = vmatprep.subr.mxu0 %v3282
  %3541 = vmatpush2.msra.mxu0 %v3281
  %3542 = vmatprep.mubr.f32.mxu0 %v3150
  %3543 = vmatmul.mubr.f32.gmra.mxu0 %v3149
  %v3544 = vpop.f32.mrf.mxu0
  %v3545 = vadd.f32 0.0, %v3544
  %v3546 = vpop.f32.mrf.mxu0
  %v3547 = vadd.f32 0.0, %v3546
  %3548 = vdwg.mxu0
  %3549 = vmatprep.subr.mxu0 %v3276
  %3550 = vmatpush1.msra.mxu0 %v3275
  %3551 = vmatprep.subr.mxu0 %v3268
  %3552 = vmatpush1.msra.mxu0 %v3267
  %3553 = vmatprep.subr.mxu0 %v3260
  %3554 = vmatpush1.msra.mxu0 %v3259
  %3555 = vmatprep.subr.mxu0 %v3252
  %3556 = vmatpush1.msra.mxu0 %v3251
  %3557 = vmatprep.subr.mxu0 %v3244
  %3558 = vmatpush1.msra.mxu0 %v3243
  %3559 = vmatprep.subr.mxu0 %v3236
  %3560 = vmatpush1.msra.mxu0 %v3235
  %3561 = vmatprep.subr.mxu0 %v3228
  %3562 = vmatpush1.msra.mxu0 %v3227
  %3563 = vmatprep.subr.mxu0 %v3220
  %3564 = vmatpush1.msra.mxu0 %v3219
  %3565 = vmatprep.subr.mxu0 %v3212
  %3566 = vmatpush1.msra.mxu0 %v3211
  %3567 = vmatprep.subr.mxu0 %v3204
  %3568 = vmatpush1.msra.mxu0 %v3203
  %3569 = vmatprep.subr.mxu0 %v3196
  %3570 = vmatpush1.msra.mxu0 %v3195
  %3571 = vmatprep.subr.mxu0 %v3188
  %3572 = vmatpush1.msra.mxu0 %v3187
  %3573 = vmatprep.subr.mxu0 %v3180
  %3574 = vmatpush1.msra.mxu0 %v3179
  %3575 = vmatprep.subr.mxu0 %v3172
  %3576 = vmatpush1.msra.mxu0 %v3171
  %3577 = vmatprep.subr.mxu0 %v3164
  %3578 = vmatpush1.msra.mxu0 %v3163
  %3579 = vmatprep.subr.mxu0 %v3156
  %3580 = vmatpush1.msra.mxu0 %v3155
  %3581 = vmatprep.subr.mxu0 %v3404
  %3582 = vmatpush2.msra.mxu0 %v3403
  %3583 = vmatprep.subr.mxu0 %v3396
  %3584 = vmatpush2.msra.mxu0 %v3395
  %3585 = vmatprep.subr.mxu0 %v3388
  %3586 = vmatpush2.msra.mxu0 %v3387
  %3587 = vmatprep.subr.mxu0 %v3380
  %3588 = vmatpush2.msra.mxu0 %v3379
  %3589 = vmatprep.subr.mxu0 %v3372
  %3590 = vmatpush2.msra.mxu0 %v3371
  %3591 = vmatprep.subr.mxu0 %v3364
  %3592 = vmatpush2.msra.mxu0 %v3363
  %3593 = vmatprep.subr.mxu0 %v3356
  %3594 = vmatpush2.msra.mxu0 %v3355
  %3595 = vmatprep.subr.mxu0 %v3348
  %3596 = vmatpush2.msra.mxu0 %v3347
  %3597 = vmatprep.subr.mxu0 %v3340
  %3598 = vmatpush2.msra.mxu0 %v3339
  %3599 = vmatprep.subr.mxu0 %v3332
  %3600 = vmatpush2.msra.mxu0 %v3331
  %3601 = vmatprep.subr.mxu0 %v3324
  %3602 = vmatpush2.msra.mxu0 %v3323
  %3603 = vmatprep.subr.mxu0 %v3316
  %3604 = vmatpush2.msra.mxu0 %v3315
  %3605 = vmatprep.subr.mxu0 %v3308
  %3606 = vmatpush2.msra.mxu0 %v3307
  %3607 = vmatprep.subr.mxu0 %v3300
  %3608 = vmatpush2.msra.mxu0 %v3299
  %3609 = vmatprep.subr.mxu0 %v3292
  %3610 = vmatpush2.msra.mxu0 %v3291
  %3611 = vmatprep.subr.mxu0 %v3284
  %3612 = vmatpush2.msra.mxu0 %v3283
  %3613 = vmatprep.mubr.f32.mxu0 %v3150
  %3614 = vmatmul.mubr.f32.gmra.mxu0 %v3149
  %v3615 = vpop.f32.mrf.mxu0
  %v3616 = vadd.f32 0.0, %v3615
  %v3617 = vpop.f32.mrf.mxu0
  %v3618 = vadd.f32 0.0, %v3617
  %3619 = vdwg.mxu0
  %3620 = vmatprep.subr.mxu0 %v3278
  %3621 = vmatpush1.msra.mxu0 %v3277
  %3622 = vmatprep.subr.mxu0 %v3270
  %3623 = vmatpush1.msra.mxu0 %v3269
  %3624 = vmatprep.subr.mxu0 %v3262
  %3625 = vmatpush1.msra.mxu0 %v3261
  %3626 = vmatprep.subr.mxu0 %v3254
  %3627 = vmatpush1.msra.mxu0 %v3253
  %3628 = vmatprep.subr.mxu0 %v3246
  %3629 = vmatpush1.msra.mxu0 %v3245
  %3630 = vmatprep.subr.mxu0 %v3238
  %3631 = vmatpush1.msra.mxu0 %v3237
  %3632 = vmatprep.subr.mxu0 %v3230
  %3633 = vmatpush1.msra.mxu0 %v3229
  %3634 = vmatprep.subr.mxu0 %v3222
  %3635 = vmatpush1.msra.mxu0 %v3221
  %3636 = vmatprep.subr.mxu0 %v3214
  %3637 = vmatpush1.msra.mxu0 %v3213
  %3638 = vmatprep.subr.mxu0 %v3206
  %3639 = vmatpush1.msra.mxu0 %v3205
  %3640 = vmatprep.subr.mxu0 %v3198
  %3641 = vmatpush1.msra.mxu0 %v3197
  %3642 = vmatprep.subr.mxu0 %v3190
  %3643 = vmatpush1.msra.mxu0 %v3189
  %3644 = vmatprep.subr.mxu0 %v3182
  %3645 = vmatpush1.msra.mxu0 %v3181
  %3646 = vmatprep.subr.mxu0 %v3174
  %3647 = vmatpush1.msra.mxu0 %v3173
  %3648 = vmatprep.subr.mxu0 %v3166
  %3649 = vmatpush1.msra.mxu0 %v3165
  %3650 = vmatprep.subr.mxu0 %v3158
  %3651 = vmatpush1.msra.mxu0 %v3157
  %3652 = vmatprep.subr.mxu0 %v3406
  %3653 = vmatpush2.msra.mxu0 %v3405
  %3654 = vmatprep.subr.mxu0 %v3398
  %3655 = vmatpush2.msra.mxu0 %v3397
  %3656 = vmatprep.subr.mxu0 %v3390
  %3657 = vmatpush2.msra.mxu0 %v3389
  %3658 = vmatprep.subr.mxu0 %v3382
  %3659 = vmatpush2.msra.mxu0 %v3381
  %3660 = vmatprep.subr.mxu0 %v3374
  %3661 = vmatpush2.msra.mxu0 %v3373
  %3662 = vmatprep.subr.mxu0 %v3366
  %3663 = vmatpush2.msra.mxu0 %v3365
  %3664 = vmatprep.subr.mxu0 %v3358
  %3665 = vmatpush2.msra.mxu0 %v3357
  %3666 = vmatprep.subr.mxu0 %v3350
  %3667 = vmatpush2.msra.mxu0 %v3349
  %3668 = vmatprep.subr.mxu0 %v3342
  %3669 = vmatpush2.msra.mxu0 %v3341
  %3670 = vmatprep.subr.mxu0 %v3334
  %3671 = vmatpush2.msra.mxu0 %v3333
  %3672 = vmatprep.subr.mxu0 %v3326
  %3673 = vmatpush2.msra.mxu0 %v3325
  %3674 = vmatprep.subr.mxu0 %v3318
  %3675 = vmatpush2.msra.mxu0 %v3317
  %3676 = vmatprep.subr.mxu0 %v3310
  %3677 = vmatpush2.msra.mxu0 %v3309
  %3678 = vmatprep.subr.mxu0 %v3302
  %3679 = vmatpush2.msra.mxu0 %v3301
  %3680 = vmatprep.subr.mxu0 %v3294
  %3681 = vmatpush2.msra.mxu0 %v3293
  %3682 = vmatprep.subr.mxu0 %v3286
  %3683 = vmatpush2.msra.mxu0 %v3285
  %3684 = vmatprep.mubr.f32.mxu0 %v3150
  %3685 = vmatmul.mubr.f32.gmra.mxu0 %v3149
  %v3686 = vpop.f32.mrf.mxu0
  %v3687 = vadd.f32 0.0, %v3686
  %v3688 = vpop.f32.mrf.mxu0
  %v3689 = vadd.f32 0.0, %v3688
  %3690 = vdwg.mxu0
  %v3691 = vadd.f32 %v3141, %v3474
  %v3692 = vadd.f32 %v3142, %v3476
  %v3693 = vadd.f32 %v3143, %v3545
  %v3694 = vadd.f32 %v3144, %v3547
  %v3695 = vadd.f32 %v3145, %v3616
  %v3696 = vadd.f32 %v3146, %v3618
  %v3697 = vadd.f32 %v3147, %v3687
  %v3698 = vadd.f32 %v3148, %v3689
  %v3699 = vxor.u32 %v3691, 2147483648
  %v3700 = vxor.u32 %v3692, 2147483648
  %v3701 = vmul.f32 %v3699, 1.442695
  %v3702 = vpow.pop %v3701
  %v3703 = vmul.f32 %v3700, 1.442695
  %v3704 = vpow.pop %v3703
  %v3705 = vadd.f32 %v3702, 1.0
  %v3706 = vadd.f32 %v3704, 1.0
  %v3707 = vrcp.pop %v3705
  %v3708 = vmul.f32 1.0, %v3707
  %v3709 = vrcp.pop %v3706
  %v3710 = vmul.f32 1.0, %v3709
  %v3711 = vxor.u32 %v3693, 2147483648
  %v3712 = vxor.u32 %v3694, 2147483648
  %v3713 = vmul.f32 %v3711, 1.442695
  %v3714 = vpow.pop %v3713
  %v3715 = vmul.f32 %v3712, 1.442695
  %v3716 = vpow.pop %v3715
  %v3717 = vadd.f32 %v3714, 1.0
  %v3718 = vadd.f32 %v3716, 1.0
  %v3719 = vrcp.pop %v3717
  %v3720 = vmul.f32 1.0, %v3719
  %v3721 = vrcp.pop %v3718
  %v3722 = vmul.f32 1.0, %v3721
  %v3723 = vtanh.pop %v3695
  %v3724 = vtanh.pop %v3696
  %v3725 = vxor.u32 %v3697, 2147483648
  %v3726 = vxor.u32 %v3698, 2147483648
  %v3727 = vmul.f32 %v3725, 1.442695
  %v3728 = vpow.pop %v3727
  %v3729 = vmul.f32 %v3726, 1.442695
  %v3730 = vpow.pop %v3729
  %v3731 = vadd.f32 %v3728, 1.0
  %v3732 = vadd.f32 %v3730, 1.0
  %v3733 = vrcp.pop %v3731
  %v3734 = vmul.f32 1.0, %v3733
  %v3735 = vrcp.pop %v3732
  %v3736 = vmul.f32 1.0, %v3735
  %v3737 = vld [vmem:[%s5] sm:$0xff]
  %v3738 = vld [vmem:[%s5 + $0x8] sm:$0xff]
  %v3739 = vmul.f32 %v3720, %v3737
  %v3740 = vmul.f32 %v3722, %v3738
  %v3741 = vmul.f32 %v3708, %v3723
  %v3742 = vmul.f32 %v3710, %v3724
  %v3743 = vadd.f32 %v3739, %v3741
  %v3744 = vadd.f32 %v3740, %v3742
  %3745 = vst [vmem:[%s5] sm:$0xff] %v3743
  %3746 = vst [vmem:[%s5 + $0x8] sm:$0xff] %v3744
  %v3747 = vtanh.pop %v3743
  %v3748 = vtanh.pop %v3744
  %v3749 = vmul.f32 %v3734, %v3747
  %v3750 = vmul.f32 %v3736, %v3748
  %3751 = vst [vmem:[%s4] sm:$0xff] %v3749
  %3752 = vst [vmem:[%s4 + $0x8] sm:$0xff] %v3750
  %s3753 = smul.u32 5, 8
  %s3754 = smul.addr %s3753, 8
  %s3755 = scalar_lea.vmem [#allocation2], %s3754
  %v3756 = vld [vmem:[%s3755] sm:$0xff]
  %v3757 = vld [vmem:[%s3755 + $0x8] sm:$0xff]
  %v3758 = vld [vmem:[%s3755 + $0x10] sm:$0xff]
  %v3759 = vld [vmem:[%s3755 + $0x18] sm:$0xff]
  %v3760 = vld [vmem:[%s3755 + $0x20] sm:$0xff]
  %v3761 = vld [vmem:[%s3755 + $0x28] sm:$0xff]
  %v3762 = vld [vmem:[%s3755 + $0x30] sm:$0xff]
  %v3763 = vld [vmem:[%s3755 + $0x38] sm:$0xff]
  %v3764 = vld [vmem:[%s4] sm:$0xff]
  %v3765 = vld [vmem:[%s4 + $0x8] sm:$0xff]
  %v3766 = vld [vmem:[%s2] sm:$0xff]
  %v3767 = vld [vmem:[%s2 + $0x8] sm:$0xff]
  %v3768 = vld [vmem:[%s2 + $0x10] sm:$0xff]
  %v3769 = vld [vmem:[%s2 + $0x18] sm:$0xff]
  %v3770 = vld [vmem:[%s2 + $0x20] sm:$0xff]
  %v3771 = vld [vmem:[%s2 + $0x28] sm:$0xff]
  %v3772 = vld [vmem:[%s2 + $0x30] sm:$0xff]
  %v3773 = vld [vmem:[%s2 + $0x38] sm:$0xff]
  %v3774 = vld [vmem:[%s2 + $0x40] sm:$0xff]
  %v3775 = vld [vmem:[%s2 + $0x48] sm:$0xff]
  %v3776 = vld [vmem:[%s2 + $0x50] sm:$0xff]
  %v3777 = vld [vmem:[%s2 + $0x58] sm:$0xff]
  %v3778 = vld [vmem:[%s2 + $0x60] sm:$0xff]
  %v3779 = vld [vmem:[%s2 + $0x68] sm:$0xff]
  %v3780 = vld [vmem:[%s2 + $0x70] sm:$0xff]
  %v3781 = vld [vmem:[%s2 + $0x78] sm:$0xff]
  %v3782 = vld [vmem:[%s2 + $0x80] sm:$0xff]
  %v3783 = vld [vmem:[%s2 + $0x88] sm:$0xff]
  %v3784 = vld [vmem:[%s2 + $0x90] sm:$0xff]
  %v3785 = vld [vmem:[%s2 + $0x98] sm:$0xff]
  %v3786 = vld [vmem:[%s2 + $0xa0] sm:$0xff]
  %v3787 = vld [vmem:[%s2 + $0xa8] sm:$0xff]
  %v3788 = vld [vmem:[%s2 + $0xb0] sm:$0xff]
  %v3789 = vld [vmem:[%s2 + $0xb8] sm:$0xff]
  %v3790 = vld [vmem:[%s2 + $0xc0] sm:$0xff]
  %v3791 = vld [vmem:[%s2 + $0xc8] sm:$0xff]
  %v3792 = vld [vmem:[%s2 + $0xd0] sm:$0xff]
  %v3793 = vld [vmem:[%s2 + $0xd8] sm:$0xff]
  %v3794 = vld [vmem:[%s2 + $0xe0] sm:$0xff]
  %v3795 = vld [vmem:[%s2 + $0xe8] sm:$0xff]
  %v3796 = vld [vmem:[%s2 + $0xf0] sm:$0xff]
  %v3797 = vld [vmem:[%s2 + $0xf8] sm:$0xff]
  %v3798 = vld [vmem:[%s2 + $0x100] sm:$0xff]
  %v3799 = vld [vmem:[%s2 + $0x108] sm:$0xff]
  %v3800 = vld [vmem:[%s2 + $0x110] sm:$0xff]
  %v3801 = vld [vmem:[%s2 + $0x118] sm:$0xff]
  %v3802 = vld [vmem:[%s2 + $0x120] sm:$0xff]
  %v3803 = vld [vmem:[%s2 + $0x128] sm:$0xff]
  %v3804 = vld [vmem:[%s2 + $0x130] sm:$0xff]
  %v3805 = vld [vmem:[%s2 + $0x138] sm:$0xff]
  %v3806 = vld [vmem:[%s2 + $0x140] sm:$0xff]
  %v3807 = vld [vmem:[%s2 + $0x148] sm:$0xff]
  %v3808 = vld [vmem:[%s2 + $0x150] sm:$0xff]
  %v3809 = vld [vmem:[%s2 + $0x158] sm:$0xff]
  %v3810 = vld [vmem:[%s2 + $0x160] sm:$0xff]
  %v3811 = vld [vmem:[%s2 + $0x168] sm:$0xff]
  %v3812 = vld [vmem:[%s2 + $0x170] sm:$0xff]
  %v3813 = vld [vmem:[%s2 + $0x178] sm:$0xff]
  %v3814 = vld [vmem:[%s2 + $0x180] sm:$0xff]
  %v3815 = vld [vmem:[%s2 + $0x188] sm:$0xff]
  %v3816 = vld [vmem:[%s2 + $0x190] sm:$0xff]
  %v3817 = vld [vmem:[%s2 + $0x198] sm:$0xff]
  %v3818 = vld [vmem:[%s2 + $0x1a0] sm:$0xff]
  %v3819 = vld [vmem:[%s2 + $0x1a8] sm:$0xff]
  %v3820 = vld [vmem:[%s2 + $0x1b0] sm:$0xff]
  %v3821 = vld [vmem:[%s2 + $0x1b8] sm:$0xff]
  %v3822 = vld [vmem:[%s2 + $0x1c0] sm:$0xff]
  %v3823 = vld [vmem:[%s2 + $0x1c8] sm:$0xff]
  %v3824 = vld [vmem:[%s2 + $0x1d0] sm:$0xff]
  %v3825 = vld [vmem:[%s2 + $0x1d8] sm:$0xff]
  %v3826 = vld [vmem:[%s2 + $0x1e0] sm:$0xff]
  %v3827 = vld [vmem:[%s2 + $0x1e8] sm:$0xff]
  %v3828 = vld [vmem:[%s2 + $0x1f0] sm:$0xff]
  %v3829 = vld [vmem:[%s2 + $0x1f8] sm:$0xff]
  %v3830 = vld [vmem:[%s2 + $0x200] sm:$0xff]
  %v3831 = vld [vmem:[%s2 + $0x208] sm:$0xff]
  %v3832 = vld [vmem:[%s2 + $0x210] sm:$0xff]
  %v3833 = vld [vmem:[%s2 + $0x218] sm:$0xff]
  %v3834 = vld [vmem:[%s2 + $0x220] sm:$0xff]
  %v3835 = vld [vmem:[%s2 + $0x228] sm:$0xff]
  %v3836 = vld [vmem:[%s2 + $0x230] sm:$0xff]
  %v3837 = vld [vmem:[%s2 + $0x238] sm:$0xff]
  %v3838 = vld [vmem:[%s2 + $0x240] sm:$0xff]
  %v3839 = vld [vmem:[%s2 + $0x248] sm:$0xff]
  %v3840 = vld [vmem:[%s2 + $0x250] sm:$0xff]
  %v3841 = vld [vmem:[%s2 + $0x258] sm:$0xff]
  %v3842 = vld [vmem:[%s2 + $0x260] sm:$0xff]
  %v3843 = vld [vmem:[%s2 + $0x268] sm:$0xff]
  %v3844 = vld [vmem:[%s2 + $0x270] sm:$0xff]
  %v3845 = vld [vmem:[%s2 + $0x278] sm:$0xff]
  %v3846 = vld [vmem:[%s2 + $0x280] sm:$0xff]
  %v3847 = vld [vmem:[%s2 + $0x288] sm:$0xff]
  %v3848 = vld [vmem:[%s2 + $0x290] sm:$0xff]
  %v3849 = vld [vmem:[%s2 + $0x298] sm:$0xff]
  %v3850 = vld [vmem:[%s2 + $0x2a0] sm:$0xff]
  %v3851 = vld [vmem:[%s2 + $0x2a8] sm:$0xff]
  %v3852 = vld [vmem:[%s2 + $0x2b0] sm:$0xff]
  %v3853 = vld [vmem:[%s2 + $0x2b8] sm:$0xff]
  %v3854 = vld [vmem:[%s2 + $0x2c0] sm:$0xff]
  %v3855 = vld [vmem:[%s2 + $0x2c8] sm:$0xff]
  %v3856 = vld [vmem:[%s2 + $0x2d0] sm:$0xff]
  %v3857 = vld [vmem:[%s2 + $0x2d8] sm:$0xff]
  %v3858 = vld [vmem:[%s2 + $0x2e0] sm:$0xff]
  %v3859 = vld [vmem:[%s2 + $0x2e8] sm:$0xff]
  %v3860 = vld [vmem:[%s2 + $0x2f0] sm:$0xff]
  %v3861 = vld [vmem:[%s2 + $0x2f8] sm:$0xff]
  %v3862 = vld [vmem:[%s2 + $0x300] sm:$0xff]
  %v3863 = vld [vmem:[%s2 + $0x308] sm:$0xff]
  %v3864 = vld [vmem:[%s2 + $0x310] sm:$0xff]
  %v3865 = vld [vmem:[%s2 + $0x318] sm:$0xff]
  %v3866 = vld [vmem:[%s2 + $0x320] sm:$0xff]
  %v3867 = vld [vmem:[%s2 + $0x328] sm:$0xff]
  %v3868 = vld [vmem:[%s2 + $0x330] sm:$0xff]
  %v3869 = vld [vmem:[%s2 + $0x338] sm:$0xff]
  %v3870 = vld [vmem:[%s2 + $0x340] sm:$0xff]
  %v3871 = vld [vmem:[%s2 + $0x348] sm:$0xff]
  %v3872 = vld [vmem:[%s2 + $0x350] sm:$0xff]
  %v3873 = vld [vmem:[%s2 + $0x358] sm:$0xff]
  %v3874 = vld [vmem:[%s2 + $0x360] sm:$0xff]
  %v3875 = vld [vmem:[%s2 + $0x368] sm:$0xff]
  %v3876 = vld [vmem:[%s2 + $0x370] sm:$0xff]
  %v3877 = vld [vmem:[%s2 + $0x378] sm:$0xff]
  %v3878 = vld [vmem:[%s2 + $0x380] sm:$0xff]
  %v3879 = vld [vmem:[%s2 + $0x388] sm:$0xff]
  %v3880 = vld [vmem:[%s2 + $0x390] sm:$0xff]
  %v3881 = vld [vmem:[%s2 + $0x398] sm:$0xff]
  %v3882 = vld [vmem:[%s2 + $0x3a0] sm:$0xff]
  %v3883 = vld [vmem:[%s2 + $0x3a8] sm:$0xff]
  %v3884 = vld [vmem:[%s2 + $0x3b0] sm:$0xff]
  %v3885 = vld [vmem:[%s2 + $0x3b8] sm:$0xff]
  %v3886 = vld [vmem:[%s2 + $0x3c0] sm:$0xff]
  %v3887 = vld [vmem:[%s2 + $0x3c8] sm:$0xff]
  %v3888 = vld [vmem:[%s2 + $0x3d0] sm:$0xff]
  %v3889 = vld [vmem:[%s2 + $0x3d8] sm:$0xff]
  %v3890 = vld [vmem:[%s2 + $0x3e0] sm:$0xff]
  %v3891 = vld [vmem:[%s2 + $0x3e8] sm:$0xff]
  %v3892 = vld [vmem:[%s2 + $0x3f0] sm:$0xff]
  %v3893 = vld [vmem:[%s2 + $0x3f8] sm:$0xff]
  %v3894 = vld [vmem:[%s2 + $0x400] sm:$0xff]
  %v3895 = vld [vmem:[%s2 + $0x408] sm:$0xff]
  %v3896 = vld [vmem:[%s2 + $0x410] sm:$0xff]
  %v3897 = vld [vmem:[%s2 + $0x418] sm:$0xff]
  %v3898 = vld [vmem:[%s2 + $0x420] sm:$0xff]
  %v3899 = vld [vmem:[%s2 + $0x428] sm:$0xff]
  %v3900 = vld [vmem:[%s2 + $0x430] sm:$0xff]
  %v3901 = vld [vmem:[%s2 + $0x438] sm:$0xff]
  %v3902 = vld [vmem:[%s2 + $0x440] sm:$0xff]
  %v3903 = vld [vmem:[%s2 + $0x448] sm:$0xff]
  %v3904 = vld [vmem:[%s2 + $0x450] sm:$0xff]
  %v3905 = vld [vmem:[%s2 + $0x458] sm:$0xff]
  %v3906 = vld [vmem:[%s2 + $0x460] sm:$0xff]
  %v3907 = vld [vmem:[%s2 + $0x468] sm:$0xff]
  %v3908 = vld [vmem:[%s2 + $0x470] sm:$0xff]
  %v3909 = vld [vmem:[%s2 + $0x478] sm:$0xff]
  %v3910 = vld [vmem:[%s2 + $0x480] sm:$0xff]
  %v3911 = vld [vmem:[%s2 + $0x488] sm:$0xff]
  %v3912 = vld [vmem:[%s2 + $0x490] sm:$0xff]
  %v3913 = vld [vmem:[%s2 + $0x498] sm:$0xff]
  %v3914 = vld [vmem:[%s2 + $0x4a0] sm:$0xff]
  %v3915 = vld [vmem:[%s2 + $0x4a8] sm:$0xff]
  %v3916 = vld [vmem:[%s2 + $0x4b0] sm:$0xff]
  %v3917 = vld [vmem:[%s2 + $0x4b8] sm:$0xff]
  %v3918 = vld [vmem:[%s2 + $0x4c0] sm:$0xff]
  %v3919 = vld [vmem:[%s2 + $0x4c8] sm:$0xff]
  %v3920 = vld [vmem:[%s2 + $0x4d0] sm:$0xff]
  %v3921 = vld [vmem:[%s2 + $0x4d8] sm:$0xff]
  %v3922 = vld [vmem:[%s2 + $0x4e0] sm:$0xff]
  %v3923 = vld [vmem:[%s2 + $0x4e8] sm:$0xff]
  %v3924 = vld [vmem:[%s2 + $0x4f0] sm:$0xff]
  %v3925 = vld [vmem:[%s2 + $0x4f8] sm:$0xff]
  %v3926 = vld [vmem:[%s2 + $0x500] sm:$0xff]
  %v3927 = vld [vmem:[%s2 + $0x508] sm:$0xff]
  %v3928 = vld [vmem:[%s2 + $0x510] sm:$0xff]
  %v3929 = vld [vmem:[%s2 + $0x518] sm:$0xff]
  %v3930 = vld [vmem:[%s2 + $0x520] sm:$0xff]
  %v3931 = vld [vmem:[%s2 + $0x528] sm:$0xff]
  %v3932 = vld [vmem:[%s2 + $0x530] sm:$0xff]
  %v3933 = vld [vmem:[%s2 + $0x538] sm:$0xff]
  %v3934 = vld [vmem:[%s2 + $0x540] sm:$0xff]
  %v3935 = vld [vmem:[%s2 + $0x548] sm:$0xff]
  %v3936 = vld [vmem:[%s2 + $0x550] sm:$0xff]
  %v3937 = vld [vmem:[%s2 + $0x558] sm:$0xff]
  %v3938 = vld [vmem:[%s2 + $0x560] sm:$0xff]
  %v3939 = vld [vmem:[%s2 + $0x568] sm:$0xff]
  %v3940 = vld [vmem:[%s2 + $0x570] sm:$0xff]
  %v3941 = vld [vmem:[%s2 + $0x578] sm:$0xff]
  %v3942 = vld [vmem:[%s2 + $0x580] sm:$0xff]
  %v3943 = vld [vmem:[%s2 + $0x588] sm:$0xff]
  %v3944 = vld [vmem:[%s2 + $0x590] sm:$0xff]
  %v3945 = vld [vmem:[%s2 + $0x598] sm:$0xff]
  %v3946 = vld [vmem:[%s2 + $0x5a0] sm:$0xff]
  %v3947 = vld [vmem:[%s2 + $0x5a8] sm:$0xff]
  %v3948 = vld [vmem:[%s2 + $0x5b0] sm:$0xff]
  %v3949 = vld [vmem:[%s2 + $0x5b8] sm:$0xff]
  %v3950 = vld [vmem:[%s2 + $0x5c0] sm:$0xff]
  %v3951 = vld [vmem:[%s2 + $0x5c8] sm:$0xff]
  %v3952 = vld [vmem:[%s2 + $0x5d0] sm:$0xff]
  %v3953 = vld [vmem:[%s2 + $0x5d8] sm:$0xff]
  %v3954 = vld [vmem:[%s2 + $0x5e0] sm:$0xff]
  %v3955 = vld [vmem:[%s2 + $0x5e8] sm:$0xff]
  %v3956 = vld [vmem:[%s2 + $0x5f0] sm:$0xff]
  %v3957 = vld [vmem:[%s2 + $0x5f8] sm:$0xff]
  %v3958 = vld [vmem:[%s2 + $0x600] sm:$0xff]
  %v3959 = vld [vmem:[%s2 + $0x608] sm:$0xff]
  %v3960 = vld [vmem:[%s2 + $0x610] sm:$0xff]
  %v3961 = vld [vmem:[%s2 + $0x618] sm:$0xff]
  %v3962 = vld [vmem:[%s2 + $0x620] sm:$0xff]
  %v3963 = vld [vmem:[%s2 + $0x628] sm:$0xff]
  %v3964 = vld [vmem:[%s2 + $0x630] sm:$0xff]
  %v3965 = vld [vmem:[%s2 + $0x638] sm:$0xff]
  %v3966 = vld [vmem:[%s2 + $0x640] sm:$0xff]
  %v3967 = vld [vmem:[%s2 + $0x648] sm:$0xff]
  %v3968 = vld [vmem:[%s2 + $0x650] sm:$0xff]
  %v3969 = vld [vmem:[%s2 + $0x658] sm:$0xff]
  %v3970 = vld [vmem:[%s2 + $0x660] sm:$0xff]
  %v3971 = vld [vmem:[%s2 + $0x668] sm:$0xff]
  %v3972 = vld [vmem:[%s2 + $0x670] sm:$0xff]
  %v3973 = vld [vmem:[%s2 + $0x678] sm:$0xff]
  %v3974 = vld [vmem:[%s2 + $0x680] sm:$0xff]
  %v3975 = vld [vmem:[%s2 + $0x688] sm:$0xff]
  %v3976 = vld [vmem:[%s2 + $0x690] sm:$0xff]
  %v3977 = vld [vmem:[%s2 + $0x698] sm:$0xff]
  %v3978 = vld [vmem:[%s2 + $0x6a0] sm:$0xff]
  %v3979 = vld [vmem:[%s2 + $0x6a8] sm:$0xff]
  %v3980 = vld [vmem:[%s2 + $0x6b0] sm:$0xff]
  %v3981 = vld [vmem:[%s2 + $0x6b8] sm:$0xff]
  %v3982 = vld [vmem:[%s2 + $0x6c0] sm:$0xff]
  %v3983 = vld [vmem:[%s2 + $0x6c8] sm:$0xff]
  %v3984 = vld [vmem:[%s2 + $0x6d0] sm:$0xff]
  %v3985 = vld [vmem:[%s2 + $0x6d8] sm:$0xff]
  %v3986 = vld [vmem:[%s2 + $0x6e0] sm:$0xff]
  %v3987 = vld [vmem:[%s2 + $0x6e8] sm:$0xff]
  %v3988 = vld [vmem:[%s2 + $0x6f0] sm:$0xff]
  %v3989 = vld [vmem:[%s2 + $0x6f8] sm:$0xff]
  %v3990 = vld [vmem:[%s2 + $0x700] sm:$0xff]
  %v3991 = vld [vmem:[%s2 + $0x708] sm:$0xff]
  %v3992 = vld [vmem:[%s2 + $0x710] sm:$0xff]
  %v3993 = vld [vmem:[%s2 + $0x718] sm:$0xff]
  %v3994 = vld [vmem:[%s2 + $0x720] sm:$0xff]
  %v3995 = vld [vmem:[%s2 + $0x728] sm:$0xff]
  %v3996 = vld [vmem:[%s2 + $0x730] sm:$0xff]
  %v3997 = vld [vmem:[%s2 + $0x738] sm:$0xff]
  %v3998 = vld [vmem:[%s2 + $0x740] sm:$0xff]
  %v3999 = vld [vmem:[%s2 + $0x748] sm:$0xff]
  %v4000 = vld [vmem:[%s2 + $0x750] sm:$0xff]
  %v4001 = vld [vmem:[%s2 + $0x758] sm:$0xff]
  %v4002 = vld [vmem:[%s2 + $0x760] sm:$0xff]
  %v4003 = vld [vmem:[%s2 + $0x768] sm:$0xff]
  %v4004 = vld [vmem:[%s2 + $0x770] sm:$0xff]
  %v4005 = vld [vmem:[%s2 + $0x778] sm:$0xff]
  %v4006 = vld [vmem:[%s2 + $0x780] sm:$0xff]
  %v4007 = vld [vmem:[%s2 + $0x788] sm:$0xff]
  %v4008 = vld [vmem:[%s2 + $0x790] sm:$0xff]
  %v4009 = vld [vmem:[%s2 + $0x798] sm:$0xff]
  %v4010 = vld [vmem:[%s2 + $0x7a0] sm:$0xff]
  %v4011 = vld [vmem:[%s2 + $0x7a8] sm:$0xff]
  %v4012 = vld [vmem:[%s2 + $0x7b0] sm:$0xff]
  %v4013 = vld [vmem:[%s2 + $0x7b8] sm:$0xff]
  %v4014 = vld [vmem:[%s2 + $0x7c0] sm:$0xff]
  %v4015 = vld [vmem:[%s2 + $0x7c8] sm:$0xff]
  %v4016 = vld [vmem:[%s2 + $0x7d0] sm:$0xff]
  %v4017 = vld [vmem:[%s2 + $0x7d8] sm:$0xff]
  %v4018 = vld [vmem:[%s2 + $0x7e0] sm:$0xff]
  %v4019 = vld [vmem:[%s2 + $0x7e8] sm:$0xff]
  %v4020 = vld [vmem:[%s2 + $0x7f0] sm:$0xff]
  %v4021 = vld [vmem:[%s2 + $0x7f8] sm:$0xff]
  %4022 = vmatprep.subr.mxu0 %v3887
  %4023 = vmatpush1.msra.mxu0 %v3886
  %4024 = vmatprep.subr.mxu0 %v3879
  %4025 = vmatpush1.msra.mxu0 %v3878
  %4026 = vmatprep.subr.mxu0 %v3871
  %4027 = vmatpush1.msra.mxu0 %v3870
  %4028 = vmatprep.subr.mxu0 %v3863
  %4029 = vmatpush1.msra.mxu0 %v3862
  %4030 = vmatprep.subr.mxu0 %v3855
  %4031 = vmatpush1.msra.mxu0 %v3854
  %4032 = vmatprep.subr.mxu0 %v3847
  %4033 = vmatpush1.msra.mxu0 %v3846
  %4034 = vmatprep.subr.mxu0 %v3839
  %4035 = vmatpush1.msra.mxu0 %v3838
  %4036 = vmatprep.subr.mxu0 %v3831
  %4037 = vmatpush1.msra.mxu0 %v3830
  %4038 = vmatprep.subr.mxu0 %v3823
  %4039 = vmatpush1.msra.mxu0 %v3822
  %4040 = vmatprep.subr.mxu0 %v3815
  %4041 = vmatpush1.msra.mxu0 %v3814
  %4042 = vmatprep.subr.mxu0 %v3807
  %4043 = vmatpush1.msra.mxu0 %v3806
  %4044 = vmatprep.subr.mxu0 %v3799
  %4045 = vmatpush1.msra.mxu0 %v3798
  %4046 = vmatprep.subr.mxu0 %v3791
  %4047 = vmatpush1.msra.mxu0 %v3790
  %4048 = vmatprep.subr.mxu0 %v3783
  %4049 = vmatpush1.msra.mxu0 %v3782
  %4050 = vmatprep.subr.mxu0 %v3775
  %4051 = vmatpush1.msra.mxu0 %v3774
  %4052 = vmatprep.subr.mxu0 %v3767
  %4053 = vmatpush1.msra.mxu0 %v3766
  %4054 = vmatprep.subr.mxu0 %v4015
  %4055 = vmatpush2.msra.mxu0 %v4014
  %4056 = vmatprep.subr.mxu0 %v4007
  %4057 = vmatpush2.msra.mxu0 %v4006
  %4058 = vmatprep.subr.mxu0 %v3999
  %4059 = vmatpush2.msra.mxu0 %v3998
  %4060 = vmatprep.subr.mxu0 %v3991
  %4061 = vmatpush2.msra.mxu0 %v3990
  %4062 = vmatprep.subr.mxu0 %v3983
  %4063 = vmatpush2.msra.mxu0 %v3982
  %4064 = vmatprep.subr.mxu0 %v3975
  %4065 = vmatpush2.msra.mxu0 %v3974
  %4066 = vmatprep.subr.mxu0 %v3967
  %4067 = vmatpush2.msra.mxu0 %v3966
  %4068 = vmatprep.subr.mxu0 %v3959
  %4069 = vmatpush2.msra.mxu0 %v3958
  %4070 = vmatprep.subr.mxu0 %v3951
  %4071 = vmatpush2.msra.mxu0 %v3950
  %4072 = vmatprep.subr.mxu0 %v3943
  %4073 = vmatpush2.msra.mxu0 %v3942
  %4074 = vmatprep.subr.mxu0 %v3935
  %4075 = vmatpush2.msra.mxu0 %v3934
  %4076 = vmatprep.subr.mxu0 %v3927
  %4077 = vmatpush2.msra.mxu0 %v3926
  %4078 = vmatprep.subr.mxu0 %v3919
  %4079 = vmatpush2.msra.mxu0 %v3918
  %4080 = vmatprep.subr.mxu0 %v3911
  %4081 = vmatpush2.msra.mxu0 %v3910
  %4082 = vmatprep.subr.mxu0 %v3903
  %4083 = vmatpush2.msra.mxu0 %v3902
  %4084 = vmatprep.subr.mxu0 %v3895
  %4085 = vmatpush2.msra.mxu0 %v3894
  %4086 = vmatprep.mubr.f32.mxu0 %v3765
  %4087 = vmatmul.mubr.f32.gmra.mxu0 %v3764
  %v4088 = vpop.f32.mrf.mxu0
  %v4089 = vadd.f32 0.0, %v4088
  %v4090 = vpop.f32.mrf.mxu0
  %v4091 = vadd.f32 0.0, %v4090
  %4092 = vdwg.mxu0
  %4093 = vmatprep.subr.mxu0 %v3889
  %4094 = vmatpush1.msra.mxu0 %v3888
  %4095 = vmatprep.subr.mxu0 %v3881
  %4096 = vmatpush1.msra.mxu0 %v3880
  %4097 = vmatprep.subr.mxu0 %v3873
  %4098 = vmatpush1.msra.mxu0 %v3872
  %4099 = vmatprep.subr.mxu0 %v3865
  %4100 = vmatpush1.msra.mxu0 %v3864
  %4101 = vmatprep.subr.mxu0 %v3857
  %4102 = vmatpush1.msra.mxu0 %v3856
  %4103 = vmatprep.subr.mxu0 %v3849
  %4104 = vmatpush1.msra.mxu0 %v3848
  %4105 = vmatprep.subr.mxu0 %v3841
  %4106 = vmatpush1.msra.mxu0 %v3840
  %4107 = vmatprep.subr.mxu0 %v3833
  %4108 = vmatpush1.msra.mxu0 %v3832
  %4109 = vmatprep.subr.mxu0 %v3825
  %4110 = vmatpush1.msra.mxu0 %v3824
  %4111 = vmatprep.subr.mxu0 %v3817
  %4112 = vmatpush1.msra.mxu0 %v3816
  %4113 = vmatprep.subr.mxu0 %v3809
  %4114 = vmatpush1.msra.mxu0 %v3808
  %4115 = vmatprep.subr.mxu0 %v3801
  %4116 = vmatpush1.msra.mxu0 %v3800
  %4117 = vmatprep.subr.mxu0 %v3793
  %4118 = vmatpush1.msra.mxu0 %v3792
  %4119 = vmatprep.subr.mxu0 %v3785
  %4120 = vmatpush1.msra.mxu0 %v3784
  %4121 = vmatprep.subr.mxu0 %v3777
  %4122 = vmatpush1.msra.mxu0 %v3776
  %4123 = vmatprep.subr.mxu0 %v3769
  %4124 = vmatpush1.msra.mxu0 %v3768
  %4125 = vmatprep.subr.mxu0 %v4017
  %4126 = vmatpush2.msra.mxu0 %v4016
  %4127 = vmatprep.subr.mxu0 %v4009
  %4128 = vmatpush2.msra.mxu0 %v4008
  %4129 = vmatprep.subr.mxu0 %v4001
  %4130 = vmatpush2.msra.mxu0 %v4000
  %4131 = vmatprep.subr.mxu0 %v3993
  %4132 = vmatpush2.msra.mxu0 %v3992
  %4133 = vmatprep.subr.mxu0 %v3985
  %4134 = vmatpush2.msra.mxu0 %v3984
  %4135 = vmatprep.subr.mxu0 %v3977
  %4136 = vmatpush2.msra.mxu0 %v3976
  %4137 = vmatprep.subr.mxu0 %v3969
  %4138 = vmatpush2.msra.mxu0 %v3968
  %4139 = vmatprep.subr.mxu0 %v3961
  %4140 = vmatpush2.msra.mxu0 %v3960
  %4141 = vmatprep.subr.mxu0 %v3953
  %4142 = vmatpush2.msra.mxu0 %v3952
  %4143 = vmatprep.subr.mxu0 %v3945
  %4144 = vmatpush2.msra.mxu0 %v3944
  %4145 = vmatprep.subr.mxu0 %v3937
  %4146 = vmatpush2.msra.mxu0 %v3936
  %4147 = vmatprep.subr.mxu0 %v3929
  %4148 = vmatpush2.msra.mxu0 %v3928
  %4149 = vmatprep.subr.mxu0 %v3921
  %4150 = vmatpush2.msra.mxu0 %v3920
  %4151 = vmatprep.subr.mxu0 %v3913
  %4152 = vmatpush2.msra.mxu0 %v3912
  %4153 = vmatprep.subr.mxu0 %v3905
  %4154 = vmatpush2.msra.mxu0 %v3904
  %4155 = vmatprep.subr.mxu0 %v3897
  %4156 = vmatpush2.msra.mxu0 %v3896
  %4157 = vmatprep.mubr.f32.mxu0 %v3765
  %4158 = vmatmul.mubr.f32.gmra.mxu0 %v3764
  %v4159 = vpop.f32.mrf.mxu0
  %v4160 = vadd.f32 0.0, %v4159
  %v4161 = vpop.f32.mrf.mxu0
  %v4162 = vadd.f32 0.0, %v4161
  %4163 = vdwg.mxu0
  %4164 = vmatprep.subr.mxu0 %v3891
  %4165 = vmatpush1.msra.mxu0 %v3890
  %4166 = vmatprep.subr.mxu0 %v3883
  %4167 = vmatpush1.msra.mxu0 %v3882
  %4168 = vmatprep.subr.mxu0 %v3875
  %4169 = vmatpush1.msra.mxu0 %v3874
  %4170 = vmatprep.subr.mxu0 %v3867
  %4171 = vmatpush1.msra.mxu0 %v3866
  %4172 = vmatprep.subr.mxu0 %v3859
  %4173 = vmatpush1.msra.mxu0 %v3858
  %4174 = vmatprep.subr.mxu0 %v3851
  %4175 = vmatpush1.msra.mxu0 %v3850
  %4176 = vmatprep.subr.mxu0 %v3843
  %4177 = vmatpush1.msra.mxu0 %v3842
  %4178 = vmatprep.subr.mxu0 %v3835
  %4179 = vmatpush1.msra.mxu0 %v3834
  %4180 = vmatprep.subr.mxu0 %v3827
  %4181 = vmatpush1.msra.mxu0 %v3826
  %4182 = vmatprep.subr.mxu0 %v3819
  %4183 = vmatpush1.msra.mxu0 %v3818
  %4184 = vmatprep.subr.mxu0 %v3811
  %4185 = vmatpush1.msra.mxu0 %v3810
  %4186 = vmatprep.subr.mxu0 %v3803
  %4187 = vmatpush1.msra.mxu0 %v3802
  %4188 = vmatprep.subr.mxu0 %v3795
  %4189 = vmatpush1.msra.mxu0 %v3794
  %4190 = vmatprep.subr.mxu0 %v3787
  %4191 = vmatpush1.msra.mxu0 %v3786
  %4192 = vmatprep.subr.mxu0 %v3779
  %4193 = vmatpush1.msra.mxu0 %v3778
  %4194 = vmatprep.subr.mxu0 %v3771
  %4195 = vmatpush1.msra.mxu0 %v3770
  %4196 = vmatprep.subr.mxu0 %v4019
  %4197 = vmatpush2.msra.mxu0 %v4018
  %4198 = vmatprep.subr.mxu0 %v4011
  %4199 = vmatpush2.msra.mxu0 %v4010
  %4200 = vmatprep.subr.mxu0 %v4003
  %4201 = vmatpush2.msra.mxu0 %v4002
  %4202 = vmatprep.subr.mxu0 %v3995
  %4203 = vmatpush2.msra.mxu0 %v3994
  %4204 = vmatprep.subr.mxu0 %v3987
  %4205 = vmatpush2.msra.mxu0 %v3986
  %4206 = vmatprep.subr.mxu0 %v3979
  %4207 = vmatpush2.msra.mxu0 %v3978
  %4208 = vmatprep.subr.mxu0 %v3971
  %4209 = vmatpush2.msra.mxu0 %v3970
  %4210 = vmatprep.subr.mxu0 %v3963
  %4211 = vmatpush2.msra.mxu0 %v3962
  %4212 = vmatprep.subr.mxu0 %v3955
  %4213 = vmatpush2.msra.mxu0 %v3954
  %4214 = vmatprep.subr.mxu0 %v3947
  %4215 = vmatpush2.msra.mxu0 %v3946
  %4216 = vmatprep.subr.mxu0 %v3939
  %4217 = vmatpush2.msra.mxu0 %v3938
  %4218 = vmatprep.subr.mxu0 %v3931
  %4219 = vmatpush2.msra.mxu0 %v3930
  %4220 = vmatprep.subr.mxu0 %v3923
  %4221 = vmatpush2.msra.mxu0 %v3922
  %4222 = vmatprep.subr.mxu0 %v3915
  %4223 = vmatpush2.msra.mxu0 %v3914
  %4224 = vmatprep.subr.mxu0 %v3907
  %4225 = vmatpush2.msra.mxu0 %v3906
  %4226 = vmatprep.subr.mxu0 %v3899
  %4227 = vmatpush2.msra.mxu0 %v3898
  %4228 = vmatprep.mubr.f32.mxu0 %v3765
  %4229 = vmatmul.mubr.f32.gmra.mxu0 %v3764
  %v4230 = vpop.f32.mrf.mxu0
  %v4231 = vadd.f32 0.0, %v4230
  %v4232 = vpop.f32.mrf.mxu0
  %v4233 = vadd.f32 0.0, %v4232
  %4234 = vdwg.mxu0
  %4235 = vmatprep.subr.mxu0 %v3893
  %4236 = vmatpush1.msra.mxu0 %v3892
  %4237 = vmatprep.subr.mxu0 %v3885
  %4238 = vmatpush1.msra.mxu0 %v3884
  %4239 = vmatprep.subr.mxu0 %v3877
  %4240 = vmatpush1.msra.mxu0 %v3876
  %4241 = vmatprep.subr.mxu0 %v3869
  %4242 = vmatpush1.msra.mxu0 %v3868
  %4243 = vmatprep.subr.mxu0 %v3861
  %4244 = vmatpush1.msra.mxu0 %v3860
  %4245 = vmatprep.subr.mxu0 %v3853
  %4246 = vmatpush1.msra.mxu0 %v3852
  %4247 = vmatprep.subr.mxu0 %v3845
  %4248 = vmatpush1.msra.mxu0 %v3844
  %4249 = vmatprep.subr.mxu0 %v3837
  %4250 = vmatpush1.msra.mxu0 %v3836
  %4251 = vmatprep.subr.mxu0 %v3829
  %4252 = vmatpush1.msra.mxu0 %v3828
  %4253 = vmatprep.subr.mxu0 %v3821
  %4254 = vmatpush1.msra.mxu0 %v3820
  %4255 = vmatprep.subr.mxu0 %v3813
  %4256 = vmatpush1.msra.mxu0 %v3812
  %4257 = vmatprep.subr.mxu0 %v3805
  %4258 = vmatpush1.msra.mxu0 %v3804
  %4259 = vmatprep.subr.mxu0 %v3797
  %4260 = vmatpush1.msra.mxu0 %v3796
  %4261 = vmatprep.subr.mxu0 %v3789
  %4262 = vmatpush1.msra.mxu0 %v3788
  %4263 = vmatprep.subr.mxu0 %v3781
  %4264 = vmatpush1.msra.mxu0 %v3780
  %4265 = vmatprep.subr.mxu0 %v3773
  %4266 = vmatpush1.msra.mxu0 %v3772
  %4267 = vmatprep.subr.mxu0 %v4021
  %4268 = vmatpush2.msra.mxu0 %v4020
  %4269 = vmatprep.subr.mxu0 %v4013
  %4270 = vmatpush2.msra.mxu0 %v4012
  %4271 = vmatprep.subr.mxu0 %v4005
  %4272 = vmatpush2.msra.mxu0 %v4004
  %4273 = vmatprep.subr.mxu0 %v3997
  %4274 = vmatpush2.msra.mxu0 %v3996
  %4275 = vmatprep.subr.mxu0 %v3989
  %4276 = vmatpush2.msra.mxu0 %v3988
  %4277 = vmatprep.subr.mxu0 %v3981
  %4278 = vmatpush2.msra.mxu0 %v3980
  %4279 = vmatprep.subr.mxu0 %v3973
  %4280 = vmatpush2.msra.mxu0 %v3972
  %4281 = vmatprep.subr.mxu0 %v3965
  %4282 = vmatpush2.msra.mxu0 %v3964
  %4283 = vmatprep.subr.mxu0 %v3957
  %4284 = vmatpush2.msra.mxu0 %v3956
  %4285 = vmatprep.subr.mxu0 %v3949
  %4286 = vmatpush2.msra.mxu0 %v3948
  %4287 = vmatprep.subr.mxu0 %v3941
  %4288 = vmatpush2.msra.mxu0 %v3940
  %4289 = vmatprep.subr.mxu0 %v3933
  %4290 = vmatpush2.msra.mxu0 %v3932
  %4291 = vmatprep.subr.mxu0 %v3925
  %4292 = vmatpush2.msra.mxu0 %v3924
  %4293 = vmatprep.subr.mxu0 %v3917
  %4294 = vmatpush2.msra.mxu0 %v3916
  %4295 = vmatprep.subr.mxu0 %v3909
  %4296 = vmatpush2.msra.mxu0 %v3908
  %4297 = vmatprep.subr.mxu0 %v3901
  %4298 = vmatpush2.msra.mxu0 %v3900
  %4299 = vmatprep.mubr.f32.mxu0 %v3765
  %4300 = vmatmul.mubr.f32.gmra.mxu0 %v3764
  %v4301 = vpop.f32.mrf.mxu0
  %v4302 = vadd.f32 0.0, %v4301
  %v4303 = vpop.f32.mrf.mxu0
  %v4304 = vadd.f32 0.0, %v4303
  %4305 = vdwg.mxu0
  %v4306 = vadd.f32 %v3756, %v4089
  %v4307 = vadd.f32 %v3757, %v4091
  %v4308 = vadd.f32 %v3758, %v4160
  %v4309 = vadd.f32 %v3759, %v4162
  %v4310 = vadd.f32 %v3760, %v4231
  %v4311 = vadd.f32 %v3761, %v4233
  %v4312 = vadd.f32 %v3762, %v4302
  %v4313 = vadd.f32 %v3763, %v4304
  %v4314 = vxor.u32 %v4306, 2147483648
  %v4315 = vxor.u32 %v4307, 2147483648
  %v4316 = vmul.f32 %v4314, 1.442695
  %v4317 = vpow.pop %v4316
  %v4318 = vmul.f32 %v4315, 1.442695
  %v4319 = vpow.pop %v4318
  %v4320 = vadd.f32 %v4317, 1.0
  %v4321 = vadd.f32 %v4319, 1.0
  %v4322 = vrcp.pop %v4320
  %v4323 = vmul.f32 1.0, %v4322
  %v4324 = vrcp.pop %v4321
  %v4325 = vmul.f32 1.0, %v4324
  %v4326 = vxor.u32 %v4308, 2147483648
  %v4327 = vxor.u32 %v4309, 2147483648
  %v4328 = vmul.f32 %v4326, 1.442695
  %v4329 = vpow.pop %v4328
  %v4330 = vmul.f32 %v4327, 1.442695
  %v4331 = vpow.pop %v4330
  %v4332 = vadd.f32 %v4329, 1.0
  %v4333 = vadd.f32 %v4331, 1.0
  %v4334 = vrcp.pop %v4332
  %v4335 = vmul.f32 1.0, %v4334
  %v4336 = vrcp.pop %v4333
  %v4337 = vmul.f32 1.0, %v4336
  %v4338 = vtanh.pop %v4310
  %v4339 = vtanh.pop %v4311
  %v4340 = vxor.u32 %v4312, 2147483648
  %v4341 = vxor.u32 %v4313, 2147483648
  %v4342 = vmul.f32 %v4340, 1.442695
  %v4343 = vpow.pop %v4342
  %v4344 = vmul.f32 %v4341, 1.442695
  %v4345 = vpow.pop %v4344
  %v4346 = vadd.f32 %v4343, 1.0
  %v4347 = vadd.f32 %v4345, 1.0
  %v4348 = vrcp.pop %v4346
  %v4349 = vmul.f32 1.0, %v4348
  %v4350 = vrcp.pop %v4347
  %v4351 = vmul.f32 1.0, %v4350
  %v4352 = vld [vmem:[%s5] sm:$0xff]
  %v4353 = vld [vmem:[%s5 + $0x8] sm:$0xff]
  %v4354 = vmul.f32 %v4335, %v4352
  %v4355 = vmul.f32 %v4337, %v4353
  %v4356 = vmul.f32 %v4323, %v4338
  %v4357 = vmul.f32 %v4325, %v4339
  %v4358 = vadd.f32 %v4354, %v4356
  %v4359 = vadd.f32 %v4355, %v4357
  %4360 = vst [vmem:[%s5] sm:$0xff] %v4358
  %4361 = vst [vmem:[%s5 + $0x8] sm:$0xff] %v4359
  %v4362 = vtanh.pop %v4358
  %v4363 = vtanh.pop %v4359
  %v4364 = vmul.f32 %v4349, %v4362
  %v4365 = vmul.f32 %v4351, %v4363
  %4366 = vst [vmem:[%s4] sm:$0xff] %v4364
  %4367 = vst [vmem:[%s4 + $0x8] sm:$0xff] %v4365
  %s4368 = smul.u32 6, 8
  %s4369 = smul.addr %s4368, 8
  %s4370 = scalar_lea.vmem [#allocation2], %s4369
  %v4371 = vld [vmem:[%s4370] sm:$0xff]
  %v4372 = vld [vmem:[%s4370 + $0x8] sm:$0xff]
  %v4373 = vld [vmem:[%s4370 + $0x10] sm:$0xff]
  %v4374 = vld [vmem:[%s4370 + $0x18] sm:$0xff]
  %v4375 = vld [vmem:[%s4370 + $0x20] sm:$0xff]
  %v4376 = vld [vmem:[%s4370 + $0x28] sm:$0xff]
  %v4377 = vld [vmem:[%s4370 + $0x30] sm:$0xff]
  %v4378 = vld [vmem:[%s4370 + $0x38] sm:$0xff]
  %v4379 = vld [vmem:[%s4] sm:$0xff]
  %v4380 = vld [vmem:[%s4 + $0x8] sm:$0xff]
  %v4381 = vld [vmem:[%s2] sm:$0xff]
  %v4382 = vld [vmem:[%s2 + $0x8] sm:$0xff]
  %v4383 = vld [vmem:[%s2 + $0x10] sm:$0xff]
  %v4384 = vld [vmem:[%s2 + $0x18] sm:$0xff]
  %v4385 = vld [vmem:[%s2 + $0x20] sm:$0xff]
  %v4386 = vld [vmem:[%s2 + $0x28] sm:$0xff]
  %v4387 = vld [vmem:[%s2 + $0x30] sm:$0xff]
  %v4388 = vld [vmem:[%s2 + $0x38] sm:$0xff]
  %v4389 = vld [vmem:[%s2 + $0x40] sm:$0xff]
  %v4390 = vld [vmem:[%s2 + $0x48] sm:$0xff]
  %v4391 = vld [vmem:[%s2 + $0x50] sm:$0xff]
  %v4392 = vld [vmem:[%s2 + $0x58] sm:$0xff]
  %v4393 = vld [vmem:[%s2 + $0x60] sm:$0xff]
  %v4394 = vld [vmem:[%s2 + $0x68] sm:$0xff]
  %v4395 = vld [vmem:[%s2 + $0x70] sm:$0xff]
  %v4396 = vld [vmem:[%s2 + $0x78] sm:$0xff]
  %v4397 = vld [vmem:[%s2 + $0x80] sm:$0xff]
  %v4398 = vld [vmem:[%s2 + $0x88] sm:$0xff]
  %v4399 = vld [vmem:[%s2 + $0x90] sm:$0xff]
  %v4400 = vld [vmem:[%s2 + $0x98] sm:$0xff]
  %v4401 = vld [vmem:[%s2 + $0xa0] sm:$0xff]
  %v4402 = vld [vmem:[%s2 + $0xa8] sm:$0xff]
  %v4403 = vld [vmem:[%s2 + $0xb0] sm:$0xff]
  %v4404 = vld [vmem:[%s2 + $0xb8] sm:$0xff]
  %v4405 = vld [vmem:[%s2 + $0xc0] sm:$0xff]
  %v4406 = vld [vmem:[%s2 + $0xc8] sm:$0xff]
  %v4407 = vld [vmem:[%s2 + $0xd0] sm:$0xff]
  %v4408 = vld [vmem:[%s2 + $0xd8] sm:$0xff]
  %v4409 = vld [vmem:[%s2 + $0xe0] sm:$0xff]
  %v4410 = vld [vmem:[%s2 + $0xe8] sm:$0xff]
  %v4411 = vld [vmem:[%s2 + $0xf0] sm:$0xff]
  %v4412 = vld [vmem:[%s2 + $0xf8] sm:$0xff]
  %v4413 = vld [vmem:[%s2 + $0x100] sm:$0xff]
  %v4414 = vld [vmem:[%s2 + $0x108] sm:$0xff]
  %v4415 = vld [vmem:[%s2 + $0x110] sm:$0xff]
  %v4416 = vld [vmem:[%s2 + $0x118] sm:$0xff]
  %v4417 = vld [vmem:[%s2 + $0x120] sm:$0xff]
  %v4418 = vld [vmem:[%s2 + $0x128] sm:$0xff]
  %v4419 = vld [vmem:[%s2 + $0x130] sm:$0xff]
  %v4420 = vld [vmem:[%s2 + $0x138] sm:$0xff]
  %v4421 = vld [vmem:[%s2 + $0x140] sm:$0xff]
  %v4422 = vld [vmem:[%s2 + $0x148] sm:$0xff]
  %v4423 = vld [vmem:[%s2 + $0x150] sm:$0xff]
  %v4424 = vld [vmem:[%s2 + $0x158] sm:$0xff]
  %v4425 = vld [vmem:[%s2 + $0x160] sm:$0xff]
  %v4426 = vld [vmem:[%s2 + $0x168] sm:$0xff]
  %v4427 = vld [vmem:[%s2 + $0x170] sm:$0xff]
  %v4428 = vld [vmem:[%s2 + $0x178] sm:$0xff]
  %v4429 = vld [vmem:[%s2 + $0x180] sm:$0xff]
  %v4430 = vld [vmem:[%s2 + $0x188] sm:$0xff]
  %v4431 = vld [vmem:[%s2 + $0x190] sm:$0xff]
  %v4432 = vld [vmem:[%s2 + $0x198] sm:$0xff]
  %v4433 = vld [vmem:[%s2 + $0x1a0] sm:$0xff]
  %v4434 = vld [vmem:[%s2 + $0x1a8] sm:$0xff]
  %v4435 = vld [vmem:[%s2 + $0x1b0] sm:$0xff]
  %v4436 = vld [vmem:[%s2 + $0x1b8] sm:$0xff]
  %v4437 = vld [vmem:[%s2 + $0x1c0] sm:$0xff]
  %v4438 = vld [vmem:[%s2 + $0x1c8] sm:$0xff]
  %v4439 = vld [vmem:[%s2 + $0x1d0] sm:$0xff]
  %v4440 = vld [vmem:[%s2 + $0x1d8] sm:$0xff]
  %v4441 = vld [vmem:[%s2 + $0x1e0] sm:$0xff]
  %v4442 = vld [vmem:[%s2 + $0x1e8] sm:$0xff]
  %v4443 = vld [vmem:[%s2 + $0x1f0] sm:$0xff]
  %v4444 = vld [vmem:[%s2 + $0x1f8] sm:$0xff]
  %v4445 = vld [vmem:[%s2 + $0x200] sm:$0xff]
  %v4446 = vld [vmem:[%s2 + $0x208] sm:$0xff]
  %v4447 = vld [vmem:[%s2 + $0x210] sm:$0xff]
  %v4448 = vld [vmem:[%s2 + $0x218] sm:$0xff]
  %v4449 = vld [vmem:[%s2 + $0x220] sm:$0xff]
  %v4450 = vld [vmem:[%s2 + $0x228] sm:$0xff]
  %v4451 = vld [vmem:[%s2 + $0x230] sm:$0xff]
  %v4452 = vld [vmem:[%s2 + $0x238] sm:$0xff]
  %v4453 = vld [vmem:[%s2 + $0x240] sm:$0xff]
  %v4454 = vld [vmem:[%s2 + $0x248] sm:$0xff]
  %v4455 = vld [vmem:[%s2 + $0x250] sm:$0xff]
  %v4456 = vld [vmem:[%s2 + $0x258] sm:$0xff]
  %v4457 = vld [vmem:[%s2 + $0x260] sm:$0xff]
  %v4458 = vld [vmem:[%s2 + $0x268] sm:$0xff]
  %v4459 = vld [vmem:[%s2 + $0x270] sm:$0xff]
  %v4460 = vld [vmem:[%s2 + $0x278] sm:$0xff]
  %v4461 = vld [vmem:[%s2 + $0x280] sm:$0xff]
  %v4462 = vld [vmem:[%s2 + $0x288] sm:$0xff]
  %v4463 = vld [vmem:[%s2 + $0x290] sm:$0xff]
  %v4464 = vld [vmem:[%s2 + $0x298] sm:$0xff]
  %v4465 = vld [vmem:[%s2 + $0x2a0] sm:$0xff]
  %v4466 = vld [vmem:[%s2 + $0x2a8] sm:$0xff]
  %v4467 = vld [vmem:[%s2 + $0x2b0] sm:$0xff]
  %v4468 = vld [vmem:[%s2 + $0x2b8] sm:$0xff]
  %v4469 = vld [vmem:[%s2 + $0x2c0] sm:$0xff]
  %v4470 = vld [vmem:[%s2 + $0x2c8] sm:$0xff]
  %v4471 = vld [vmem:[%s2 + $0x2d0] sm:$0xff]
  %v4472 = vld [vmem:[%s2 + $0x2d8] sm:$0xff]
  %v4473 = vld [vmem:[%s2 + $0x2e0] sm:$0xff]
  %v4474 = vld [vmem:[%s2 + $0x2e8] sm:$0xff]
  %v4475 = vld [vmem:[%s2 + $0x2f0] sm:$0xff]
  %v4476 = vld [vmem:[%s2 + $0x2f8] sm:$0xff]
  %v4477 = vld [vmem:[%s2 + $0x300] sm:$0xff]
  %v4478 = vld [vmem:[%s2 + $0x308] sm:$0xff]
  %v4479 = vld [vmem:[%s2 + $0x310] sm:$0xff]
  %v4480 = vld [vmem:[%s2 + $0x318] sm:$0xff]
  %v4481 = vld [vmem:[%s2 + $0x320] sm:$0xff]
  %v4482 = vld [vmem:[%s2 + $0x328] sm:$0xff]
  %v4483 = vld [vmem:[%s2 + $0x330] sm:$0xff]
  %v4484 = vld [vmem:[%s2 + $0x338] sm:$0xff]
  %v4485 = vld [vmem:[%s2 + $0x340] sm:$0xff]
  %v4486 = vld [vmem:[%s2 + $0x348] sm:$0xff]
  %v4487 = vld [vmem:[%s2 + $0x350] sm:$0xff]
  %v4488 = vld [vmem:[%s2 + $0x358] sm:$0xff]
  %v4489 = vld [vmem:[%s2 + $0x360] sm:$0xff]
  %v4490 = vld [vmem:[%s2 + $0x368] sm:$0xff]
  %v4491 = vld [vmem:[%s2 + $0x370] sm:$0xff]
  %v4492 = vld [vmem:[%s2 + $0x378] sm:$0xff]
  %v4493 = vld [vmem:[%s2 + $0x380] sm:$0xff]
  %v4494 = vld [vmem:[%s2 + $0x388] sm:$0xff]
  %v4495 = vld [vmem:[%s2 + $0x390] sm:$0xff]
  %v4496 = vld [vmem:[%s2 + $0x398] sm:$0xff]
  %v4497 = vld [vmem:[%s2 + $0x3a0] sm:$0xff]
  %v4498 = vld [vmem:[%s2 + $0x3a8] sm:$0xff]
  %v4499 = vld [vmem:[%s2 + $0x3b0] sm:$0xff]
  %v4500 = vld [vmem:[%s2 + $0x3b8] sm:$0xff]
  %v4501 = vld [vmem:[%s2 + $0x3c0] sm:$0xff]
  %v4502 = vld [vmem:[%s2 + $0x3c8] sm:$0xff]
  %v4503 = vld [vmem:[%s2 + $0x3d0] sm:$0xff]
  %v4504 = vld [vmem:[%s2 + $0x3d8] sm:$0xff]
  %v4505 = vld [vmem:[%s2 + $0x3e0] sm:$0xff]
  %v4506 = vld [vmem:[%s2 + $0x3e8] sm:$0xff]
  %v4507 = vld [vmem:[%s2 + $0x3f0] sm:$0xff]
  %v4508 = vld [vmem:[%s2 + $0x3f8] sm:$0xff]
  %v4509 = vld [vmem:[%s2 + $0x400] sm:$0xff]
  %v4510 = vld [vmem:[%s2 + $0x408] sm:$0xff]
  %v4511 = vld [vmem:[%s2 + $0x410] sm:$0xff]
  %v4512 = vld [vmem:[%s2 + $0x418] sm:$0xff]
  %v4513 = vld [vmem:[%s2 + $0x420] sm:$0xff]
  %v4514 = vld [vmem:[%s2 + $0x428] sm:$0xff]
  %v4515 = vld [vmem:[%s2 + $0x430] sm:$0xff]
  %v4516 = vld [vmem:[%s2 + $0x438] sm:$0xff]
  %v4517 = vld [vmem:[%s2 + $0x440] sm:$0xff]
  %v4518 = vld [vmem:[%s2 + $0x448] sm:$0xff]
  %v4519 = vld [vmem:[%s2 + $0x450] sm:$0xff]
  %v4520 = vld [vmem:[%s2 + $0x458] sm:$0xff]
  %v4521 = vld [vmem:[%s2 + $0x460] sm:$0xff]
  %v4522 = vld [vmem:[%s2 + $0x468] sm:$0xff]
  %v4523 = vld [vmem:[%s2 + $0x470] sm:$0xff]
  %v4524 = vld [vmem:[%s2 + $0x478] sm:$0xff]
  %v4525 = vld [vmem:[%s2 + $0x480] sm:$0xff]
  %v4526 = vld [vmem:[%s2 + $0x488] sm:$0xff]
  %v4527 = vld [vmem:[%s2 + $0x490] sm:$0xff]
  %v4528 = vld [vmem:[%s2 + $0x498] sm:$0xff]
  %v4529 = vld [vmem:[%s2 + $0x4a0] sm:$0xff]
  %v4530 = vld [vmem:[%s2 + $0x4a8] sm:$0xff]
  %v4531 = vld [vmem:[%s2 + $0x4b0] sm:$0xff]
  %v4532 = vld [vmem:[%s2 + $0x4b8] sm:$0xff]
  %v4533 = vld [vmem:[%s2 + $0x4c0] sm:$0xff]
  %v4534 = vld [vmem:[%s2 + $0x4c8] sm:$0xff]
  %v4535 = vld [vmem:[%s2 + $0x4d0] sm:$0xff]
  %v4536 = vld [vmem:[%s2 + $0x4d8] sm:$0xff]
  %v4537 = vld [vmem:[%s2 + $0x4e0] sm:$0xff]
  %v4538 = vld [vmem:[%s2 + $0x4e8] sm:$0xff]
  %v4539 = vld [vmem:[%s2 + $0x4f0] sm:$0xff]
  %v4540 = vld [vmem:[%s2 + $0x4f8] sm:$0xff]
  %v4541 = vld [vmem:[%s2 + $0x500] sm:$0xff]
  %v4542 = vld [vmem:[%s2 + $0x508] sm:$0xff]
  %v4543 = vld [vmem:[%s2 + $0x510] sm:$0xff]
  %v4544 = vld [vmem:[%s2 + $0x518] sm:$0xff]
  %v4545 = vld [vmem:[%s2 + $0x520] sm:$0xff]
  %v4546 = vld [vmem:[%s2 + $0x528] sm:$0xff]
  %v4547 = vld [vmem:[%s2 + $0x530] sm:$0xff]
  %v4548 = vld [vmem:[%s2 + $0x538] sm:$0xff]
  %v4549 = vld [vmem:[%s2 + $0x540] sm:$0xff]
  %v4550 = vld [vmem:[%s2 + $0x548] sm:$0xff]
  %v4551 = vld [vmem:[%s2 + $0x550] sm:$0xff]
  %v4552 = vld [vmem:[%s2 + $0x558] sm:$0xff]
  %v4553 = vld [vmem:[%s2 + $0x560] sm:$0xff]
  %v4554 = vld [vmem:[%s2 + $0x568] sm:$0xff]
  %v4555 = vld [vmem:[%s2 + $0x570] sm:$0xff]
  %v4556 = vld [vmem:[%s2 + $0x578] sm:$0xff]
  %v4557 = vld [vmem:[%s2 + $0x580] sm:$0xff]
  %v4558 = vld [vmem:[%s2 + $0x588] sm:$0xff]
  %v4559 = vld [vmem:[%s2 + $0x590] sm:$0xff]
  %v4560 = vld [vmem:[%s2 + $0x598] sm:$0xff]
  %v4561 = vld [vmem:[%s2 + $0x5a0] sm:$0xff]
  %v4562 = vld [vmem:[%s2 + $0x5a8] sm:$0xff]
  %v4563 = vld [vmem:[%s2 + $0x5b0] sm:$0xff]
  %v4564 = vld [vmem:[%s2 + $0x5b8] sm:$0xff]
  %v4565 = vld [vmem:[%s2 + $0x5c0] sm:$0xff]
  %v4566 = vld [vmem:[%s2 + $0x5c8] sm:$0xff]
  %v4567 = vld [vmem:[%s2 + $0x5d0] sm:$0xff]
  %v4568 = vld [vmem:[%s2 + $0x5d8] sm:$0xff]
  %v4569 = vld [vmem:[%s2 + $0x5e0] sm:$0xff]
  %v4570 = vld [vmem:[%s2 + $0x5e8] sm:$0xff]
  %v4571 = vld [vmem:[%s2 + $0x5f0] sm:$0xff]
  %v4572 = vld [vmem:[%s2 + $0x5f8] sm:$0xff]
  %v4573 = vld [vmem:[%s2 + $0x600] sm:$0xff]
  %v4574 = vld [vmem:[%s2 + $0x608] sm:$0xff]
  %v4575 = vld [vmem:[%s2 + $0x610] sm:$0xff]
  %v4576 = vld [vmem:[%s2 + $0x618] sm:$0xff]
  %v4577 = vld [vmem:[%s2 + $0x620] sm:$0xff]
  %v4578 = vld [vmem:[%s2 + $0x628] sm:$0xff]
  %v4579 = vld [vmem:[%s2 + $0x630] sm:$0xff]
  %v4580 = vld [vmem:[%s2 + $0x638] sm:$0xff]
  %v4581 = vld [vmem:[%s2 + $0x640] sm:$0xff]
  %v4582 = vld [vmem:[%s2 + $0x648] sm:$0xff]
  %v4583 = vld [vmem:[%s2 + $0x650] sm:$0xff]
  %v4584 = vld [vmem:[%s2 + $0x658] sm:$0xff]
  %v4585 = vld [vmem:[%s2 + $0x660] sm:$0xff]
  %v4586 = vld [vmem:[%s2 + $0x668] sm:$0xff]
  %v4587 = vld [vmem:[%s2 + $0x670] sm:$0xff]
  %v4588 = vld [vmem:[%s2 + $0x678] sm:$0xff]
  %v4589 = vld [vmem:[%s2 + $0x680] sm:$0xff]
  %v4590 = vld [vmem:[%s2 + $0x688] sm:$0xff]
  %v4591 = vld [vmem:[%s2 + $0x690] sm:$0xff]
  %v4592 = vld [vmem:[%s2 + $0x698] sm:$0xff]
  %v4593 = vld [vmem:[%s2 + $0x6a0] sm:$0xff]
  %v4594 = vld [vmem:[%s2 + $0x6a8] sm:$0xff]
  %v4595 = vld [vmem:[%s2 + $0x6b0] sm:$0xff]
  %v4596 = vld [vmem:[%s2 + $0x6b8] sm:$0xff]
  %v4597 = vld [vmem:[%s2 + $0x6c0] sm:$0xff]
  %v4598 = vld [vmem:[%s2 + $0x6c8] sm:$0xff]
  %v4599 = vld [vmem:[%s2 + $0x6d0] sm:$0xff]
  %v4600 = vld [vmem:[%s2 + $0x6d8] sm:$0xff]
  %v4601 = vld [vmem:[%s2 + $0x6e0] sm:$0xff]
  %v4602 = vld [vmem:[%s2 + $0x6e8] sm:$0xff]
  %v4603 = vld [vmem:[%s2 + $0x6f0] sm:$0xff]
  %v4604 = vld [vmem:[%s2 + $0x6f8] sm:$0xff]
  %v4605 = vld [vmem:[%s2 + $0x700] sm:$0xff]
  %v4606 = vld [vmem:[%s2 + $0x708] sm:$0xff]
  %v4607 = vld [vmem:[%s2 + $0x710] sm:$0xff]
  %v4608 = vld [vmem:[%s2 + $0x718] sm:$0xff]
  %v4609 = vld [vmem:[%s2 + $0x720] sm:$0xff]
  %v4610 = vld [vmem:[%s2 + $0x728] sm:$0xff]
  %v4611 = vld [vmem:[%s2 + $0x730] sm:$0xff]
  %v4612 = vld [vmem:[%s2 + $0x738] sm:$0xff]
  %v4613 = vld [vmem:[%s2 + $0x740] sm:$0xff]
  %v4614 = vld [vmem:[%s2 + $0x748] sm:$0xff]
  %v4615 = vld [vmem:[%s2 + $0x750] sm:$0xff]
  %v4616 = vld [vmem:[%s2 + $0x758] sm:$0xff]
  %v4617 = vld [vmem:[%s2 + $0x760] sm:$0xff]
  %v4618 = vld [vmem:[%s2 + $0x768] sm:$0xff]
  %v4619 = vld [vmem:[%s2 + $0x770] sm:$0xff]
  %v4620 = vld [vmem:[%s2 + $0x778] sm:$0xff]
  %v4621 = vld [vmem:[%s2 + $0x780] sm:$0xff]
  %v4622 = vld [vmem:[%s2 + $0x788] sm:$0xff]
  %v4623 = vld [vmem:[%s2 + $0x790] sm:$0xff]
  %v4624 = vld [vmem:[%s2 + $0x798] sm:$0xff]
  %v4625 = vld [vmem:[%s2 + $0x7a0] sm:$0xff]
  %v4626 = vld [vmem:[%s2 + $0x7a8] sm:$0xff]
  %v4627 = vld [vmem:[%s2 + $0x7b0] sm:$0xff]
  %v4628 = vld [vmem:[%s2 + $0x7b8] sm:$0xff]
  %v4629 = vld [vmem:[%s2 + $0x7c0] sm:$0xff]
  %v4630 = vld [vmem:[%s2 + $0x7c8] sm:$0xff]
  %v4631 = vld [vmem:[%s2 + $0x7d0] sm:$0xff]
  %v4632 = vld [vmem:[%s2 + $0x7d8] sm:$0xff]
  %v4633 = vld [vmem:[%s2 + $0x7e0] sm:$0xff]
  %v4634 = vld [vmem:[%s2 + $0x7e8] sm:$0xff]
  %v4635 = vld [vmem:[%s2 + $0x7f0] sm:$0xff]
  %v4636 = vld [vmem:[%s2 + $0x7f8] sm:$0xff]
  %4637 = vmatprep.subr.mxu0 %v4502
  %4638 = vmatpush1.msra.mxu0 %v4501
  %4639 = vmatprep.subr.mxu0 %v4494
  %4640 = vmatpush1.msra.mxu0 %v4493
  %4641 = vmatprep.subr.mxu0 %v4486
  %4642 = vmatpush1.msra.mxu0 %v4485
  %4643 = vmatprep.subr.mxu0 %v4478
  %4644 = vmatpush1.msra.mxu0 %v4477
  %4645 = vmatprep.subr.mxu0 %v4470
  %4646 = vmatpush1.msra.mxu0 %v4469
  %4647 = vmatprep.subr.mxu0 %v4462
  %4648 = vmatpush1.msra.mxu0 %v4461
  %4649 = vmatprep.subr.mxu0 %v4454
  %4650 = vmatpush1.msra.mxu0 %v4453
  %4651 = vmatprep.subr.mxu0 %v4446
  %4652 = vmatpush1.msra.mxu0 %v4445
  %4653 = vmatprep.subr.mxu0 %v4438
  %4654 = vmatpush1.msra.mxu0 %v4437
  %4655 = vmatprep.subr.mxu0 %v4430
  %4656 = vmatpush1.msra.mxu0 %v4429
  %4657 = vmatprep.subr.mxu0 %v4422
  %4658 = vmatpush1.msra.mxu0 %v4421
  %4659 = vmatprep.subr.mxu0 %v4414
  %4660 = vmatpush1.msra.mxu0 %v4413
  %4661 = vmatprep.subr.mxu0 %v4406
  %4662 = vmatpush1.msra.mxu0 %v4405
  %4663 = vmatprep.subr.mxu0 %v4398
  %4664 = vmatpush1.msra.mxu0 %v4397
  %4665 = vmatprep.subr.mxu0 %v4390
  %4666 = vmatpush1.msra.mxu0 %v4389
  %4667 = vmatprep.subr.mxu0 %v4382
  %4668 = vmatpush1.msra.mxu0 %v4381
  %4669 = vmatprep.subr.mxu0 %v4630
  %4670 = vmatpush2.msra.mxu0 %v4629
  %4671 = vmatprep.subr.mxu0 %v4622
  %4672 = vmatpush2.msra.mxu0 %v4621
  %4673 = vmatprep.subr.mxu0 %v4614
  %4674 = vmatpush2.msra.mxu0 %v4613
  %4675 = vmatprep.subr.mxu0 %v4606
  %4676 = vmatpush2.msra.mxu0 %v4605
  %4677 = vmatprep.subr.mxu0 %v4598
  %4678 = vmatpush2.msra.mxu0 %v4597
  %4679 = vmatprep.subr.mxu0 %v4590
  %4680 = vmatpush2.msra.mxu0 %v4589
  %4681 = vmatprep.subr.mxu0 %v4582
  %4682 = vmatpush2.msra.mxu0 %v4581
  %4683 = vmatprep.subr.mxu0 %v4574
  %4684 = vmatpush2.msra.mxu0 %v4573
  %4685 = vmatprep.subr.mxu0 %v4566
  %4686 = vmatpush2.msra.mxu0 %v4565
  %4687 = vmatprep.subr.mxu0 %v4558
  %4688 = vmatpush2.msra.mxu0 %v4557
  %4689 = vmatprep.subr.mxu0 %v4550
  %4690 = vmatpush2.msra.mxu0 %v4549
  %4691 = vmatprep.subr.mxu0 %v4542
  %4692 = vmatpush2.msra.mxu0 %v4541
  %4693 = vmatprep.subr.mxu0 %v4534
  %4694 = vmatpush2.msra.mxu0 %v4533
  %4695 = vmatprep.subr.mxu0 %v4526
  %4696 = vmatpush2.msra.mxu0 %v4525
  %4697 = vmatprep.subr.mxu0 %v4518
  %4698 = vmatpush2.msra.mxu0 %v4517
  %4699 = vmatprep.subr.mxu0 %v4510
  %4700 = vmatpush2.msra.mxu0 %v4509
  %4701 = vmatprep.mubr.f32.mxu0 %v4380
  %4702 = vmatmul.mubr.f32.gmra.mxu0 %v4379
  %v4703 = vpop.f32.mrf.mxu0
  %v4704 = vadd.f32 0.0, %v4703
  %v4705 = vpop.f32.mrf.mxu0
  %v4706 = vadd.f32 0.0, %v4705
  %4707 = vdwg.mxu0
  %4708 = vmatprep.subr.mxu0 %v4504
  %4709 = vmatpush1.msra.mxu0 %v4503
  %4710 = vmatprep.subr.mxu0 %v4496
  %4711 = vmatpush1.msra.mxu0 %v4495
  %4712 = vmatprep.subr.mxu0 %v4488
  %4713 = vmatpush1.msra.mxu0 %v4487
  %4714 = vmatprep.subr.mxu0 %v4480
  %4715 = vmatpush1.msra.mxu0 %v4479
  %4716 = vmatprep.subr.mxu0 %v4472
  %4717 = vmatpush1.msra.mxu0 %v4471
  %4718 = vmatprep.subr.mxu0 %v4464
  %4719 = vmatpush1.msra.mxu0 %v4463
  %4720 = vmatprep.subr.mxu0 %v4456
  %4721 = vmatpush1.msra.mxu0 %v4455
  %4722 = vmatprep.subr.mxu0 %v4448
  %4723 = vmatpush1.msra.mxu0 %v4447
  %4724 = vmatprep.subr.mxu0 %v4440
  %4725 = vmatpush1.msra.mxu0 %v4439
  %4726 = vmatprep.subr.mxu0 %v4432
  %4727 = vmatpush1.msra.mxu0 %v4431
  %4728 = vmatprep.subr.mxu0 %v4424
  %4729 = vmatpush1.msra.mxu0 %v4423
  %4730 = vmatprep.subr.mxu0 %v4416
  %4731 = vmatpush1.msra.mxu0 %v4415
  %4732 = vmatprep.subr.mxu0 %v4408
  %4733 = vmatpush1.msra.mxu0 %v4407
  %4734 = vmatprep.subr.mxu0 %v4400
  %4735 = vmatpush1.msra.mxu0 %v4399
  %4736 = vmatprep.subr.mxu0 %v4392
  %4737 = vmatpush1.msra.mxu0 %v4391
  %4738 = vmatprep.subr.mxu0 %v4384
  %4739 = vmatpush1.msra.mxu0 %v4383
  %4740 = vmatprep.subr.mxu0 %v4632
  %4741 = vmatpush2.msra.mxu0 %v4631
  %4742 = vmatprep.subr.mxu0 %v4624
  %4743 = vmatpush2.msra.mxu0 %v4623
  %4744 = vmatprep.subr.mxu0 %v4616
  %4745 = vmatpush2.msra.mxu0 %v4615
  %4746 = vmatprep.subr.mxu0 %v4608
  %4747 = vmatpush2.msra.mxu0 %v4607
  %4748 = vmatprep.subr.mxu0 %v4600
  %4749 = vmatpush2.msra.mxu0 %v4599
  %4750 = vmatprep.subr.mxu0 %v4592
  %4751 = vmatpush2.msra.mxu0 %v4591
  %4752 = vmatprep.subr.mxu0 %v4584
  %4753 = vmatpush2.msra.mxu0 %v4583
  %4754 = vmatprep.subr.mxu0 %v4576
  %4755 = vmatpush2.msra.mxu0 %v4575
  %4756 = vmatprep.subr.mxu0 %v4568
  %4757 = vmatpush2.msra.mxu0 %v4567
  %4758 = vmatprep.subr.mxu0 %v4560
  %4759 = vmatpush2.msra.mxu0 %v4559
  %4760 = vmatprep.subr.mxu0 %v4552
  %4761 = vmatpush2.msra.mxu0 %v4551
  %4762 = vmatprep.subr.mxu0 %v4544
  %4763 = vmatpush2.msra.mxu0 %v4543
  %4764 = vmatprep.subr.mxu0 %v4536
  %4765 = vmatpush2.msra.mxu0 %v4535
  %4766 = vmatprep.subr.mxu0 %v4528
  %4767 = vmatpush2.msra.mxu0 %v4527
  %4768 = vmatprep.subr.mxu0 %v4520
  %4769 = vmatpush2.msra.mxu0 %v4519
  %4770 = vmatprep.subr.mxu0 %v4512
  %4771 = vmatpush2.msra.mxu0 %v4511
  %4772 = vmatprep.mubr.f32.mxu0 %v4380
  %4773 = vmatmul.mubr.f32.gmra.mxu0 %v4379
  %v4774 = vpop.f32.mrf.mxu0
  %v4775 = vadd.f32 0.0, %v4774
  %v4776 = vpop.f32.mrf.mxu0
  %v4777 = vadd.f32 0.0, %v4776
  %4778 = vdwg.mxu0
  %4779 = vmatprep.subr.mxu0 %v4506
  %4780 = vmatpush1.msra.mxu0 %v4505
  %4781 = vmatprep.subr.mxu0 %v4498
  %4782 = vmatpush1.msra.mxu0 %v4497
  %4783 = vmatprep.subr.mxu0 %v4490
  %4784 = vmatpush1.msra.mxu0 %v4489
  %4785 = vmatprep.subr.mxu0 %v4482
  %4786 = vmatpush1.msra.mxu0 %v4481
  %4787 = vmatprep.subr.mxu0 %v4474
  %4788 = vmatpush1.msra.mxu0 %v4473
  %4789 = vmatprep.subr.mxu0 %v4466
  %4790 = vmatpush1.msra.mxu0 %v4465
  %4791 = vmatprep.subr.mxu0 %v4458
  %4792 = vmatpush1.msra.mxu0 %v4457
  %4793 = vmatprep.subr.mxu0 %v4450
  %4794 = vmatpush1.msra.mxu0 %v4449
  %4795 = vmatprep.subr.mxu0 %v4442
  %4796 = vmatpush1.msra.mxu0 %v4441
  %4797 = vmatprep.subr.mxu0 %v4434
  %4798 = vmatpush1.msra.mxu0 %v4433
  %4799 = vmatprep.subr.mxu0 %v4426
  %4800 = vmatpush1.msra.mxu0 %v4425
  %4801 = vmatprep.subr.mxu0 %v4418
  %4802 = vmatpush1.msra.mxu0 %v4417
  %4803 = vmatprep.subr.mxu0 %v4410
  %4804 = vmatpush1.msra.mxu0 %v4409
  %4805 = vmatprep.subr.mxu0 %v4402
  %4806 = vmatpush1.msra.mxu0 %v4401
  %4807 = vmatprep.subr.mxu0 %v4394
  %4808 = vmatpush1.msra.mxu0 %v4393
  %4809 = vmatprep.subr.mxu0 %v4386
  %4810 = vmatpush1.msra.mxu0 %v4385
  %4811 = vmatprep.subr.mxu0 %v4634
  %4812 = vmatpush2.msra.mxu0 %v4633
  %4813 = vmatprep.subr.mxu0 %v4626
  %4814 = vmatpush2.msra.mxu0 %v4625
  %4815 = vmatprep.subr.mxu0 %v4618
  %4816 = vmatpush2.msra.mxu0 %v4617
  %4817 = vmatprep.subr.mxu0 %v4610
  %4818 = vmatpush2.msra.mxu0 %v4609
  %4819 = vmatprep.subr.mxu0 %v4602
  %4820 = vmatpush2.msra.mxu0 %v4601
  %4821 = vmatprep.subr.mxu0 %v4594
  %4822 = vmatpush2.msra.mxu0 %v4593
  %4823 = vmatprep.subr.mxu0 %v4586
  %4824 = vmatpush2.msra.mxu0 %v4585
  %4825 = vmatprep.subr.mxu0 %v4578
  %4826 = vmatpush2.msra.mxu0 %v4577
  %4827 = vmatprep.subr.mxu0 %v4570
  %4828 = vmatpush2.msra.mxu0 %v4569
  %4829 = vmatprep.subr.mxu0 %v4562
  %4830 = vmatpush2.msra.mxu0 %v4561
  %4831 = vmatprep.subr.mxu0 %v4554
  %4832 = vmatpush2.msra.mxu0 %v4553
  %4833 = vmatprep.subr.mxu0 %v4546
  %4834 = vmatpush2.msra.mxu0 %v4545
  %4835 = vmatprep.subr.mxu0 %v4538
  %4836 = vmatpush2.msra.mxu0 %v4537
  %4837 = vmatprep.subr.mxu0 %v4530
  %4838 = vmatpush2.msra.mxu0 %v4529
  %4839 = vmatprep.subr.mxu0 %v4522
  %4840 = vmatpush2.msra.mxu0 %v4521
  %4841 = vmatprep.subr.mxu0 %v4514
  %4842 = vmatpush2.msra.mxu0 %v4513
  %4843 = vmatprep.mubr.f32.mxu0 %v4380
  %4844 = vmatmul.mubr.f32.gmra.mxu0 %v4379
  %v4845 = vpop.f32.mrf.mxu0
  %v4846 = vadd.f32 0.0, %v4845
  %v4847 = vpop.f32.mrf.mxu0
  %v4848 = vadd.f32 0.0, %v4847
  %4849 = vdwg.mxu0
  %4850 = vmatprep.subr.mxu0 %v4508
  %4851 = vmatpush1.msra.mxu0 %v4507
  %4852 = vmatprep.subr.mxu0 %v4500
  %4853 = vmatpush1.msra.mxu0 %v4499
  %4854 = vmatprep.subr.mxu0 %v4492
  %4855 = vmatpush1.msra.mxu0 %v4491
  %4856 = vmatprep.subr.mxu0 %v4484
  %4857 = vmatpush1.msra.mxu0 %v4483
  %4858 = vmatprep.subr.mxu0 %v4476
  %4859 = vmatpush1.msra.mxu0 %v4475
  %4860 = vmatprep.subr.mxu0 %v4468
  %4861 = vmatpush1.msra.mxu0 %v4467
  %4862 = vmatprep.subr.mxu0 %v4460
  %4863 = vmatpush1.msra.mxu0 %v4459
  %4864 = vmatprep.subr.mxu0 %v4452
  %4865 = vmatpush1.msra.mxu0 %v4451
  %4866 = vmatprep.subr.mxu0 %v4444
  %4867 = vmatpush1.msra.mxu0 %v4443
  %4868 = vmatprep.subr.mxu0 %v4436
  %4869 = vmatpush1.msra.mxu0 %v4435
  %4870 = vmatprep.subr.mxu0 %v4428
  %4871 = vmatpush1.msra.mxu0 %v4427
  %4872 = vmatprep.subr.mxu0 %v4420
  %4873 = vmatpush1.msra.mxu0 %v4419
  %4874 = vmatprep.subr.mxu0 %v4412
  %4875 = vmatpush1.msra.mxu0 %v4411
  %4876 = vmatprep.subr.mxu0 %v4404
  %4877 = vmatpush1.msra.mxu0 %v4403
  %4878 = vmatprep.subr.mxu0 %v4396
  %4879 = vmatpush1.msra.mxu0 %v4395
  %4880 = vmatprep.subr.mxu0 %v4388
  %4881 = vmatpush1.msra.mxu0 %v4387
  %4882 = vmatprep.subr.mxu0 %v4636
  %4883 = vmatpush2.msra.mxu0 %v4635
  %4884 = vmatprep.subr.mxu0 %v4628
  %4885 = vmatpush2.msra.mxu0 %v4627
  %4886 = vmatprep.subr.mxu0 %v4620
  %4887 = vmatpush2.msra.mxu0 %v4619
  %4888 = vmatprep.subr.mxu0 %v4612
  %4889 = vmatpush2.msra.mxu0 %v4611
  %4890 = vmatprep.subr.mxu0 %v4604
  %4891 = vmatpush2.msra.mxu0 %v4603
  %4892 = vmatprep.subr.mxu0 %v4596
  %4893 = vmatpush2.msra.mxu0 %v4595
  %4894 = vmatprep.subr.mxu0 %v4588
  %4895 = vmatpush2.msra.mxu0 %v4587
  %4896 = vmatprep.subr.mxu0 %v4580
  %4897 = vmatpush2.msra.mxu0 %v4579
  %4898 = vmatprep.subr.mxu0 %v4572
  %4899 = vmatpush2.msra.mxu0 %v4571
  %4900 = vmatprep.subr.mxu0 %v4564
  %4901 = vmatpush2.msra.mxu0 %v4563
  %4902 = vmatprep.subr.mxu0 %v4556
  %4903 = vmatpush2.msra.mxu0 %v4555
  %4904 = vmatprep.subr.mxu0 %v4548
  %4905 = vmatpush2.msra.mxu0 %v4547
  %4906 = vmatprep.subr.mxu0 %v4540
  %4907 = vmatpush2.msra.mxu0 %v4539
  %4908 = vmatprep.subr.mxu0 %v4532
  %4909 = vmatpush2.msra.mxu0 %v4531
  %4910 = vmatprep.subr.mxu0 %v4524
  %4911 = vmatpush2.msra.mxu0 %v4523
  %4912 = vmatprep.subr.mxu0 %v4516
  %4913 = vmatpush2.msra.mxu0 %v4515
  %4914 = vmatprep.mubr.f32.mxu0 %v4380
  %4915 = vmatmul.mubr.f32.gmra.mxu0 %v4379
  %v4916 = vpop.f32.mrf.mxu0
  %v4917 = vadd.f32 0.0, %v4916
  %v4918 = vpop.f32.mrf.mxu0
  %v4919 = vadd.f32 0.0, %v4918
  %4920 = vdwg.mxu0
  %v4921 = vadd.f32 %v4371, %v4704
  %v4922 = vadd.f32 %v4372, %v4706
  %v4923 = vadd.f32 %v4373, %v4775
  %v4924 = vadd.f32 %v4374, %v4777
  %v4925 = vadd.f32 %v4375, %v4846
  %v4926 = vadd.f32 %v4376, %v4848
  %v4927 = vadd.f32 %v4377, %v4917
  %v4928 = vadd.f32 %v4378, %v4919
  %v4929 = vxor.u32 %v4921, 2147483648
  %v4930 = vxor.u32 %v4922, 2147483648
  %v4931 = vmul.f32 %v4929, 1.442695
  %v4932 = vpow.pop %v4931
  %v4933 = vmul.f32 %v4930, 1.442695
  %v4934 = vpow.pop %v4933
  %v4935 = vadd.f32 %v4932, 1.0
  %v4936 = vadd.f32 %v4934, 1.0
  %v4937 = vrcp.pop %v4935
  %v4938 = vmul.f32 1.0, %v4937
  %v4939 = vrcp.pop %v4936
  %v4940 = vmul.f32 1.0, %v4939
  %v4941 = vxor.u32 %v4923, 2147483648
  %v4942 = vxor.u32 %v4924, 2147483648
  %v4943 = vmul.f32 %v4941, 1.442695
  %v4944 = vpow.pop %v4943
  %v4945 = vmul.f32 %v4942, 1.442695
  %v4946 = vpow.pop %v4945
  %v4947 = vadd.f32 %v4944, 1.0
  %v4948 = vadd.f32 %v4946, 1.0
  %v4949 = vrcp.pop %v4947
  %v4950 = vmul.f32 1.0, %v4949
  %v4951 = vrcp.pop %v4948
  %v4952 = vmul.f32 1.0, %v4951
  %v4953 = vtanh.pop %v4925
  %v4954 = vtanh.pop %v4926
  %v4955 = vxor.u32 %v4927, 2147483648
  %v4956 = vxor.u32 %v4928, 2147483648
  %v4957 = vmul.f32 %v4955, 1.442695
  %v4958 = vpow.pop %v4957
  %v4959 = vmul.f32 %v4956, 1.442695
  %v4960 = vpow.pop %v4959
  %v4961 = vadd.f32 %v4958, 1.0
  %v4962 = vadd.f32 %v4960, 1.0
  %v4963 = vrcp.pop %v4961
  %v4964 = vmul.f32 1.0, %v4963
  %v4965 = vrcp.pop %v4962
  %v4966 = vmul.f32 1.0, %v4965
  %v4967 = vld [vmem:[%s5] sm:$0xff]
  %v4968 = vld [vmem:[%s5 + $0x8] sm:$0xff]
  %v4969 = vmul.f32 %v4950, %v4967
  %v4970 = vmul.f32 %v4952, %v4968
  %v4971 = vmul.f32 %v4938, %v4953
  %v4972 = vmul.f32 %v4940, %v4954
  %v4973 = vadd.f32 %v4969, %v4971
  %v4974 = vadd.f32 %v4970, %v4972
  %4975 = vst [vmem:[%s5] sm:$0xff] %v4973
  %4976 = vst [vmem:[%s5 + $0x8] sm:$0xff] %v4974
  %v4977 = vtanh.pop %v4973
  %v4978 = vtanh.pop %v4974
  %v4979 = vmul.f32 %v4964, %v4977
  %v4980 = vmul.f32 %v4966, %v4978
  %4981 = vst [vmem:[%s4] sm:$0xff] %v4979
  %4982 = vst [vmem:[%s4 + $0x8] sm:$0xff] %v4980
  %s4983 = smul.u32 7, 8
  %s4984 = smul.addr %s4983, 8
  %s4985 = scalar_lea.vmem [#allocation2], %s4984
  %v4986 = vld [vmem:[%s4985] sm:$0xff]
  %v4987 = vld [vmem:[%s4985 + $0x8] sm:$0xff]
  %v4988 = vld [vmem:[%s4985 + $0x10] sm:$0xff]
  %v4989 = vld [vmem:[%s4985 + $0x18] sm:$0xff]
  %v4990 = vld [vmem:[%s4985 + $0x20] sm:$0xff]
  %v4991 = vld [vmem:[%s4985 + $0x28] sm:$0xff]
  %v4992 = vld [vmem:[%s4985 + $0x30] sm:$0xff]
  %v4993 = vld [vmem:[%s4985 + $0x38] sm:$0xff]
  %v4994 = vld [vmem:[%s4] sm:$0xff]
  %v4995 = vld [vmem:[%s4 + $0x8] sm:$0xff]
  %v4996 = vld [vmem:[%s2] sm:$0xff]
  %v4997 = vld [vmem:[%s2 + $0x8] sm:$0xff]
  %v4998 = vld [vmem:[%s2 + $0x10] sm:$0xff]
  %v4999 = vld [vmem:[%s2 + $0x18] sm:$0xff]
  %v5000 = vld [vmem:[%s2 + $0x20] sm:$0xff]
  %v5001 = vld [vmem:[%s2 + $0x28] sm:$0xff]
  %v5002 = vld [vmem:[%s2 + $0x30] sm:$0xff]
  %v5003 = vld [vmem:[%s2 + $0x38] sm:$0xff]
  %v5004 = vld [vmem:[%s2 + $0x40] sm:$0xff]
  %v5005 = vld [vmem:[%s2 + $0x48] sm:$0xff]
  %v5006 = vld [vmem:[%s2 + $0x50] sm:$0xff]
  %v5007 = vld [vmem:[%s2 + $0x58] sm:$0xff]
  %v5008 = vld [vmem:[%s2 + $0x60] sm:$0xff]
  %v5009 = vld [vmem:[%s2 + $0x68] sm:$0xff]
  %v5010 = vld [vmem:[%s2 + $0x70] sm:$0xff]
  %v5011 = vld [vmem:[%s2 + $0x78] sm:$0xff]
  %v5012 = vld [vmem:[%s2 + $0x80] sm:$0xff]
  %v5013 = vld [vmem:[%s2 + $0x88] sm:$0xff]
  %v5014 = vld [vmem:[%s2 + $0x90] sm:$0xff]
  %v5015 = vld [vmem:[%s2 + $0x98] sm:$0xff]
  %v5016 = vld [vmem:[%s2 + $0xa0] sm:$0xff]
  %v5017 = vld [vmem:[%s2 + $0xa8] sm:$0xff]
  %v5018 = vld [vmem:[%s2 + $0xb0] sm:$0xff]
  %v5019 = vld [vmem:[%s2 + $0xb8] sm:$0xff]
  %v5020 = vld [vmem:[%s2 + $0xc0] sm:$0xff]
  %v5021 = vld [vmem:[%s2 + $0xc8] sm:$0xff]
  %v5022 = vld [vmem:[%s2 + $0xd0] sm:$0xff]
  %v5023 = vld [vmem:[%s2 + $0xd8] sm:$0xff]
  %v5024 = vld [vmem:[%s2 + $0xe0] sm:$0xff]
  %v5025 = vld [vmem:[%s2 + $0xe8] sm:$0xff]
  %v5026 = vld [vmem:[%s2 + $0xf0] sm:$0xff]
  %v5027 = vld [vmem:[%s2 + $0xf8] sm:$0xff]
  %v5028 = vld [vmem:[%s2 + $0x100] sm:$0xff]
  %v5029 = vld [vmem:[%s2 + $0x108] sm:$0xff]
  %v5030 = vld [vmem:[%s2 + $0x110] sm:$0xff]
  %v5031 = vld [vmem:[%s2 + $0x118] sm:$0xff]
  %v5032 = vld [vmem:[%s2 + $0x120] sm:$0xff]
  %v5033 = vld [vmem:[%s2 + $0x128] sm:$0xff]
  %v5034 = vld [vmem:[%s2 + $0x130] sm:$0xff]
  %v5035 = vld [vmem:[%s2 + $0x138] sm:$0xff]
  %v5036 = vld [vmem:[%s2 + $0x140] sm:$0xff]
  %v5037 = vld [vmem:[%s2 + $0x148] sm:$0xff]
  %v5038 = vld [vmem:[%s2 + $0x150] sm:$0xff]
  %v5039 = vld [vmem:[%s2 + $0x158] sm:$0xff]
  %v5040 = vld [vmem:[%s2 + $0x160] sm:$0xff]
  %v5041 = vld [vmem:[%s2 + $0x168] sm:$0xff]
  %v5042 = vld [vmem:[%s2 + $0x170] sm:$0xff]
  %v5043 = vld [vmem:[%s2 + $0x178] sm:$0xff]
  %v5044 = vld [vmem:[%s2 + $0x180] sm:$0xff]
  %v5045 = vld [vmem:[%s2 + $0x188] sm:$0xff]
  %v5046 = vld [vmem:[%s2 + $0x190] sm:$0xff]
  %v5047 = vld [vmem:[%s2 + $0x198] sm:$0xff]
  %v5048 = vld [vmem:[%s2 + $0x1a0] sm:$0xff]
  %v5049 = vld [vmem:[%s2 + $0x1a8] sm:$0xff]
  %v5050 = vld [vmem:[%s2 + $0x1b0] sm:$0xff]
  %v5051 = vld [vmem:[%s2 + $0x1b8] sm:$0xff]
  %v5052 = vld [vmem:[%s2 + $0x1c0] sm:$0xff]
  %v5053 = vld [vmem:[%s2 + $0x1c8] sm:$0xff]
  %v5054 = vld [vmem:[%s2 + $0x1d0] sm:$0xff]
  %v5055 = vld [vmem:[%s2 + $0x1d8] sm:$0xff]
  %v5056 = vld [vmem:[%s2 + $0x1e0] sm:$0xff]
  %v5057 = vld [vmem:[%s2 + $0x1e8] sm:$0xff]
  %v5058 = vld [vmem:[%s2 + $0x1f0] sm:$0xff]
  %v5059 = vld [vmem:[%s2 + $0x1f8] sm:$0xff]
  %v5060 = vld [vmem:[%s2 + $0x200] sm:$0xff]
  %v5061 = vld [vmem:[%s2 + $0x208] sm:$0xff]
  %v5062 = vld [vmem:[%s2 + $0x210] sm:$0xff]
  %v5063 = vld [vmem:[%s2 + $0x218] sm:$0xff]
  %v5064 = vld [vmem:[%s2 + $0x220] sm:$0xff]
  %v5065 = vld [vmem:[%s2 + $0x228] sm:$0xff]
  %v5066 = vld [vmem:[%s2 + $0x230] sm:$0xff]
  %v5067 = vld [vmem:[%s2 + $0x238] sm:$0xff]
  %v5068 = vld [vmem:[%s2 + $0x240] sm:$0xff]
  %v5069 = vld [vmem:[%s2 + $0x248] sm:$0xff]
  %v5070 = vld [vmem:[%s2 + $0x250] sm:$0xff]
  %v5071 = vld [vmem:[%s2 + $0x258] sm:$0xff]
  %v5072 = vld [vmem:[%s2 + $0x260] sm:$0xff]
  %v5073 = vld [vmem:[%s2 + $0x268] sm:$0xff]
  %v5074 = vld [vmem:[%s2 + $0x270] sm:$0xff]
  %v5075 = vld [vmem:[%s2 + $0x278] sm:$0xff]
  %v5076 = vld [vmem:[%s2 + $0x280] sm:$0xff]
  %v5077 = vld [vmem:[%s2 + $0x288] sm:$0xff]
  %v5078 = vld [vmem:[%s2 + $0x290] sm:$0xff]
  %v5079 = vld [vmem:[%s2 + $0x298] sm:$0xff]
  %v5080 = vld [vmem:[%s2 + $0x2a0] sm:$0xff]
  %v5081 = vld [vmem:[%s2 + $0x2a8] sm:$0xff]
  %v5082 = vld [vmem:[%s2 + $0x2b0] sm:$0xff]
  %v5083 = vld [vmem:[%s2 + $0x2b8] sm:$0xff]
  %v5084 = vld [vmem:[%s2 + $0x2c0] sm:$0xff]
  %v5085 = vld [vmem:[%s2 + $0x2c8] sm:$0xff]
  %v5086 = vld [vmem:[%s2 + $0x2d0] sm:$0xff]
  %v5087 = vld [vmem:[%s2 + $0x2d8] sm:$0xff]
  %v5088 = vld [vmem:[%s2 + $0x2e0] sm:$0xff]
  %v5089 = vld [vmem:[%s2 + $0x2e8] sm:$0xff]
  %v5090 = vld [vmem:[%s2 + $0x2f0] sm:$0xff]
  %v5091 = vld [vmem:[%s2 + $0x2f8] sm:$0xff]
  %v5092 = vld [vmem:[%s2 + $0x300] sm:$0xff]
  %v5093 = vld [vmem:[%s2 + $0x308] sm:$0xff]
  %v5094 = vld [vmem:[%s2 + $0x310] sm:$0xff]
  %v5095 = vld [vmem:[%s2 + $0x318] sm:$0xff]
  %v5096 = vld [vmem:[%s2 + $0x320] sm:$0xff]
  %v5097 = vld [vmem:[%s2 + $0x328] sm:$0xff]
  %v5098 = vld [vmem:[%s2 + $0x330] sm:$0xff]
  %v5099 = vld [vmem:[%s2 + $0x338] sm:$0xff]
  %v5100 = vld [vmem:[%s2 + $0x340] sm:$0xff]
  %v5101 = vld [vmem:[%s2 + $0x348] sm:$0xff]
  %v5102 = vld [vmem:[%s2 + $0x350] sm:$0xff]
  %v5103 = vld [vmem:[%s2 + $0x358] sm:$0xff]
  %v5104 = vld [vmem:[%s2 + $0x360] sm:$0xff]
  %v5105 = vld [vmem:[%s2 + $0x368] sm:$0xff]
  %v5106 = vld [vmem:[%s2 + $0x370] sm:$0xff]
  %v5107 = vld [vmem:[%s2 + $0x378] sm:$0xff]
  %v5108 = vld [vmem:[%s2 + $0x380] sm:$0xff]
  %v5109 = vld [vmem:[%s2 + $0x388] sm:$0xff]
  %v5110 = vld [vmem:[%s2 + $0x390] sm:$0xff]
  %v5111 = vld [vmem:[%s2 + $0x398] sm:$0xff]
  %v5112 = vld [vmem:[%s2 + $0x3a0] sm:$0xff]
  %v5113 = vld [vmem:[%s2 + $0x3a8] sm:$0xff]
  %v5114 = vld [vmem:[%s2 + $0x3b0] sm:$0xff]
  %v5115 = vld [vmem:[%s2 + $0x3b8] sm:$0xff]
  %v5116 = vld [vmem:[%s2 + $0x3c0] sm:$0xff]
  %v5117 = vld [vmem:[%s2 + $0x3c8] sm:$0xff]
  %v5118 = vld [vmem:[%s2 + $0x3d0] sm:$0xff]
  %v5119 = vld [vmem:[%s2 + $0x3d8] sm:$0xff]
  %v5120 = vld [vmem:[%s2 + $0x3e0] sm:$0xff]
  %v5121 = vld [vmem:[%s2 + $0x3e8] sm:$0xff]
  %v5122 = vld [vmem:[%s2 + $0x3f0] sm:$0xff]
  %v5123 = vld [vmem:[%s2 + $0x3f8] sm:$0xff]
  %v5124 = vld [vmem:[%s2 + $0x400] sm:$0xff]
  %v5125 = vld [vmem:[%s2 + $0x408] sm:$0xff]
  %v5126 = vld [vmem:[%s2 + $0x410] sm:$0xff]
  %v5127 = vld [vmem:[%s2 + $0x418] sm:$0xff]
  %v5128 = vld [vmem:[%s2 + $0x420] sm:$0xff]
  %v5129 = vld [vmem:[%s2 + $0x428] sm:$0xff]
  %v5130 = vld [vmem:[%s2 + $0x430] sm:$0xff]
  %v5131 = vld [vmem:[%s2 + $0x438] sm:$0xff]
  %v5132 = vld [vmem:[%s2 + $0x440] sm:$0xff]
  %v5133 = vld [vmem:[%s2 + $0x448] sm:$0xff]
  %v5134 = vld [vmem:[%s2 + $0x450] sm:$0xff]
  %v5135 = vld [vmem:[%s2 + $0x458] sm:$0xff]
  %v5136 = vld [vmem:[%s2 + $0x460] sm:$0xff]
  %v5137 = vld [vmem:[%s2 + $0x468] sm:$0xff]
  %v5138 = vld [vmem:[%s2 + $0x470] sm:$0xff]
  %v5139 = vld [vmem:[%s2 + $0x478] sm:$0xff]
  %v5140 = vld [vmem:[%s2 + $0x480] sm:$0xff]
  %v5141 = vld [vmem:[%s2 + $0x488] sm:$0xff]
  %v5142 = vld [vmem:[%s2 + $0x490] sm:$0xff]
  %v5143 = vld [vmem:[%s2 + $0x498] sm:$0xff]
  %v5144 = vld [vmem:[%s2 + $0x4a0] sm:$0xff]
  %v5145 = vld [vmem:[%s2 + $0x4a8] sm:$0xff]
  %v5146 = vld [vmem:[%s2 + $0x4b0] sm:$0xff]
  %v5147 = vld [vmem:[%s2 + $0x4b8] sm:$0xff]
  %v5148 = vld [vmem:[%s2 + $0x4c0] sm:$0xff]
  %v5149 = vld [vmem:[%s2 + $0x4c8] sm:$0xff]
  %v5150 = vld [vmem:[%s2 + $0x4d0] sm:$0xff]
  %v5151 = vld [vmem:[%s2 + $0x4d8] sm:$0xff]
  %v5152 = vld [vmem:[%s2 + $0x4e0] sm:$0xff]
  %v5153 = vld [vmem:[%s2 + $0x4e8] sm:$0xff]
  %v5154 = vld [vmem:[%s2 + $0x4f0] sm:$0xff]
  %v5155 = vld [vmem:[%s2 + $0x4f8] sm:$0xff]
  %v5156 = vld [vmem:[%s2 + $0x500] sm:$0xff]
  %v5157 = vld [vmem:[%s2 + $0x508] sm:$0xff]
  %v5158 = vld [vmem:[%s2 + $0x510] sm:$0xff]
  %v5159 = vld [vmem:[%s2 + $0x518] sm:$0xff]
  %v5160 = vld [vmem:[%s2 + $0x520] sm:$0xff]
  %v5161 = vld [vmem:[%s2 + $0x528] sm:$0xff]
  %v5162 = vld [vmem:[%s2 + $0x530] sm:$0xff]
  %v5163 = vld [vmem:[%s2 + $0x538] sm:$0xff]
  %v5164 = vld [vmem:[%s2 + $0x540] sm:$0xff]
  %v5165 = vld [vmem:[%s2 + $0x548] sm:$0xff]
  %v5166 = vld [vmem:[%s2 + $0x550] sm:$0xff]
  %v5167 = vld [vmem:[%s2 + $0x558] sm:$0xff]
  %v5168 = vld [vmem:[%s2 + $0x560] sm:$0xff]
  %v5169 = vld [vmem:[%s2 + $0x568] sm:$0xff]
  %v5170 = vld [vmem:[%s2 + $0x570] sm:$0xff]
  %v5171 = vld [vmem:[%s2 + $0x578] sm:$0xff]
  %v5172 = vld [vmem:[%s2 + $0x580] sm:$0xff]
  %v5173 = vld [vmem:[%s2 + $0x588] sm:$0xff]
  %v5174 = vld [vmem:[%s2 + $0x590] sm:$0xff]
  %v5175 = vld [vmem:[%s2 + $0x598] sm:$0xff]
  %v5176 = vld [vmem:[%s2 + $0x5a0] sm:$0xff]
  %v5177 = vld [vmem:[%s2 + $0x5a8] sm:$0xff]
  %v5178 = vld [vmem:[%s2 + $0x5b0] sm:$0xff]
  %v5179 = vld [vmem:[%s2 + $0x5b8] sm:$0xff]
  %v5180 = vld [vmem:[%s2 + $0x5c0] sm:$0xff]
  %v5181 = vld [vmem:[%s2 + $0x5c8] sm:$0xff]
  %v5182 = vld [vmem:[%s2 + $0x5d0] sm:$0xff]
  %v5183 = vld [vmem:[%s2 + $0x5d8] sm:$0xff]
  %v5184 = vld [vmem:[%s2 + $0x5e0] sm:$0xff]
  %v5185 = vld [vmem:[%s2 + $0x5e8] sm:$0xff]
  %v5186 = vld [vmem:[%s2 + $0x5f0] sm:$0xff]
  %v5187 = vld [vmem:[%s2 + $0x5f8] sm:$0xff]
  %v5188 = vld [vmem:[%s2 + $0x600] sm:$0xff]
  %v5189 = vld [vmem:[%s2 + $0x608] sm:$0xff]
  %v5190 = vld [vmem:[%s2 + $0x610] sm:$0xff]
  %v5191 = vld [vmem:[%s2 + $0x618] sm:$0xff]
  %v5192 = vld [vmem:[%s2 + $0x620] sm:$0xff]
  %v5193 = vld [vmem:[%s2 + $0x628] sm:$0xff]
  %v5194 = vld [vmem:[%s2 + $0x630] sm:$0xff]
  %v5195 = vld [vmem:[%s2 + $0x638] sm:$0xff]
  %v5196 = vld [vmem:[%s2 + $0x640] sm:$0xff]
  %v5197 = vld [vmem:[%s2 + $0x648] sm:$0xff]
  %v5198 = vld [vmem:[%s2 + $0x650] sm:$0xff]
  %v5199 = vld [vmem:[%s2 + $0x658] sm:$0xff]
  %v5200 = vld [vmem:[%s2 + $0x660] sm:$0xff]
  %v5201 = vld [vmem:[%s2 + $0x668] sm:$0xff]
  %v5202 = vld [vmem:[%s2 + $0x670] sm:$0xff]
  %v5203 = vld [vmem:[%s2 + $0x678] sm:$0xff]
  %v5204 = vld [vmem:[%s2 + $0x680] sm:$0xff]
  %v5205 = vld [vmem:[%s2 + $0x688] sm:$0xff]
  %v5206 = vld [vmem:[%s2 + $0x690] sm:$0xff]
  %v5207 = vld [vmem:[%s2 + $0x698] sm:$0xff]
  %v5208 = vld [vmem:[%s2 + $0x6a0] sm:$0xff]
  %v5209 = vld [vmem:[%s2 + $0x6a8] sm:$0xff]
  %v5210 = vld [vmem:[%s2 + $0x6b0] sm:$0xff]
  %v5211 = vld [vmem:[%s2 + $0x6b8] sm:$0xff]
  %v5212 = vld [vmem:[%s2 + $0x6c0] sm:$0xff]
  %v5213 = vld [vmem:[%s2 + $0x6c8] sm:$0xff]
  %v5214 = vld [vmem:[%s2 + $0x6d0] sm:$0xff]
  %v5215 = vld [vmem:[%s2 + $0x6d8] sm:$0xff]
  %v5216 = vld [vmem:[%s2 + $0x6e0] sm:$0xff]
  %v5217 = vld [vmem:[%s2 + $0x6e8] sm:$0xff]
  %v5218 = vld [vmem:[%s2 + $0x6f0] sm:$0xff]
  %v5219 = vld [vmem:[%s2 + $0x6f8] sm:$0xff]
  %v5220 = vld [vmem:[%s2 + $0x700] sm:$0xff]
  %v5221 = vld [vmem:[%s2 + $0x708] sm:$0xff]
  %v5222 = vld [vmem:[%s2 + $0x710] sm:$0xff]
  %v5223 = vld [vmem:[%s2 + $0x718] sm:$0xff]
  %v5224 = vld [vmem:[%s2 + $0x720] sm:$0xff]
  %v5225 = vld [vmem:[%s2 + $0x728] sm:$0xff]
  %v5226 = vld [vmem:[%s2 + $0x730] sm:$0xff]
  %v5227 = vld [vmem:[%s2 + $0x738] sm:$0xff]
  %v5228 = vld [vmem:[%s2 + $0x740] sm:$0xff]
  %v5229 = vld [vmem:[%s2 + $0x748] sm:$0xff]
  %v5230 = vld [vmem:[%s2 + $0x750] sm:$0xff]
  %v5231 = vld [vmem:[%s2 + $0x758] sm:$0xff]
  %v5232 = vld [vmem:[%s2 + $0x760] sm:$0xff]
  %v5233 = vld [vmem:[%s2 + $0x768] sm:$0xff]
  %v5234 = vld [vmem:[%s2 + $0x770] sm:$0xff]
  %v5235 = vld [vmem:[%s2 + $0x778] sm:$0xff]
  %v5236 = vld [vmem:[%s2 + $0x780] sm:$0xff]
  %v5237 = vld [vmem:[%s2 + $0x788] sm:$0xff]
  %v5238 = vld [vmem:[%s2 + $0x790] sm:$0xff]
  %v5239 = vld [vmem:[%s2 + $0x798] sm:$0xff]
  %v5240 = vld [vmem:[%s2 + $0x7a0] sm:$0xff]
  %v5241 = vld [vmem:[%s2 + $0x7a8] sm:$0xff]
  %v5242 = vld [vmem:[%s2 + $0x7b0] sm:$0xff]
  %v5243 = vld [vmem:[%s2 + $0x7b8] sm:$0xff]
  %v5244 = vld [vmem:[%s2 + $0x7c0] sm:$0xff]
  %v5245 = vld [vmem:[%s2 + $0x7c8] sm:$0xff]
  %v5246 = vld [vmem:[%s2 + $0x7d0] sm:$0xff]
  %v5247 = vld [vmem:[%s2 + $0x7d8] sm:$0xff]
  %v5248 = vld [vmem:[%s2 + $0x7e0] sm:$0xff]
  %v5249 = vld [vmem:[%s2 + $0x7e8] sm:$0xff]
  %v5250 = vld [vmem:[%s2 + $0x7f0] sm:$0xff]
  %v5251 = vld [vmem:[%s2 + $0x7f8] sm:$0xff]
  %5252 = vmatprep.subr.mxu0 %v5117
  %5253 = vmatpush1.msra.mxu0 %v5116
  %5254 = vmatprep.subr.mxu0 %v5109
  %5255 = vmatpush1.msra.mxu0 %v5108
  %5256 = vmatprep.subr.mxu0 %v5101
  %5257 = vmatpush1.msra.mxu0 %v5100
  %5258 = vmatprep.subr.mxu0 %v5093
  %5259 = vmatpush1.msra.mxu0 %v5092
  %5260 = vmatprep.subr.mxu0 %v5085
  %5261 = vmatpush1.msra.mxu0 %v5084
  %5262 = vmatprep.subr.mxu0 %v5077
  %5263 = vmatpush1.msra.mxu0 %v5076
  %5264 = vmatprep.subr.mxu0 %v5069
  %5265 = vmatpush1.msra.mxu0 %v5068
  %5266 = vmatprep.subr.mxu0 %v5061
  %5267 = vmatpush1.msra.mxu0 %v5060
  %5268 = vmatprep.subr.mxu0 %v5053
  %5269 = vmatpush1.msra.mxu0 %v5052
  %5270 = vmatprep.subr.mxu0 %v5045
  %5271 = vmatpush1.msra.mxu0 %v5044
  %5272 = vmatprep.subr.mxu0 %v5037
  %5273 = vmatpush1.msra.mxu0 %v5036
  %5274 = vmatprep.subr.mxu0 %v5029
  %5275 = vmatpush1.msra.mxu0 %v5028
  %5276 = vmatprep.subr.mxu0 %v5021
  %5277 = vmatpush1.msra.mxu0 %v5020
  %5278 = vmatprep.subr.mxu0 %v5013
  %5279 = vmatpush1.msra.mxu0 %v5012
  %5280 = vmatprep.subr.mxu0 %v5005
  %5281 = vmatpush1.msra.mxu0 %v5004
  %5282 = vmatprep.subr.mxu0 %v4997
  %5283 = vmatpush1.msra.mxu0 %v4996
  %5284 = vmatprep.subr.mxu0 %v5245
  %5285 = vmatpush2.msra.mxu0 %v5244
  %5286 = vmatprep.subr.mxu0 %v5237
  %5287 = vmatpush2.msra.mxu0 %v5236
  %5288 = vmatprep.subr.mxu0 %v5229
  %5289 = vmatpush2.msra.mxu0 %v5228
  %5290 = vmatprep.subr.mxu0 %v5221
  %5291 = vmatpush2.msra.mxu0 %v5220
  %5292 = vmatprep.subr.mxu0 %v5213
  %5293 = vmatpush2.msra.mxu0 %v5212
  %5294 = vmatprep.subr.mxu0 %v5205
  %5295 = vmatpush2.msra.mxu0 %v5204
  %5296 = vmatprep.subr.mxu0 %v5197
  %5297 = vmatpush2.msra.mxu0 %v5196
  %5298 = vmatprep.subr.mxu0 %v5189
  %5299 = vmatpush2.msra.mxu0 %v5188
  %5300 = vmatprep.subr.mxu0 %v5181
  %5301 = vmatpush2.msra.mxu0 %v5180
  %5302 = vmatprep.subr.mxu0 %v5173
  %5303 = vmatpush2.msra.mxu0 %v5172
  %5304 = vmatprep.subr.mxu0 %v5165
  %5305 = vmatpush2.msra.mxu0 %v5164
  %5306 = vmatprep.subr.mxu0 %v5157
  %5307 = vmatpush2.msra.mxu0 %v5156
  %5308 = vmatprep.subr.mxu0 %v5149
  %5309 = vmatpush2.msra.mxu0 %v5148
  %5310 = vmatprep.subr.mxu0 %v5141
  %5311 = vmatpush2.msra.mxu0 %v5140
  %5312 = vmatprep.subr.mxu0 %v5133
  %5313 = vmatpush2.msra.mxu0 %v5132
  %5314 = vmatprep.subr.mxu0 %v5125
  %5315 = vmatpush2.msra.mxu0 %v5124
  %5316 = vmatprep.mubr.f32.mxu0 %v4995
  %5317 = vmatmul.mubr.f32.gmra.mxu0 %v4994
  %v5318 = vpop.f32.mrf.mxu0
  %v5319 = vadd.f32 0.0, %v5318
  %v5320 = vpop.f32.mrf.mxu0
  %v5321 = vadd.f32 0.0, %v5320
  %5322 = vdwg.mxu0
  %5323 = vmatprep.subr.mxu0 %v5119
  %5324 = vmatpush1.msra.mxu0 %v5118
  %5325 = vmatprep.subr.mxu0 %v5111
  %5326 = vmatpush1.msra.mxu0 %v5110
  %5327 = vmatprep.subr.mxu0 %v5103
  %5328 = vmatpush1.msra.mxu0 %v5102
  %5329 = vmatprep.subr.mxu0 %v5095
  %5330 = vmatpush1.msra.mxu0 %v5094
  %5331 = vmatprep.subr.mxu0 %v5087
  %5332 = vmatpush1.msra.mxu0 %v5086
  %5333 = vmatprep.subr.mxu0 %v5079
  %5334 = vmatpush1.msra.mxu0 %v5078
  %5335 = vmatprep.subr.mxu0 %v5071
  %5336 = vmatpush1.msra.mxu0 %v5070
  %5337 = vmatprep.subr.mxu0 %v5063
  %5338 = vmatpush1.msra.mxu0 %v5062
  %5339 = vmatprep.subr.mxu0 %v5055
  %5340 = vmatpush1.msra.mxu0 %v5054
  %5341 = vmatprep.subr.mxu0 %v5047
  %5342 = vmatpush1.msra.mxu0 %v5046
  %5343 = vmatprep.subr.mxu0 %v5039
  %5344 = vmatpush1.msra.mxu0 %v5038
  %5345 = vmatprep.subr.mxu0 %v5031
  %5346 = vmatpush1.msra.mxu0 %v5030
  %5347 = vmatprep.subr.mxu0 %v5023
  %5348 = vmatpush1.msra.mxu0 %v5022
  %5349 = vmatprep.subr.mxu0 %v5015
  %5350 = vmatpush1.msra.mxu0 %v5014
  %5351 = vmatprep.subr.mxu0 %v5007
  %5352 = vmatpush1.msra.mxu0 %v5006
  %5353 = vmatprep.subr.mxu0 %v4999
  %5354 = vmatpush1.msra.mxu0 %v4998
  %5355 = vmatprep.subr.mxu0 %v5247
  %5356 = vmatpush2.msra.mxu0 %v5246
  %5357 = vmatprep.subr.mxu0 %v5239
  %5358 = vmatpush2.msra.mxu0 %v5238
  %5359 = vmatprep.subr.mxu0 %v5231
  %5360 = vmatpush2.msra.mxu0 %v5230
  %5361 = vmatprep.subr.mxu0 %v5223
  %5362 = vmatpush2.msra.mxu0 %v5222
  %5363 = vmatprep.subr.mxu0 %v5215
  %5364 = vmatpush2.msra.mxu0 %v5214
  %5365 = vmatprep.subr.mxu0 %v5207
  %5366 = vmatpush2.msra.mxu0 %v5206
  %5367 = vmatprep.subr.mxu0 %v5199
  %5368 = vmatpush2.msra.mxu0 %v5198
  %5369 = vmatprep.subr.mxu0 %v5191
  %5370 = vmatpush2.msra.mxu0 %v5190
  %5371 = vmatprep.subr.mxu0 %v5183
  %5372 = vmatpush2.msra.mxu0 %v5182
  %5373 = vmatprep.subr.mxu0 %v5175
  %5374 = vmatpush2.msra.mxu0 %v5174
  %5375 = vmatprep.subr.mxu0 %v5167
  %5376 = vmatpush2.msra.mxu0 %v5166
  %5377 = vmatprep.subr.mxu0 %v5159
  %5378 = vmatpush2.msra.mxu0 %v5158
  %5379 = vmatprep.subr.mxu0 %v5151
  %5380 = vmatpush2.msra.mxu0 %v5150
  %5381 = vmatprep.subr.mxu0 %v5143
  %5382 = vmatpush2.msra.mxu0 %v5142
  %5383 = vmatprep.subr.mxu0 %v5135
  %5384 = vmatpush2.msra.mxu0 %v5134
  %5385 = vmatprep.subr.mxu0 %v5127
  %5386 = vmatpush2.msra.mxu0 %v5126
  %5387 = vmatprep.mubr.f32.mxu0 %v4995
  %5388 = vmatmul.mubr.f32.gmra.mxu0 %v4994
  %v5389 = vpop.f32.mrf.mxu0
  %v5390 = vadd.f32 0.0, %v5389
  %v5391 = vpop.f32.mrf.mxu0
  %v5392 = vadd.f32 0.0, %v5391
  %5393 = vdwg.mxu0
  %5394 = vmatprep.subr.mxu0 %v5121
  %5395 = vmatpush1.msra.mxu0 %v5120
  %5396 = vmatprep.subr.mxu0 %v5113
  %5397 = vmatpush1.msra.mxu0 %v5112
  %5398 = vmatprep.subr.mxu0 %v5105
  %5399 = vmatpush1.msra.mxu0 %v5104
  %5400 = vmatprep.subr.mxu0 %v5097
  %5401 = vmatpush1.msra.mxu0 %v5096
  %5402 = vmatprep.subr.mxu0 %v5089
  %5403 = vmatpush1.msra.mxu0 %v5088
  %5404 = vmatprep.subr.mxu0 %v5081
  %5405 = vmatpush1.msra.mxu0 %v5080
  %5406 = vmatprep.subr.mxu0 %v5073
  %5407 = vmatpush1.msra.mxu0 %v5072
  %5408 = vmatprep.subr.mxu0 %v5065
  %5409 = vmatpush1.msra.mxu0 %v5064
  %5410 = vmatprep.subr.mxu0 %v5057
  %5411 = vmatpush1.msra.mxu0 %v5056
  %5412 = vmatprep.subr.mxu0 %v5049
  %5413 = vmatpush1.msra.mxu0 %v5048
  %5414 = vmatprep.subr.mxu0 %v5041
  %5415 = vmatpush1.msra.mxu0 %v5040
  %5416 = vmatprep.subr.mxu0 %v5033
  %5417 = vmatpush1.msra.mxu0 %v5032
  %5418 = vmatprep.subr.mxu0 %v5025
  %5419 = vmatpush1.msra.mxu0 %v5024
  %5420 = vmatprep.subr.mxu0 %v5017
  %5421 = vmatpush1.msra.mxu0 %v5016
  %5422 = vmatprep.subr.mxu0 %v5009
  %5423 = vmatpush1.msra.mxu0 %v5008
  %5424 = vmatprep.subr.mxu0 %v5001
  %5425 = vmatpush1.msra.mxu0 %v5000
  %5426 = vmatprep.subr.mxu0 %v5249
  %5427 = vmatpush2.msra.mxu0 %v5248
  %5428 = vmatprep.subr.mxu0 %v5241
  %5429 = vmatpush2.msra.mxu0 %v5240
  %5430 = vmatprep.subr.mxu0 %v5233
  %5431 = vmatpush2.msra.mxu0 %v5232
  %5432 = vmatprep.subr.mxu0 %v5225
  %5433 = vmatpush2.msra.mxu0 %v5224
  %5434 = vmatprep.subr.mxu0 %v5217
  %5435 = vmatpush2.msra.mxu0 %v5216
  %5436 = vmatprep.subr.mxu0 %v5209
  %5437 = vmatpush2.msra.mxu0 %v5208
  %5438 = vmatprep.subr.mxu0 %v5201
  %5439 = vmatpush2.msra.mxu0 %v5200
  %5440 = vmatprep.subr.mxu0 %v5193
  %5441 = vmatpush2.msra.mxu0 %v5192
  %5442 = vmatprep.subr.mxu0 %v5185
  %5443 = vmatpush2.msra.mxu0 %v5184
  %5444 = vmatprep.subr.mxu0 %v5177
  %5445 = vmatpush2.msra.mxu0 %v5176
  %5446 = vmatprep.subr.mxu0 %v5169
  %5447 = vmatpush2.msra.mxu0 %v5168
  %5448 = vmatprep.subr.mxu0 %v5161
  %5449 = vmatpush2.msra.mxu0 %v5160
  %5450 = vmatprep.subr.mxu0 %v5153
  %5451 = vmatpush2.msra.mxu0 %v5152
  %5452 = vmatprep.subr.mxu0 %v5145
  %5453 = vmatpush2.msra.mxu0 %v5144
  %5454 = vmatprep.subr.mxu0 %v5137
  %5455 = vmatpush2.msra.mxu0 %v5136
  %5456 = vmatprep.subr.mxu0 %v5129
  %5457 = vmatpush2.msra.mxu0 %v5128
  %5458 = vmatprep.mubr.f32.mxu0 %v4995
  %5459 = vmatmul.mubr.f32.gmra.mxu0 %v4994
  %v5460 = vpop.f32.mrf.mxu0
  %v5461 = vadd.f32 0.0, %v5460
  %v5462 = vpop.f32.mrf.mxu0
  %v5463 = vadd.f32 0.0, %v5462
  %5464 = vdwg.mxu0
  %5465 = vmatprep.subr.mxu0 %v5123
  %5466 = vmatpush1.msra.mxu0 %v5122
  %5467 = vmatprep.subr.mxu0 %v5115
  %5468 = vmatpush1.msra.mxu0 %v5114
  %5469 = vmatprep.subr.mxu0 %v5107
  %5470 = vmatpush1.msra.mxu0 %v5106
  %5471 = vmatprep.subr.mxu0 %v5099
  %5472 = vmatpush1.msra.mxu0 %v5098
  %5473 = vmatprep.subr.mxu0 %v5091
  %5474 = vmatpush1.msra.mxu0 %v5090
  %5475 = vmatprep.subr.mxu0 %v5083
  %5476 = vmatpush1.msra.mxu0 %v5082
  %5477 = vmatprep.subr.mxu0 %v5075
  %5478 = vmatpush1.msra.mxu0 %v5074
  %5479 = vmatprep.subr.mxu0 %v5067
  %5480 = vmatpush1.msra.mxu0 %v5066
  %5481 = vmatprep.subr.mxu0 %v5059
  %5482 = vmatpush1.msra.mxu0 %v5058
  %5483 = vmatprep.subr.mxu0 %v5051
  %5484 = vmatpush1.msra.mxu0 %v5050
  %5485 = vmatprep.subr.mxu0 %v5043
  %5486 = vmatpush1.msra.mxu0 %v5042
  %5487 = vmatprep.subr.mxu0 %v5035
  %5488 = vmatpush1.msra.mxu0 %v5034
  %5489 = vmatprep.subr.mxu0 %v5027
  %5490 = vmatpush1.msra.mxu0 %v5026
  %5491 = vmatprep.subr.mxu0 %v5019
  %5492 = vmatpush1.msra.mxu0 %v5018
  %5493 = vmatprep.subr.mxu0 %v5011
  %5494 = vmatpush1.msra.mxu0 %v5010
  %5495 = vmatprep.subr.mxu0 %v5003
  %5496 = vmatpush1.msra.mxu0 %v5002
  %5497 = vmatprep.subr.mxu0 %v5251
  %5498 = vmatpush2.msra.mxu0 %v5250
  %5499 = vmatprep.subr.mxu0 %v5243
  %5500 = vmatpush2.msra.mxu0 %v5242
  %5501 = vmatprep.subr.mxu0 %v5235
  %5502 = vmatpush2.msra.mxu0 %v5234
  %5503 = vmatprep.subr.mxu0 %v5227
  %5504 = vmatpush2.msra.mxu0 %v5226
  %5505 = vmatprep.subr.mxu0 %v5219
  %5506 = vmatpush2.msra.mxu0 %v5218
  %5507 = vmatprep.subr.mxu0 %v5211
  %5508 = vmatpush2.msra.mxu0 %v5210
  %5509 = vmatprep.subr.mxu0 %v5203
  %5510 = vmatpush2.msra.mxu0 %v5202
  %5511 = vmatprep.subr.mxu0 %v5195
  %5512 = vmatpush2.msra.mxu0 %v5194
  %5513 = vmatprep.subr.mxu0 %v5187
  %5514 = vmatpush2.msra.mxu0 %v5186
  %5515 = vmatprep.subr.mxu0 %v5179
  %5516 = vmatpush2.msra.mxu0 %v5178
  %5517 = vmatprep.subr.mxu0 %v5171
  %5518 = vmatpush2.msra.mxu0 %v5170
  %5519 = vmatprep.subr.mxu0 %v5163
  %5520 = vmatpush2.msra.mxu0 %v5162
  %5521 = vmatprep.subr.mxu0 %v5155
  %5522 = vmatpush2.msra.mxu0 %v5154
  %5523 = vmatprep.subr.mxu0 %v5147
  %5524 = vmatpush2.msra.mxu0 %v5146
  %5525 = vmatprep.subr.mxu0 %v5139
  %5526 = vmatpush2.msra.mxu0 %v5138
  %5527 = vmatprep.subr.mxu0 %v5131
  %5528 = vmatpush2.msra.mxu0 %v5130
  %5529 = vmatprep.mubr.f32.mxu0 %v4995
  %5530 = vmatmul.mubr.f32.gmra.mxu0 %v4994
  %v5531 = vpop.f32.mrf.mxu0
  %v5532 = vadd.f32 0.0, %v5531
  %v5533 = vpop.f32.mrf.mxu0
  %v5534 = vadd.f32 0.0, %v5533
  %5535 = vdwg.mxu0
  %v5536 = vadd.f32 %v4986, %v5319
  %v5537 = vadd.f32 %v4987, %v5321
  %v5538 = vadd.f32 %v4988, %v5390
  %v5539 = vadd.f32 %v4989, %v5392
  %v5540 = vadd.f32 %v4990, %v5461
  %v5541 = vadd.f32 %v4991, %v5463
  %v5542 = vadd.f32 %v4992, %v5532
  %v5543 = vadd.f32 %v4993, %v5534
  %v5544 = vxor.u32 %v5536, 2147483648
  %v5545 = vxor.u32 %v5537, 2147483648
  %v5546 = vmul.f32 %v5544, 1.442695
  %v5547 = vpow.pop %v5546
  %v5548 = vmul.f32 %v5545, 1.442695
  %v5549 = vpow.pop %v5548
  %v5550 = vadd.f32 %v5547, 1.0
  %v5551 = vadd.f32 %v5549, 1.0
  %v5552 = vrcp.pop %v5550
  %v5553 = vmul.f32 1.0, %v5552
  %v5554 = vrcp.pop %v5551
  %v5555 = vmul.f32 1.0, %v5554
  %v5556 = vxor.u32 %v5538, 2147483648
  %v5557 = vxor.u32 %v5539, 2147483648
  %v5558 = vmul.f32 %v5556, 1.442695
  %v5559 = vpow.pop %v5558
  %v5560 = vmul.f32 %v5557, 1.442695
  %v5561 = vpow.pop %v5560
  %v5562 = vadd.f32 %v5559, 1.0
  %v5563 = vadd.f32 %v5561, 1.0
  %v5564 = vrcp.pop %v5562
  %v5565 = vmul.f32 1.0, %v5564
  %v5566 = vrcp.pop %v5563
  %v5567 = vmul.f32 1.0, %v5566
  %v5568 = vtanh.pop %v5540
  %v5569 = vtanh.pop %v5541
  %v5570 = vxor.u32 %v5542, 2147483648
  %v5571 = vxor.u32 %v5543, 2147483648
  %v5572 = vmul.f32 %v5570, 1.442695
  %v5573 = vpow.pop %v5572
  %v5574 = vmul.f32 %v5571, 1.442695
  %v5575 = vpow.pop %v5574
  %v5576 = vadd.f32 %v5573, 1.0
  %v5577 = vadd.f32 %v5575, 1.0
  %v5578 = vrcp.pop %v5576
  %v5579 = vmul.f32 1.0, %v5578
  %v5580 = vrcp.pop %v5577
  %v5581 = vmul.f32 1.0, %v5580
  %v5582 = vld [vmem:[%s5] sm:$0xff]
  %v5583 = vld [vmem:[%s5 + $0x8] sm:$0xff]
  %v5584 = vmul.f32 %v5565, %v5582
  %v5585 = vmul.f32 %v5567, %v5583
  %v5586 = vmul.f32 %v5553, %v5568
  %v5587 = vmul.f32 %v5555, %v5569
  %v5588 = vadd.f32 %v5584, %v5586
  %v5589 = vadd.f32 %v5585, %v5587
  %5590 = vst [vmem:[%s5] sm:$0xff] %v5588
  %5591 = vst [vmem:[%s5 + $0x8] sm:$0xff] %v5589
  %v5592 = vtanh.pop %v5588
  %v5593 = vtanh.pop %v5589
  %v5594 = vmul.f32 %v5579, %v5592
  %v5595 = vmul.f32 %v5581, %v5593
  %5596 = vst [vmem:[%s4] sm:$0xff] %v5594
  %5597 = vst [vmem:[%s4 + $0x8] sm:$0xff] %v5595
  // Predicated region
  $region18: #{encoder_forward.1} parent=0 // pred_check
    _
  $region19: #{encoder_forward.1} parent=0 // pred_check_branch
    %5599 = sbr.rel (0) target = $region21
  $region20: #{encoder_forward.1} parent=0 // pred_region
    _
  $region21: #{encoder_forward.1} parent=0 // pred_fallthru
    _
  // Predicated region
  $region22: #{encoder_forward.1} parent=0 // pred_check
    _
  $region23: #{encoder_forward.1} parent=0 // pred_check_branch
    %5601 = sbr.rel (0) target = $region25
  $region24: #{encoder_forward.1} parent=0 // pred_region
    _
  $region25: #{encoder_forward.1} parent=0 // pred_fallthru
    _
  // Predicated region
  $region26: #{encoder_forward.1} parent=0 // pred_check
    _
  $region27: #{encoder_forward.1} parent=0 // pred_check_branch
    %5603 = sbr.rel (0) target = $region29
  $region28: #{encoder_forward.1} parent=0 // pred_region
    _
  $region29: #{encoder_forward.1} parent=0 // pred_fallthru
    _
  // Predicated region
  $region30: #{encoder_forward.1} parent=0 // pred_check
    _
  $region31: #{encoder_forward.1} parent=0 // pred_check_branch
    %5605 = sbr.rel (0) target = $region33
  $region32: #{encoder_forward.1} parent=0 // pred_region
    _
  $region33: #{encoder_forward.1} parent=0 // pred_fallthru
    _

</llo_original>
